<compile_context>
chip_gen: v6e
topology: v6e:2x2x1
jax: 0.10.0
libtpu: 0.0.40
codegen_flags: <defaults>
</compile_context>

<pallas_src>
import math
import functools

import jax
import jax.numpy as jnp
from jax.experimental import pallas as pl
from jax.experimental.pallas import tpu as pltpu


# ----------------------------------------------------------------------------
# In-kernel helpers
# ----------------------------------------------------------------------------
def _ln(x, g, b, eps):
    """Row-wise LayerNorm of a (rows, feat) f32 tile; g, b are (1, feat)."""
    mean = jnp.mean(x, axis=-1, keepdims=True)
    var = jnp.mean(jnp.square(x - mean), axis=-1, keepdims=True)
    return (x - mean) * jax.lax.rsqrt(var + eps) * g + b


def _mha_ffn_core(x_ref, mask_ref, wq_ref, bq_ref, wk_ref, bk_ref, wv_ref, bv_ref,
                  wo_ref, bo_ref, ln1g_ref, ln1b_ref, w1_ref, b1_ref, w2_ref, b2_ref,
                  ln2g_ref, ln2b_ref, *, n_heads, d_head, eps):
    """Fused transformer encoder layer body (one batch element, all in VMEM)."""
    x = x_ref[0].astype(jnp.float32)            # (L, D)
    add_mask = mask_ref[0]                      # (1, L) additive f32 key-pad mask
    xb = x.astype(jnp.bfloat16)                 # bf16 MXU inputs, f32 accumulate
    scale = 1.0 / math.sqrt(d_head)

    # ---- multi-head self-attention: all heads inside one kernel ----
    attn = jnp.zeros_like(x)                    # (L, D) accumulated out-projection
    for h in range(n_heads):                    # static unrolled head loop
        # scale folded into q (L x Dh) instead of the (L x L) score matrix
        q = (jnp.dot(xb, wq_ref[h], preferred_element_type=jnp.float32)
             + bq_ref[h]) * scale
        k = jnp.dot(xb, wk_ref[h], preferred_element_type=jnp.float32) + bk_ref[h]
        v = jnp.dot(xb, wv_ref[h], preferred_element_type=jnp.float32) + bv_ref[h]
        # q @ k^T without materializing a transpose
        s = jax.lax.dot_general(q, k, (((1,), (1,)), ((), ())),
                                preferred_element_type=jnp.float32)       # (L, L)
        s = s + add_mask                        # mask addition in f32
        s = s - jnp.max(s, axis=-1, keepdims=True)
        p = jnp.exp(s)
        p = p * pl.reciprocal(jnp.sum(p, axis=-1, keepdims=True), approx=True)
        ctx = jnp.dot(p.astype(jnp.bfloat16), v.astype(jnp.bfloat16),
                      preferred_element_type=jnp.float32)                 # (L, Dh)
        # fold the output projection per head: ctx @ Wo = sum_h ctx_h @ Wo[h]
        attn = attn + jnp.dot(ctx.astype(jnp.bfloat16), wo_ref[h],
                              preferred_element_type=jnp.float32)         # (L, D)
    attn = attn + bo_ref[...]

    # ---- residual + LayerNorm 1 (fused, stays in VMEM) ----
    h1 = _ln(x + attn, ln1g_ref[...], ln1b_ref[...], eps)

    # ---- feed-forward (ReLU) ----
    ff = jnp.dot(h1.astype(jnp.bfloat16), w1_ref[...],
                 preferred_element_type=jnp.float32) + b1_ref[...]
    ff = jnp.maximum(ff, 0.0)
    ff = jnp.dot(ff.astype(jnp.bfloat16), w2_ref[...],
                 preferred_element_type=jnp.float32) + b2_ref[...]

    # ---- residual + LayerNorm 2 ----
    return _ln(h1 + ff, ln2g_ref[...], ln2b_ref[...], eps)


# ----------------------------------------------------------------------------
# Fused transformer layer kernels (one grid step = one batch element)
# ----------------------------------------------------------------------------
def _transformer_layer_kernel(x_ref, mask_ref,
                              wq_ref, bq_ref, wk_ref, bk_ref, wv_ref, bv_ref,
                              wo_ref, bo_ref, ln1g_ref, ln1b_ref,
                              w1_ref, b1_ref, w2_ref, b2_ref,
                              ln2g_ref, ln2b_ref, o_ref,
                              *, n_heads, d_head, eps):
    out = _mha_ffn_core(x_ref, mask_ref, wq_ref, bq_ref, wk_ref, bk_ref,
                        wv_ref, bv_ref, wo_ref, bo_ref, ln1g_ref, ln1b_ref,
                        w1_ref, b1_ref, w2_ref, b2_ref, ln2g_ref, ln2b_ref,
                        n_heads=n_heads, d_head=d_head, eps=eps)
    o_ref[0] = out.astype(o_ref.dtype)


def _transformer_layer_proj_kernel(x_ref, mask_ref,
                                   wq_ref, bq_ref, wk_ref, bk_ref, wv_ref, bv_ref,
                                   wo_ref, bo_ref, ln1g_ref, ln1b_ref,
                                   w1_ref, b1_ref, w2_ref, b2_ref,
                                   ln2g_ref, ln2b_ref, pw_ref, pb_ref, mel_ref,
                                   *, n_heads, d_head, eps):
    """Last decoder layer with the mel projection fused in (no HBM round trip
    of the final hidden state, one fewer kernel launch)."""
    out = _mha_ffn_core(x_ref, mask_ref, wq_ref, bq_ref, wk_ref, bk_ref,
                        wv_ref, bv_ref, wo_ref, bo_ref, ln1g_ref, ln1b_ref,
                        w1_ref, b1_ref, w2_ref, b2_ref, ln2g_ref, ln2b_ref,
                        n_heads=n_heads, d_head=d_head, eps=eps)
    mel = jnp.dot(out.astype(jnp.bfloat16), pw_ref[...],
                  preferred_element_type=jnp.float32) + pb_ref[...]
    mel_ref[0] = mel.astype(mel_ref.dtype)


def transformer_layer(x, add_mask, p, n_heads, eps=1e-5, proj=None):
    """x: (B, L, D) f32, add_mask: (B, 1, L) additive f32.
    Returns (B, L, D) hidden states, or -- if `proj=(W, b)` is given -- the
    fused mel projection (B, L, n_mel) of this layer's output."""
    B, L, D = x.shape
    H = n_heads
    Dh = D // H
    FF = p["w1"].shape[1]

    # Per-head weight layout (leading head axis -> only leading-dim indexing
    # inside the kernel; no lane slicing / lane concat needed).
    wq = p["wq"].reshape(D, H, Dh).transpose(1, 0, 2).astype(jnp.bfloat16)   # (H,D,Dh)
    wk = p["wk"].reshape(D, H, Dh).transpose(1, 0, 2).astype(jnp.bfloat16)
    wv = p["wv"].reshape(D, H, Dh).transpose(1, 0, 2).astype(jnp.bfloat16)
    bq = p["bq"].reshape(H, 1, Dh)
    bk = p["bk"].reshape(H, 1, Dh)
    bv = p["bv"].reshape(H, 1, Dh)
    wo = p["wo"].reshape(H, Dh, D).astype(jnp.bfloat16)                      # (H,Dh,D)

    full2 = lambda b: (0, 0)
    full3 = lambda b: (0, 0, 0)

    in_specs = [
        pl.BlockSpec((1, L, D), lambda b: (b, 0, 0)),   # x
        pl.BlockSpec((1, 1, L), lambda b: (b, 0, 0)),   # additive key-pad mask
        pl.BlockSpec((H, D, Dh), full3),                # wq
        pl.BlockSpec((H, 1, Dh), full3),                # bq
        pl.BlockSpec((H, D, Dh), full3),                # wk
        pl.BlockSpec((H, 1, Dh), full3),                # bk
        pl.BlockSpec((H, D, Dh), full3),                # wv
        pl.BlockSpec((H, 1, Dh), full3),                # bv
        pl.BlockSpec((H, Dh, D), full3),                # wo
        pl.BlockSpec((1, D), full2),                    # bo
        pl.BlockSpec((1, D), full2),                    # ln1_g
        pl.BlockSpec((1, D), full2),                    # ln1_b
        pl.BlockSpec((D, FF), full2),                   # w1
        pl.BlockSpec((1, FF), full2),                   # b1
        pl.BlockSpec((FF, D), full2),                   # w2
        pl.BlockSpec((1, D), full2),                    # b2
        pl.BlockSpec((1, D), full2),                    # ln2_g
        pl.BlockSpec((1, D), full2),                    # ln2_b
    ]
    operands = [
        x.astype(jnp.float32), add_mask.astype(jnp.float32),
        wq, bq, wk, bk, wv, bv, wo,
        p["bo"].reshape(1, D),
        p["ln1_g"].reshape(1, D), p["ln1_b"].reshape(1, D),
        p["w1"].astype(jnp.bfloat16), p["b1"].reshape(1, FF),
        p["w2"].astype(jnp.bfloat16), p["b2"].reshape(1, D),
        p["ln2_g"].reshape(1, D), p["ln2_b"].reshape(1, D),
    ]

    if proj is None:
        kernel = functools.partial(_transformer_layer_kernel,
                                   n_heads=H, d_head=Dh, eps=eps)
        out_specs = pl.BlockSpec((1, L, D), lambda b: (b, 0, 0))
        out_shape = jax.ShapeDtypeStruct((B, L, D), jnp.float32)
    else:
        pw, pb = proj
        N = pw.shape[1]
        kernel = functools.partial(_transformer_layer_proj_kernel,
                                   n_heads=H, d_head=Dh, eps=eps)
        in_specs = in_specs + [pl.BlockSpec((D, N), full2),
                               pl.BlockSpec((1, N), full2)]
        operands = operands + [pw.astype(jnp.bfloat16),
                               pb.reshape(1, N).astype(jnp.float32)]
        out_specs = pl.BlockSpec((1, L, N), lambda b: (b, 0, 0))
        out_shape = jax.ShapeDtypeStruct((B, L, N), jnp.float32)

    return pl.pallas_call(
        kernel,
        grid=(B,),
        in_specs=in_specs,
        out_specs=out_specs,
        out_shape=out_shape,
        compiler_params=pltpu.CompilerParams(dimension_semantics=("parallel",)),
    )(*operands)


# ----------------------------------------------------------------------------
# Fused duration predictor kernel (conv3+ReLU+LN, conv3+ReLU+LN, linear)
# ----------------------------------------------------------------------------
def _duration_kernel(h_ref, w1p_ref, w1c_ref, w1n_ref, b1_ref, ln1g_ref, ln1b_ref,
                     w2p_ref, w2c_ref, w2n_ref, b2_ref, ln2g_ref, ln2b_ref,
                     lw_ref, lb_ref, o_ref, *, eps):
    x = h_ref[0].astype(jnp.float32)            # (L, D) channels-last
    L = x.shape[0]

    # k=3 / padding=1 conv taps via sublane rotations (XLU) + edge-row masks --
    # no LxL shift-matrix matmuls, no im2col buffer.
    row = jax.lax.broadcasted_iota(jnp.int32, (L, 1), 0)
    first = row == 0
    last = row == L - 1

    def conv3(inp, wp_ref, wc_ref, wn_ref, b_ref):
        prev = jnp.where(first, 0.0, pltpu.roll(inp, 1, 0))       # prev[t] = inp[t-1]
        nxt = jnp.where(last, 0.0, pltpu.roll(inp, L - 1, 0))     # nxt[t]  = inp[t+1]
        return (jnp.dot(prev.astype(jnp.bfloat16), wp_ref[...],
                        preferred_element_type=jnp.float32)
                + jnp.dot(inp.astype(jnp.bfloat16), wc_ref[...],
                          preferred_element_type=jnp.float32)
                + jnp.dot(nxt.astype(jnp.bfloat16), wn_ref[...],
                          preferred_element_type=jnp.float32)
                + b_ref[...])

    h1 = jnp.maximum(conv3(x, w1p_ref, w1c_ref, w1n_ref, b1_ref), 0.0)
    h1 = _ln(h1, ln1g_ref[...], ln1b_ref[...], eps)
    h2 = jnp.maximum(conv3(h1, w2p_ref, w2c_ref, w2n_ref, b2_ref), 0.0)
    h2 = _ln(h2, ln2g_ref[...], ln2b_ref[...], eps)
    out = jnp.dot(h2, lw_ref[...], preferred_element_type=jnp.float32) + lb_ref[...]
    o_ref[0] = out.astype(o_ref.dtype)          # (L, 1)


def duration_predictor(h, p, eps=1e-5):
    """h: (B, L, D) encoder hidden states.  Returns (B, L)."""
    B, L, D = h.shape
    DUR = p["w1c"].shape[1]
    full2 = lambda b: (0, 0)
    out = pl.pallas_call(
        functools.partial(_duration_kernel, eps=eps),
        grid=(B,),
        in_specs=[
            pl.BlockSpec((1, L, D), lambda b: (b, 0, 0)),
            pl.BlockSpec((D, DUR), full2),      # conv1 tap t-1
            pl.BlockSpec((D, DUR), full2),      # conv1 tap t
            pl.BlockSpec((D, DUR), full2),      # conv1 tap t+1
            pl.BlockSpec((1, DUR), full2),      # conv1 bias
            pl.BlockSpec((1, DUR), full2),      # ln1 gamma
            pl.BlockSpec((1, DUR), full2),      # ln1 beta
            pl.BlockSpec((DUR, DUR), full2),    # conv2 tap t-1
            pl.BlockSpec((DUR, DUR), full2),    # conv2 tap t
            pl.BlockSpec((DUR, DUR), full2),    # conv2 tap t+1
            pl.BlockSpec((1, DUR), full2),      # conv2 bias
            pl.BlockSpec((1, DUR), full2),      # ln2 gamma
            pl.BlockSpec((1, DUR), full2),      # ln2 beta
            pl.BlockSpec((DUR, 1), full2),      # final linear weight
            pl.BlockSpec((1, 1), full2),        # final linear bias
        ],
        out_specs=pl.BlockSpec((1, L, 1), lambda b: (b, 0, 0)),
        out_shape=jax.ShapeDtypeStruct((B, L, 1), jnp.float32),
        compiler_params=pltpu.CompilerParams(dimension_semantics=("parallel",)),
    )(h.astype(jnp.float32),
      p["w1p"].astype(jnp.bfloat16), p["w1c"].astype(jnp.bfloat16),
      p["w1n"].astype(jnp.bfloat16), p["b1"].reshape(1, DUR),
      p["ln1_g"].reshape(1, DUR), p["ln1_b"].reshape(1, DUR),
      p["w2p"].astype(jnp.bfloat16), p["w2c"].astype(jnp.bfloat16),
      p["w2n"].astype(jnp.bfloat16), p["b2"].reshape(1, DUR),
      p["ln2_g"].reshape(1, DUR), p["ln2_b"].reshape(1, DUR),
      p["lin_w"], p["lin_b"].reshape(1, 1))
    return out[..., 0]


# ----------------------------------------------------------------------------
# Standalone mel projection kernel (fallback when there is no decoder layer to
# fuse it into)
# ----------------------------------------------------------------------------
def _projection_kernel(x_ref, w_ref, b_ref, o_ref):
    x = x_ref[0].astype(jnp.bfloat16)
    y = jnp.dot(x, w_ref[...], preferred_element_type=jnp.float32) + b_ref[...]
    o_ref[0] = y.astype(o_ref.dtype)


def mel_projection(h, w, b):
    """h: (B, T, D) -> (B, T, n_mel)."""
    B, T, D = h.shape
    N = w.shape[1]
    return pl.pallas_call(
        _projection_kernel,
        grid=(B,),
        in_specs=[
            pl.BlockSpec((1, T, D), lambda b: (b, 0, 0)),
            pl.BlockSpec((D, N), lambda b: (0, 0)),
            pl.BlockSpec((1, N), lambda b: (0, 0)),
        ],
        out_specs=pl.BlockSpec((1, T, N), lambda b: (b, 0, 0)),
        out_shape=jax.ShapeDtypeStruct((B, T, N), jnp.float32),
        compiler_params=pltpu.CompilerParams(dimension_semantics=("parallel",)),
    )(h.astype(jnp.float32), w.astype(jnp.bfloat16),
      b.reshape(1, N).astype(jnp.float32))


# ----------------------------------------------------------------------------
# Non-kernel model pieces (gathers / data-dependent indexing stay in XLA)
# ----------------------------------------------------------------------------
def positional_encoding(max_len, d_model):
    pos = jnp.arange(max_len, dtype=jnp.float32)[:, None]
    div = jnp.exp(jnp.arange(0, d_model, 2, dtype=jnp.float32)
                  * (-math.log(10000.0) / d_model))
    pe = jnp.zeros((max_len, d_model), dtype=jnp.float32)
    pe = pe.at[:, 0::2].set(jnp.sin(pos * div))
    pe = pe.at[:, 1::2].set(jnp.cos(pos * div))
    return pe


def get_mask_from_lengths(lengths, max_len):
    """True where padding (pos >= length)."""
    ids = jnp.arange(max_len)
    return ids[None, :] >= lengths[:, None]


def align2duration(alignments, mel_mask):
    B, T, L = alignments.shape
    max_ids = jnp.argmax(alignments, axis=2)                   # (B, T)
    one_hot = (jnp.arange(L)[None, None, :] == max_ids[:, :, None]).astype(jnp.float32)
    one_hot = jnp.where(mel_mask[:, :, None], 0.0, one_hot)
    return jnp.sum(one_hot, axis=1)                            # (B, L)


def length_regulate(hidden_bld, durations, T):
    """Static-T length regulator (T = max mel length; exact on forward path).
    Positions beyond the cumulative duration of each example are zero, matching
    the reference `new_zeros` expansion."""
    B, L, D = hidden_bld.shape
    d = jnp.round(durations).astype(jnp.int32)                 # (B, L)
    cum = jnp.cumsum(d, axis=1)                                # (B, L)
    t = jnp.arange(T)
    idx = jnp.sum((cum[:, None, :] <= t[None, :, None]).astype(jnp.int32), axis=2)
    idx = jnp.clip(idx, 0, L - 1)                              # (B, T)
    valid = t[None, :] < cum[:, -1:]                           # (B, T)
    gathered = jnp.take_along_axis(hidden_bld, idx[:, :, None], axis=1)
    return jnp.where(valid[:, :, None], gathered, 0.0)         # (B, T, D)


def model_outputs(params, hp, text, alignments, text_lengths, mel_lengths):
    B, L = text.shape
    T = alignments.shape[1]
    H = hp["n_heads"]

    # Embedding gather + scaled positional encoding (batch-first, no transposes).
    emb = params["embedding"][text]                            # (B, L, D)
    h = emb + params["alpha1"] * params["pe"][:L][None, :, :]

    text_mask = get_mask_from_lengths(text_lengths, L)         # True = pad
    mel_mask = get_mask_from_lengths(mel_lengths, T)
    text_add = jnp.where(text_mask, -1e9, 0.0).astype(jnp.float32)[:, None, :]
    mel_add = jnp.where(mel_mask, -1e9, 0.0).astype(jnp.float32)[:, None, :]

    for p in params["encoder"]:
        h = transformer_layer(h, text_add, p, H)               # (B, L, D)

    durations = align2duration(alignments, mel_mask)           # (B, L)
    h_exp = length_regulate(h, durations, T)                   # (B, T, D)
    h_exp = h_exp + params["alpha2"] * params["pe"][:T][None, :, :]

    dec_layers = params["decoder"]
    if dec_layers:
        for p in dec_layers[:-1]:
            h_exp = transformer_layer(h_exp, mel_add, p, H)    # (B, T, D)
        # last decoder layer with the mel projection fused in -> (B, T, n_mel)
        mel_btn = transformer_layer(h_exp, mel_add, dec_layers[-1], H,
                                    proj=(params["proj_w"], params["proj_b"]))
    else:
        mel_btn = mel_projection(h_exp, params["proj_w"], params["proj_b"])
    mel_out = jnp.transpose(mel_btn, (0, 2, 1))                # (B, n_mel, T)

    duration_out = duration_predictor(h, params["duration"])   # (B, L)
    return mel_out, duration_out, durations


def model_forward(params, hp, text, melspec, alignments,
                  text_lengths, mel_lengths, criterion):
    # Static padded shapes + length masks (no host-sync `.item()` cropping,
    # no per-(Lmax,Tmax) recompiles).  In the driver max(lengths) == padded dim,
    # so this matches the reference cropping exactly.
    mel_out, duration_out, durations = model_outputs(
        params, hp, text, alignments, text_lengths, mel_lengths)
    mel_loss, duration_loss = criterion(
        (mel_out, duration_out), (melspec, durations), (text_lengths, mel_lengths))
    return mel_loss, duration_loss


# ----------------------------------------------------------------------------
# Deterministic parameter init
# ----------------------------------------------------------------------------
def init_params(hp, key):
    D = hp["hidden_dim"]
    FF = hp["ff_dim"]
    DUR = hp["duration_dim"]

    def nrm(k, shape, scale=0.02):
        return scale * jax.random.normal(k, shape, dtype=jnp.float32)

    keys = list(jax.random.split(key, 64))
    ki = iter(keys)

    def enc_layer_params():
        return dict(
            wq=nrm(next(ki), (D, D)), bq=jnp.zeros((D,), jnp.float32),
            wk=nrm(next(ki), (D, D)), bk=jnp.zeros((D,), jnp.float32),
            wv=nrm(next(ki), (D, D)), bv=jnp.zeros((D,), jnp.float32),
            wo=nrm(next(ki), (D, D)), bo=jnp.zeros((D,), jnp.float32),
            w1=nrm(next(ki), (D, FF)), b1=jnp.zeros((FF,), jnp.float32),
            w2=nrm(next(ki), (FF, D)), b2=jnp.zeros((D,), jnp.float32),
            ln1_g=jnp.ones((D,), jnp.float32), ln1_b=jnp.zeros((D,), jnp.float32),
            ln2_g=jnp.ones((D,), jnp.float32), ln2_b=jnp.zeros((D,), jnp.float32),
        )

    params = dict(
        embedding=nrm(next(ki), (hp["n_symbols"], hp["symbols_embedding_dim"])),
        alpha1=jnp.ones((1,), jnp.float32),
        alpha2=jnp.ones((1,), jnp.float32),
        pe=positional_encoding(256, D),
        encoder=[enc_layer_params() for _ in range(hp["n_layers"])],
        decoder=[enc_layer_params() for _ in range(hp["n_layers"])],
        duration=dict(
            # k=3 conv expressed as three (Cin, Cout) taps: t-1, t, t+1
            w1p=nrm(next(ki), (D, DUR)), w1c=nrm(next(ki), (D, DUR)),
            w1n=nrm(next(ki), (D, DUR)), b1=jnp.zeros((DUR,), jnp.float32),
            ln1_g=jnp.ones((DUR,), jnp.float32), ln1_b=jnp.zeros((DUR,), jnp.float32),
            w2p=nrm(next(ki), (DUR, DUR)), w2c=nrm(next(ki), (DUR, DUR)),
            w2n=nrm(next(ki), (DUR, DUR)), b2=jnp.zeros((DUR,), jnp.float32),
            ln2_g=jnp.ones((DUR,), jnp.float32), ln2_b=jnp.zeros((DUR,), jnp.float32),
            lin_w=nrm(next(ki), (DUR, 1)), lin_b=jnp.zeros((1,), jnp.float32),
        ),
        proj_w=nrm(next(ki), (D, hp["n_mel_channels"])),
        proj_b=jnp.zeros((hp["n_mel_channels"],), jnp.float32),
    )
    return params


# TODO(synk): the training `criterion` is an external module in the reference;
#             a simple masked-MSE criterion is supplied here for the driver.
def simple_criterion(outputs, targets, lengths):
    (mel_out, duration_out) = outputs
    (melspec, durations) = targets
    (text_lengths, mel_lengths) = lengths
    B, n_mel, T = mel_out.shape
    L = duration_out.shape[1]
    mel_valid = (~get_mask_from_lengths(mel_lengths, T)).astype(jnp.float32)
    text_valid = (~get_mask_from_lengths(text_lengths, L)).astype(jnp.float32)
    mel_loss = jnp.sum(jnp.square(mel_out - melspec) * mel_valid[:, None, :]) \
        / (jnp.sum(mel_valid) * n_mel)
    duration_loss = jnp.sum(jnp.square(duration_out - durations) * text_valid) \
        / jnp.sum(text_valid)
    return mel_loss, duration_loss


# ----------------------------------------------------------------------------
# Driver
# ----------------------------------------------------------------------------
if __name__ == "__main__":
    hp = dict(
        n_symbols=40,
        symbols_embedding_dim=32,
        hidden_dim=32,
        n_heads=2,
        ff_dim=64,
        n_layers=2,
        duration_dim=16,
        n_mel_channels=20,
    )

    key = jax.random.PRNGKey(0)
    kp, kt, km, ka = jax.random.split(key, 4)

    B, L, T = 2, 8, 16
    params = init_params(hp, kp)

    text = jax.random.randint(kt, (B, L), 0, hp["n_symbols"], dtype=jnp.int32)
    text_lengths = jnp.array([8, 6], dtype=jnp.int32)
    mel_lengths = jnp.array([16, 12], dtype=jnp.int32)
    melspec = jax.random.normal(km, (B, hp["n_mel_channels"], T), dtype=jnp.float32)
    alignments = jax.random.uniform(ka, (B, T, L), dtype=jnp.float32)

    @jax.jit
    def fwd(params, text, melspec, alignments, text_lengths, mel_lengths):
        return model_forward(params, hp, text, melspec, alignments,
                             text_lengths, mel_lengths, simple_criterion)

    mel_loss, duration_loss = fwd(params, text, melspec, alignments,
                                  text_lengths, mel_lengths)
    jax.block_until_ready((mel_loss, duration_loss))
    print("KERNEL_OK")
</pallas_src>

<mosaic_0001>
module attributes {stable_mosaic.version = 11 : i64} {
  func.func @_duration_kernel(%arg0: i32, %arg1: memref<1x8x32xf32, #tpu.memory_space<vmem>>, %arg2: memref<32x16xbf16, #tpu.memory_space<vmem>>, %arg3: memref<32x16xbf16, #tpu.memory_space<vmem>>, %arg4: memref<32x16xbf16, #tpu.memory_space<vmem>>, %arg5: memref<1x16xf32, #tpu.memory_space<vmem>>, %arg6: memref<1x16xf32, #tpu.memory_space<vmem>>, %arg7: memref<1x16xf32, #tpu.memory_space<vmem>>, %arg8: memref<16x16xbf16, #tpu.memory_space<vmem>>, %arg9: memref<16x16xbf16, #tpu.memory_space<vmem>>, %arg10: memref<16x16xbf16, #tpu.memory_space<vmem>>, %arg11: memref<1x16xf32, #tpu.memory_space<vmem>>, %arg12: memref<1x16xf32, #tpu.memory_space<vmem>>, %arg13: memref<1x16xf32, #tpu.memory_space<vmem>>, %arg14: memref<16x1xf32, #tpu.memory_space<vmem>>, %arg15: memref<1x1xf32, #tpu.memory_space<vmem>>, %arg16: memref<1x8x1xf32, #tpu.memory_space<vmem>>) attributes {dimension_semantics = [#tpu.dimension_semantics<parallel>], iteration_bounds = array<i64: 2>, scalar_prefetch = 0 : i64, scratch_operands = 0 : i64, tpu.core_type = #tpu.core_type<tc>, window_params = [{transform_indices = @transform_0, window_bounds = array<i64: 1, 8, 32>}, {pipeline_mode = #tpu.pipeline_mode<synchronous>, transform_indices = @transform_1, window_bounds = array<i64: 32, 16>}, {pipeline_mode = #tpu.pipeline_mode<synchronous>, transform_indices = @transform_2, window_bounds = array<i64: 32, 16>}, {pipeline_mode = #tpu.pipeline_mode<synchronous>, transform_indices = @transform_3, window_bounds = array<i64: 32, 16>}, {pipeline_mode = #tpu.pipeline_mode<synchronous>, transform_indices = @transform_4, window_bounds = array<i64: 1, 16>}, {pipeline_mode = #tpu.pipeline_mode<synchronous>, transform_indices = @transform_5, window_bounds = array<i64: 1, 16>}, {pipeline_mode = #tpu.pipeline_mode<synchronous>, transform_indices = @transform_6, window_bounds = array<i64: 1, 16>}, {pipeline_mode = #tpu.pipeline_mode<synchronous>, transform_indices = @transform_7, window_bounds = array<i64: 16, 16>}, {pipeline_mode = #tpu.pipeline_mode<synchronous>, transform_indices = @transform_8, window_bounds = array<i64: 16, 16>}, {pipeline_mode = #tpu.pipeline_mode<synchronous>, transform_indices = @transform_9, window_bounds = array<i64: 16, 16>}, {pipeline_mode = #tpu.pipeline_mode<synchronous>, transform_indices = @transform_10, window_bounds = array<i64: 1, 16>}, {pipeline_mode = #tpu.pipeline_mode<synchronous>, transform_indices = @transform_11, window_bounds = array<i64: 1, 16>}, {pipeline_mode = #tpu.pipeline_mode<synchronous>, transform_indices = @transform_12, window_bounds = array<i64: 1, 16>}, {pipeline_mode = #tpu.pipeline_mode<synchronous>, transform_indices = @transform_13, window_bounds = array<i64: 16, 1>}, {pipeline_mode = #tpu.pipeline_mode<synchronous>, transform_indices = @transform_14, window_bounds = array<i64: 1, 1>}, {transform_indices = @transform_15, window_bounds = array<i64: 1, 8, 1>}]} {
    %c0 = arith.constant 0 : index
    %c0_0 = arith.constant 0 : index
    %c0_1 = arith.constant 0 : index
    %0 = vector.load %arg1[%c0, %c0_0, %c0_1] : memref<1x8x32xf32, #tpu.memory_space<vmem>>, vector<1x8x32xf32>
    %1 = vector.shape_cast %0 : vector<1x8x32xf32> to vector<8x32xf32>
    %2 = tpu.iota {dimensions = array<i32: 0>} : vector<8x1xi32>
    %c0_i32 = arith.constant 0 : i32
    %3 = vector.broadcast %c0_i32 : i32 to vector<8x1xi32>
    %4 = arith.cmpi eq, %2, %3 : vector<8x1xi32>
    %c7_i32 = arith.constant 7 : i32
    %5 = vector.broadcast %c7_i32 : i32 to vector<8x1xi32>
    %6 = arith.cmpi eq, %2, %5 : vector<8x1xi32>
    %c1_i32 = arith.constant 1 : i32
    %7 = tpu.dynamic_rotate %1 by %c1_i32 dim 0 : vector<8x32xf32>, i32 -> vector<8x32xf32>
    %cst = arith.constant 0.000000e+00 : f32
    %8 = vector.shape_cast %4 : vector<8x1xi1> to vector<8x1xi1>
    %9 = vector.broadcast %8 : vector<8x1xi1> to vector<8x32xi1>
    %10 = vector.broadcast %cst : f32 to vector<8x32xf32>
    %11 = arith.select %9, %10, %7 : vector<8x32xi1>, vector<8x32xf32>
    %c7_i32_2 = arith.constant 7 : i32
    %12 = tpu.dynamic_rotate %1 by %c7_i32_2 dim 0 : vector<8x32xf32>, i32 -> vector<8x32xf32>
    %cst_3 = arith.constant 0.000000e+00 : f32
    %13 = vector.shape_cast %6 : vector<8x1xi1> to vector<8x1xi1>
    %14 = vector.broadcast %13 : vector<8x1xi1> to vector<8x32xi1>
    %15 = vector.broadcast %cst_3 : f32 to vector<8x32xf32>
    %16 = arith.select %14, %15, %12 : vector<8x32xi1>, vector<8x32xf32>
    %17 = arith.truncf %11 : vector<8x32xf32> to vector<8x32xbf16>
    %c0_4 = arith.constant 0 : index
    %c0_5 = arith.constant 0 : index
    %18 = vector.load %arg2[%c0_4, %c0_5] : memref<32x16xbf16, #tpu.memory_space<vmem>>, vector<32x16xbf16>
    %cst_6 = arith.constant dense<0.000000e+00> : vector<8x16xf32>
    %19 = tpu.matmul %17, %18, %cst_6 {dimension_numbers = #tpu.dot_dimension_numbers<[1], [0], [0], [1], [0, 0, 1, 1], [], []>} : vector<8x32xbf16>, vector<32x16xbf16>, vector<8x16xf32> -> vector<8x16xf32>
    %20 = arith.truncf %1 : vector<8x32xf32> to vector<8x32xbf16>
    %c0_7 = arith.constant 0 : index
    %c0_8 = arith.constant 0 : index
    %21 = vector.load %arg3[%c0_7, %c0_8] : memref<32x16xbf16, #tpu.memory_space<vmem>>, vector<32x16xbf16>
    %cst_9 = arith.constant dense<0.000000e+00> : vector<8x16xf32>
    %22 = tpu.matmul %20, %21, %cst_9 {dimension_numbers = #tpu.dot_dimension_numbers<[1], [0], [0], [1], [0, 0, 1, 1], [], []>} : vector<8x32xbf16>, vector<32x16xbf16>, vector<8x16xf32> -> vector<8x16xf32>
    %23 = arith.addf %19, %22 : vector<8x16xf32>
    %24 = arith.truncf %16 : vector<8x32xf32> to vector<8x32xbf16>
    %c0_10 = arith.constant 0 : index
    %c0_11 = arith.constant 0 : index
    %25 = vector.load %arg4[%c0_10, %c0_11] : memref<32x16xbf16, #tpu.memory_space<vmem>>, vector<32x16xbf16>
    %cst_12 = arith.constant dense<0.000000e+00> : vector<8x16xf32>
    %26 = tpu.matmul %24, %25, %cst_12 {dimension_numbers = #tpu.dot_dimension_numbers<[1], [0], [0], [1], [0, 0, 1, 1], [], []>} : vector<8x32xbf16>, vector<32x16xbf16>, vector<8x16xf32> -> vector<8x16xf32>
    %27 = arith.addf %23, %26 : vector<8x16xf32>
    %c0_13 = arith.constant 0 : index
    %c0_14 = arith.constant 0 : index
    %28 = vector.load %arg5[%c0_13, %c0_14] : memref<1x16xf32, #tpu.memory_space<vmem>>, vector<1x16xf32>
    %29 = vector.broadcast %28 : vector<1x16xf32> to vector<8x16xf32>
    %30 = arith.addf %27, %29 : vector<8x16xf32>
    %cst_15 = arith.constant 0.000000e+00 : f32
    %31 = vector.broadcast %cst_15 : f32 to vector<8x16xf32>
    %32 = arith.maximumf %30, %31 : vector<8x16xf32>
    %c0_16 = arith.constant 0 : index
    %c0_17 = arith.constant 0 : index
    %33 = vector.load %arg6[%c0_16, %c0_17] : memref<1x16xf32, #tpu.memory_space<vmem>>, vector<1x16xf32>
    %c0_18 = arith.constant 0 : index
    %c0_19 = arith.constant 0 : index
    %34 = vector.load %arg7[%c0_18, %c0_19] : memref<1x16xf32, #tpu.memory_space<vmem>>, vector<1x16xf32>
    %cst_20 = arith.constant dense<0.000000e+00> : vector<8xf32>
    %35 = vector.multi_reduction <add>, %32, %cst_20 [1] : vector<8x16xf32> to vector<8xf32>
    %36 = vector.shape_cast %35 : vector<8xf32> to vector<8x1xf32>
    %cst_21 = arith.constant 1.600000e+01 : f32
    %37 = vector.broadcast %cst_21 : f32 to vector<8x1xf32>
    %38 = arith.divf %36, %37 : vector<8x1xf32>
    %39 = vector.broadcast %38 : vector<8x1xf32> to vector<8x16xf32>
    %40 = arith.subf %32, %39 : vector<8x16xf32>
    %41 = arith.mulf %40, %40 : vector<8x16xf32>
    %cst_22 = arith.constant dense<0.000000e+00> : vector<8xf32>
    %42 = vector.multi_reduction <add>, %41, %cst_22 [1] : vector<8x16xf32> to vector<8xf32>
    %43 = vector.shape_cast %42 : vector<8xf32> to vector<8x1xf32>
    %cst_23 = arith.constant 1.600000e+01 : f32
    %44 = vector.broadcast %cst_23 : f32 to vector<8x1xf32>
    %45 = arith.divf %43, %44 : vector<8x1xf32>
    %46 = vector.broadcast %38 : vector<8x1xf32> to vector<8x16xf32>
    %47 = arith.subf %32, %46 : vector<8x16xf32>
    %cst_24 = arith.constant 9.99999974E-6 : f32
    %48 = vector.broadcast %cst_24 : f32 to vector<8x1xf32>
    %49 = arith.addf %45, %48 : vector<8x1xf32>
    %50 = math.rsqrt %49 : vector<8x1xf32>
    %51 = vector.broadcast %50 : vector<8x1xf32> to vector<8x16xf32>
    %52 = arith.mulf %47, %51 : vector<8x16xf32>
    %53 = vector.broadcast %33 : vector<1x16xf32> to vector<8x16xf32>
    %54 = arith.mulf %52, %53 : vector<8x16xf32>
    %55 = vector.broadcast %34 : vector<1x16xf32> to vector<8x16xf32>
    %56 = arith.addf %54, %55 : vector<8x16xf32>
    %c1_i32_25 = arith.constant 1 : i32
    %57 = tpu.dynamic_rotate %56 by %c1_i32_25 dim 0 : vector<8x16xf32>, i32 -> vector<8x16xf32>
    %cst_26 = arith.constant 0.000000e+00 : f32
    %58 = vector.shape_cast %4 : vector<8x1xi1> to vector<8x1xi1>
    %59 = vector.broadcast %58 : vector<8x1xi1> to vector<8x16xi1>
    %60 = vector.broadcast %cst_26 : f32 to vector<8x16xf32>
    %61 = arith.select %59, %60, %57 : vector<8x16xi1>, vector<8x16xf32>
    %c7_i32_27 = arith.constant 7 : i32
    %62 = tpu.dynamic_rotate %56 by %c7_i32_27 dim 0 : vector<8x16xf32>, i32 -> vector<8x16xf32>
    %cst_28 = arith.constant 0.000000e+00 : f32
    %63 = vector.shape_cast %6 : vector<8x1xi1> to vector<8x1xi1>
    %64 = vector.broadcast %63 : vector<8x1xi1> to vector<8x16xi1>
    %65 = vector.broadcast %cst_28 : f32 to vector<8x16xf32>
    %66 = arith.select %64, %65, %62 : vector<8x16xi1>, vector<8x16xf32>
    %67 = arith.truncf %61 : vector<8x16xf32> to vector<8x16xbf16>
    %c0_29 = arith.constant 0 : index
    %c0_30 = arith.constant 0 : index
    %68 = vector.load %arg8[%c0_29, %c0_30] : memref<16x16xbf16, #tpu.memory_space<vmem>>, vector<16x16xbf16>
    %cst_31 = arith.constant dense<0.000000e+00> : vector<8x16xf32>
    %69 = tpu.matmul %67, %68, %cst_31 {dimension_numbers = #tpu.dot_dimension_numbers<[1], [0], [0], [1], [0, 0, 1, 1], [], []>} : vector<8x16xbf16>, vector<16x16xbf16>, vector<8x16xf32> -> vector<8x16xf32>
    %70 = arith.truncf %56 : vector<8x16xf32> to vector<8x16xbf16>
    %c0_32 = arith.constant 0 : index
    %c0_33 = arith.constant 0 : index
    %71 = vector.load %arg9[%c0_32, %c0_33] : memref<16x16xbf16, #tpu.memory_space<vmem>>, vector<16x16xbf16>
    %cst_34 = arith.constant dense<0.000000e+00> : vector<8x16xf32>
    %72 = tpu.matmul %70, %71, %cst_34 {dimension_numbers = #tpu.dot_dimension_numbers<[1], [0], [0], [1], [0, 0, 1, 1], [], []>} : vector<8x16xbf16>, vector<16x16xbf16>, vector<8x16xf32> -> vector<8x16xf32>
    %73 = arith.addf %69, %72 : vector<8x16xf32>
    %74 = arith.truncf %66 : vector<8x16xf32> to vector<8x16xbf16>
    %c0_35 = arith.constant 0 : index
    %c0_36 = arith.constant 0 : index
    %75 = vector.load %arg10[%c0_35, %c0_36] : memref<16x16xbf16, #tpu.memory_space<vmem>>, vector<16x16xbf16>
    %cst_37 = arith.constant dense<0.000000e+00> : vector<8x16xf32>
    %76 = tpu.matmul %74, %75, %cst_37 {dimension_numbers = #tpu.dot_dimension_numbers<[1], [0], [0], [1], [0, 0, 1, 1], [], []>} : vector<8x16xbf16>, vector<16x16xbf16>, vector<8x16xf32> -> vector<8x16xf32>
    %77 = arith.addf %73, %76 : vector<8x16xf32>
    %c0_38 = arith.constant 0 : index
    %c0_39 = arith.constant 0 : index
    %78 = vector.load %arg11[%c0_38, %c0_39] : memref<1x16xf32, #tpu.memory_space<vmem>>, vector<1x16xf32>
    %79 = vector.broadcast %78 : vector<1x16xf32> to vector<8x16xf32>
    %80 = arith.addf %77, %79 : vector<8x16xf32>
    %cst_40 = arith.constant 0.000000e+00 : f32
    %81 = vector.broadcast %cst_40 : f32 to vector<8x16xf32>
    %82 = arith.maximumf %80, %81 : vector<8x16xf32>
    %c0_41 = arith.constant 0 : index
    %c0_42 = arith.constant 0 : index
    %83 = vector.load %arg12[%c0_41, %c0_42] : memref<1x16xf32, #tpu.memory_space<vmem>>, vector<1x16xf32>
    %c0_43 = arith.constant 0 : index
    %c0_44 = arith.constant 0 : index
    %84 = vector.load %arg13[%c0_43, %c0_44] : memref<1x16xf32, #tpu.memory_space<vmem>>, vector<1x16xf32>
    %cst_45 = arith.constant dense<0.000000e+00> : vector<8xf32>
    %85 = vector.multi_reduction <add>, %82, %cst_45 [1] : vector<8x16xf32> to vector<8xf32>
    %86 = vector.shape_cast %85 : vector<8xf32> to vector<8x1xf32>
    %cst_46 = arith.constant 1.600000e+01 : f32
    %87 = vector.broadcast %cst_46 : f32 to vector<8x1xf32>
    %88 = arith.divf %86, %87 : vector<8x1xf32>
    %89 = vector.broadcast %88 : vector<8x1xf32> to vector<8x16xf32>
    %90 = arith.subf %82, %89 : vector<8x16xf32>
    %91 = arith.mulf %90, %90 : vector<8x16xf32>
    %cst_47 = arith.constant dense<0.000000e+00> : vector<8xf32>
    %92 = vector.multi_reduction <add>, %91, %cst_47 [1] : vector<8x16xf32> to vector<8xf32>
    %93 = vector.shape_cast %92 : vector<8xf32> to vector<8x1xf32>
    %cst_48 = arith.constant 1.600000e+01 : f32
    %94 = vector.broadcast %cst_48 : f32 to vector<8x1xf32>
    %95 = arith.divf %93, %94 : vector<8x1xf32>
    %96 = vector.broadcast %88 : vector<8x1xf32> to vector<8x16xf32>
    %97 = arith.subf %82, %96 : vector<8x16xf32>
    %cst_49 = arith.constant 9.99999974E-6 : f32
    %98 = vector.broadcast %cst_49 : f32 to vector<8x1xf32>
    %99 = arith.addf %95, %98 : vector<8x1xf32>
    %100 = math.rsqrt %99 : vector<8x1xf32>
    %101 = vector.broadcast %100 : vector<8x1xf32> to vector<8x16xf32>
    %102 = arith.mulf %97, %101 : vector<8x16xf32>
    %103 = vector.broadcast %83 : vector<1x16xf32> to vector<8x16xf32>
    %104 = arith.mulf %102, %103 : vector<8x16xf32>
    %105 = vector.broadcast %84 : vector<1x16xf32> to vector<8x16xf32>
    %106 = arith.addf %104, %105 : vector<8x16xf32>
    %c0_50 = arith.constant 0 : index
    %c0_51 = arith.constant 0 : index
    %107 = vector.load %arg14[%c0_50, %c0_51] : memref<16x1xf32, #tpu.memory_space<vmem>>, vector<16x1xf32>
    %cst_52 = arith.constant dense<0.000000e+00> : vector<8x1xf32>
    %108 = tpu.matmul %106, %107, %cst_52 {dimension_numbers = #tpu.dot_dimension_numbers<[1], [0], [0], [1], [0, 0, 1, 1], [], []>} : vector<8x16xf32>, vector<16x1xf32>, vector<8x1xf32> -> vector<8x1xf32>
    %c0_53 = arith.constant 0 : index
    %c0_54 = arith.constant 0 : index
    %109 = vector.load %arg15[%c0_53, %c0_54] : memref<1x1xf32, #tpu.memory_space<vmem>>, vector<1x1xf32>
    %110 = vector.broadcast %109 : vector<1x1xf32> to vector<8x1xf32>
    %111 = arith.addf %108, %110 : vector<8x1xf32>
    %c0_55 = arith.constant 0 : index
    %c0_56 = arith.constant 0 : index
    %c0_57 = arith.constant 0 : index
    %112 = vector.load %arg16[%c0_55, %c0_56, %c0_57] : memref<1x8x1xf32, #tpu.memory_space<vmem>>, vector<1x8x1xf32>
    %113 = vector.shape_cast %112 : vector<1x8x1xf32> to vector<8x1xf32>
    %114 = vector.shape_cast %111 : vector<8x1xf32> to vector<1x8x1xf32>
    tpu.vector_store %arg16[%c0_55, %c0_56, %c0_57], %114 {strides = array<i32>} : memref<1x8x1xf32, #tpu.memory_space<vmem>>, vector<1x8x1xf32>,
    return
  }
  func.func @transform_0(%arg0: i32) -> (i32, i32, i32) {
    %c0_i32 = arith.constant 0 : i32
    %c0_i32_0 = arith.constant 0 : i32
    %c0_i32_1 = arith.constant 0 : i32
    return %arg0, %c0_i32, %c0_i32_0 : i32, i32, i32
  }
  func.func @transform_1(%arg0: i32) -> (i32, i32) {
    %c0_i32 = arith.constant 0 : i32
    %c0_i32_0 = arith.constant 0 : i32
    %c0_i32_1 = arith.constant 0 : i32
    return %c0_i32, %c0_i32_0 : i32, i32
  }
  func.func @transform_2(%arg0: i32) -> (i32, i32) {
    %c0_i32 = arith.constant 0 : i32
    %c0_i32_0 = arith.constant 0 : i32
    %c0_i32_1 = arith.constant 0 : i32
    return %c0_i32, %c0_i32_0 : i32, i32
  }
  func.func @transform_3(%arg0: i32) -> (i32, i32) {
    %c0_i32 = arith.constant 0 : i32
    %c0_i32_0 = arith.constant 0 : i32
    %c0_i32_1 = arith.constant 0 : i32
    return %c0_i32, %c0_i32_0 : i32, i32
  }
  func.func @transform_4(%arg0: i32) -> (i32, i32) {
    %c0_i32 = arith.constant 0 : i32
    %c0_i32_0 = arith.constant 0 : i32
    %c0_i32_1 = arith.constant 0 : i32
    return %c0_i32, %c0_i32_0 : i32, i32
  }
  func.func @transform_5(%arg0: i32) -> (i32, i32) {
    %c0_i32 = arith.constant 0 : i32
    %c0_i32_0 = arith.constant 0 : i32
    %c0_i32_1 = arith.constant 0 : i32
    return %c0_i32, %c0_i32_0 : i32, i32
  }
  func.func @transform_6(%arg0: i32) -> (i32, i32) {
    %c0_i32 = arith.constant 0 : i32
    %c0_i32_0 = arith.constant 0 : i32
    %c0_i32_1 = arith.constant 0 : i32
    return %c0_i32, %c0_i32_0 : i32, i32
  }
  func.func @transform_7(%arg0: i32) -> (i32, i32) {
    %c0_i32 = arith.constant 0 : i32
    %c0_i32_0 = arith.constant 0 : i32
    %c0_i32_1 = arith.constant 0 : i32
    return %c0_i32, %c0_i32_0 : i32, i32
  }
  func.func @transform_8(%arg0: i32) -> (i32, i32) {
    %c0_i32 = arith.constant 0 : i32
    %c0_i32_0 = arith.constant 0 : i32
    %c0_i32_1 = arith.constant 0 : i32
    return %c0_i32, %c0_i32_0 : i32, i32
  }
  func.func @transform_9(%arg0: i32) -> (i32, i32) {
    %c0_i32 = arith.constant 0 : i32
    %c0_i32_0 = arith.constant 0 : i32
    %c0_i32_1 = arith.constant 0 : i32
    return %c0_i32, %c0_i32_0 : i32, i32
  }
  func.func @transform_10(%arg0: i32) -> (i32, i32) {
    %c0_i32 = arith.constant 0 : i32
    %c0_i32_0 = arith.constant 0 : i32
    %c0_i32_1 = arith.constant 0 : i32
    return %c0_i32, %c0_i32_0 : i32, i32
  }
  func.func @transform_11(%arg0: i32) -> (i32, i32) {
    %c0_i32 = arith.constant 0 : i32
    %c0_i32_0 = arith.constant 0 : i32
    %c0_i32_1 = arith.constant 0 : i32
    return %c0_i32, %c0_i32_0 : i32, i32
  }
  func.func @transform_12(%arg0: i32) -> (i32, i32) {
    %c0_i32 = arith.constant 0 : i32
    %c0_i32_0 = arith.constant 0 : i32
    %c0_i32_1 = arith.constant 0 : i32
    return %c0_i32, %c0_i32_0 : i32, i32
  }
  func.func @transform_13(%arg0: i32) -> (i32, i32) {
    %c0_i32 = arith.constant 0 : i32
    %c0_i32_0 = arith.constant 0 : i32
    %c0_i32_1 = arith.constant 0 : i32
    return %c0_i32, %c0_i32_0 : i32, i32
  }
  func.func @transform_14(%arg0: i32) -> (i32, i32) {
    %c0_i32 = arith.constant 0 : i32
    %c0_i32_0 = arith.constant 0 : i32
    %c0_i32_1 = arith.constant 0 : i32
    return %c0_i32, %c0_i32_0 : i32, i32
  }
  func.func @transform_15(%arg0: i32) -> (i32, i32, i32) {
    %c0_i32 = arith.constant 0 : i32
    %c0_i32_0 = arith.constant 0 : i32
    %c0_i32_1 = arith.constant 0 : i32
    return %arg0, %c0_i32, %c0_i32_0 : i32, i32, i32
  }
}

module attributes {stable_mosaic.version = 11 : i64} {
  func.func @_transformer_layer_kernel(%arg0: i32, %arg1: memref<1x8x32xf32, #tpu.memory_space<vmem>>, %arg2: memref<1x1x8xf32, #tpu.memory_space<vmem>>, %arg3: memref<2x32x16xbf16, #tpu.memory_space<vmem>>, %arg4: memref<2x1x16xf32, #tpu.memory_space<vmem>>, %arg5: memref<2x32x16xbf16, #tpu.memory_space<vmem>>, %arg6: memref<2x1x16xf32, #tpu.memory_space<vmem>>, %arg7: memref<2x32x16xbf16, #tpu.memory_space<vmem>>, %arg8: memref<2x1x16xf32, #tpu.memory_space<vmem>>, %arg9: memref<2x16x32xbf16, #tpu.memory_space<vmem>>, %arg10: memref<1x32xf32, #tpu.memory_space<vmem>>, %arg11: memref<1x32xf32, #tpu.memory_space<vmem>>, %arg12: memref<1x32xf32, #tpu.memory_space<vmem>>, %arg13: memref<32x64xbf16, #tpu.memory_space<vmem>>, %arg14: memref<1x64xf32, #tpu.memory_space<vmem>>, %arg15: memref<64x32xbf16, #tpu.memory_space<vmem>>, %arg16: memref<1x32xf32, #tpu.memory_space<vmem>>, %arg17: memref<1x32xf32, #tpu.memory_space<vmem>>, %arg18: memref<1x32xf32, #tpu.memory_space<vmem>>, %arg19: memref<1x8x32xf32, #tpu.memory_space<vmem>>) attributes {dimension_semantics = [#tpu.dimension_semantics<parallel>], iteration_bounds = array<i64: 2>, scalar_prefetch = 0 : i64, scratch_operands = 0 : i64, tpu.core_type = #tpu.core_type<tc>, window_params = [{transform_indices = @transform_0, window_bounds = array<i64: 1, 8, 32>}, {transform_indices = @transform_1, window_bounds = array<i64: 1, 1, 8>}, {pipeline_mode = #tpu.pipeline_mode<synchronous>, transform_indices = @transform_2, window_bounds = array<i64: 2, 32, 16>}, {pipeline_mode = #tpu.pipeline_mode<synchronous>, transform_indices = @transform_3, window_bounds = array<i64: 2, 1, 16>}, {pipeline_mode = #tpu.pipeline_mode<synchronous>, transform_indices = @transform_4, window_bounds = array<i64: 2, 32, 16>}, {pipeline_mode = #tpu.pipeline_mode<synchronous>, transform_indices = @transform_5, window_bounds = array<i64: 2, 1, 16>}, {pipeline_mode = #tpu.pipeline_mode<synchronous>, transform_indices = @transform_6, window_bounds = array<i64: 2, 32, 16>}, {pipeline_mode = #tpu.pipeline_mode<synchronous>, transform_indices = @transform_7, window_bounds = array<i64: 2, 1, 16>}, {pipeline_mode = #tpu.pipeline_mode<synchronous>, transform_indices = @transform_8, window_bounds = array<i64: 2, 16, 32>}, {pipeline_mode = #tpu.pipeline_mode<synchronous>, transform_indices = @transform_9, window_bounds = array<i64: 1, 32>}, {pipeline_mode = #tpu.pipeline_mode<synchronous>, transform_indices = @transform_10, window_bounds = array<i64: 1, 32>}, {pipeline_mode = #tpu.pipeline_mode<synchronous>, transform_indices = @transform_11, window_bounds = array<i64: 1, 32>}, {pipeline_mode = #tpu.pipeline_mode<synchronous>, transform_indices = @transform_12, window_bounds = array<i64: 32, 64>}, {pipeline_mode = #tpu.pipeline_mode<synchronous>, transform_indices = @transform_13, window_bounds = array<i64: 1, 64>}, {pipeline_mode = #tpu.pipeline_mode<synchronous>, transform_indices = @transform_14, window_bounds = array<i64: 64, 32>}, {pipeline_mode = #tpu.pipeline_mode<synchronous>, transform_indices = @transform_15, window_bounds = array<i64: 1, 32>}, {pipeline_mode = #tpu.pipeline_mode<synchronous>, transform_indices = @transform_16, window_bounds = array<i64: 1, 32>}, {pipeline_mode = #tpu.pipeline_mode<synchronous>, transform_indices = @transform_17, window_bounds = array<i64: 1, 32>}, {transform_indices = @transform_18, window_bounds = array<i64: 1, 8, 32>}]} {
    %c0 = arith.constant 0 : index
    %c0_0 = arith.constant 0 : index
    %c0_1 = arith.constant 0 : index
    %0 = vector.load %arg1[%c0, %c0_0, %c0_1] : memref<1x8x32xf32, #tpu.memory_space<vmem>>, vector<1x8x32xf32>
    %1 = vector.shape_cast %0 : vector<1x8x32xf32> to vector<8x32xf32>
    %c0_2 = arith.constant 0 : index
    %c0_3 = arith.constant 0 : index
    %c0_4 = arith.constant 0 : index
    %2 = vector.load %arg2[%c0_2, %c0_3, %c0_4] : memref<1x1x8xf32, #tpu.memory_space<vmem>>, vector<1x1x8xf32>
    %3 = vector.shape_cast %2 : vector<1x1x8xf32> to vector<1x8xf32>
    %4 = arith.truncf %1 : vector<8x32xf32> to vector<8x32xbf16>
    %cst = arith.constant 0.000000e+00 : f32
    %5 = vector.broadcast %cst : f32 to vector<8x32xf32>
    %c0_5 = arith.constant 0 : index
    %c0_6 = arith.constant 0 : index
    %c0_7 = arith.constant 0 : index
    %6 = vector.load %arg3[%c0_5, %c0_6, %c0_7] : memref<2x32x16xbf16, #tpu.memory_space<vmem>>, vector<1x32x16xbf16>
    %7 = vector.shape_cast %6 : vector<1x32x16xbf16> to vector<32x16xbf16>
    %cst_8 = arith.constant dense<0.000000e+00> : vector<8x16xf32>
    %8 = tpu.matmul %4, %7, %cst_8 {dimension_numbers = #tpu.dot_dimension_numbers<[1], [0], [0], [1], [0, 0, 1, 1], [], []>} : vector<8x32xbf16>, vector<32x16xbf16>, vector<8x16xf32> -> vector<8x16xf32>
    %c0_9 = arith.constant 0 : index
    %c0_10 = arith.constant 0 : index
    %c0_11 = arith.constant 0 : index
    %9 = vector.load %arg4[%c0_9, %c0_10, %c0_11] : memref<2x1x16xf32, #tpu.memory_space<vmem>>, vector<1x1x16xf32>
    %10 = vector.shape_cast %9 : vector<1x1x16xf32> to vector<1x16xf32>
    %11 = vector.broadcast %10 : vector<1x16xf32> to vector<8x16xf32>
    %12 = arith.addf %8, %11 : vector<8x16xf32>
    %cst_12 = arith.constant 2.500000e-01 : f32
    %13 = vector.broadcast %cst_12 : f32 to vector<8x16xf32>
    %14 = arith.mulf %12, %13 : vector<8x16xf32>
    %c0_13 = arith.constant 0 : index
    %c0_14 = arith.constant 0 : index
    %c0_15 = arith.constant 0 : index
    %15 = vector.load %arg5[%c0_13, %c0_14, %c0_15] : memref<2x32x16xbf16, #tpu.memory_space<vmem>>, vector<1x32x16xbf16>
    %16 = vector.shape_cast %15 : vector<1x32x16xbf16> to vector<32x16xbf16>
    %cst_16 = arith.constant dense<0.000000e+00> : vector<8x16xf32>
    %17 = tpu.matmul %4, %16, %cst_16 {dimension_numbers = #tpu.dot_dimension_numbers<[1], [0], [0], [1], [0, 0, 1, 1], [], []>} : vector<8x32xbf16>, vector<32x16xbf16>, vector<8x16xf32> -> vector<8x16xf32>
    %c0_17 = arith.constant 0 : index
    %c0_18 = arith.constant 0 : index
    %c0_19 = arith.constant 0 : index
    %18 = vector.load %arg6[%c0_17, %c0_18, %c0_19] : memref<2x1x16xf32, #tpu.memory_space<vmem>>, vector<1x1x16xf32>
    %19 = vector.shape_cast %18 : vector<1x1x16xf32> to vector<1x16xf32>
    %20 = vector.broadcast %19 : vector<1x16xf32> to vector<8x16xf32>
    %21 = arith.addf %17, %20 : vector<8x16xf32>
    %c0_20 = arith.constant 0 : index
    %c0_21 = arith.constant 0 : index
    %c0_22 = arith.constant 0 : index
    %22 = vector.load %arg7[%c0_20, %c0_21, %c0_22] : memref<2x32x16xbf16, #tpu.memory_space<vmem>>, vector<1x32x16xbf16>
    %23 = vector.shape_cast %22 : vector<1x32x16xbf16> to vector<32x16xbf16>
    %cst_23 = arith.constant dense<0.000000e+00> : vector<8x16xf32>
    %24 = tpu.matmul %4, %23, %cst_23 {dimension_numbers = #tpu.dot_dimension_numbers<[1], [0], [0], [1], [0, 0, 1, 1], [], []>} : vector<8x32xbf16>, vector<32x16xbf16>, vector<8x16xf32> -> vector<8x16xf32>
    %c0_24 = arith.constant 0 : index
    %c0_25 = arith.constant 0 : index
    %c0_26 = arith.constant 0 : index
    %25 = vector.load %arg8[%c0_24, %c0_25, %c0_26] : memref<2x1x16xf32, #tpu.memory_space<vmem>>, vector<1x1x16xf32>
    %26 = vector.shape_cast %25 : vector<1x1x16xf32> to vector<1x16xf32>
    %27 = vector.broadcast %26 : vector<1x16xf32> to vector<8x16xf32>
    %28 = arith.addf %24, %27 : vector<8x16xf32>
    %cst_27 = arith.constant dense<0.000000e+00> : vector<8x8xf32>
    %29 = tpu.matmul %14, %21, %cst_27 {dimension_numbers = #tpu.dot_dimension_numbers<[1], [1], [0], [0], [0, 0, 1, 0], [], []>} : vector<8x16xf32>, vector<8x16xf32>, vector<8x8xf32> -> vector<8x8xf32>
    %30 = vector.broadcast %3 : vector<1x8xf32> to vector<8x8xf32>
    %31 = arith.addf %29, %30 : vector<8x8xf32>
    %cst_28 = arith.constant dense<0xFF800000> : vector<8xf32>
    %32 = vector.multi_reduction <maximumf>, %31, %cst_28 [1] : vector<8x8xf32> to vector<8xf32>
    %33 = vector.shape_cast %32 : vector<8xf32> to vector<8x1xf32>
    %34 = vector.broadcast %33 : vector<8x1xf32> to vector<8x8xf32>
    %35 = arith.subf %31, %34 : vector<8x8xf32>
    %36 = math.exp %35 : vector<8x8xf32>
    %cst_29 = arith.constant dense<0.000000e+00> : vector<8xf32>
    %37 = vector.multi_reduction <add>, %36, %cst_29 [1] : vector<8x8xf32> to vector<8xf32>
    %38 = vector.shape_cast %37 : vector<8xf32> to vector<8x1xf32>
    %39 = tpu.reciprocal %38 {approx = true} : vector<8x1xf32> -> vector<8x1xf32>
    %40 = vector.broadcast %39 : vector<8x1xf32> to vector<8x8xf32>
    %41 = arith.mulf %36, %40 : vector<8x8xf32>
    %42 = arith.truncf %41 : vector<8x8xf32> to vector<8x8xbf16>
    %43 = arith.truncf %28 : vector<8x16xf32> to vector<8x16xbf16>
    %cst_30 = arith.constant dense<0.000000e+00> : vector<8x16xf32>
    %44 = tpu.matmul %42, %43, %cst_30 {dimension_numbers = #tpu.dot_dimension_numbers<[1], [0], [0], [1], [0, 0, 1, 1], [], []>} : vector<8x8xbf16>, vector<8x16xbf16>, vector<8x16xf32> -> vector<8x16xf32>
    %45 = arith.truncf %44 : vector<8x16xf32> to vector<8x16xbf16>
    %c0_31 = arith.constant 0 : index
    %c0_32 = arith.constant 0 : index
    %c0_33 = arith.constant 0 : index
    %46 = vector.load %arg9[%c0_31, %c0_32, %c0_33] : memref<2x16x32xbf16, #tpu.memory_space<vmem>>, vector<1x16x32xbf16>
    %47 = vector.shape_cast %46 : vector<1x16x32xbf16> to vector<16x32xbf16>
    %cst_34 = arith.constant dense<0.000000e+00> : vector<8x32xf32>
    %48 = tpu.matmul %45, %47, %cst_34 {dimension_numbers = #tpu.dot_dimension_numbers<[1], [0], [0], [1], [0, 0, 1, 1], [], []>} : vector<8x16xbf16>, vector<16x32xbf16>, vector<8x32xf32> -> vector<8x32xf32>
    %49 = arith.addf %5, %48 : vector<8x32xf32>
    %c1 = arith.constant 1 : index
    %c0_35 = arith.constant 0 : index
    %c0_36 = arith.constant 0 : index
    %50 = vector.load %arg3[%c1, %c0_35, %c0_36] : memref<2x32x16xbf16, #tpu.memory_space<vmem>>, vector<1x32x16xbf16>
    %51 = vector.shape_cast %50 : vector<1x32x16xbf16> to vector<32x16xbf16>
    %cst_37 = arith.constant dense<0.000000e+00> : vector<8x16xf32>
    %52 = tpu.matmul %4, %51, %cst_37 {dimension_numbers = #tpu.dot_dimension_numbers<[1], [0], [0], [1], [0, 0, 1, 1], [], []>} : vector<8x32xbf16>, vector<32x16xbf16>, vector<8x16xf32> -> vector<8x16xf32>
    %c1_38 = arith.constant 1 : index
    %c0_39 = arith.constant 0 : index
    %c0_40 = arith.constant 0 : index
    %53 = vector.load %arg4[%c1_38, %c0_39, %c0_40] : memref<2x1x16xf32, #tpu.memory_space<vmem>>, vector<1x1x16xf32>
    %54 = vector.shape_cast %53 : vector<1x1x16xf32> to vector<1x16xf32>
    %55 = vector.broadcast %54 : vector<1x16xf32> to vector<8x16xf32>
    %56 = arith.addf %52, %55 : vector<8x16xf32>
    %cst_41 = arith.constant 2.500000e-01 : f32
    %57 = vector.broadcast %cst_41 : f32 to vector<8x16xf32>
    %58 = arith.mulf %56, %57 : vector<8x16xf32>
    %c1_42 = arith.constant 1 : index
    %c0_43 = arith.constant 0 : index
    %c0_44 = arith.constant 0 : index
    %59 = vector.load %arg5[%c1_42, %c0_43, %c0_44] : memref<2x32x16xbf16, #tpu.memory_space<vmem>>, vector<1x32x16xbf16>
    %60 = vector.shape_cast %59 : vector<1x32x16xbf16> to vector<32x16xbf16>
    %cst_45 = arith.constant dense<0.000000e+00> : vector<8x16xf32>
    %61 = tpu.matmul %4, %60, %cst_45 {dimension_numbers = #tpu.dot_dimension_numbers<[1], [0], [0], [1], [0, 0, 1, 1], [], []>} : vector<8x32xbf16>, vector<32x16xbf16>, vector<8x16xf32> -> vector<8x16xf32>
    %c1_46 = arith.constant 1 : index
    %c0_47 = arith.constant 0 : index
    %c0_48 = arith.constant 0 : index
    %62 = vector.load %arg6[%c1_46, %c0_47, %c0_48] : memref<2x1x16xf32, #tpu.memory_space<vmem>>, vector<1x1x16xf32>
    %63 = vector.shape_cast %62 : vector<1x1x16xf32> to vector<1x16xf32>
    %64 = vector.broadcast %63 : vector<1x16xf32> to vector<8x16xf32>
    %65 = arith.addf %61, %64 : vector<8x16xf32>
    %c1_49 = arith.constant 1 : index
    %c0_50 = arith.constant 0 : index
    %c0_51 = arith.constant 0 : index
    %66 = vector.load %arg7[%c1_49, %c0_50, %c0_51] : memref<2x32x16xbf16, #tpu.memory_space<vmem>>, vector<1x32x16xbf16>
    %67 = vector.shape_cast %66 : vector<1x32x16xbf16> to vector<32x16xbf16>
    %cst_52 = arith.constant dense<0.000000e+00> : vector<8x16xf32>
    %68 = tpu.matmul %4, %67, %cst_52 {dimension_numbers = #tpu.dot_dimension_numbers<[1], [0], [0], [1], [0, 0, 1, 1], [], []>} : vector<8x32xbf16>, vector<32x16xbf16>, vector<8x16xf32> -> vector<8x16xf32>
    %c1_53 = arith.constant 1 : index
    %c0_54 = arith.constant 0 : index
    %c0_55 = arith.constant 0 : index
    %69 = vector.load %arg8[%c1_53, %c0_54, %c0_55] : memref<2x1x16xf32, #tpu.memory_space<vmem>>, vector<1x1x16xf32>
    %70 = vector.shape_cast %69 : vector<1x1x16xf32> to vector<1x16xf32>
    %71 = vector.broadcast %70 : vector<1x16xf32> to vector<8x16xf32>
    %72 = arith.addf %68, %71 : vector<8x16xf32>
    %cst_56 = arith.constant dense<0.000000e+00> : vector<8x8xf32>
    %73 = tpu.matmul %58, %65, %cst_56 {dimension_numbers = #tpu.dot_dimension_numbers<[1], [1], [0], [0], [0, 0, 1, 0], [], []>} : vector<8x16xf32>, vector<8x16xf32>, vector<8x8xf32> -> vector<8x8xf32>
    %74 = vector.broadcast %3 : vector<1x8xf32> to vector<8x8xf32>
    %75 = arith.addf %73, %74 : vector<8x8xf32>
    %cst_57 = arith.constant dense<0xFF800000> : vector<8xf32>
    %76 = vector.multi_reduction <maximumf>, %75, %cst_57 [1] : vector<8x8xf32> to vector<8xf32>
    %77 = vector.shape_cast %76 : vector<8xf32> to vector<8x1xf32>
    %78 = vector.broadcast %77 : vector<8x1xf32> to vector<8x8xf32>
    %79 = arith.subf %75, %78 : vector<8x8xf32>
    %80 = math.exp %79 : vector<8x8xf32>
    %cst_58 = arith.constant dense<0.000000e+00> : vector<8xf32>
    %81 = vector.multi_reduction <add>, %80, %cst_58 [1] : vector<8x8xf32> to vector<8xf32>
    %82 = vector.shape_cast %81 : vector<8xf32> to vector<8x1xf32>
    %83 = tpu.reciprocal %82 {approx = true} : vector<8x1xf32> -> vector<8x1xf32>
    %84 = vector.broadcast %83 : vector<8x1xf32> to vector<8x8xf32>
    %85 = arith.mulf %80, %84 : vector<8x8xf32>
    %86 = arith.truncf %85 : vector<8x8xf32> to vector<8x8xbf16>
    %87 = arith.truncf %72 : vector<8x16xf32> to vector<8x16xbf16>
    %cst_59 = arith.constant dense<0.000000e+00> : vector<8x16xf32>
    %88 = tpu.matmul %86, %87, %cst_59 {dimension_numbers = #tpu.dot_dimension_numbers<[1], [0], [0], [1], [0, 0, 1, 1], [], []>} : vector<8x8xbf16>, vector<8x16xbf16>, vector<8x16xf32> -> vector<8x16xf32>
    %89 = arith.truncf %88 : vector<8x16xf32> to vector<8x16xbf16>
    %c1_60 = arith.constant 1 : index
    %c0_61 = arith.constant 0 : index
    %c0_62 = arith.constant 0 : index
    %90 = vector.load %arg9[%c1_60, %c0_61, %c0_62] : memref<2x16x32xbf16, #tpu.memory_space<vmem>>, vector<1x16x32xbf16>
    %91 = vector.shape_cast %90 : vector<1x16x32xbf16> to vector<16x32xbf16>
    %cst_63 = arith.constant dense<0.000000e+00> : vector<8x32xf32>
    %92 = tpu.matmul %89, %91, %cst_63 {dimension_numbers = #tpu.dot_dimension_numbers<[1], [0], [0], [1], [0, 0, 1, 1], [], []>} : vector<8x16xbf16>, vector<16x32xbf16>, vector<8x32xf32> -> vector<8x32xf32>
    %93 = arith.addf %49, %92 : vector<8x32xf32>
    %c0_64 = arith.constant 0 : index
    %c0_65 = arith.constant 0 : index
    %94 = vector.load %arg10[%c0_64, %c0_65] : memref<1x32xf32, #tpu.memory_space<vmem>>, vector<1x32xf32>
    %95 = vector.broadcast %94 : vector<1x32xf32> to vector<8x32xf32>
    %96 = arith.addf %93, %95 : vector<8x32xf32>
    %97 = arith.addf %1, %96 : vector<8x32xf32>
    %c0_66 = arith.constant 0 : index
    %c0_67 = arith.constant 0 : index
    %98 = vector.load %arg11[%c0_66, %c0_67] : memref<1x32xf32, #tpu.memory_space<vmem>>, vector<1x32xf32>
    %c0_68 = arith.constant 0 : index
    %c0_69 = arith.constant 0 : index
    %99 = vector.load %arg12[%c0_68, %c0_69] : memref<1x32xf32, #tpu.memory_space<vmem>>, vector<1x32xf32>
    %cst_70 = arith.constant dense<0.000000e+00> : vector<8xf32>
    %100 = vector.multi_reduction <add>, %97, %cst_70 [1] : vector<8x32xf32> to vector<8xf32>
    %101 = vector.shape_cast %100 : vector<8xf32> to vector<8x1xf32>
    %cst_71 = arith.constant 3.200000e+01 : f32
    %102 = vector.broadcast %cst_71 : f32 to vector<8x1xf32>
    %103 = arith.divf %101, %102 : vector<8x1xf32>
    %104 = vector.broadcast %103 : vector<8x1xf32> to vector<8x32xf32>
    %105 = arith.subf %97, %104 : vector<8x32xf32>
    %106 = arith.mulf %105, %105 : vector<8x32xf32>
    %cst_72 = arith.constant dense<0.000000e+00> : vector<8xf32>
    %107 = vector.multi_reduction <add>, %106, %cst_72 [1] : vector<8x32xf32> to vector<8xf32>
    %108 = vector.shape_cast %107 : vector<8xf32> to vector<8x1xf32>
    %cst_73 = arith.constant 3.200000e+01 : f32
    %109 = vector.broadcast %cst_73 : f32 to vector<8x1xf32>
    %110 = arith.divf %108, %109 : vector<8x1xf32>
    %111 = vector.broadcast %103 : vector<8x1xf32> to vector<8x32xf32>
    %112 = arith.subf %97, %111 : vector<8x32xf32>
    %cst_74 = arith.constant 9.99999974E-6 : f32
    %113 = vector.broadcast %cst_74 : f32 to vector<8x1xf32>
    %114 = arith.addf %110, %113 : vector<8x1xf32>
    %115 = math.rsqrt %114 : vector<8x1xf32>
    %116 = vector.broadcast %115 : vector<8x1xf32> to vector<8x32xf32>
    %117 = arith.mulf %112, %116 : vector<8x32xf32>
    %118 = vector.broadcast %98 : vector<1x32xf32> to vector<8x32xf32>
    %119 = arith.mulf %117, %118 : vector<8x32xf32>
    %120 = vector.broadcast %99 : vector<1x32xf32> to vector<8x32xf32>
    %121 = arith.addf %119, %120 : vector<8x32xf32>
    %122 = arith.truncf %121 : vector<8x32xf32> to vector<8x32xbf16>
    %c0_75 = arith.constant 0 : index
    %c0_76 = arith.constant 0 : index
    %123 = vector.load %arg13[%c0_75, %c0_76] : memref<32x64xbf16, #tpu.memory_space<vmem>>, vector<32x64xbf16>
    %cst_77 = arith.constant dense<0.000000e+00> : vector<8x64xf32>
    %124 = tpu.matmul %122, %123, %cst_77 {dimension_numbers = #tpu.dot_dimension_numbers<[1], [0], [0], [1], [0, 0, 1, 1], [], []>} : vector<8x32xbf16>, vector<32x64xbf16>, vector<8x64xf32> -> vector<8x64xf32>
    %c0_78 = arith.constant 0 : index
    %c0_79 = arith.constant 0 : index
    %125 = vector.load %arg14[%c0_78, %c0_79] : memref<1x64xf32, #tpu.memory_space<vmem>>, vector<1x64xf32>
    %126 = vector.broadcast %125 : vector<1x64xf32> to vector<8x64xf32>
    %127 = arith.addf %124, %126 : vector<8x64xf32>
    %cst_80 = arith.constant 0.000000e+00 : f32
    %128 = vector.broadcast %cst_80 : f32 to vector<8x64xf32>
    %129 = arith.maximumf %127, %128 : vector<8x64xf32>
    %130 = arith.truncf %129 : vector<8x64xf32> to vector<8x64xbf16>
    %c0_81 = arith.constant 0 : index
    %c0_82 = arith.constant 0 : index
    %131 = vector.load %arg15[%c0_81, %c0_82] : memref<64x32xbf16, #tpu.memory_space<vmem>>, vector<64x32xbf16>
    %cst_83 = arith.constant dense<0.000000e+00> : vector<8x32xf32>
    %132 = tpu.matmul %130, %131, %cst_83 {dimension_numbers = #tpu.dot_dimension_numbers<[1], [0], [0], [1], [0, 0, 1, 1], [], []>} : vector<8x64xbf16>, vector<64x32xbf16>, vector<8x32xf32> -> vector<8x32xf32>
    %c0_84 = arith.constant 0 : index
    %c0_85 = arith.constant 0 : index
    %133 = vector.load %arg16[%c0_84, %c0_85] : memref<1x32xf32, #tpu.memory_space<vmem>>, vector<1x32xf32>
    %134 = vector.broadcast %133 : vector<1x32xf32> to vector<8x32xf32>
    %135 = arith.addf %132, %134 : vector<8x32xf32>
    %136 = arith.addf %121, %135 : vector<8x32xf32>
    %c0_86 = arith.constant 0 : index
    %c0_87 = arith.constant 0 : index
    %137 = vector.load %arg17[%c0_86, %c0_87] : memref<1x32xf32, #tpu.memory_space<vmem>>, vector<1x32xf32>
    %c0_88 = arith.constant 0 : index
    %c0_89 = arith.constant 0 : index
    %138 = vector.load %arg18[%c0_88, %c0_89] : memref<1x32xf32, #tpu.memory_space<vmem>>, vector<1x32xf32>
    %cst_90 = arith.constant dense<0.000000e+00> : vector<8xf32>
    %139 = vector.multi_reduction <add>, %136, %cst_90 [1] : vector<8x32xf32> to vector<8xf32>
    %140 = vector.shape_cast %139 : vector<8xf32> to vector<8x1xf32>
    %cst_91 = arith.constant 3.200000e+01 : f32
    %141 = vector.broadcast %cst_91 : f32 to vector<8x1xf32>
    %142 = arith.divf %140, %141 : vector<8x1xf32>
    %143 = vector.broadcast %142 : vector<8x1xf32> to vector<8x32xf32>
    %144 = arith.subf %136, %143 : vector<8x32xf32>
    %145 = arith.mulf %144, %144 : vector<8x32xf32>
    %cst_92 = arith.constant dense<0.000000e+00> : vector<8xf32>
    %146 = vector.multi_reduction <add>, %145, %cst_92 [1] : vector<8x32xf32> to vector<8xf32>
    %147 = vector.shape_cast %146 : vector<8xf32> to vector<8x1xf32>
    %cst_93 = arith.constant 3.200000e+01 : f32
    %148 = vector.broadcast %cst_93 : f32 to vector<8x1xf32>
    %149 = arith.divf %147, %148 : vector<8x1xf32>
    %150 = vector.broadcast %142 : vector<8x1xf32> to vector<8x32xf32>
    %151 = arith.subf %136, %150 : vector<8x32xf32>
    %cst_94 = arith.constant 9.99999974E-6 : f32
    %152 = vector.broadcast %cst_94 : f32 to vector<8x1xf32>
    %153 = arith.addf %149, %152 : vector<8x1xf32>
    %154 = math.rsqrt %153 : vector<8x1xf32>
    %155 = vector.broadcast %154 : vector<8x1xf32> to vector<8x32xf32>
    %156 = arith.mulf %151, %155 : vector<8x32xf32>
    %157 = vector.broadcast %137 : vector<1x32xf32> to vector<8x32xf32>
    %158 = arith.mulf %156, %157 : vector<8x32xf32>
    %159 = vector.broadcast %138 : vector<1x32xf32> to vector<8x32xf32>
    %160 = arith.addf %158, %159 : vector<8x32xf32>
    %c0_95 = arith.constant 0 : index
    %c0_96 = arith.constant 0 : index
    %c0_97 = arith.constant 0 : index
    %161 = vector.load %arg19[%c0_95, %c0_96, %c0_97] : memref<1x8x32xf32, #tpu.memory_space<vmem>>, vector<1x8x32xf32>
    %162 = vector.shape_cast %161 : vector<1x8x32xf32> to vector<8x32xf32>
    %163 = vector.shape_cast %160 : vector<8x32xf32> to vector<1x8x32xf32>
    tpu.vector_store %arg19[%c0_95, %c0_96, %c0_97], %163 {strides = array<i32>} : memref<1x8x32xf32, #tpu.memory_space<vmem>>, vector<1x8x32xf32>,
    return
  }
  func.func @transform_0(%arg0: i32) -> (i32, i32, i32) {
    %c0_i32 = arith.constant 0 : i32
    %c0_i32_0 = arith.constant 0 : i32
    %c0_i32_1 = arith.constant 0 : i32
    return %arg0, %c0_i32, %c0_i32_0 : i32, i32, i32
  }
  func.func @transform_1(%arg0: i32) -> (i32, i32, i32) {
    %c0_i32 = arith.constant 0 : i32
    %c0_i32_0 = arith.constant 0 : i32
    %c0_i32_1 = arith.constant 0 : i32
    return %arg0, %c0_i32, %c0_i32_0 : i32, i32, i32
  }
  func.func @transform_2(%arg0: i32) -> (i32, i32, i32) {
    %c0_i32 = arith.constant 0 : i32
    %c0_i32_0 = arith.constant 0 : i32
    %c0_i32_1 = arith.constant 0 : i32
    %c0_i32_2 = arith.constant 0 : i32
    return %c0_i32, %c0_i32_0, %c0_i32_1 : i32, i32, i32
  }
  func.func @transform_3(%arg0: i32) -> (i32, i32, i32) {
    %c0_i32 = arith.constant 0 : i32
    %c0_i32_0 = arith.constant 0 : i32
    %c0_i32_1 = arith.constant 0 : i32
    %c0_i32_2 = arith.constant 0 : i32
    return %c0_i32, %c0_i32_0, %c0_i32_1 : i32, i32, i32
  }
  func.func @transform_4(%arg0: i32) -> (i32, i32, i32) {
    %c0_i32 = arith.constant 0 : i32
    %c0_i32_0 = arith.constant 0 : i32
    %c0_i32_1 = arith.constant 0 : i32
    %c0_i32_2 = arith.constant 0 : i32
    return %c0_i32, %c0_i32_0, %c0_i32_1 : i32, i32, i32
  }
  func.func @transform_5(%arg0: i32) -> (i32, i32, i32) {
    %c0_i32 = arith.constant 0 : i32
    %c0_i32_0 = arith.constant 0 : i32
    %c0_i32_1 = arith.constant 0 : i32
    %c0_i32_2 = arith.constant 0 : i32
    return %c0_i32, %c0_i32_0, %c0_i32_1 : i32, i32, i32
  }
  func.func @transform_6(%arg0: i32) -> (i32, i32, i32) {
    %c0_i32 = arith.constant 0 : i32
    %c0_i32_0 = arith.constant 0 : i32
    %c0_i32_1 = arith.constant 0 : i32
    %c0_i32_2 = arith.constant 0 : i32
    return %c0_i32, %c0_i32_0, %c0_i32_1 : i32, i32, i32
  }
  func.func @transform_7(%arg0: i32) -> (i32, i32, i32) {
    %c0_i32 = arith.constant 0 : i32
    %c0_i32_0 = arith.constant 0 : i32
    %c0_i32_1 = arith.constant 0 : i32
    %c0_i32_2 = arith.constant 0 : i32
    return %c0_i32, %c0_i32_0, %c0_i32_1 : i32, i32, i32
  }
  func.func @transform_8(%arg0: i32) -> (i32, i32, i32) {
    %c0_i32 = arith.constant 0 : i32
    %c0_i32_0 = arith.constant 0 : i32
    %c0_i32_1 = arith.constant 0 : i32
    %c0_i32_2 = arith.constant 0 : i32
    return %c0_i32, %c0_i32_0, %c0_i32_1 : i32, i32, i32
  }
  func.func @transform_9(%arg0: i32) -> (i32, i32) {
    %c0_i32 = arith.constant 0 : i32
    %c0_i32_0 = arith.constant 0 : i32
    %c0_i32_1 = arith.constant 0 : i32
    return %c0_i32, %c0_i32_0 : i32, i32
  }
  func.func @transform_10(%arg0: i32) -> (i32, i32) {
    %c0_i32 = arith.constant 0 : i32
    %c0_i32_0 = arith.constant 0 : i32
    %c0_i32_1 = arith.constant 0 : i32
    return %c0_i32, %c0_i32_0 : i32, i32
  }
  func.func @transform_11(%arg0: i32) -> (i32, i32) {
    %c0_i32 = arith.constant 0 : i32
    %c0_i32_0 = arith.constant 0 : i32
    %c0_i32_1 = arith.constant 0 : i32
    return %c0_i32, %c0_i32_0 : i32, i32
  }
  func.func @transform_12(%arg0: i32) -> (i32, i32) {
    %c0_i32 = arith.constant 0 : i32
    %c0_i32_0 = arith.constant 0 : i32
    %c0_i32_1 = arith.constant 0 : i32
    return %c0_i32, %c0_i32_0 : i32, i32
  }
  func.func @transform_13(%arg0: i32) -> (i32, i32) {
    %c0_i32 = arith.constant 0 : i32
    %c0_i32_0 = arith.constant 0 : i32
    %c0_i32_1 = arith.constant 0 : i32
    return %c0_i32, %c0_i32_0 : i32, i32
  }
  func.func @transform_14(%arg0: i32) -> (i32, i32) {
    %c0_i32 = arith.constant 0 : i32
    %c0_i32_0 = arith.constant 0 : i32
    %c0_i32_1 = arith.constant 0 : i32
    return %c0_i32, %c0_i32_0 : i32, i32
  }
  func.func @transform_15(%arg0: i32) -> (i32, i32) {
    %c0_i32 = arith.constant 0 : i32
    %c0_i32_0 = arith.constant 0 : i32
    %c0_i32_1 = arith.constant 0 : i32
    return %c0_i32, %c0_i32_0 : i32, i32
  }
  func.func @transform_16(%arg0: i32) -> (i32, i32) {
    %c0_i32 = arith.constant 0 : i32
    %c0_i32_0 = arith.constant 0 : i32
    %c0_i32_1 = arith.constant 0 : i32
    return %c0_i32, %c0_i32_0 : i32, i32
  }
  func.func @transform_17(%arg0: i32) -> (i32, i32) {
    %c0_i32 = arith.constant 0 : i32
    %c0_i32_0 = arith.constant 0 : i32
    %c0_i32_1 = arith.constant 0 : i32
    return %c0_i32, %c0_i32_0 : i32, i32
  }
  func.func @transform_18(%arg0: i32) -> (i32, i32, i32) {
    %c0_i32 = arith.constant 0 : i32
    %c0_i32_0 = arith.constant 0 : i32
    %c0_i32_1 = arith.constant 0 : i32
    return %arg0, %c0_i32, %c0_i32_0 : i32, i32, i32
  }
}

module attributes {stable_mosaic.version = 11 : i64} {
  func.func @_transformer_layer_kernel(%arg0: i32, %arg1: memref<1x16x32xf32, #tpu.memory_space<vmem>>, %arg2: memref<1x1x16xf32, #tpu.memory_space<vmem>>, %arg3: memref<2x32x16xbf16, #tpu.memory_space<vmem>>, %arg4: memref<2x1x16xf32, #tpu.memory_space<vmem>>, %arg5: memref<2x32x16xbf16, #tpu.memory_space<vmem>>, %arg6: memref<2x1x16xf32, #tpu.memory_space<vmem>>, %arg7: memref<2x32x16xbf16, #tpu.memory_space<vmem>>, %arg8: memref<2x1x16xf32, #tpu.memory_space<vmem>>, %arg9: memref<2x16x32xbf16, #tpu.memory_space<vmem>>, %arg10: memref<1x32xf32, #tpu.memory_space<vmem>>, %arg11: memref<1x32xf32, #tpu.memory_space<vmem>>, %arg12: memref<1x32xf32, #tpu.memory_space<vmem>>, %arg13: memref<32x64xbf16, #tpu.memory_space<vmem>>, %arg14: memref<1x64xf32, #tpu.memory_space<vmem>>, %arg15: memref<64x32xbf16, #tpu.memory_space<vmem>>, %arg16: memref<1x32xf32, #tpu.memory_space<vmem>>, %arg17: memref<1x32xf32, #tpu.memory_space<vmem>>, %arg18: memref<1x32xf32, #tpu.memory_space<vmem>>, %arg19: memref<1x16x32xf32, #tpu.memory_space<vmem>>) attributes {dimension_semantics = [#tpu.dimension_semantics<parallel>], iteration_bounds = array<i64: 2>, scalar_prefetch = 0 : i64, scratch_operands = 0 : i64, tpu.core_type = #tpu.core_type<tc>, window_params = [{transform_indices = @transform_0, window_bounds = array<i64: 1, 16, 32>}, {transform_indices = @transform_1, window_bounds = array<i64: 1, 1, 16>}, {pipeline_mode = #tpu.pipeline_mode<synchronous>, transform_indices = @transform_2, window_bounds = array<i64: 2, 32, 16>}, {pipeline_mode = #tpu.pipeline_mode<synchronous>, transform_indices = @transform_3, window_bounds = array<i64: 2, 1, 16>}, {pipeline_mode = #tpu.pipeline_mode<synchronous>, transform_indices = @transform_4, window_bounds = array<i64: 2, 32, 16>}, {pipeline_mode = #tpu.pipeline_mode<synchronous>, transform_indices = @transform_5, window_bounds = array<i64: 2, 1, 16>}, {pipeline_mode = #tpu.pipeline_mode<synchronous>, transform_indices = @transform_6, window_bounds = array<i64: 2, 32, 16>}, {pipeline_mode = #tpu.pipeline_mode<synchronous>, transform_indices = @transform_7, window_bounds = array<i64: 2, 1, 16>}, {pipeline_mode = #tpu.pipeline_mode<synchronous>, transform_indices = @transform_8, window_bounds = array<i64: 2, 16, 32>}, {pipeline_mode = #tpu.pipeline_mode<synchronous>, transform_indices = @transform_9, window_bounds = array<i64: 1, 32>}, {pipeline_mode = #tpu.pipeline_mode<synchronous>, transform_indices = @transform_10, window_bounds = array<i64: 1, 32>}, {pipeline_mode = #tpu.pipeline_mode<synchronous>, transform_indices = @transform_11, window_bounds = array<i64: 1, 32>}, {pipeline_mode = #tpu.pipeline_mode<synchronous>, transform_indices = @transform_12, window_bounds = array<i64: 32, 64>}, {pipeline_mode = #tpu.pipeline_mode<synchronous>, transform_indices = @transform_13, window_bounds = array<i64: 1, 64>}, {pipeline_mode = #tpu.pipeline_mode<synchronous>, transform_indices = @transform_14, window_bounds = array<i64: 64, 32>}, {pipeline_mode = #tpu.pipeline_mode<synchronous>, transform_indices = @transform_15, window_bounds = array<i64: 1, 32>}, {pipeline_mode = #tpu.pipeline_mode<synchronous>, transform_indices = @transform_16, window_bounds = array<i64: 1, 32>}, {pipeline_mode = #tpu.pipeline_mode<synchronous>, transform_indices = @transform_17, window_bounds = array<i64: 1, 32>}, {transform_indices = @transform_18, window_bounds = array<i64: 1, 16, 32>}]} {
    %c0 = arith.constant 0 : index
    %c0_0 = arith.constant 0 : index
    %c0_1 = arith.constant 0 : index
    %0 = vector.load %arg1[%c0, %c0_0, %c0_1] : memref<1x16x32xf32, #tpu.memory_space<vmem>>, vector<1x16x32xf32>
    %1 = vector.shape_cast %0 : vector<1x16x32xf32> to vector<16x32xf32>
    %c0_2 = arith.constant 0 : index
    %c0_3 = arith.constant 0 : index
    %c0_4 = arith.constant 0 : index
    %2 = vector.load %arg2[%c0_2, %c0_3, %c0_4] : memref<1x1x16xf32, #tpu.memory_space<vmem>>, vector<1x1x16xf32>
    %3 = vector.shape_cast %2 : vector<1x1x16xf32> to vector<1x16xf32>
    %4 = arith.truncf %1 : vector<16x32xf32> to vector<16x32xbf16>
    %cst = arith.constant 0.000000e+00 : f32
    %5 = vector.broadcast %cst : f32 to vector<16x32xf32>
    %c0_5 = arith.constant 0 : index
    %c0_6 = arith.constant 0 : index
    %c0_7 = arith.constant 0 : index
    %6 = vector.load %arg3[%c0_5, %c0_6, %c0_7] : memref<2x32x16xbf16, #tpu.memory_space<vmem>>, vector<1x32x16xbf16>
    %7 = vector.shape_cast %6 : vector<1x32x16xbf16> to vector<32x16xbf16>
    %cst_8 = arith.constant dense<0.000000e+00> : vector<16x16xf32>
    %8 = tpu.matmul %4, %7, %cst_8 {dimension_numbers = #tpu.dot_dimension_numbers<[1], [0], [0], [1], [0, 0, 1, 1], [], []>} : vector<16x32xbf16>, vector<32x16xbf16>, vector<16x16xf32> -> vector<16x16xf32>
    %c0_9 = arith.constant 0 : index
    %c0_10 = arith.constant 0 : index
    %c0_11 = arith.constant 0 : index
    %9 = vector.load %arg4[%c0_9, %c0_10, %c0_11] : memref<2x1x16xf32, #tpu.memory_space<vmem>>, vector<1x1x16xf32>
    %10 = vector.shape_cast %9 : vector<1x1x16xf32> to vector<1x16xf32>
    %11 = vector.broadcast %10 : vector<1x16xf32> to vector<16x16xf32>
    %12 = arith.addf %8, %11 : vector<16x16xf32>
    %cst_12 = arith.constant 2.500000e-01 : f32
    %13 = vector.broadcast %cst_12 : f32 to vector<16x16xf32>
    %14 = arith.mulf %12, %13 : vector<16x16xf32>
    %c0_13 = arith.constant 0 : index
    %c0_14 = arith.constant 0 : index
    %c0_15 = arith.constant 0 : index
    %15 = vector.load %arg5[%c0_13, %c0_14, %c0_15] : memref<2x32x16xbf16, #tpu.memory_space<vmem>>, vector<1x32x16xbf16>
    %16 = vector.shape_cast %15 : vector<1x32x16xbf16> to vector<32x16xbf16>
    %cst_16 = arith.constant dense<0.000000e+00> : vector<16x16xf32>
    %17 = tpu.matmul %4, %16, %cst_16 {dimension_numbers = #tpu.dot_dimension_numbers<[1], [0], [0], [1], [0, 0, 1, 1], [], []>} : vector<16x32xbf16>, vector<32x16xbf16>, vector<16x16xf32> -> vector<16x16xf32>
    %c0_17 = arith.constant 0 : index
    %c0_18 = arith.constant 0 : index
    %c0_19 = arith.constant 0 : index
    %18 = vector.load %arg6[%c0_17, %c0_18, %c0_19] : memref<2x1x16xf32, #tpu.memory_space<vmem>>, vector<1x1x16xf32>
    %19 = vector.shape_cast %18 : vector<1x1x16xf32> to vector<1x16xf32>
    %20 = vector.broadcast %19 : vector<1x16xf32> to vector<16x16xf32>
    %21 = arith.addf %17, %20 : vector<16x16xf32>
    %c0_20 = arith.constant 0 : index
    %c0_21 = arith.constant 0 : index
    %c0_22 = arith.constant 0 : index
    %22 = vector.load %arg7[%c0_20, %c0_21, %c0_22] : memref<2x32x16xbf16, #tpu.memory_space<vmem>>, vector<1x32x16xbf16>
    %23 = vector.shape_cast %22 : vector<1x32x16xbf16> to vector<32x16xbf16>
    %cst_23 = arith.constant dense<0.000000e+00> : vector<16x16xf32>
    %24 = tpu.matmul %4, %23, %cst_23 {dimension_numbers = #tpu.dot_dimension_numbers<[1], [0], [0], [1], [0, 0, 1, 1], [], []>} : vector<16x32xbf16>, vector<32x16xbf16>, vector<16x16xf32> -> vector<16x16xf32>
    %c0_24 = arith.constant 0 : index
    %c0_25 = arith.constant 0 : index
    %c0_26 = arith.constant 0 : index
    %25 = vector.load %arg8[%c0_24, %c0_25, %c0_26] : memref<2x1x16xf32, #tpu.memory_space<vmem>>, vector<1x1x16xf32>
    %26 = vector.shape_cast %25 : vector<1x1x16xf32> to vector<1x16xf32>
    %27 = vector.broadcast %26 : vector<1x16xf32> to vector<16x16xf32>
    %28 = arith.addf %24, %27 : vector<16x16xf32>
    %cst_27 = arith.constant dense<0.000000e+00> : vector<16x16xf32>
    %29 = tpu.matmul %14, %21, %cst_27 {dimension_numbers = #tpu.dot_dimension_numbers<[1], [1], [0], [0], [0, 0, 1, 0], [], []>} : vector<16x16xf32>, vector<16x16xf32>, vector<16x16xf32> -> vector<16x16xf32>
    %30 = vector.broadcast %3 : vector<1x16xf32> to vector<16x16xf32>
    %31 = arith.addf %29, %30 : vector<16x16xf32>
    %cst_28 = arith.constant dense<0xFF800000> : vector<16xf32>
    %32 = vector.multi_reduction <maximumf>, %31, %cst_28 [1] : vector<16x16xf32> to vector<16xf32>
    %33 = vector.shape_cast %32 : vector<16xf32> to vector<16x1xf32>
    %34 = vector.broadcast %33 : vector<16x1xf32> to vector<16x16xf32>
    %35 = arith.subf %31, %34 : vector<16x16xf32>
    %36 = math.exp %35 : vector<16x16xf32>
    %cst_29 = arith.constant dense<0.000000e+00> : vector<16xf32>
    %37 = vector.multi_reduction <add>, %36, %cst_29 [1] : vector<16x16xf32> to vector<16xf32>
    %38 = vector.shape_cast %37 : vector<16xf32> to vector<16x1xf32>
    %39 = tpu.reciprocal %38 {approx = true} : vector<16x1xf32> -> vector<16x1xf32>
    %40 = vector.broadcast %39 : vector<16x1xf32> to vector<16x16xf32>
    %41 = arith.mulf %36, %40 : vector<16x16xf32>
    %42 = arith.truncf %41 : vector<16x16xf32> to vector<16x16xbf16>
    %43 = arith.truncf %28 : vector<16x16xf32> to vector<16x16xbf16>
    %cst_30 = arith.constant dense<0.000000e+00> : vector<16x16xf32>
    %44 = tpu.matmul %42, %43, %cst_30 {dimension_numbers = #tpu.dot_dimension_numbers<[1], [0], [0], [1], [0, 0, 1, 1], [], []>} : vector<16x16xbf16>, vector<16x16xbf16>, vector<16x16xf32> -> vector<16x16xf32>
    %45 = arith.truncf %44 : vector<16x16xf32> to vector<16x16xbf16>
    %c0_31 = arith.constant 0 : index
    %c0_32 = arith.constant 0 : index
    %c0_33 = arith.constant 0 : index
    %46 = vector.load %arg9[%c0_31, %c0_32, %c0_33] : memref<2x16x32xbf16, #tpu.memory_space<vmem>>, vector<1x16x32xbf16>
    %47 = vector.shape_cast %46 : vector<1x16x32xbf16> to vector<16x32xbf16>
    %cst_34 = arith.constant dense<0.000000e+00> : vector<16x32xf32>
    %48 = tpu.matmul %45, %47, %cst_34 {dimension_numbers = #tpu.dot_dimension_numbers<[1], [0], [0], [1], [0, 0, 1, 1], [], []>} : vector<16x16xbf16>, vector<16x32xbf16>, vector<16x32xf32> -> vector<16x32xf32>
    %49 = arith.addf %5, %48 : vector<16x32xf32>
    %c1 = arith.constant 1 : index
    %c0_35 = arith.constant 0 : index
    %c0_36 = arith.constant 0 : index
    %50 = vector.load %arg3[%c1, %c0_35, %c0_36] : memref<2x32x16xbf16, #tpu.memory_space<vmem>>, vector<1x32x16xbf16>
    %51 = vector.shape_cast %50 : vector<1x32x16xbf16> to vector<32x16xbf16>
    %cst_37 = arith.constant dense<0.000000e+00> : vector<16x16xf32>
    %52 = tpu.matmul %4, %51, %cst_37 {dimension_numbers = #tpu.dot_dimension_numbers<[1], [0], [0], [1], [0, 0, 1, 1], [], []>} : vector<16x32xbf16>, vector<32x16xbf16>, vector<16x16xf32> -> vector<16x16xf32>
    %c1_38 = arith.constant 1 : index
    %c0_39 = arith.constant 0 : index
    %c0_40 = arith.constant 0 : index
    %53 = vector.load %arg4[%c1_38, %c0_39, %c0_40] : memref<2x1x16xf32, #tpu.memory_space<vmem>>, vector<1x1x16xf32>
    %54 = vector.shape_cast %53 : vector<1x1x16xf32> to vector<1x16xf32>
    %55 = vector.broadcast %54 : vector<1x16xf32> to vector<16x16xf32>
    %56 = arith.addf %52, %55 : vector<16x16xf32>
    %cst_41 = arith.constant 2.500000e-01 : f32
    %57 = vector.broadcast %cst_41 : f32 to vector<16x16xf32>
    %58 = arith.mulf %56, %57 : vector<16x16xf32>
    %c1_42 = arith.constant 1 : index
    %c0_43 = arith.constant 0 : index
    %c0_44 = arith.constant 0 : index
    %59 = vector.load %arg5[%c1_42, %c0_43, %c0_44] : memref<2x32x16xbf16, #tpu.memory_space<vmem>>, vector<1x32x16xbf16>
    %60 = vector.shape_cast %59 : vector<1x32x16xbf16> to vector<32x16xbf16>
    %cst_45 = arith.constant dense<0.000000e+00> : vector<16x16xf32>
    %61 = tpu.matmul %4, %60, %cst_45 {dimension_numbers = #tpu.dot_dimension_numbers<[1], [0], [0], [1], [0, 0, 1, 1], [], []>} : vector<16x32xbf16>, vector<32x16xbf16>, vector<16x16xf32> -> vector<16x16xf32>
    %c1_46 = arith.constant 1 : index
    %c0_47 = arith.constant 0 : index
    %c0_48 = arith.constant 0 : index
    %62 = vector.load %arg6[%c1_46, %c0_47, %c0_48] : memref<2x1x16xf32, #tpu.memory_space<vmem>>, vector<1x1x16xf32>
    %63 = vector.shape_cast %62 : vector<1x1x16xf32> to vector<1x16xf32>
    %64 = vector.broadcast %63 : vector<1x16xf32> to vector<16x16xf32>
    %65 = arith.addf %61, %64 : vector<16x16xf32>
    %c1_49 = arith.constant 1 : index
    %c0_50 = arith.constant 0 : index
    %c0_51 = arith.constant 0 : index
    %66 = vector.load %arg7[%c1_49, %c0_50, %c0_51] : memref<2x32x16xbf16, #tpu.memory_space<vmem>>, vector<1x32x16xbf16>
    %67 = vector.shape_cast %66 : vector<1x32x16xbf16> to vector<32x16xbf16>
    %cst_52 = arith.constant dense<0.000000e+00> : vector<16x16xf32>
    %68 = tpu.matmul %4, %67, %cst_52 {dimension_numbers = #tpu.dot_dimension_numbers<[1], [0], [0], [1], [0, 0, 1, 1], [], []>} : vector<16x32xbf16>, vector<32x16xbf16>, vector<16x16xf32> -> vector<16x16xf32>
    %c1_53 = arith.constant 1 : index
    %c0_54 = arith.constant 0 : index
    %c0_55 = arith.constant 0 : index
    %69 = vector.load %arg8[%c1_53, %c0_54, %c0_55] : memref<2x1x16xf32, #tpu.memory_space<vmem>>, vector<1x1x16xf32>
    %70 = vector.shape_cast %69 : vector<1x1x16xf32> to vector<1x16xf32>
    %71 = vector.broadcast %70 : vector<1x16xf32> to vector<16x16xf32>
    %72 = arith.addf %68, %71 : vector<16x16xf32>
    %cst_56 = arith.constant dense<0.000000e+00> : vector<16x16xf32>
    %73 = tpu.matmul %58, %65, %cst_56 {dimension_numbers = #tpu.dot_dimension_numbers<[1], [1], [0], [0], [0, 0, 1, 0], [], []>} : vector<16x16xf32>, vector<16x16xf32>, vector<16x16xf32> -> vector<16x16xf32>
    %74 = vector.broadcast %3 : vector<1x16xf32> to vector<16x16xf32>
    %75 = arith.addf %73, %74 : vector<16x16xf32>
    %cst_57 = arith.constant dense<0xFF800000> : vector<16xf32>
    %76 = vector.multi_reduction <maximumf>, %75, %cst_57 [1] : vector<16x16xf32> to vector<16xf32>
    %77 = vector.shape_cast %76 : vector<16xf32> to vector<16x1xf32>
    %78 = vector.broadcast %77 : vector<16x1xf32> to vector<16x16xf32>
    %79 = arith.subf %75, %78 : vector<16x16xf32>
    %80 = math.exp %79 : vector<16x16xf32>
    %cst_58 = arith.constant dense<0.000000e+00> : vector<16xf32>
    %81 = vector.multi_reduction <add>, %80, %cst_58 [1] : vector<16x16xf32> to vector<16xf32>
    %82 = vector.shape_cast %81 : vector<16xf32> to vector<16x1xf32>
    %83 = tpu.reciprocal %82 {approx = true} : vector<16x1xf32> -> vector<16x1xf32>
    %84 = vector.broadcast %83 : vector<16x1xf32> to vector<16x16xf32>
    %85 = arith.mulf %80, %84 : vector<16x16xf32>
    %86 = arith.truncf %85 : vector<16x16xf32> to vector<16x16xbf16>
    %87 = arith.truncf %72 : vector<16x16xf32> to vector<16x16xbf16>
    %cst_59 = arith.constant dense<0.000000e+00> : vector<16x16xf32>
    %88 = tpu.matmul %86, %87, %cst_59 {dimension_numbers = #tpu.dot_dimension_numbers<[1], [0], [0], [1], [0, 0, 1, 1], [], []>} : vector<16x16xbf16>, vector<16x16xbf16>, vector<16x16xf32> -> vector<16x16xf32>
    %89 = arith.truncf %88 : vector<16x16xf32> to vector<16x16xbf16>
    %c1_60 = arith.constant 1 : index
    %c0_61 = arith.constant 0 : index
    %c0_62 = arith.constant 0 : index
    %90 = vector.load %arg9[%c1_60, %c0_61, %c0_62] : memref<2x16x32xbf16, #tpu.memory_space<vmem>>, vector<1x16x32xbf16>
    %91 = vector.shape_cast %90 : vector<1x16x32xbf16> to vector<16x32xbf16>
    %cst_63 = arith.constant dense<0.000000e+00> : vector<16x32xf32>
    %92 = tpu.matmul %89, %91, %cst_63 {dimension_numbers = #tpu.dot_dimension_numbers<[1], [0], [0], [1], [0, 0, 1, 1], [], []>} : vector<16x16xbf16>, vector<16x32xbf16>, vector<16x32xf32> -> vector<16x32xf32>
    %93 = arith.addf %49, %92 : vector<16x32xf32>
    %c0_64 = arith.constant 0 : index
    %c0_65 = arith.constant 0 : index
    %94 = vector.load %arg10[%c0_64, %c0_65] : memref<1x32xf32, #tpu.memory_space<vmem>>, vector<1x32xf32>
    %95 = vector.broadcast %94 : vector<1x32xf32> to vector<16x32xf32>
    %96 = arith.addf %93, %95 : vector<16x32xf32>
    %97 = arith.addf %1, %96 : vector<16x32xf32>
    %c0_66 = arith.constant 0 : index
    %c0_67 = arith.constant 0 : index
    %98 = vector.load %arg11[%c0_66, %c0_67] : memref<1x32xf32, #tpu.memory_space<vmem>>, vector<1x32xf32>
    %c0_68 = arith.constant 0 : index
    %c0_69 = arith.constant 0 : index
    %99 = vector.load %arg12[%c0_68, %c0_69] : memref<1x32xf32, #tpu.memory_space<vmem>>, vector<1x32xf32>
    %cst_70 = arith.constant dense<0.000000e+00> : vector<16xf32>
    %100 = vector.multi_reduction <add>, %97, %cst_70 [1] : vector<16x32xf32> to vector<16xf32>
    %101 = vector.shape_cast %100 : vector<16xf32> to vector<16x1xf32>
    %cst_71 = arith.constant 3.200000e+01 : f32
    %102 = vector.broadcast %cst_71 : f32 to vector<16x1xf32>
    %103 = arith.divf %101, %102 : vector<16x1xf32>
    %104 = vector.broadcast %103 : vector<16x1xf32> to vector<16x32xf32>
    %105 = arith.subf %97, %104 : vector<16x32xf32>
    %106 = arith.mulf %105, %105 : vector<16x32xf32>
    %cst_72 = arith.constant dense<0.000000e+00> : vector<16xf32>
    %107 = vector.multi_reduction <add>, %106, %cst_72 [1] : vector<16x32xf32> to vector<16xf32>
    %108 = vector.shape_cast %107 : vector<16xf32> to vector<16x1xf32>
    %cst_73 = arith.constant 3.200000e+01 : f32
    %109 = vector.broadcast %cst_73 : f32 to vector<16x1xf32>
    %110 = arith.divf %108, %109 : vector<16x1xf32>
    %111 = vector.broadcast %103 : vector<16x1xf32> to vector<16x32xf32>
    %112 = arith.subf %97, %111 : vector<16x32xf32>
    %cst_74 = arith.constant 9.99999974E-6 : f32
    %113 = vector.broadcast %cst_74 : f32 to vector<16x1xf32>
    %114 = arith.addf %110, %113 : vector<16x1xf32>
    %115 = math.rsqrt %114 : vector<16x1xf32>
    %116 = vector.broadcast %115 : vector<16x1xf32> to vector<16x32xf32>
    %117 = arith.mulf %112, %116 : vector<16x32xf32>
    %118 = vector.broadcast %98 : vector<1x32xf32> to vector<16x32xf32>
    %119 = arith.mulf %117, %118 : vector<16x32xf32>
    %120 = vector.broadcast %99 : vector<1x32xf32> to vector<16x32xf32>
    %121 = arith.addf %119, %120 : vector<16x32xf32>
    %122 = arith.truncf %121 : vector<16x32xf32> to vector<16x32xbf16>
    %c0_75 = arith.constant 0 : index
    %c0_76 = arith.constant 0 : index
    %123 = vector.load %arg13[%c0_75, %c0_76] : memref<32x64xbf16, #tpu.memory_space<vmem>>, vector<32x64xbf16>
    %cst_77 = arith.constant dense<0.000000e+00> : vector<16x64xf32>
    %124 = tpu.matmul %122, %123, %cst_77 {dimension_numbers = #tpu.dot_dimension_numbers<[1], [0], [0], [1], [0, 0, 1, 1], [], []>} : vector<16x32xbf16>, vector<32x64xbf16>, vector<16x64xf32> -> vector<16x64xf32>
    %c0_78 = arith.constant 0 : index
    %c0_79 = arith.constant 0 : index
    %125 = vector.load %arg14[%c0_78, %c0_79] : memref<1x64xf32, #tpu.memory_space<vmem>>, vector<1x64xf32>
    %126 = vector.broadcast %125 : vector<1x64xf32> to vector<16x64xf32>
    %127 = arith.addf %124, %126 : vector<16x64xf32>
    %cst_80 = arith.constant 0.000000e+00 : f32
    %128 = vector.broadcast %cst_80 : f32 to vector<16x64xf32>
    %129 = arith.maximumf %127, %128 : vector<16x64xf32>
    %130 = arith.truncf %129 : vector<16x64xf32> to vector<16x64xbf16>
    %c0_81 = arith.constant 0 : index
    %c0_82 = arith.constant 0 : index
    %131 = vector.load %arg15[%c0_81, %c0_82] : memref<64x32xbf16, #tpu.memory_space<vmem>>, vector<64x32xbf16>
    %cst_83 = arith.constant dense<0.000000e+00> : vector<16x32xf32>
    %132 = tpu.matmul %130, %131, %cst_83 {dimension_numbers = #tpu.dot_dimension_numbers<[1], [0], [0], [1], [0, 0, 1, 1], [], []>} : vector<16x64xbf16>, vector<64x32xbf16>, vector<16x32xf32> -> vector<16x32xf32>
    %c0_84 = arith.constant 0 : index
    %c0_85 = arith.constant 0 : index
    %133 = vector.load %arg16[%c0_84, %c0_85] : memref<1x32xf32, #tpu.memory_space<vmem>>, vector<1x32xf32>
    %134 = vector.broadcast %133 : vector<1x32xf32> to vector<16x32xf32>
    %135 = arith.addf %132, %134 : vector<16x32xf32>
    %136 = arith.addf %121, %135 : vector<16x32xf32>
    %c0_86 = arith.constant 0 : index
    %c0_87 = arith.constant 0 : index
    %137 = vector.load %arg17[%c0_86, %c0_87] : memref<1x32xf32, #tpu.memory_space<vmem>>, vector<1x32xf32>
    %c0_88 = arith.constant 0 : index
    %c0_89 = arith.constant 0 : index
    %138 = vector.load %arg18[%c0_88, %c0_89] : memref<1x32xf32, #tpu.memory_space<vmem>>, vector<1x32xf32>
    %cst_90 = arith.constant dense<0.000000e+00> : vector<16xf32>
    %139 = vector.multi_reduction <add>, %136, %cst_90 [1] : vector<16x32xf32> to vector<16xf32>
    %140 = vector.shape_cast %139 : vector<16xf32> to vector<16x1xf32>
    %cst_91 = arith.constant 3.200000e+01 : f32
    %141 = vector.broadcast %cst_91 : f32 to vector<16x1xf32>
    %142 = arith.divf %140, %141 : vector<16x1xf32>
    %143 = vector.broadcast %142 : vector<16x1xf32> to vector<16x32xf32>
    %144 = arith.subf %136, %143 : vector<16x32xf32>
    %145 = arith.mulf %144, %144 : vector<16x32xf32>
    %cst_92 = arith.constant dense<0.000000e+00> : vector<16xf32>
    %146 = vector.multi_reduction <add>, %145, %cst_92 [1] : vector<16x32xf32> to vector<16xf32>
    %147 = vector.shape_cast %146 : vector<16xf32> to vector<16x1xf32>
    %cst_93 = arith.constant 3.200000e+01 : f32
    %148 = vector.broadcast %cst_93 : f32 to vector<16x1xf32>
    %149 = arith.divf %147, %148 : vector<16x1xf32>
    %150 = vector.broadcast %142 : vector<16x1xf32> to vector<16x32xf32>
    %151 = arith.subf %136, %150 : vector<16x32xf32>
    %cst_94 = arith.constant 9.99999974E-6 : f32
    %152 = vector.broadcast %cst_94 : f32 to vector<16x1xf32>
    %153 = arith.addf %149, %152 : vector<16x1xf32>
    %154 = math.rsqrt %153 : vector<16x1xf32>
    %155 = vector.broadcast %154 : vector<16x1xf32> to vector<16x32xf32>
    %156 = arith.mulf %151, %155 : vector<16x32xf32>
    %157 = vector.broadcast %137 : vector<1x32xf32> to vector<16x32xf32>
    %158 = arith.mulf %156, %157 : vector<16x32xf32>
    %159 = vector.broadcast %138 : vector<1x32xf32> to vector<16x32xf32>
    %160 = arith.addf %158, %159 : vector<16x32xf32>
    %c0_95 = arith.constant 0 : index
    %c0_96 = arith.constant 0 : index
    %c0_97 = arith.constant 0 : index
    %161 = vector.load %arg19[%c0_95, %c0_96, %c0_97] : memref<1x16x32xf32, #tpu.memory_space<vmem>>, vector<1x16x32xf32>
    %162 = vector.shape_cast %161 : vector<1x16x32xf32> to vector<16x32xf32>
    %163 = vector.shape_cast %160 : vector<16x32xf32> to vector<1x16x32xf32>
    tpu.vector_store %arg19[%c0_95, %c0_96, %c0_97], %163 {strides = array<i32>} : memref<1x16x32xf32, #tpu.memory_space<vmem>>, vector<1x16x32xf32>,
    return
  }
  func.func @transform_0(%arg0: i32) -> (i32, i32, i32) {
    %c0_i32 = arith.constant 0 : i32
    %c0_i32_0 = arith.constant 0 : i32
    %c0_i32_1 = arith.constant 0 : i32
    return %arg0, %c0_i32, %c0_i32_0 : i32, i32, i32
  }
  func.func @transform_1(%arg0: i32) -> (i32, i32, i32) {
    %c0_i32 = arith.constant 0 : i32
    %c0_i32_0 = arith.constant 0 : i32
    %c0_i32_1 = arith.constant 0 : i32
    return %arg0, %c0_i32, %c0_i32_0 : i32, i32, i32
  }
  func.func @transform_2(%arg0: i32) -> (i32, i32, i32) {
    %c0_i32 = arith.constant 0 : i32
    %c0_i32_0 = arith.constant 0 : i32
    %c0_i32_1 = arith.constant 0 : i32
    %c0_i32_2 = arith.constant 0 : i32
    return %c0_i32, %c0_i32_0, %c0_i32_1 : i32, i32, i32
  }
  func.func @transform_3(%arg0: i32) -> (i32, i32, i32) {
    %c0_i32 = arith.constant 0 : i32
    %c0_i32_0 = arith.constant 0 : i32
    %c0_i32_1 = arith.constant 0 : i32
    %c0_i32_2 = arith.constant 0 : i32
    return %c0_i32, %c0_i32_0, %c0_i32_1 : i32, i32, i32
  }
  func.func @transform_4(%arg0: i32) -> (i32, i32, i32) {
    %c0_i32 = arith.constant 0 : i32
    %c0_i32_0 = arith.constant 0 : i32
    %c0_i32_1 = arith.constant 0 : i32
    %c0_i32_2 = arith.constant 0 : i32
    return %c0_i32, %c0_i32_0, %c0_i32_1 : i32, i32, i32
  }
  func.func @transform_5(%arg0: i32) -> (i32, i32, i32) {
    %c0_i32 = arith.constant 0 : i32
    %c0_i32_0 = arith.constant 0 : i32
    %c0_i32_1 = arith.constant 0 : i32
    %c0_i32_2 = arith.constant 0 : i32
    return %c0_i32, %c0_i32_0, %c0_i32_1 : i32, i32, i32
  }
  func.func @transform_6(%arg0: i32) -> (i32, i32, i32) {
    %c0_i32 = arith.constant 0 : i32
    %c0_i32_0 = arith.constant 0 : i32
    %c0_i32_1 = arith.constant 0 : i32
    %c0_i32_2 = arith.constant 0 : i32
    return %c0_i32, %c0_i32_0, %c0_i32_1 : i32, i32, i32
  }
  func.func @transform_7(%arg0: i32) -> (i32, i32, i32) {
    %c0_i32 = arith.constant 0 : i32
    %c0_i32_0 = arith.constant 0 : i32
    %c0_i32_1 = arith.constant 0 : i32
    %c0_i32_2 = arith.constant 0 : i32
    return %c0_i32, %c0_i32_0, %c0_i32_1 : i32, i32, i32
  }
  func.func @transform_8(%arg0: i32) -> (i32, i32, i32) {
    %c0_i32 = arith.constant 0 : i32
    %c0_i32_0 = arith.constant 0 : i32
    %c0_i32_1 = arith.constant 0 : i32
    %c0_i32_2 = arith.constant 0 : i32
    return %c0_i32, %c0_i32_0, %c0_i32_1 : i32, i32, i32
  }
  func.func @transform_9(%arg0: i32) -> (i32, i32) {
    %c0_i32 = arith.constant 0 : i32
    %c0_i32_0 = arith.constant 0 : i32
    %c0_i32_1 = arith.constant 0 : i32
    return %c0_i32, %c0_i32_0 : i32, i32
  }
  func.func @transform_10(%arg0: i32) -> (i32, i32) {
    %c0_i32 = arith.constant 0 : i32
    %c0_i32_0 = arith.constant 0 : i32
    %c0_i32_1 = arith.constant 0 : i32
    return %c0_i32, %c0_i32_0 : i32, i32
  }
  func.func @transform_11(%arg0: i32) -> (i32, i32) {
    %c0_i32 = arith.constant 0 : i32
    %c0_i32_0 = arith.constant 0 : i32
    %c0_i32_1 = arith.constant 0 : i32
    return %c0_i32, %c0_i32_0 : i32, i32
  }
  func.func @transform_12(%arg0: i32) -> (i32, i32) {
    %c0_i32 = arith.constant 0 : i32
    %c0_i32_0 = arith.constant 0 : i32
    %c0_i32_1 = arith.constant 0 : i32
    return %c0_i32, %c0_i32_0 : i32, i32
  }
  func.func @transform_13(%arg0: i32) -> (i32, i32) {
    %c0_i32 = arith.constant 0 : i32
    %c0_i32_0 = arith.constant 0 : i32
    %c0_i32_1 = arith.constant 0 : i32
    return %c0_i32, %c0_i32_0 : i32, i32
  }
  func.func @transform_14(%arg0: i32) -> (i32, i32) {
    %c0_i32 = arith.constant 0 : i32
    %c0_i32_0 = arith.constant 0 : i32
    %c0_i32_1 = arith.constant 0 : i32
    return %c0_i32, %c0_i32_0 : i32, i32
  }
  func.func @transform_15(%arg0: i32) -> (i32, i32) {
    %c0_i32 = arith.constant 0 : i32
    %c0_i32_0 = arith.constant 0 : i32
    %c0_i32_1 = arith.constant 0 : i32
    return %c0_i32, %c0_i32_0 : i32, i32
  }
  func.func @transform_16(%arg0: i32) -> (i32, i32) {
    %c0_i32 = arith.constant 0 : i32
    %c0_i32_0 = arith.constant 0 : i32
    %c0_i32_1 = arith.constant 0 : i32
    return %c0_i32, %c0_i32_0 : i32, i32
  }
  func.func @transform_17(%arg0: i32) -> (i32, i32) {
    %c0_i32 = arith.constant 0 : i32
    %c0_i32_0 = arith.constant 0 : i32
    %c0_i32_1 = arith.constant 0 : i32
    return %c0_i32, %c0_i32_0 : i32, i32
  }
  func.func @transform_18(%arg0: i32) -> (i32, i32, i32) {
    %c0_i32 = arith.constant 0 : i32
    %c0_i32_0 = arith.constant 0 : i32
    %c0_i32_1 = arith.constant 0 : i32
    return %arg0, %c0_i32, %c0_i32_0 : i32, i32, i32
  }
}

module attributes {stable_mosaic.version = 11 : i64} {
  func.func @_transformer_layer_proj_kernel(%arg0: i32, %arg1: memref<1x16x32xf32, #tpu.memory_space<vmem>>, %arg2: memref<1x1x16xf32, #tpu.memory_space<vmem>>, %arg3: memref<2x32x16xbf16, #tpu.memory_space<vmem>>, %arg4: memref<2x1x16xf32, #tpu.memory_space<vmem>>, %arg5: memref<2x32x16xbf16, #tpu.memory_space<vmem>>, %arg6: memref<2x1x16xf32, #tpu.memory_space<vmem>>, %arg7: memref<2x32x16xbf16, #tpu.memory_space<vmem>>, %arg8: memref<2x1x16xf32, #tpu.memory_space<vmem>>, %arg9: memref<2x16x32xbf16, #tpu.memory_space<vmem>>, %arg10: memref<1x32xf32, #tpu.memory_space<vmem>>, %arg11: memref<1x32xf32, #tpu.memory_space<vmem>>, %arg12: memref<1x32xf32, #tpu.memory_space<vmem>>, %arg13: memref<32x64xbf16, #tpu.memory_space<vmem>>, %arg14: memref<1x64xf32, #tpu.memory_space<vmem>>, %arg15: memref<64x32xbf16, #tpu.memory_space<vmem>>, %arg16: memref<1x32xf32, #tpu.memory_space<vmem>>, %arg17: memref<1x32xf32, #tpu.memory_space<vmem>>, %arg18: memref<1x32xf32, #tpu.memory_space<vmem>>, %arg19: memref<32x20xbf16, #tpu.memory_space<vmem>>, %arg20: memref<1x20xf32, #tpu.memory_space<vmem>>, %arg21: memref<1x16x20xf32, #tpu.memory_space<vmem>>) attributes {dimension_semantics = [#tpu.dimension_semantics<parallel>], iteration_bounds = array<i64: 2>, scalar_prefetch = 0 : i64, scratch_operands = 0 : i64, tpu.core_type = #tpu.core_type<tc>, window_params = [{transform_indices = @transform_0, window_bounds = array<i64: 1, 16, 32>}, {transform_indices = @transform_1, window_bounds = array<i64: 1, 1, 16>}, {pipeline_mode = #tpu.pipeline_mode<synchronous>, transform_indices = @transform_2, window_bounds = array<i64: 2, 32, 16>}, {pipeline_mode = #tpu.pipeline_mode<synchronous>, transform_indices = @transform_3, window_bounds = array<i64: 2, 1, 16>}, {pipeline_mode = #tpu.pipeline_mode<synchronous>, transform_indices = @transform_4, window_bounds = array<i64: 2, 32, 16>}, {pipeline_mode = #tpu.pipeline_mode<synchronous>, transform_indices = @transform_5, window_bounds = array<i64: 2, 1, 16>}, {pipeline_mode = #tpu.pipeline_mode<synchronous>, transform_indices = @transform_6, window_bounds = array<i64: 2, 32, 16>}, {pipeline_mode = #tpu.pipeline_mode<synchronous>, transform_indices = @transform_7, window_bounds = array<i64: 2, 1, 16>}, {pipeline_mode = #tpu.pipeline_mode<synchronous>, transform_indices = @transform_8, window_bounds = array<i64: 2, 16, 32>}, {pipeline_mode = #tpu.pipeline_mode<synchronous>, transform_indices = @transform_9, window_bounds = array<i64: 1, 32>}, {pipeline_mode = #tpu.pipeline_mode<synchronous>, transform_indices = @transform_10, window_bounds = array<i64: 1, 32>}, {pipeline_mode = #tpu.pipeline_mode<synchronous>, transform_indices = @transform_11, window_bounds = array<i64: 1, 32>}, {pipeline_mode = #tpu.pipeline_mode<synchronous>, transform_indices = @transform_12, window_bounds = array<i64: 32, 64>}, {pipeline_mode = #tpu.pipeline_mode<synchronous>, transform_indices = @transform_13, window_bounds = array<i64: 1, 64>}, {pipeline_mode = #tpu.pipeline_mode<synchronous>, transform_indices = @transform_14, window_bounds = array<i64: 64, 32>}, {pipeline_mode = #tpu.pipeline_mode<synchronous>, transform_indices = @transform_15, window_bounds = array<i64: 1, 32>}, {pipeline_mode = #tpu.pipeline_mode<synchronous>, transform_indices = @transform_16, window_bounds = array<i64: 1, 32>}, {pipeline_mode = #tpu.pipeline_mode<synchronous>, transform_indices = @transform_17, window_bounds = array<i64: 1, 32>}, {pipeline_mode = #tpu.pipeline_mode<synchronous>, transform_indices = @transform_18, window_bounds = array<i64: 32, 20>}, {pipeline_mode = #tpu.pipeline_mode<synchronous>, transform_indices = @transform_19, window_bounds = array<i64: 1, 20>}, {transform_indices = @transform_20, window_bounds = array<i64: 1, 16, 20>}]} {
    %c0 = arith.constant 0 : index
    %c0_0 = arith.constant 0 : index
    %c0_1 = arith.constant 0 : index
    %0 = vector.load %arg1[%c0, %c0_0, %c0_1] : memref<1x16x32xf32, #tpu.memory_space<vmem>>, vector<1x16x32xf32>
    %1 = vector.shape_cast %0 : vector<1x16x32xf32> to vector<16x32xf32>
    %c0_2 = arith.constant 0 : index
    %c0_3 = arith.constant 0 : index
    %c0_4 = arith.constant 0 : index
    %2 = vector.load %arg2[%c0_2, %c0_3, %c0_4] : memref<1x1x16xf32, #tpu.memory_space<vmem>>, vector<1x1x16xf32>
    %3 = vector.shape_cast %2 : vector<1x1x16xf32> to vector<1x16xf32>
    %4 = arith.truncf %1 : vector<16x32xf32> to vector<16x32xbf16>
    %cst = arith.constant 0.000000e+00 : f32
    %5 = vector.broadcast %cst : f32 to vector<16x32xf32>
    %c0_5 = arith.constant 0 : index
    %c0_6 = arith.constant 0 : index
    %c0_7 = arith.constant 0 : index
    %6 = vector.load %arg3[%c0_5, %c0_6, %c0_7] : memref<2x32x16xbf16, #tpu.memory_space<vmem>>, vector<1x32x16xbf16>
    %7 = vector.shape_cast %6 : vector<1x32x16xbf16> to vector<32x16xbf16>
    %cst_8 = arith.constant dense<0.000000e+00> : vector<16x16xf32>
    %8 = tpu.matmul %4, %7, %cst_8 {dimension_numbers = #tpu.dot_dimension_numbers<[1], [0], [0], [1], [0, 0, 1, 1], [], []>} : vector<16x32xbf16>, vector<32x16xbf16>, vector<16x16xf32> -> vector<16x16xf32>
    %c0_9 = arith.constant 0 : index
    %c0_10 = arith.constant 0 : index
    %c0_11 = arith.constant 0 : index
    %9 = vector.load %arg4[%c0_9, %c0_10, %c0_11] : memref<2x1x16xf32, #tpu.memory_space<vmem>>, vector<1x1x16xf32>
    %10 = vector.shape_cast %9 : vector<1x1x16xf32> to vector<1x16xf32>
    %11 = vector.broadcast %10 : vector<1x16xf32> to vector<16x16xf32>
    %12 = arith.addf %8, %11 : vector<16x16xf32>
    %cst_12 = arith.constant 2.500000e-01 : f32
    %13 = vector.broadcast %cst_12 : f32 to vector<16x16xf32>
    %14 = arith.mulf %12, %13 : vector<16x16xf32>
    %c0_13 = arith.constant 0 : index
    %c0_14 = arith.constant 0 : index
    %c0_15 = arith.constant 0 : index
    %15 = vector.load %arg5[%c0_13, %c0_14, %c0_15] : memref<2x32x16xbf16, #tpu.memory_space<vmem>>, vector<1x32x16xbf16>
    %16 = vector.shape_cast %15 : vector<1x32x16xbf16> to vector<32x16xbf16>
    %cst_16 = arith.constant dense<0.000000e+00> : vector<16x16xf32>
    %17 = tpu.matmul %4, %16, %cst_16 {dimension_numbers = #tpu.dot_dimension_numbers<[1], [0], [0], [1], [0, 0, 1, 1], [], []>} : vector<16x32xbf16>, vector<32x16xbf16>, vector<16x16xf32> -> vector<16x16xf32>
    %c0_17 = arith.constant 0 : index
    %c0_18 = arith.constant 0 : index
    %c0_19 = arith.constant 0 : index
    %18 = vector.load %arg6[%c0_17, %c0_18, %c0_19] : memref<2x1x16xf32, #tpu.memory_space<vmem>>, vector<1x1x16xf32>
    %19 = vector.shape_cast %18 : vector<1x1x16xf32> to vector<1x16xf32>
    %20 = vector.broadcast %19 : vector<1x16xf32> to vector<16x16xf32>
    %21 = arith.addf %17, %20 : vector<16x16xf32>
    %c0_20 = arith.constant 0 : index
    %c0_21 = arith.constant 0 : index
    %c0_22 = arith.constant 0 : index
    %22 = vector.load %arg7[%c0_20, %c0_21, %c0_22] : memref<2x32x16xbf16, #tpu.memory_space<vmem>>, vector<1x32x16xbf16>
    %23 = vector.shape_cast %22 : vector<1x32x16xbf16> to vector<32x16xbf16>
    %cst_23 = arith.constant dense<0.000000e+00> : vector<16x16xf32>
    %24 = tpu.matmul %4, %23, %cst_23 {dimension_numbers = #tpu.dot_dimension_numbers<[1], [0], [0], [1], [0, 0, 1, 1], [], []>} : vector<16x32xbf16>, vector<32x16xbf16>, vector<16x16xf32> -> vector<16x16xf32>
    %c0_24 = arith.constant 0 : index
    %c0_25 = arith.constant 0 : index
    %c0_26 = arith.constant 0 : index
    %25 = vector.load %arg8[%c0_24, %c0_25, %c0_26] : memref<2x1x16xf32, #tpu.memory_space<vmem>>, vector<1x1x16xf32>
    %26 = vector.shape_cast %25 : vector<1x1x16xf32> to vector<1x16xf32>
    %27 = vector.broadcast %26 : vector<1x16xf32> to vector<16x16xf32>
    %28 = arith.addf %24, %27 : vector<16x16xf32>
    %cst_27 = arith.constant dense<0.000000e+00> : vector<16x16xf32>
    %29 = tpu.matmul %14, %21, %cst_27 {dimension_numbers = #tpu.dot_dimension_numbers<[1], [1], [0], [0], [0, 0, 1, 0], [], []>} : vector<16x16xf32>, vector<16x16xf32>, vector<16x16xf32> -> vector<16x16xf32>
    %30 = vector.broadcast %3 : vector<1x16xf32> to vector<16x16xf32>
    %31 = arith.addf %29, %30 : vector<16x16xf32>
    %cst_28 = arith.constant dense<0xFF800000> : vector<16xf32>
    %32 = vector.multi_reduction <maximumf>, %31, %cst_28 [1] : vector<16x16xf32> to vector<16xf32>
    %33 = vector.shape_cast %32 : vector<16xf32> to vector<16x1xf32>
    %34 = vector.broadcast %33 : vector<16x1xf32> to vector<16x16xf32>
    %35 = arith.subf %31, %34 : vector<16x16xf32>
    %36 = math.exp %35 : vector<16x16xf32>
    %cst_29 = arith.constant dense<0.000000e+00> : vector<16xf32>
    %37 = vector.multi_reduction <add>, %36, %cst_29 [1] : vector<16x16xf32> to vector<16xf32>
    %38 = vector.shape_cast %37 : vector<16xf32> to vector<16x1xf32>
    %39 = tpu.reciprocal %38 {approx = true} : vector<16x1xf32> -> vector<16x1xf32>
    %40 = vector.broadcast %39 : vector<16x1xf32> to vector<16x16xf32>
    %41 = arith.mulf %36, %40 : vector<16x16xf32>
    %42 = arith.truncf %41 : vector<16x16xf32> to vector<16x16xbf16>
    %43 = arith.truncf %28 : vector<16x16xf32> to vector<16x16xbf16>
    %cst_30 = arith.constant dense<0.000000e+00> : vector<16x16xf32>
    %44 = tpu.matmul %42, %43, %cst_30 {dimension_numbers = #tpu.dot_dimension_numbers<[1], [0], [0], [1], [0, 0, 1, 1], [], []>} : vector<16x16xbf16>, vector<16x16xbf16>, vector<16x16xf32> -> vector<16x16xf32>
    %45 = arith.truncf %44 : vector<16x16xf32> to vector<16x16xbf16>
    %c0_31 = arith.constant 0 : index
    %c0_32 = arith.constant 0 : index
    %c0_33 = arith.constant 0 : index
    %46 = vector.load %arg9[%c0_31, %c0_32, %c0_33] : memref<2x16x32xbf16, #tpu.memory_space<vmem>>, vector<1x16x32xbf16>
    %47 = vector.shape_cast %46 : vector<1x16x32xbf16> to vector<16x32xbf16>
    %cst_34 = arith.constant dense<0.000000e+00> : vector<16x32xf32>
    %48 = tpu.matmul %45, %47, %cst_34 {dimension_numbers = #tpu.dot_dimension_numbers<[1], [0], [0], [1], [0, 0, 1, 1], [], []>} : vector<16x16xbf16>, vector<16x32xbf16>, vector<16x32xf32> -> vector<16x32xf32>
    %49 = arith.addf %5, %48 : vector<16x32xf32>
    %c1 = arith.constant 1 : index
    %c0_35 = arith.constant 0 : index
    %c0_36 = arith.constant 0 : index
    %50 = vector.load %arg3[%c1, %c0_35, %c0_36] : memref<2x32x16xbf16, #tpu.memory_space<vmem>>, vector<1x32x16xbf16>
    %51 = vector.shape_cast %50 : vector<1x32x16xbf16> to vector<32x16xbf16>
    %cst_37 = arith.constant dense<0.000000e+00> : vector<16x16xf32>
    %52 = tpu.matmul %4, %51, %cst_37 {dimension_numbers = #tpu.dot_dimension_numbers<[1], [0], [0], [1], [0, 0, 1, 1], [], []>} : vector<16x32xbf16>, vector<32x16xbf16>, vector<16x16xf32> -> vector<16x16xf32>
    %c1_38 = arith.constant 1 : index
    %c0_39 = arith.constant 0 : index
    %c0_40 = arith.constant 0 : index
    %53 = vector.load %arg4[%c1_38, %c0_39, %c0_40] : memref<2x1x16xf32, #tpu.memory_space<vmem>>, vector<1x1x16xf32>
    %54 = vector.shape_cast %53 : vector<1x1x16xf32> to vector<1x16xf32>
    %55 = vector.broadcast %54 : vector<1x16xf32> to vector<16x16xf32>
    %56 = arith.addf %52, %55 : vector<16x16xf32>
    %cst_41 = arith.constant 2.500000e-01 : f32
    %57 = vector.broadcast %cst_41 : f32 to vector<16x16xf32>
    %58 = arith.mulf %56, %57 : vector<16x16xf32>
    %c1_42 = arith.constant 1 : index
    %c0_43 = arith.constant 0 : index
    %c0_44 = arith.constant 0 : index
    %59 = vector.load %arg5[%c1_42, %c0_43, %c0_44] : memref<2x32x16xbf16, #tpu.memory_space<vmem>>, vector<1x32x16xbf16>
    %60 = vector.shape_cast %59 : vector<1x32x16xbf16> to vector<32x16xbf16>
    %cst_45 = arith.constant dense<0.000000e+00> : vector<16x16xf32>
    %61 = tpu.matmul %4, %60, %cst_45 {dimension_numbers = #tpu.dot_dimension_numbers<[1], [0], [0], [1], [0, 0, 1, 1], [], []>} : vector<16x32xbf16>, vector<32x16xbf16>, vector<16x16xf32> -> vector<16x16xf32>
    %c1_46 = arith.constant 1 : index
    %c0_47 = arith.constant 0 : index
    %c0_48 = arith.constant 0 : index
    %62 = vector.load %arg6[%c1_46, %c0_47, %c0_48] : memref<2x1x16xf32, #tpu.memory_space<vmem>>, vector<1x1x16xf32>
    %63 = vector.shape_cast %62 : vector<1x1x16xf32> to vector<1x16xf32>
    %64 = vector.broadcast %63 : vector<1x16xf32> to vector<16x16xf32>
    %65 = arith.addf %61, %64 : vector<16x16xf32>
    %c1_49 = arith.constant 1 : index
    %c0_50 = arith.constant 0 : index
    %c0_51 = arith.constant 0 : index
    %66 = vector.load %arg7[%c1_49, %c0_50, %c0_51] : memref<2x32x16xbf16, #tpu.memory_space<vmem>>, vector<1x32x16xbf16>
    %67 = vector.shape_cast %66 : vector<1x32x16xbf16> to vector<32x16xbf16>
    %cst_52 = arith.constant dense<0.000000e+00> : vector<16x16xf32>
    %68 = tpu.matmul %4, %67, %cst_52 {dimension_numbers = #tpu.dot_dimension_numbers<[1], [0], [0], [1], [0, 0, 1, 1], [], []>} : vector<16x32xbf16>, vector<32x16xbf16>, vector<16x16xf32> -> vector<16x16xf32>
    %c1_53 = arith.constant 1 : index
    %c0_54 = arith.constant 0 : index
    %c0_55 = arith.constant 0 : index
    %69 = vector.load %arg8[%c1_53, %c0_54, %c0_55] : memref<2x1x16xf32, #tpu.memory_space<vmem>>, vector<1x1x16xf32>
    %70 = vector.shape_cast %69 : vector<1x1x16xf32> to vector<1x16xf32>
    %71 = vector.broadcast %70 : vector<1x16xf32> to vector<16x16xf32>
    %72 = arith.addf %68, %71 : vector<16x16xf32>
    %cst_56 = arith.constant dense<0.000000e+00> : vector<16x16xf32>
    %73 = tpu.matmul %58, %65, %cst_56 {dimension_numbers = #tpu.dot_dimension_numbers<[1], [1], [0], [0], [0, 0, 1, 0], [], []>} : vector<16x16xf32>, vector<16x16xf32>, vector<16x16xf32> -> vector<16x16xf32>
    %74 = vector.broadcast %3 : vector<1x16xf32> to vector<16x16xf32>
    %75 = arith.addf %73, %74 : vector<16x16xf32>
    %cst_57 = arith.constant dense<0xFF800000> : vector<16xf32>
    %76 = vector.multi_reduction <maximumf>, %75, %cst_57 [1] : vector<16x16xf32> to vector<16xf32>
    %77 = vector.shape_cast %76 : vector<16xf32> to vector<16x1xf32>
    %78 = vector.broadcast %77 : vector<16x1xf32> to vector<16x16xf32>
    %79 = arith.subf %75, %78 : vector<16x16xf32>
    %80 = math.exp %79 : vector<16x16xf32>
    %cst_58 = arith.constant dense<0.000000e+00> : vector<16xf32>
    %81 = vector.multi_reduction <add>, %80, %cst_58 [1] : vector<16x16xf32> to vector<16xf32>
    %82 = vector.shape_cast %81 : vector<16xf32> to vector<16x1xf32>
    %83 = tpu.reciprocal %82 {approx = true} : vector<16x1xf32> -> vector<16x1xf32>
    %84 = vector.broadcast %83 : vector<16x1xf32> to vector<16x16xf32>
    %85 = arith.mulf %80, %84 : vector<16x16xf32>
    %86 = arith.truncf %85 : vector<16x16xf32> to vector<16x16xbf16>
    %87 = arith.truncf %72 : vector<16x16xf32> to vector<16x16xbf16>
    %cst_59 = arith.constant dense<0.000000e+00> : vector<16x16xf32>
    %88 = tpu.matmul %86, %87, %cst_59 {dimension_numbers = #tpu.dot_dimension_numbers<[1], [0], [0], [1], [0, 0, 1, 1], [], []>} : vector<16x16xbf16>, vector<16x16xbf16>, vector<16x16xf32> -> vector<16x16xf32>
    %89 = arith.truncf %88 : vector<16x16xf32> to vector<16x16xbf16>
    %c1_60 = arith.constant 1 : index
    %c0_61 = arith.constant 0 : index
    %c0_62 = arith.constant 0 : index
    %90 = vector.load %arg9[%c1_60, %c0_61, %c0_62] : memref<2x16x32xbf16, #tpu.memory_space<vmem>>, vector<1x16x32xbf16>
    %91 = vector.shape_cast %90 : vector<1x16x32xbf16> to vector<16x32xbf16>
    %cst_63 = arith.constant dense<0.000000e+00> : vector<16x32xf32>
    %92 = tpu.matmul %89, %91, %cst_63 {dimension_numbers = #tpu.dot_dimension_numbers<[1], [0], [0], [1], [0, 0, 1, 1], [], []>} : vector<16x16xbf16>, vector<16x32xbf16>, vector<16x32xf32> -> vector<16x32xf32>
    %93 = arith.addf %49, %92 : vector<16x32xf32>
    %c0_64 = arith.constant 0 : index
    %c0_65 = arith.constant 0 : index
    %94 = vector.load %arg10[%c0_64, %c0_65] : memref<1x32xf32, #tpu.memory_space<vmem>>, vector<1x32xf32>
    %95 = vector.broadcast %94 : vector<1x32xf32> to vector<16x32xf32>
    %96 = arith.addf %93, %95 : vector<16x32xf32>
    %97 = arith.addf %1, %96 : vector<16x32xf32>
    %c0_66 = arith.constant 0 : index
    %c0_67 = arith.constant 0 : index
    %98 = vector.load %arg11[%c0_66, %c0_67] : memref<1x32xf32, #tpu.memory_space<vmem>>, vector<1x32xf32>
    %c0_68 = arith.constant 0 : index
    %c0_69 = arith.constant 0 : index
    %99 = vector.load %arg12[%c0_68, %c0_69] : memref<1x32xf32, #tpu.memory_space<vmem>>, vector<1x32xf32>
    %cst_70 = arith.constant dense<0.000000e+00> : vector<16xf32>
    %100 = vector.multi_reduction <add>, %97, %cst_70 [1] : vector<16x32xf32> to vector<16xf32>
    %101 = vector.shape_cast %100 : vector<16xf32> to vector<16x1xf32>
    %cst_71 = arith.constant 3.200000e+01 : f32
    %102 = vector.broadcast %cst_71 : f32 to vector<16x1xf32>
    %103 = arith.divf %101, %102 : vector<16x1xf32>
    %104 = vector.broadcast %103 : vector<16x1xf32> to vector<16x32xf32>
    %105 = arith.subf %97, %104 : vector<16x32xf32>
    %106 = arith.mulf %105, %105 : vector<16x32xf32>
    %cst_72 = arith.constant dense<0.000000e+00> : vector<16xf32>
    %107 = vector.multi_reduction <add>, %106, %cst_72 [1] : vector<16x32xf32> to vector<16xf32>
    %108 = vector.shape_cast %107 : vector<16xf32> to vector<16x1xf32>
    %cst_73 = arith.constant 3.200000e+01 : f32
    %109 = vector.broadcast %cst_73 : f32 to vector<16x1xf32>
    %110 = arith.divf %108, %109 : vector<16x1xf32>
    %111 = vector.broadcast %103 : vector<16x1xf32> to vector<16x32xf32>
    %112 = arith.subf %97, %111 : vector<16x32xf32>
    %cst_74 = arith.constant 9.99999974E-6 : f32
    %113 = vector.broadcast %cst_74 : f32 to vector<16x1xf32>
    %114 = arith.addf %110, %113 : vector<16x1xf32>
    %115 = math.rsqrt %114 : vector<16x1xf32>
    %116 = vector.broadcast %115 : vector<16x1xf32> to vector<16x32xf32>
    %117 = arith.mulf %112, %116 : vector<16x32xf32>
    %118 = vector.broadcast %98 : vector<1x32xf32> to vector<16x32xf32>
    %119 = arith.mulf %117, %118 : vector<16x32xf32>
    %120 = vector.broadcast %99 : vector<1x32xf32> to vector<16x32xf32>
    %121 = arith.addf %119, %120 : vector<16x32xf32>
    %122 = arith.truncf %121 : vector<16x32xf32> to vector<16x32xbf16>
    %c0_75 = arith.constant 0 : index
    %c0_76 = arith.constant 0 : index
    %123 = vector.load %arg13[%c0_75, %c0_76] : memref<32x64xbf16, #tpu.memory_space<vmem>>, vector<32x64xbf16>
    %cst_77 = arith.constant dense<0.000000e+00> : vector<16x64xf32>
    %124 = tpu.matmul %122, %123, %cst_77 {dimension_numbers = #tpu.dot_dimension_numbers<[1], [0], [0], [1], [0, 0, 1, 1], [], []>} : vector<16x32xbf16>, vector<32x64xbf16>, vector<16x64xf32> -> vector<16x64xf32>
    %c0_78 = arith.constant 0 : index
    %c0_79 = arith.constant 0 : index
    %125 = vector.load %arg14[%c0_78, %c0_79] : memref<1x64xf32, #tpu.memory_space<vmem>>, vector<1x64xf32>
    %126 = vector.broadcast %125 : vector<1x64xf32> to vector<16x64xf32>
    %127 = arith.addf %124, %126 : vector<16x64xf32>
    %cst_80 = arith.constant 0.000000e+00 : f32
    %128 = vector.broadcast %cst_80 : f32 to vector<16x64xf32>
    %129 = arith.maximumf %127, %128 : vector<16x64xf32>
    %130 = arith.truncf %129 : vector<16x64xf32> to vector<16x64xbf16>
    %c0_81 = arith.constant 0 : index
    %c0_82 = arith.constant 0 : index
    %131 = vector.load %arg15[%c0_81, %c0_82] : memref<64x32xbf16, #tpu.memory_space<vmem>>, vector<64x32xbf16>
    %cst_83 = arith.constant dense<0.000000e+00> : vector<16x32xf32>
    %132 = tpu.matmul %130, %131, %cst_83 {dimension_numbers = #tpu.dot_dimension_numbers<[1], [0], [0], [1], [0, 0, 1, 1], [], []>} : vector<16x64xbf16>, vector<64x32xbf16>, vector<16x32xf32> -> vector<16x32xf32>
    %c0_84 = arith.constant 0 : index
    %c0_85 = arith.constant 0 : index
    %133 = vector.load %arg16[%c0_84, %c0_85] : memref<1x32xf32, #tpu.memory_space<vmem>>, vector<1x32xf32>
    %134 = vector.broadcast %133 : vector<1x32xf32> to vector<16x32xf32>
    %135 = arith.addf %132, %134 : vector<16x32xf32>
    %136 = arith.addf %121, %135 : vector<16x32xf32>
    %c0_86 = arith.constant 0 : index
    %c0_87 = arith.constant 0 : index
    %137 = vector.load %arg17[%c0_86, %c0_87] : memref<1x32xf32, #tpu.memory_space<vmem>>, vector<1x32xf32>
    %c0_88 = arith.constant 0 : index
    %c0_89 = arith.constant 0 : index
    %138 = vector.load %arg18[%c0_88, %c0_89] : memref<1x32xf32, #tpu.memory_space<vmem>>, vector<1x32xf32>
    %cst_90 = arith.constant dense<0.000000e+00> : vector<16xf32>
    %139 = vector.multi_reduction <add>, %136, %cst_90 [1] : vector<16x32xf32> to vector<16xf32>
    %140 = vector.shape_cast %139 : vector<16xf32> to vector<16x1xf32>
    %cst_91 = arith.constant 3.200000e+01 : f32
    %141 = vector.broadcast %cst_91 : f32 to vector<16x1xf32>
    %142 = arith.divf %140, %141 : vector<16x1xf32>
    %143 = vector.broadcast %142 : vector<16x1xf32> to vector<16x32xf32>
    %144 = arith.subf %136, %143 : vector<16x32xf32>
    %145 = arith.mulf %144, %144 : vector<16x32xf32>
    %cst_92 = arith.constant dense<0.000000e+00> : vector<16xf32>
    %146 = vector.multi_reduction <add>, %145, %cst_92 [1] : vector<16x32xf32> to vector<16xf32>
    %147 = vector.shape_cast %146 : vector<16xf32> to vector<16x1xf32>
    %cst_93 = arith.constant 3.200000e+01 : f32
    %148 = vector.broadcast %cst_93 : f32 to vector<16x1xf32>
    %149 = arith.divf %147, %148 : vector<16x1xf32>
    %150 = vector.broadcast %142 : vector<16x1xf32> to vector<16x32xf32>
    %151 = arith.subf %136, %150 : vector<16x32xf32>
    %cst_94 = arith.constant 9.99999974E-6 : f32
    %152 = vector.broadcast %cst_94 : f32 to vector<16x1xf32>
    %153 = arith.addf %149, %152 : vector<16x1xf32>
    %154 = math.rsqrt %153 : vector<16x1xf32>
    %155 = vector.broadcast %154 : vector<16x1xf32> to vector<16x32xf32>
    %156 = arith.mulf %151, %155 : vector<16x32xf32>
    %157 = vector.broadcast %137 : vector<1x32xf32> to vector<16x32xf32>
    %158 = arith.mulf %156, %157 : vector<16x32xf32>
    %159 = vector.broadcast %138 : vector<1x32xf32> to vector<16x32xf32>
    %160 = arith.addf %158, %159 : vector<16x32xf32>
    %161 = arith.truncf %160 : vector<16x32xf32> to vector<16x32xbf16>
    %c0_95 = arith.constant 0 : index
    %c0_96 = arith.constant 0 : index
    %162 = vector.load %arg19[%c0_95, %c0_96] : memref<32x20xbf16, #tpu.memory_space<vmem>>, vector<32x20xbf16>
    %cst_97 = arith.constant dense<0.000000e+00> : vector<16x20xf32>
    %163 = tpu.matmul %161, %162, %cst_97 {dimension_numbers = #tpu.dot_dimension_numbers<[1], [0], [0], [1], [0, 0, 1, 1], [], []>} : vector<16x32xbf16>, vector<32x20xbf16>, vector<16x20xf32> -> vector<16x20xf32>
    %c0_98 = arith.constant 0 : index
    %c0_99 = arith.constant 0 : index
    %164 = vector.load %arg20[%c0_98, %c0_99] : memref<1x20xf32, #tpu.memory_space<vmem>>, vector<1x20xf32>
    %165 = vector.broadcast %164 : vector<1x20xf32> to vector<16x20xf32>
    %166 = arith.addf %163, %165 : vector<16x20xf32>
    %c0_100 = arith.constant 0 : index
    %c0_101 = arith.constant 0 : index
    %c0_102 = arith.constant 0 : index
    %167 = vector.load %arg21[%c0_100, %c0_101, %c0_102] : memref<1x16x20xf32, #tpu.memory_space<vmem>>, vector<1x16x20xf32>
    %168 = vector.shape_cast %167 : vector<1x16x20xf32> to vector<16x20xf32>
    %169 = vector.shape_cast %166 : vector<16x20xf32> to vector<1x16x20xf32>
    tpu.vector_store %arg21[%c0_100, %c0_101, %c0_102], %169 {strides = array<i32>} : memref<1x16x20xf32, #tpu.memory_space<vmem>>, vector<1x16x20xf32>,
    return
  }
  func.func @transform_0(%arg0: i32) -> (i32, i32, i32) {
    %c0_i32 = arith.constant 0 : i32
    %c0_i32_0 = arith.constant 0 : i32
    %c0_i32_1 = arith.constant 0 : i32
    return %arg0, %c0_i32, %c0_i32_0 : i32, i32, i32
  }
  func.func @transform_1(%arg0: i32) -> (i32, i32, i32) {
    %c0_i32 = arith.constant 0 : i32
    %c0_i32_0 = arith.constant 0 : i32
    %c0_i32_1 = arith.constant 0 : i32
    return %arg0, %c0_i32, %c0_i32_0 : i32, i32, i32
  }
  func.func @transform_2(%arg0: i32) -> (i32, i32, i32) {
    %c0_i32 = arith.constant 0 : i32
    %c0_i32_0 = arith.constant 0 : i32
    %c0_i32_1 = arith.constant 0 : i32
    %c0_i32_2 = arith.constant 0 : i32
    return %c0_i32, %c0_i32_0, %c0_i32_1 : i32, i32, i32
  }
  func.func @transform_3(%arg0: i32) -> (i32, i32, i32) {
    %c0_i32 = arith.constant 0 : i32
    %c0_i32_0 = arith.constant 0 : i32
    %c0_i32_1 = arith.constant 0 : i32
    %c0_i32_2 = arith.constant 0 : i32
    return %c0_i32, %c0_i32_0, %c0_i32_1 : i32, i32, i32
  }
  func.func @transform_4(%arg0: i32) -> (i32, i32, i32) {
    %c0_i32 = arith.constant 0 : i32
    %c0_i32_0 = arith.constant 0 : i32
    %c0_i32_1 = arith.constant 0 : i32
    %c0_i32_2 = arith.constant 0 : i32
    return %c0_i32, %c0_i32_0, %c0_i32_1 : i32, i32, i32
  }
  func.func @transform_5(%arg0: i32) -> (i32, i32, i32) {
    %c0_i32 = arith.constant 0 : i32
    %c0_i32_0 = arith.constant 0 : i32
    %c0_i32_1 = arith.constant 0 : i32
    %c0_i32_2 = arith.constant 0 : i32
    return %c0_i32, %c0_i32_0, %c0_i32_1 : i32, i32, i32
  }
  func.func @transform_6(%arg0: i32) -> (i32, i32, i32) {
    %c0_i32 = arith.constant 0 : i32
    %c0_i32_0 = arith.constant 0 : i32
    %c0_i32_1 = arith.constant 0 : i32
    %c0_i32_2 = arith.constant 0 : i32
    return %c0_i32, %c0_i32_0, %c0_i32_1 : i32, i32, i32
  }
  func.func @transform_7(%arg0: i32) -> (i32, i32, i32) {
    %c0_i32 = arith.constant 0 : i32
    %c0_i32_0 = arith.constant 0 : i32
    %c0_i32_1 = arith.constant 0 : i32
    %c0_i32_2 = arith.constant 0 : i32
    return %c0_i32, %c0_i32_0, %c0_i32_1 : i32, i32, i32
  }
  func.func @transform_8(%arg0: i32) -> (i32, i32, i32) {
    %c0_i32 = arith.constant 0 : i32
    %c0_i32_0 = arith.constant 0 : i32
    %c0_i32_1 = arith.constant 0 : i32
    %c0_i32_2 = arith.constant 0 : i32
    return %c0_i32, %c0_i32_0, %c0_i32_1 : i32, i32, i32
  }
  func.func @transform_9(%arg0: i32) -> (i32, i32) {
    %c0_i32 = arith.constant 0 : i32
    %c0_i32_0 = arith.constant 0 : i32
    %c0_i32_1 = arith.constant 0 : i32
    return %c0_i32, %c0_i32_0 : i32, i32
  }
  func.func @transform_10(%arg0: i32) -> (i32, i32) {
    %c0_i32 = arith.constant 0 : i32
    %c0_i32_0 = arith.constant 0 : i32
    %c0_i32_1 = arith.constant 0 : i32
    return %c0_i32, %c0_i32_0 : i32, i32
  }
  func.func @transform_11(%arg0: i32) -> (i32, i32) {
    %c0_i32 = arith.constant 0 : i32
    %c0_i32_0 = arith.constant 0 : i32
    %c0_i32_1 = arith.constant 0 : i32
    return %c0_i32, %c0_i32_0 : i32, i32
  }
  func.func @transform_12(%arg0: i32) -> (i32, i32) {
    %c0_i32 = arith.constant 0 : i32
    %c0_i32_0 = arith.constant 0 : i32
    %c0_i32_1 = arith.constant 0 : i32
    return %c0_i32, %c0_i32_0 : i32, i32
  }
  func.func @transform_13(%arg0: i32) -> (i32, i32) {
    %c0_i32 = arith.constant 0 : i32
    %c0_i32_0 = arith.constant 0 : i32
    %c0_i32_1 = arith.constant 0 : i32
    return %c0_i32, %c0_i32_0 : i32, i32
  }
  func.func @transform_14(%arg0: i32) -> (i32, i32) {
    %c0_i32 = arith.constant 0 : i32
    %c0_i32_0 = arith.constant 0 : i32
    %c0_i32_1 = arith.constant 0 : i32
    return %c0_i32, %c0_i32_0 : i32, i32
  }
  func.func @transform_15(%arg0: i32) -> (i32, i32) {
    %c0_i32 = arith.constant 0 : i32
    %c0_i32_0 = arith.constant 0 : i32
    %c0_i32_1 = arith.constant 0 : i32
    return %c0_i32, %c0_i32_0 : i32, i32
  }
  func.func @transform_16(%arg0: i32) -> (i32, i32) {
    %c0_i32 = arith.constant 0 : i32
    %c0_i32_0 = arith.constant 0 : i32
    %c0_i32_1 = arith.constant 0 : i32
    return %c0_i32, %c0_i32_0 : i32, i32
  }
  func.func @transform_17(%arg0: i32) -> (i32, i32) {
    %c0_i32 = arith.constant 0 : i32
    %c0_i32_0 = arith.constant 0 : i32
    %c0_i32_1 = arith.constant 0 : i32
    return %c0_i32, %c0_i32_0 : i32, i32
  }
  func.func @transform_18(%arg0: i32) -> (i32, i32) {
    %c0_i32 = arith.constant 0 : i32
    %c0_i32_0 = arith.constant 0 : i32
    %c0_i32_1 = arith.constant 0 : i32
    return %c0_i32, %c0_i32_0 : i32, i32
  }
  func.func @transform_19(%arg0: i32) -> (i32, i32) {
    %c0_i32 = arith.constant 0 : i32
    %c0_i32_0 = arith.constant 0 : i32
    %c0_i32_1 = arith.constant 0 : i32
    return %c0_i32, %c0_i32_0 : i32, i32
  }
  func.func @transform_20(%arg0: i32) -> (i32, i32, i32) {
    %c0_i32 = arith.constant 0 : i32
    %c0_i32_0 = arith.constant 0 : i32
    %c0_i32_1 = arith.constant 0 : i32
    return %arg0, %c0_i32, %c0_i32_0 : i32, i32, i32
  }
}

</mosaic_0001>

<llo_original>
// kernel: fwd.9
$region0: #{fwd.9}
  #allocation0 [shape = 'u32[]', space=smem, size = 0x4, offset = 0x4, fixed_abs, tag = 'smem constant byte address 0x4 - core index']
  #allocation1 [shape = 'u32[144,128]{1,0:T(1,128)}', space=vmem, size = 0x12000, scoped, tag = 'internal scratch']
  #allocation2 [shape = 'f32[1,1]{1,0:T(1,128)S(1)}', space=vmem, size = 0x200, scoped, tag = 'scoped memory for fwd.9']
  %s0 = inlined_call_operand.vmem [shape: f32[2,8,32], index: 0, kind: input, shape index: {}]
  %s1 = inlined_call_operand.vmem [shape: bf16[32,16], index: 1, kind: input, shape index: {}]
  %s2 = inlined_call_operand.vmem [shape: bf16[32,16], index: 2, kind: input, shape index: {}]
  %s3 = inlined_call_operand.vmem [shape: bf16[32,16], index: 3, kind: input, shape index: {}]
  %s4 = inlined_call_operand.vmem [shape: f32[1,16], index: 4, kind: input, shape index: {}]
  %s5 = inlined_call_operand.vmem [shape: f32[1,16], index: 5, kind: input, shape index: {}]
  %s6 = inlined_call_operand.vmem [shape: f32[1,16], index: 6, kind: input, shape index: {}]
  %s7 = inlined_call_operand.vmem [shape: bf16[16,16], index: 7, kind: input, shape index: {}]
  %s8 = inlined_call_operand.vmem [shape: bf16[16,16], index: 8, kind: input, shape index: {}]
  %s9 = inlined_call_operand.vmem [shape: bf16[16,16], index: 9, kind: input, shape index: {}]
  %s10 = inlined_call_operand.vmem [shape: f32[1,16], index: 10, kind: input, shape index: {}]
  %s11 = inlined_call_operand.vmem [shape: f32[1,16], index: 11, kind: input, shape index: {}]
  %s12 = inlined_call_operand.vmem [shape: f32[1,16], index: 12, kind: input, shape index: {}]
  %s13 = inlined_call_operand.vmem [shape: f32[16,1], index: 13, kind: input, shape index: {}]
  %s14 = inlined_call_operand.<no memory space> [shape: f32[1,1], index: 14, kind: input, shape index: {}]
  %s15 = inlined_call_operand.vmem [shape: f32[2,8,1], index: 15, kind: output, shape index: {}]
  %s16 = sld [smem:[#allocation0]]
  $region93: #{fwd.9} parent=0
    _
  %s18 = ssub.s32 1, %s16
  %s19 = scalar_select 0, %s18, %s16
  %v20 = vstv %s14
  %21 = vst [vmem:[#allocation2] sm:$0x1] %v20
  loop: start=0, step=1, limit=4
  $region2: #{fwd.9} parent=0 // loop_pre_header
    _
  $region3: #{fwd.9} parent=0 // loop_header
    %s23 = sphi 0, %s27
    %p24 = scmp.ge.s32.totalorder %s23, 4
    %s33 = sphi 0, %s35
    %s36 = sphi 0, %s33
    %s37 = sphi 0, %s36
    %s53 = sphi 0, %s37
    %s57 = sphi 0, %s57
    %s59 = sphi 0, %s57
    %s60 = sphi 0, %s59
    %s74 = sphi 0, %s60
    %s78 = sphi 0, %s78
    %s80 = sphi 0, %s78
    %s81 = sphi 0, %s80
    %s95 = sphi 0, %s81
    %s99 = sphi 0, %s99
    %s101 = sphi 0, %s99
    %s102 = sphi 0, %s101
    %s116 = sphi 0, %s102
    %s120 = sphi 0, %s120
    %s122 = sphi 0, %s120
    %s123 = sphi 0, %s122
    %s137 = sphi 0, %s123
    %s141 = sphi 0, %s141
    %s143 = sphi 0, %s141
    %s144 = sphi 0, %s143
    %s158 = sphi 0, %s144
    %s162 = sphi 0, %s162
    %s164 = sphi 0, %s162
    %s165 = sphi 0, %s164
    %s179 = sphi 0, %s165
    %s183 = sphi 0, %s183
    %s185 = sphi 0, %s183
    %s186 = sphi 0, %s185
    %s200 = sphi 0, %s186
    %s204 = sphi 0, %s204
    %s206 = sphi 0, %s204
    %s207 = sphi 0, %s206
    %s221 = sphi 0, %s207
    %s225 = sphi 0, %s225
    %s227 = sphi 0, %s225
    %s228 = sphi 0, %s227
    %s242 = sphi 0, %s228
    %s246 = sphi 0, %s246
    %s248 = sphi 0, %s246
    %s249 = sphi 0, %s248
    %s263 = sphi 0, %s249
    %s267 = sphi 0, %s267
    %s269 = sphi 0, %s267
    %s270 = sphi 0, %s269
    %s284 = sphi 0, %s270
    %s288 = sphi 0, %s288
    %s290 = sphi 0, %s288
    %s291 = sphi 0, %s290
    %s305 = sphi 0, %s291
    %s309 = sphi 0, %s309
    %s311 = sphi 0, %s309
    %s312 = sphi 0, %s311
    %s326 = sphi 0, %s312
    %s330 = sphi 0, %s330
    %s332 = sphi 0, %s330
    %s333 = sphi 0, %s332
    %s347 = sphi 0, %s333
    %s353 = sphi 0, %s355
    %s356 = sphi 0, %s353
    %s357 = sphi 0, %s356
    %s373 = sphi 0, %s357
  $region4: #{fwd.9} parent=0 // loop_header_branch
    %26 = sbr.rel (%p24) target = $region8
  $region5: #{fwd.9} parent=0 // loop_body
    %s28 = ssub.s32 %s23, 1
    %s29 = ssub.s32 %s23, 2
    %s30 = sadd.s32 %s23, 1
    %s31 = ssub.s32 %s23, %s30
    %p32 = scmp.eq.s32.totalorder %s31, 0
    %s34 = sadd.s32 %s33, 1
    %s35 = scalar_select %p32, %s33, %s34
    %p38 = pneg %p32
    %p39 = scmp.eq.s32.totalorder %s23, 1
    %p40 = por %p38, %p39
    %p41 = scmp.ne.s32.totalorder %s33, %s36
    %p42 = scmp.eq.s32.totalorder %s23, 0
    %p43 = por %p41, %p42
    %p44 = scmp.ne.s32.totalorder %s33, %s36
    %p45 = scmp.eq.s32.totalorder %s28, 1
    %p46 = por %p44, %p45
    %p47 = scmp.ne.s32.totalorder %s36, %s37
    %p48 = scmp.eq.s32.totalorder %s28, 0
    %p49 = por %p47, %p48
    %p50 = scmp.ne.s32.totalorder %s36, %s37
    %p51 = scmp.eq.s32.totalorder %s29, 1
    %p52 = por %p50, %p51
    %p54 = scmp.ne.s32.totalorder %s37, %s53
    %p55 = scmp.eq.s32.totalorder %s29, 0
    %p56 = por %p54, %p55
    %s58 = sadd.s32 %s57, 1
    %p61 = scmp.eq.s32.totalorder %s23, 1
    %p62 = scmp.ne.s32.totalorder %s57, %s59
    %p63 = scmp.eq.s32.totalorder %s23, 0
    %p64 = por %p62, %p63
    %p65 = scmp.ne.s32.totalorder %s57, %s59
    %p66 = scmp.eq.s32.totalorder %s28, 1
    %p67 = por %p65, %p66
    %p68 = scmp.ne.s32.totalorder %s59, %s60
    %p69 = scmp.eq.s32.totalorder %s28, 0
    %p70 = por %p68, %p69
    %p71 = scmp.ne.s32.totalorder %s59, %s60
    %p72 = scmp.eq.s32.totalorder %s29, 1
    %p73 = por %p71, %p72
    %p75 = scmp.ne.s32.totalorder %s60, %s74
    %p76 = scmp.eq.s32.totalorder %s29, 0
    %p77 = por %p75, %p76
    %s79 = sadd.s32 %s78, 1
    %p82 = scmp.eq.s32.totalorder %s23, 1
    %p83 = scmp.ne.s32.totalorder %s78, %s80
    %p84 = scmp.eq.s32.totalorder %s23, 0
    %p85 = por %p83, %p84
    %p86 = scmp.ne.s32.totalorder %s78, %s80
    %p87 = scmp.eq.s32.totalorder %s28, 1
    %p88 = por %p86, %p87
    %p89 = scmp.ne.s32.totalorder %s80, %s81
    %p90 = scmp.eq.s32.totalorder %s28, 0
    %p91 = por %p89, %p90
    %p92 = scmp.ne.s32.totalorder %s80, %s81
    %p93 = scmp.eq.s32.totalorder %s29, 1
    %p94 = por %p92, %p93
    %p96 = scmp.ne.s32.totalorder %s81, %s95
    %p97 = scmp.eq.s32.totalorder %s29, 0
    %p98 = por %p96, %p97
    %s100 = sadd.s32 %s99, 1
    %p103 = scmp.eq.s32.totalorder %s23, 1
    %p104 = scmp.ne.s32.totalorder %s99, %s101
    %p105 = scmp.eq.s32.totalorder %s23, 0
    %p106 = por %p104, %p105
    %p107 = scmp.ne.s32.totalorder %s99, %s101
    %p108 = scmp.eq.s32.totalorder %s28, 1
    %p109 = por %p107, %p108
    %p110 = scmp.ne.s32.totalorder %s101, %s102
    %p111 = scmp.eq.s32.totalorder %s28, 0
    %p112 = por %p110, %p111
    %p113 = scmp.ne.s32.totalorder %s101, %s102
    %p114 = scmp.eq.s32.totalorder %s29, 1
    %p115 = por %p113, %p114
    %p117 = scmp.ne.s32.totalorder %s102, %s116
    %p118 = scmp.eq.s32.totalorder %s29, 0
    %p119 = por %p117, %p118
    %s121 = sadd.s32 %s120, 1
    %p124 = scmp.eq.s32.totalorder %s23, 1
    %p125 = scmp.ne.s32.totalorder %s120, %s122
    %p126 = scmp.eq.s32.totalorder %s23, 0
    %p127 = por %p125, %p126
    %p128 = scmp.ne.s32.totalorder %s120, %s122
    %p129 = scmp.eq.s32.totalorder %s28, 1
    %p130 = por %p128, %p129
    %p131 = scmp.ne.s32.totalorder %s122, %s123
    %p132 = scmp.eq.s32.totalorder %s28, 0
    %p133 = por %p131, %p132
    %p134 = scmp.ne.s32.totalorder %s122, %s123
    %p135 = scmp.eq.s32.totalorder %s29, 1
    %p136 = por %p134, %p135
    %p138 = scmp.ne.s32.totalorder %s123, %s137
    %p139 = scmp.eq.s32.totalorder %s29, 0
    %p140 = por %p138, %p139
    %s142 = sadd.s32 %s141, 1
    %p145 = scmp.eq.s32.totalorder %s23, 1
    %p146 = scmp.ne.s32.totalorder %s141, %s143
    %p147 = scmp.eq.s32.totalorder %s23, 0
    %p148 = por %p146, %p147
    %p149 = scmp.ne.s32.totalorder %s141, %s143
    %p150 = scmp.eq.s32.totalorder %s28, 1
    %p151 = por %p149, %p150
    %p152 = scmp.ne.s32.totalorder %s143, %s144
    %p153 = scmp.eq.s32.totalorder %s28, 0
    %p154 = por %p152, %p153
    %p155 = scmp.ne.s32.totalorder %s143, %s144
    %p156 = scmp.eq.s32.totalorder %s29, 1
    %p157 = por %p155, %p156
    %p159 = scmp.ne.s32.totalorder %s144, %s158
    %p160 = scmp.eq.s32.totalorder %s29, 0
    %p161 = por %p159, %p160
    %s163 = sadd.s32 %s162, 1
    %p166 = scmp.eq.s32.totalorder %s23, 1
    %p167 = scmp.ne.s32.totalorder %s162, %s164
    %p168 = scmp.eq.s32.totalorder %s23, 0
    %p169 = por %p167, %p168
    %p170 = scmp.ne.s32.totalorder %s162, %s164
    %p171 = scmp.eq.s32.totalorder %s28, 1
    %p172 = por %p170, %p171
    %p173 = scmp.ne.s32.totalorder %s164, %s165
    %p174 = scmp.eq.s32.totalorder %s28, 0
    %p175 = por %p173, %p174
    %p176 = scmp.ne.s32.totalorder %s164, %s165
    %p177 = scmp.eq.s32.totalorder %s29, 1
    %p178 = por %p176, %p177
    %p180 = scmp.ne.s32.totalorder %s165, %s179
    %p181 = scmp.eq.s32.totalorder %s29, 0
    %p182 = por %p180, %p181
    %s184 = sadd.s32 %s183, 1
    %p187 = scmp.eq.s32.totalorder %s23, 1
    %p188 = scmp.ne.s32.totalorder %s183, %s185
    %p189 = scmp.eq.s32.totalorder %s23, 0
    %p190 = por %p188, %p189
    %p191 = scmp.ne.s32.totalorder %s183, %s185
    %p192 = scmp.eq.s32.totalorder %s28, 1
    %p193 = por %p191, %p192
    %p194 = scmp.ne.s32.totalorder %s185, %s186
    %p195 = scmp.eq.s32.totalorder %s28, 0
    %p196 = por %p194, %p195
    %p197 = scmp.ne.s32.totalorder %s185, %s186
    %p198 = scmp.eq.s32.totalorder %s29, 1
    %p199 = por %p197, %p198
    %p201 = scmp.ne.s32.totalorder %s186, %s200
    %p202 = scmp.eq.s32.totalorder %s29, 0
    %p203 = por %p201, %p202
    %s205 = sadd.s32 %s204, 1
    %p208 = scmp.eq.s32.totalorder %s23, 1
    %p209 = scmp.ne.s32.totalorder %s204, %s206
    %p210 = scmp.eq.s32.totalorder %s23, 0
    %p211 = por %p209, %p210
    %p212 = scmp.ne.s32.totalorder %s204, %s206
    %p213 = scmp.eq.s32.totalorder %s28, 1
    %p214 = por %p212, %p213
    %p215 = scmp.ne.s32.totalorder %s206, %s207
    %p216 = scmp.eq.s32.totalorder %s28, 0
    %p217 = por %p215, %p216
    %p218 = scmp.ne.s32.totalorder %s206, %s207
    %p219 = scmp.eq.s32.totalorder %s29, 1
    %p220 = por %p218, %p219
    %p222 = scmp.ne.s32.totalorder %s207, %s221
    %p223 = scmp.eq.s32.totalorder %s29, 0
    %p224 = por %p222, %p223
    %s226 = sadd.s32 %s225, 1
    %p229 = scmp.eq.s32.totalorder %s23, 1
    %p230 = scmp.ne.s32.totalorder %s225, %s227
    %p231 = scmp.eq.s32.totalorder %s23, 0
    %p232 = por %p230, %p231
    %p233 = scmp.ne.s32.totalorder %s225, %s227
    %p234 = scmp.eq.s32.totalorder %s28, 1
    %p235 = por %p233, %p234
    %p236 = scmp.ne.s32.totalorder %s227, %s228
    %p237 = scmp.eq.s32.totalorder %s28, 0
    %p238 = por %p236, %p237
    %p239 = scmp.ne.s32.totalorder %s227, %s228
    %p240 = scmp.eq.s32.totalorder %s29, 1
    %p241 = por %p239, %p240
    %p243 = scmp.ne.s32.totalorder %s228, %s242
    %p244 = scmp.eq.s32.totalorder %s29, 0
    %p245 = por %p243, %p244
    %s247 = sadd.s32 %s246, 1
    %p250 = scmp.eq.s32.totalorder %s23, 1
    %p251 = scmp.ne.s32.totalorder %s246, %s248
    %p252 = scmp.eq.s32.totalorder %s23, 0
    %p253 = por %p251, %p252
    %p254 = scmp.ne.s32.totalorder %s246, %s248
    %p255 = scmp.eq.s32.totalorder %s28, 1
    %p256 = por %p254, %p255
    %p257 = scmp.ne.s32.totalorder %s248, %s249
    %p258 = scmp.eq.s32.totalorder %s28, 0
    %p259 = por %p257, %p258
    %p260 = scmp.ne.s32.totalorder %s248, %s249
    %p261 = scmp.eq.s32.totalorder %s29, 1
    %p262 = por %p260, %p261
    %p264 = scmp.ne.s32.totalorder %s249, %s263
    %p265 = scmp.eq.s32.totalorder %s29, 0
    %p266 = por %p264, %p265
    %s268 = sadd.s32 %s267, 1
    %p271 = scmp.eq.s32.totalorder %s23, 1
    %p272 = scmp.ne.s32.totalorder %s267, %s269
    %p273 = scmp.eq.s32.totalorder %s23, 0
    %p274 = por %p272, %p273
    %p275 = scmp.ne.s32.totalorder %s267, %s269
    %p276 = scmp.eq.s32.totalorder %s28, 1
    %p277 = por %p275, %p276
    %p278 = scmp.ne.s32.totalorder %s269, %s270
    %p279 = scmp.eq.s32.totalorder %s28, 0
    %p280 = por %p278, %p279
    %p281 = scmp.ne.s32.totalorder %s269, %s270
    %p282 = scmp.eq.s32.totalorder %s29, 1
    %p283 = por %p281, %p282
    %p285 = scmp.ne.s32.totalorder %s270, %s284
    %p286 = scmp.eq.s32.totalorder %s29, 0
    %p287 = por %p285, %p286
    %s289 = sadd.s32 %s288, 1
    %p292 = scmp.eq.s32.totalorder %s23, 1
    %p293 = scmp.ne.s32.totalorder %s288, %s290
    %p294 = scmp.eq.s32.totalorder %s23, 0
    %p295 = por %p293, %p294
    %p296 = scmp.ne.s32.totalorder %s288, %s290
    %p297 = scmp.eq.s32.totalorder %s28, 1
    %p298 = por %p296, %p297
    %p299 = scmp.ne.s32.totalorder %s290, %s291
    %p300 = scmp.eq.s32.totalorder %s28, 0
    %p301 = por %p299, %p300
    %p302 = scmp.ne.s32.totalorder %s290, %s291
    %p303 = scmp.eq.s32.totalorder %s29, 1
    %p304 = por %p302, %p303
    %p306 = scmp.ne.s32.totalorder %s291, %s305
    %p307 = scmp.eq.s32.totalorder %s29, 0
    %p308 = por %p306, %p307
    %s310 = sadd.s32 %s309, 1
    %p313 = scmp.eq.s32.totalorder %s23, 1
    %p314 = scmp.ne.s32.totalorder %s309, %s311
    %p315 = scmp.eq.s32.totalorder %s23, 0
    %p316 = por %p314, %p315
    %p317 = scmp.ne.s32.totalorder %s309, %s311
    %p318 = scmp.eq.s32.totalorder %s28, 1
    %p319 = por %p317, %p318
    %p320 = scmp.ne.s32.totalorder %s311, %s312
    %p321 = scmp.eq.s32.totalorder %s28, 0
    %p322 = por %p320, %p321
    %p323 = scmp.ne.s32.totalorder %s311, %s312
    %p324 = scmp.eq.s32.totalorder %s29, 1
    %p325 = por %p323, %p324
    %p327 = scmp.ne.s32.totalorder %s312, %s326
    %p328 = scmp.eq.s32.totalorder %s29, 0
    %p329 = por %p327, %p328
    %s331 = sadd.s32 %s330, 1
    %p334 = scmp.eq.s32.totalorder %s23, 1
    %p335 = scmp.ne.s32.totalorder %s330, %s332
    %p336 = scmp.eq.s32.totalorder %s23, 0
    %p337 = por %p335, %p336
    %p338 = scmp.ne.s32.totalorder %s330, %s332
    %p339 = scmp.eq.s32.totalorder %s28, 1
    %p340 = por %p338, %p339
    %p341 = scmp.ne.s32.totalorder %s332, %s333
    %p342 = scmp.eq.s32.totalorder %s28, 0
    %p343 = por %p341, %p342
    %p344 = scmp.ne.s32.totalorder %s332, %s333
    %p345 = scmp.eq.s32.totalorder %s29, 1
    %p346 = por %p344, %p345
    %p348 = scmp.ne.s32.totalorder %s333, %s347
    %p349 = scmp.eq.s32.totalorder %s29, 0
    %p350 = por %p348, %p349
    %s351 = ssub.s32 %s23, %s30
    %p352 = scmp.eq.s32.totalorder %s351, 0
    %s354 = sadd.s32 %s353, 1
    %s355 = scalar_select %p352, %s353, %s354
    %p358 = pneg %p352
    %p359 = scmp.eq.s32.totalorder %s23, 1
    %p360 = por %p358, %p359
    %p361 = scmp.ne.s32.totalorder %s353, %s356
    %p362 = scmp.eq.s32.totalorder %s23, 0
    %p363 = por %p361, %p362
    %p364 = scmp.ne.s32.totalorder %s353, %s356
    %p365 = scmp.eq.s32.totalorder %s28, 1
    %p366 = por %p364, %p365
    %p367 = scmp.ne.s32.totalorder %s356, %s357
    %p368 = scmp.eq.s32.totalorder %s28, 0
    %p369 = por %p367, %p368
    %p370 = scmp.ne.s32.totalorder %s356, %s357
    %p371 = scmp.eq.s32.totalorder %s29, 1
    %p372 = por %p370, %p371
    %p374 = scmp.ne.s32.totalorder %s357, %s373
    %p375 = scmp.eq.s32.totalorder %s29, 0
    %p376 = por %p374, %p375
    %p377 = scmp.le.s32.totalorder 1, %s23
    %p378 = scmp.lt.s32.totalorder %s23, 3
    %p379 = pnand %p377, %p378
    %p380 = pneg %p379
    // Predicated region
    $region9: #{fwd.9} parent=5 // pred_check
      _
    $region10: #{fwd.9} parent=5 // pred_check_branch
      %382 = sbr.rel (%p379) target = $region12
    $region11: #{fwd.9} parent=5 // pred_region
      %s383 = ssub.s32 %s23, 1
      // Predicated region
      $region13: #{fwd.9} parent=11 // pred_check
        %p384 = pneg %p70
      $region14: #{fwd.9} parent=11 // pred_check_branch
        %386 = sbr.rel (%p384) target = $region16
      $region15: #{fwd.9} parent=11 // pred_region
        _
      $region16: #{fwd.9} parent=11 // pred_fallthru
        _
      // Predicated region
      $region17: #{fwd.9} parent=11 // pred_check
        %p387 = pneg %p91
      $region18: #{fwd.9} parent=11 // pred_check_branch
        %389 = sbr.rel (%p387) target = $region20
      $region19: #{fwd.9} parent=11 // pred_region
        _
      $region20: #{fwd.9} parent=11 // pred_fallthru
        _
      // Predicated region
      $region21: #{fwd.9} parent=11 // pred_check
        %p390 = pneg %p112
      $region22: #{fwd.9} parent=11 // pred_check_branch
        %392 = sbr.rel (%p390) target = $region24
      $region23: #{fwd.9} parent=11 // pred_region
        _
      $region24: #{fwd.9} parent=11 // pred_fallthru
        _
      // Predicated region
      $region25: #{fwd.9} parent=11 // pred_check
        %p393 = pneg %p133
      $region26: #{fwd.9} parent=11 // pred_check_branch
        %395 = sbr.rel (%p393) target = $region28
      $region27: #{fwd.9} parent=11 // pred_region
        _
      $region28: #{fwd.9} parent=11 // pred_fallthru
        _
      // Predicated region
      $region29: #{fwd.9} parent=11 // pred_check
        %p396 = pneg %p154
      $region30: #{fwd.9} parent=11 // pred_check_branch
        %398 = sbr.rel (%p396) target = $region32
      $region31: #{fwd.9} parent=11 // pred_region
        _
      $region32: #{fwd.9} parent=11 // pred_fallthru
        _
      // Predicated region
      $region33: #{fwd.9} parent=11 // pred_check
        %p399 = pneg %p175
      $region34: #{fwd.9} parent=11 // pred_check_branch
        %401 = sbr.rel (%p399) target = $region36
      $region35: #{fwd.9} parent=11 // pred_region
        _
      $region36: #{fwd.9} parent=11 // pred_fallthru
        _
      // Predicated region
      $region37: #{fwd.9} parent=11 // pred_check
        %p402 = pneg %p196
      $region38: #{fwd.9} parent=11 // pred_check_branch
        %404 = sbr.rel (%p402) target = $region40
      $region39: #{fwd.9} parent=11 // pred_region
        _
      $region40: #{fwd.9} parent=11 // pred_fallthru
        _
      // Predicated region
      $region41: #{fwd.9} parent=11 // pred_check
        %p405 = pneg %p217
      $region42: #{fwd.9} parent=11 // pred_check_branch
        %407 = sbr.rel (%p405) target = $region44
      $region43: #{fwd.9} parent=11 // pred_region
        _
      $region44: #{fwd.9} parent=11 // pred_fallthru
        _
      // Predicated region
      $region45: #{fwd.9} parent=11 // pred_check
        %p408 = pneg %p238
      $region46: #{fwd.9} parent=11 // pred_check_branch
        %410 = sbr.rel (%p408) target = $region48
      $region47: #{fwd.9} parent=11 // pred_region
        _
      $region48: #{fwd.9} parent=11 // pred_fallthru
        _
      // Predicated region
      $region49: #{fwd.9} parent=11 // pred_check
        %p411 = pneg %p259
      $region50: #{fwd.9} parent=11 // pred_check_branch
        %413 = sbr.rel (%p411) target = $region52
      $region51: #{fwd.9} parent=11 // pred_region
        _
      $region52: #{fwd.9} parent=11 // pred_fallthru
        _
      // Predicated region
      $region53: #{fwd.9} parent=11 // pred_check
        %p414 = pneg %p280
      $region54: #{fwd.9} parent=11 // pred_check_branch
        %416 = sbr.rel (%p414) target = $region56
      $region55: #{fwd.9} parent=11 // pred_region
        _
      $region56: #{fwd.9} parent=11 // pred_fallthru
        _
      // Predicated region
      $region57: #{fwd.9} parent=11 // pred_check
        %p417 = pneg %p301
      $region58: #{fwd.9} parent=11 // pred_check_branch
        %419 = sbr.rel (%p417) target = $region60
      $region59: #{fwd.9} parent=11 // pred_region
        _
      $region60: #{fwd.9} parent=11 // pred_fallthru
        _
      // Predicated region
      $region61: #{fwd.9} parent=11 // pred_check
        %p420 = pneg %p322
      $region62: #{fwd.9} parent=11 // pred_check_branch
        %422 = sbr.rel (%p420) target = $region64
      $region63: #{fwd.9} parent=11 // pred_region
        _
      $region64: #{fwd.9} parent=11 // pred_fallthru
        _
      // Predicated region
      $region65: #{fwd.9} parent=11 // pred_check
        %p423 = pneg %p343
      $region66: #{fwd.9} parent=11 // pred_check_branch
        %425 = sbr.rel (%p423) target = $region68
      $region67: #{fwd.9} parent=11 // pred_region
        _
      $region68: #{fwd.9} parent=11 // pred_fallthru
        _
    $region12: #{fwd.9} parent=5 // pred_fallthru
      _
    %p426 = scmp.lt.s32.totalorder %s23, 2
    // Predicated region
    $region69: #{fwd.9} parent=5 // pred_check
      %p427 = pneg %p426
    $region70: #{fwd.9} parent=5 // pred_check_branch
      %429 = sbr.rel (%p427) target = $region72
    $region71: #{fwd.9} parent=5 // pred_region
      // Predicated region
      $region73: #{fwd.9} parent=71 // pred_check
        %p430 = pneg %p43
      $region74: #{fwd.9} parent=71 // pred_check_branch
        %432 = sbr.rel (%p430) target = $region76
      $region75: #{fwd.9} parent=71 // pred_region
        %p433 = scmp.lt.s32.totalorder %s23, 1
        %s434 = scalar_select %p433, %s23, 1
        %s435 = smul.addr %s434, 8
        %s436 = scalar_lea.vmem %s0, %s435
      $region76: #{fwd.9} parent=71 // pred_fallthru
        _
    $region72: #{fwd.9} parent=5 // pred_fallthru
      _
    %p437 = scmp.le.s32.totalorder 1, %s23
    %p438 = scmp.lt.s32.totalorder %s23, 3
    %p439 = pnand %p437, %p438
    %p440 = pneg %p439
    // Predicated region
    $region77: #{fwd.9} parent=5 // pred_check
      _
    $region78: #{fwd.9} parent=5 // pred_check_branch
      %442 = sbr.rel (%p439) target = $region80
    $region79: #{fwd.9} parent=5 // pred_region
      %s443 = ssub.s32 %s23, 1
      %p444 = scmp.lt.s32.totalorder %s28, 1
      %s445 = scalar_select %p444, %s28, 1
      %s446 = smul.addr %s445, 8
      %s447 = scalar_lea.vmem %s0, %s446
      %p448 = pneg %p49
      %p449 = pneg %p46
      %p450 = pneg %p70
      %p451 = pneg %p67
      %p452 = pneg %p91
      %p453 = pneg %p88
      %p454 = pneg %p112
      %p455 = pneg %p109
      %p456 = pneg %p133
      %p457 = pneg %p130
      %p458 = pneg %p154
      %p459 = pneg %p151
      %p460 = pneg %p175
      %p461 = pneg %p172
      %p462 = pneg %p196
      %p463 = pneg %p193
      %p464 = pneg %p217
      %p465 = pneg %p214
      %p466 = pneg %p238
      %p467 = pneg %p235
      %p468 = pneg %p259
      %p469 = pneg %p256
      %p470 = pneg %p280
      %p471 = pneg %p277
      %p472 = pneg %p301
      %p473 = pneg %p298
      %p474 = pneg %p322
      %p475 = pneg %p319
      %p476 = pneg %p343
      %p477 = pneg %p340
      %p478 = pneg %p369
      %p479 = pneg %p366
      %p480 = scmp.lt.s32.totalorder %s28, 1
      %s481 = scalar_select %p480, %s28, 1
      %s482 = smul.addr %s481, 8
      %s483 = scalar_lea.vmem %s15, %s482
      %p484 = scmp.lt.s32.totalorder %s28, 1
      %s485 = scalar_select %p484, %s28, 1
      %s486 = smul.addr %s485, 8
      %s487 = scalar_lea.vmem %s0, %s486
      %p488 = scmp.lt.s32.totalorder %s28, 1
      %s489 = scalar_select %p488, %s28, 1
      %s490 = smul.addr %s489, 8
      %s491 = scalar_lea.vmem %s15, %s490
      %v493 = vld [vmem:[%s487] sm:$0xff]
      %v494 = vlaneseq
      %v495 = vshrl.u32 %v494, 7
      %vm496 = vcmp.eq.s32.totalorder %v495, 0
      %vm497 = vcmp.eq.s32.totalorder %v495, 7
      %v498 = vrot.slane %v493, 7
      %v499 = vsel %vm496, 1, 0
      %vm500 = vcmp.eq.s32.totalorder %v499, 1
      %v501 = vsel %vm500, 0.0, %v498
      %v502 = vrot.slane %v493, 1
      %v503 = vsel %vm497, 1, 0
      %vm504 = vcmp.eq.s32.totalorder %v503, 1
      %v505 = vsel %vm504, 0.0, %v502
      %v506 = vpack.c.bf16 %v501, %v501
      %v507 = vld [vmem:[%s1] sm:$0xf]
      %v508 = vld [vmem:[%s1 + $0x4] sm:$0xf]
      %v509 = vld [vmem:[%s1 + $0x8] sm:$0xf]
      %v510 = vld [vmem:[%s1 + $0xc] sm:$0xf]
      %v511 = vpack.c.bf16 %v493, %v493
      %v512 = vld [vmem:[%s2] sm:$0xf]
      %v513 = vld [vmem:[%s2 + $0x4] sm:$0xf]
      %v514 = vld [vmem:[%s2 + $0x8] sm:$0xf]
      %v515 = vld [vmem:[%s2 + $0xc] sm:$0xf]
      %v520 = vunpack.c.l.b16 %v512
      %v521 = vunpack.c.l.b16 %v513
      %v522 = vunpack.c.l.b16 %v514
      %v523 = vunpack.c.l.b16 %v515
      %v524 = vpack.c.b16 %v521, %v520
      %v525 = vpack.c.b16 %v523, %v522
      %vm528 = vcmask 261120
      %v530 = vsel %vm528, %v511, 0
      %532 = vmatprep.subr.bf16.mxu0 0
      %533 = vmatpush1.bf16.msra.mxu0 0
      %534 = vmatprep.subr.bf16.mxu0 0
      %535 = vmatpush1.bf16.msra.mxu0 0
      %536 = vmatprep.subr.bf16.mxu0 0
      %537 = vmatpush1.bf16.msra.mxu0 0
      %538 = vmatprep.subr.bf16.mxu0 0
      %539 = vmatpush1.bf16.msra.mxu0 0
      %540 = vmatprep.subr.bf16.mxu0 0
      %541 = vmatpush1.bf16.msra.mxu0 0
      %542 = vmatprep.subr.bf16.mxu0 0
      %543 = vmatpush1.bf16.msra.mxu0 0
      %544 = vmatprep.subr.bf16.mxu0 0
      %545 = vmatpush1.bf16.msra.mxu0 %v525
      %546 = vmatprep.subr.bf16.mxu0 0
      %547 = vmatpush1.bf16.msra.mxu0 %v524
      %548 = vmatprep.subr.bf16.mxu0 0
      %549 = vmatpush2.bf16.msra.mxu0 0
      %550 = vmatprep.subr.bf16.mxu0 0
      %551 = vmatpush2.bf16.msra.mxu0 0
      %552 = vmatprep.subr.bf16.mxu0 0
      %553 = vmatpush2.bf16.msra.mxu0 0
      %554 = vmatprep.subr.bf16.mxu0 0
      %555 = vmatpush2.bf16.msra.mxu0 0
      %556 = vmatprep.subr.bf16.mxu0 0
      %557 = vmatpush2.bf16.msra.mxu0 0
      %558 = vmatprep.subr.bf16.mxu0 0
      %559 = vmatpush2.bf16.msra.mxu0 0
      %560 = vmatprep.subr.bf16.mxu0 0
      %561 = vmatpush2.bf16.msra.mxu0 0
      %562 = vmatprep.subr.bf16.mxu0 0
      %563 = vmatpush2.bf16.msra.mxu0 0
      %564 = vmatprep.mubr.bf16.mxu0 0
      %565 = vmatmul.mubr.bf16.gmra.mxu0 %v530
      %v566 = vpop.f32.mrf.mxu0
      %v567 = vadd.f32 0.0, %v566
      %v568 = vpop.f32.mrf.mxu0
      %v569 = vpop.f32.mrf.mxu0
      %v570 = vpop.f32.mrf.mxu0
      %571 = vdwg.mxu0
      %v576 = vunpack.c.l.b16 %v507
      %v577 = vunpack.c.l.b16 %v508
      %v578 = vunpack.c.l.b16 %v509
      %v579 = vunpack.c.l.b16 %v510
      %v580 = vpack.c.b16 %v577, %v576
      %v581 = vpack.c.b16 %v579, %v578
      %v585 = vsel %vm528, %v506, 0
      %587 = vmatprep.subr.bf16.mxu0 0
      %588 = vmatpush1.bf16.msra.mxu0 0
      %589 = vmatprep.subr.bf16.mxu0 0
      %590 = vmatpush1.bf16.msra.mxu0 0
      %591 = vmatprep.subr.bf16.mxu0 0
      %592 = vmatpush1.bf16.msra.mxu0 0
      %593 = vmatprep.subr.bf16.mxu0 0
      %594 = vmatpush1.bf16.msra.mxu0 0
      %595 = vmatprep.subr.bf16.mxu0 0
      %596 = vmatpush1.bf16.msra.mxu0 0
      %597 = vmatprep.subr.bf16.mxu0 0
      %598 = vmatpush1.bf16.msra.mxu0 0
      %599 = vmatprep.subr.bf16.mxu0 0
      %600 = vmatpush1.bf16.msra.mxu0 %v581
      %601 = vmatprep.subr.bf16.mxu0 0
      %602 = vmatpush1.bf16.msra.mxu0 %v580
      %603 = vmatprep.subr.bf16.mxu0 0
      %604 = vmatpush2.bf16.msra.mxu0 0
      %605 = vmatprep.subr.bf16.mxu0 0
      %606 = vmatpush2.bf16.msra.mxu0 0
      %607 = vmatprep.subr.bf16.mxu0 0
      %608 = vmatpush2.bf16.msra.mxu0 0
      %609 = vmatprep.subr.bf16.mxu0 0
      %610 = vmatpush2.bf16.msra.mxu0 0
      %611 = vmatprep.subr.bf16.mxu0 0
      %612 = vmatpush2.bf16.msra.mxu0 0
      %613 = vmatprep.subr.bf16.mxu0 0
      %614 = vmatpush2.bf16.msra.mxu0 0
      %615 = vmatprep.subr.bf16.mxu0 0
      %616 = vmatpush2.bf16.msra.mxu0 0
      %617 = vmatprep.subr.bf16.mxu0 0
      %618 = vmatpush2.bf16.msra.mxu0 0
      %619 = vmatprep.mubr.bf16.mxu0 0
      %620 = vmatmul.mubr.bf16.gmra.mxu0 %v585
      %v621 = vpop.f32.mrf.mxu0
      %v622 = vadd.f32 %v567, %v621
      %v623 = vpop.f32.mrf.mxu0
      %v624 = vpop.f32.mrf.mxu0
      %v625 = vpop.f32.mrf.mxu0
      %626 = vdwg.mxu0
      %v627 = vpack.c.bf16 %v505, %v505
      %v628 = vld [vmem:[%s3] sm:$0xf]
      %v629 = vld [vmem:[%s3 + $0x4] sm:$0xf]
      %v630 = vld [vmem:[%s3 + $0x8] sm:$0xf]
      %v631 = vld [vmem:[%s3 + $0xc] sm:$0xf]
      %v636 = vunpack.c.l.b16 %v628
      %v637 = vunpack.c.l.b16 %v629
      %v638 = vunpack.c.l.b16 %v630
      %v639 = vunpack.c.l.b16 %v631
      %v640 = vpack.c.b16 %v637, %v636
      %v641 = vpack.c.b16 %v639, %v638
      %v645 = vsel %vm528, %v627, 0
      %647 = vmatprep.subr.bf16.mxu0 0
      %648 = vmatpush1.bf16.msra.mxu0 0
      %649 = vmatprep.subr.bf16.mxu0 0
      %650 = vmatpush1.bf16.msra.mxu0 0
      %651 = vmatprep.subr.bf16.mxu0 0
      %652 = vmatpush1.bf16.msra.mxu0 0
      %653 = vmatprep.subr.bf16.mxu0 0
      %654 = vmatpush1.bf16.msra.mxu0 0
      %655 = vmatprep.subr.bf16.mxu0 0
      %656 = vmatpush1.bf16.msra.mxu0 0
      %657 = vmatprep.subr.bf16.mxu0 0
      %658 = vmatpush1.bf16.msra.mxu0 0
      %659 = vmatprep.subr.bf16.mxu0 0
      %660 = vmatpush1.bf16.msra.mxu0 %v641
      %661 = vmatprep.subr.bf16.mxu0 0
      %662 = vmatpush1.bf16.msra.mxu0 %v640
      %663 = vmatprep.subr.bf16.mxu0 0
      %664 = vmatpush2.bf16.msra.mxu0 0
      %665 = vmatprep.subr.bf16.mxu0 0
      %666 = vmatpush2.bf16.msra.mxu0 0
      %667 = vmatprep.subr.bf16.mxu0 0
      %668 = vmatpush2.bf16.msra.mxu0 0
      %669 = vmatprep.subr.bf16.mxu0 0
      %670 = vmatpush2.bf16.msra.mxu0 0
      %671 = vmatprep.subr.bf16.mxu0 0
      %672 = vmatpush2.bf16.msra.mxu0 0
      %673 = vmatprep.subr.bf16.mxu0 0
      %674 = vmatpush2.bf16.msra.mxu0 0
      %675 = vmatprep.subr.bf16.mxu0 0
      %676 = vmatpush2.bf16.msra.mxu0 0
      %677 = vmatprep.subr.bf16.mxu0 0
      %678 = vmatpush2.bf16.msra.mxu0 0
      %679 = vmatprep.mubr.bf16.mxu0 0
      %680 = vmatmul.mubr.bf16.gmra.mxu0 %v645
      %v681 = vpop.f32.mrf.mxu0
      %v682 = vadd.f32 0.0, %v681
      %v683 = vpop.f32.mrf.mxu0
      %v684 = vpop.f32.mrf.mxu0
      %v685 = vpop.f32.mrf.mxu0
      %686 = vdwg.mxu0
      %v687 = vadd.f32 %v622, %v682
      %v688 = vld [vmem:[%s4] sm:$0x1]
      %v690 = vlaneseq
      %v691 = vshrl.u32 %v690, 7
      %v692 = vsub.s32 0, %v691
      %v693 = vrot.slane %v688, %v692
      %v695 = vadd.f32 %v687, %v693
      %v696 = vmax.f32 %v695, 0.0
      %v697 = vld [vmem:[%s5] sm:$0x1]
      %v698 = vld [vmem:[%s6] sm:$0x1]
      %vm699 = vcmask 130048
      %v700 = vsel %vm699, %v696, 0.0
      %701 = vadd.xlane.f32.xlu0 %v700
      %v702 = vpop.xlane.xlu0 %701
      %v703 = vrcp.pop 16.0
      %v704 = vmul.f32 %v702, %v703
      %v705 = vsub.f32 %v696, %v704
      %v706 = vmul.f32 %v705, %v705
      %v707 = vsel %vm699, %v706, 0.0
      %708 = vadd.xlane.f32.xlu0 %v707
      %v709 = vpop.xlane.xlu0 %708
      %v710 = vmul.f32 %v709, %v703
      %v711 = vadd.f32 %v710, 1e-05
      %v712 = vrsqrt.pop %v711
      %v713 = vmul.f32 %v705, %v712
      %v715 = vlaneseq
      %v716 = vshrl.u32 %v715, 7
      %v717 = vsub.s32 0, %v716
      %v718 = vrot.slane %v697, %v717
      %v720 = vmul.f32 %v713, %v718
      %v722 = vlaneseq
      %v723 = vshrl.u32 %v722, 7
      %v724 = vsub.s32 0, %v723
      %v725 = vrot.slane %v698, %v724
      %v727 = vadd.f32 %v720, %v725
      %v728 = vrot.slane %v727, 7
      %v729 = vsel %vm500, 0.0, %v728
      %v730 = vrot.slane %v727, 1
      %v731 = vsel %vm504, 0.0, %v730
      %v732 = vpack.c.bf16 %v729, %v729
      %v733 = vld [vmem:[%s7] sm:$0xf]
      %v734 = vld [vmem:[%s7 + $0x4] sm:$0xf]
      %v735 = vpack.c.bf16 %v727, %v727
      %v736 = vld [vmem:[%s8] sm:$0xf]
      %v737 = vld [vmem:[%s8 + $0x4] sm:$0xf]
      %v740 = vunpack.c.l.b16 %v736
      %v741 = vunpack.c.l.b16 %v737
      %v742 = vpack.c.b16 %v741, %v740
      %v745 = vsel %vm699, %v735, 0
      %747 = vmatprep.subr.bf16.mxu0 0
      %748 = vmatpush1.bf16.msra.mxu0 0
      %749 = vmatprep.subr.bf16.mxu0 0
      %750 = vmatpush1.bf16.msra.mxu0 0
      %751 = vmatprep.subr.bf16.mxu0 0
      %752 = vmatpush1.bf16.msra.mxu0 0
      %753 = vmatprep.subr.bf16.mxu0 0
      %754 = vmatpush1.bf16.msra.mxu0 0
      %755 = vmatprep.subr.bf16.mxu0 0
      %756 = vmatpush1.bf16.msra.mxu0 0
      %757 = vmatprep.subr.bf16.mxu0 0
      %758 = vmatpush1.bf16.msra.mxu0 0
      %759 = vmatprep.subr.bf16.mxu0 0
      %760 = vmatpush1.bf16.msra.mxu0 0
      %761 = vmatprep.subr.bf16.mxu0 0
      %762 = vmatpush1.bf16.msra.mxu0 %v742
      %763 = vmatprep.subr.bf16.mxu0 0
      %764 = vmatpush2.bf16.msra.mxu0 0
      %765 = vmatprep.subr.bf16.mxu0 0
      %766 = vmatpush2.bf16.msra.mxu0 0
      %767 = vmatprep.subr.bf16.mxu0 0
      %768 = vmatpush2.bf16.msra.mxu0 0
      %769 = vmatprep.subr.bf16.mxu0 0
      %770 = vmatpush2.bf16.msra.mxu0 0
      %771 = vmatprep.subr.bf16.mxu0 0
      %772 = vmatpush2.bf16.msra.mxu0 0
      %773 = vmatprep.subr.bf16.mxu0 0
      %774 = vmatpush2.bf16.msra.mxu0 0
      %775 = vmatprep.subr.bf16.mxu0 0
      %776 = vmatpush2.bf16.msra.mxu0 0
      %777 = vmatprep.subr.bf16.mxu0 0
      %778 = vmatpush2.bf16.msra.mxu0 0
      %779 = vmatprep.mubr.bf16.mxu0 0
      %780 = vmatmul.mubr.bf16.gmra.mxu0 %v745
      %v781 = vpop.f32.mrf.mxu0
      %v782 = vadd.f32 0.0, %v781
      %v783 = vpop.f32.mrf.mxu0
      %v784 = vpop.f32.mrf.mxu0
      %v785 = vpop.f32.mrf.mxu0
      %786 = vdwg.mxu0
      %v789 = vunpack.c.l.b16 %v733
      %v790 = vunpack.c.l.b16 %v734
      %v791 = vpack.c.b16 %v790, %v789
      %v794 = vsel %vm699, %v732, 0
      %796 = vmatprep.subr.bf16.mxu0 0
      %797 = vmatpush1.bf16.msra.mxu0 0
      %798 = vmatprep.subr.bf16.mxu0 0
      %799 = vmatpush1.bf16.msra.mxu0 0
      %800 = vmatprep.subr.bf16.mxu0 0
      %801 = vmatpush1.bf16.msra.mxu0 0
      %802 = vmatprep.subr.bf16.mxu0 0
      %803 = vmatpush1.bf16.msra.mxu0 0
      %804 = vmatprep.subr.bf16.mxu0 0
      %805 = vmatpush1.bf16.msra.mxu0 0
      %806 = vmatprep.subr.bf16.mxu0 0
      %807 = vmatpush1.bf16.msra.mxu0 0
      %808 = vmatprep.subr.bf16.mxu0 0
      %809 = vmatpush1.bf16.msra.mxu0 0
      %810 = vmatprep.subr.bf16.mxu0 0
      %811 = vmatpush1.bf16.msra.mxu0 %v791
      %812 = vmatprep.subr.bf16.mxu0 0
      %813 = vmatpush2.bf16.msra.mxu0 0
      %814 = vmatprep.subr.bf16.mxu0 0
      %815 = vmatpush2.bf16.msra.mxu0 0
      %816 = vmatprep.subr.bf16.mxu0 0
      %817 = vmatpush2.bf16.msra.mxu0 0
      %818 = vmatprep.subr.bf16.mxu0 0
      %819 = vmatpush2.bf16.msra.mxu0 0
      %820 = vmatprep.subr.bf16.mxu0 0
      %821 = vmatpush2.bf16.msra.mxu0 0
      %822 = vmatprep.subr.bf16.mxu0 0
      %823 = vmatpush2.bf16.msra.mxu0 0
      %824 = vmatprep.subr.bf16.mxu0 0
      %825 = vmatpush2.bf16.msra.mxu0 0
      %826 = vmatprep.subr.bf16.mxu0 0
      %827 = vmatpush2.bf16.msra.mxu0 0
      %828 = vmatprep.mubr.bf16.mxu0 0
      %829 = vmatmul.mubr.bf16.gmra.mxu0 %v794
      %v830 = vpop.f32.mrf.mxu0
      %v831 = vadd.f32 %v782, %v830
      %v832 = vpop.f32.mrf.mxu0
      %v833 = vpop.f32.mrf.mxu0
      %v834 = vpop.f32.mrf.mxu0
      %835 = vdwg.mxu0
      %v836 = vpack.c.bf16 %v731, %v731
      %v837 = vld [vmem:[%s9] sm:$0xf]
      %v838 = vld [vmem:[%s9 + $0x4] sm:$0xf]
      %v841 = vunpack.c.l.b16 %v837
      %v842 = vunpack.c.l.b16 %v838
      %v843 = vpack.c.b16 %v842, %v841
      %v846 = vsel %vm699, %v836, 0
      %848 = vmatprep.subr.bf16.mxu0 0
      %849 = vmatpush1.bf16.msra.mxu0 0
      %850 = vmatprep.subr.bf16.mxu0 0
      %851 = vmatpush1.bf16.msra.mxu0 0
      %852 = vmatprep.subr.bf16.mxu0 0
      %853 = vmatpush1.bf16.msra.mxu0 0
      %854 = vmatprep.subr.bf16.mxu0 0
      %855 = vmatpush1.bf16.msra.mxu0 0
      %856 = vmatprep.subr.bf16.mxu0 0
      %857 = vmatpush1.bf16.msra.mxu0 0
      %858 = vmatprep.subr.bf16.mxu0 0
      %859 = vmatpush1.bf16.msra.mxu0 0
      %860 = vmatprep.subr.bf16.mxu0 0
      %861 = vmatpush1.bf16.msra.mxu0 0
      %862 = vmatprep.subr.bf16.mxu0 0
      %863 = vmatpush1.bf16.msra.mxu0 %v843
      %864 = vmatprep.subr.bf16.mxu0 0
      %865 = vmatpush2.bf16.msra.mxu0 0
      %866 = vmatprep.subr.bf16.mxu0 0
      %867 = vmatpush2.bf16.msra.mxu0 0
      %868 = vmatprep.subr.bf16.mxu0 0
      %869 = vmatpush2.bf16.msra.mxu0 0
      %870 = vmatprep.subr.bf16.mxu0 0
      %871 = vmatpush2.bf16.msra.mxu0 0
      %872 = vmatprep.subr.bf16.mxu0 0
      %873 = vmatpush2.bf16.msra.mxu0 0
      %874 = vmatprep.subr.bf16.mxu0 0
      %875 = vmatpush2.bf16.msra.mxu0 0
      %876 = vmatprep.subr.bf16.mxu0 0
      %877 = vmatpush2.bf16.msra.mxu0 0
      %878 = vmatprep.subr.bf16.mxu0 0
      %879 = vmatpush2.bf16.msra.mxu0 0
      %880 = vmatprep.mubr.bf16.mxu0 0
      %881 = vmatmul.mubr.bf16.gmra.mxu0 %v846
      %v882 = vpop.f32.mrf.mxu0
      %v883 = vadd.f32 0.0, %v882
      %v884 = vpop.f32.mrf.mxu0
      %v885 = vpop.f32.mrf.mxu0
      %v886 = vpop.f32.mrf.mxu0
      %887 = vdwg.mxu0
      %v888 = vadd.f32 %v831, %v883
      %v889 = vld [vmem:[%s10] sm:$0x1]
      %v891 = vlaneseq
      %v892 = vshrl.u32 %v891, 7
      %v893 = vsub.s32 0, %v892
      %v894 = vrot.slane %v889, %v893
      %v896 = vadd.f32 %v888, %v894
      %v897 = vmax.f32 %v896, 0.0
      %v898 = vld [vmem:[%s11] sm:$0x1]
      %v899 = vld [vmem:[%s12] sm:$0x1]
      %v900 = vsel %vm699, %v897, 0.0
      %901 = vadd.xlane.f32.xlu0 %v900
      %v902 = vpop.xlane.xlu0 %901
      %v903 = vmul.f32 %v902, %v703
      %v904 = vsub.f32 %v897, %v903
      %v905 = vmul.f32 %v904, %v904
      %v906 = vsel %vm699, %v905, 0.0
      %907 = vadd.xlane.f32.xlu0 %v906
      %v908 = vpop.xlane.xlu0 %907
      %v909 = vmul.f32 %v908, %v703
      %v910 = vadd.f32 %v909, 1e-05
      %v911 = vrsqrt.pop %v910
      %v912 = vmul.f32 %v904, %v911
      %v914 = vlaneseq
      %v915 = vshrl.u32 %v914, 7
      %v916 = vsub.s32 0, %v915
      %v917 = vrot.slane %v898, %v916
      %v919 = vmul.f32 %v912, %v917
      %v921 = vlaneseq
      %v922 = vshrl.u32 %v921, 7
      %v923 = vsub.s32 0, %v922
      %v924 = vrot.slane %v899, %v923
      %v926 = vadd.f32 %v919, %v924
      %v927 = vld [vmem:[%s13] sm:$0xff]
      %v928 = vld [vmem:[%s13 + $0x8] sm:$0xff]
      %v929 = vld [vmem:[#allocation2] sm:$0x1]
      %v931 = vlaneseq
      %v932 = vshrl.u32 %v931, 7
      %v933 = vsub.s32 0, %v932
      %v934 = vrot.slane %v929, %v933
      %v937 = vsel %vm699, %v926, 0
      %939 = vmatprep.subr.mxu0 0.0
      %940 = vmatpush1.msra.mxu0 0.0
      %941 = vmatprep.subr.mxu0 0.0
      %942 = vmatpush1.msra.mxu0 0.0
      %943 = vmatprep.subr.mxu0 0.0
      %944 = vmatpush1.msra.mxu0 0.0
      %945 = vmatprep.subr.mxu0 0.0
      %946 = vmatpush1.msra.mxu0 0.0
      %947 = vmatprep.subr.mxu0 0.0
      %948 = vmatpush1.msra.mxu0 0.0
      %949 = vmatprep.subr.mxu0 0.0
      %950 = vmatpush1.msra.mxu0 0.0
      %951 = vmatprep.subr.mxu0 0.0
      %952 = vmatpush1.msra.mxu0 0.0
      %953 = vmatprep.subr.mxu0 0.0
      %954 = vmatpush1.msra.mxu0 0.0
      %955 = vmatprep.subr.mxu0 0.0
      %956 = vmatpush1.msra.mxu0 0.0
      %957 = vmatprep.subr.mxu0 0.0
      %958 = vmatpush1.msra.mxu0 0.0
      %959 = vmatprep.subr.mxu0 0.0
      %960 = vmatpush1.msra.mxu0 0.0
      %961 = vmatprep.subr.mxu0 0.0
      %962 = vmatpush1.msra.mxu0 0.0
      %963 = vmatprep.subr.mxu0 0.0
      %964 = vmatpush1.msra.mxu0 0.0
      %965 = vmatprep.subr.mxu0 0.0
      %966 = vmatpush1.msra.mxu0 0.0
      %967 = vmatprep.subr.mxu0 0.0
      %968 = vmatpush1.msra.mxu0 %v928
      %969 = vmatprep.subr.mxu0 0.0
      %970 = vmatpush1.msra.mxu0 %v927
      %971 = vmatprep.subr.mxu0 0.0
      %972 = vmatpush2.msra.mxu0 0.0
      %973 = vmatprep.subr.mxu0 0.0
      %974 = vmatpush2.msra.mxu0 0.0
      %975 = vmatprep.subr.mxu0 0.0
      %976 = vmatpush2.msra.mxu0 0.0
      %977 = vmatprep.subr.mxu0 0.0
      %978 = vmatpush2.msra.mxu0 0.0
      %979 = vmatprep.subr.mxu0 0.0
      %980 = vmatpush2.msra.mxu0 0.0
      %981 = vmatprep.subr.mxu0 0.0
      %982 = vmatpush2.msra.mxu0 0.0
      %983 = vmatprep.subr.mxu0 0.0
      %984 = vmatpush2.msra.mxu0 0.0
      %985 = vmatprep.subr.mxu0 0.0
      %986 = vmatpush2.msra.mxu0 0.0
      %987 = vmatprep.subr.mxu0 0.0
      %988 = vmatpush2.msra.mxu0 0.0
      %989 = vmatprep.subr.mxu0 0.0
      %990 = vmatpush2.msra.mxu0 0.0
      %991 = vmatprep.subr.mxu0 0.0
      %992 = vmatpush2.msra.mxu0 0.0
      %993 = vmatprep.subr.mxu0 0.0
      %994 = vmatpush2.msra.mxu0 0.0
      %995 = vmatprep.subr.mxu0 0.0
      %996 = vmatpush2.msra.mxu0 0.0
      %997 = vmatprep.subr.mxu0 0.0
      %998 = vmatpush2.msra.mxu0 0.0
      %999 = vmatprep.subr.mxu0 0.0
      %1000 = vmatpush2.msra.mxu0 0.0
      %1001 = vmatprep.subr.mxu0 0.0
      %1002 = vmatpush2.msra.mxu0 0.0
      %1003 = vmatprep.mubr.f32.mxu0 0.0
      %1004 = vmatmul.mubr.f32.gmra.mxu0 %v937
      %v1005 = vpop.f32.mrf.mxu0
      %v1006 = vadd.f32 %v934, %v1005
      %v1007 = vpop.f32.mrf.mxu0
      %1008 = vdwg.mxu0
      %vm1009 = vcmask 7168
      %1010 = vst.msk [vmem:[%s491] sm:$0xff] %vm1009, %v1006
      %p1011 = scmp.lt.s32.totalorder %s28, 1
      %s1012 = scalar_select %p1011, %s28, 1
      %s1013 = smul.addr %s1012, 8
      %s1014 = scalar_lea.vmem %s15, %s1013
      // Predicated region
      $region81: #{fwd.9} parent=79 // pred_check
        %p1015 = pneg %p366
      $region82: #{fwd.9} parent=79 // pred_check_branch
        %1017 = sbr.rel (%p1015) target = $region84
      $region83: #{fwd.9} parent=79 // pred_region
        _
      $region84: #{fwd.9} parent=79 // pred_fallthru
        _
    $region80: #{fwd.9} parent=5 // pred_fallthru
      _
    %p1018 = scmp.le.s32.totalorder 2, %s23
    // Predicated region
    $region85: #{fwd.9} parent=5 // pred_check
      %p1019 = pneg %p1018
    $region86: #{fwd.9} parent=5 // pred_check_branch
      %1021 = sbr.rel (%p1019) target = $region88
    $region87: #{fwd.9} parent=5 // pred_region
      %s1022 = ssub.s32 %s23, 2
      // Predicated region
      $region89: #{fwd.9} parent=87 // pred_check
        %p1023 = pneg %p372
      $region90: #{fwd.9} parent=87 // pred_check_branch
        %1025 = sbr.rel (%p1023) target = $region92
      $region91: #{fwd.9} parent=87 // pred_region
        %p1026 = scmp.lt.s32.totalorder %s29, 1
        %s1027 = scalar_select %p1026, %s29, 1
        %s1028 = smul.addr %s1027, 8
        %s1029 = scalar_lea.vmem %s15, %s1028
      $region92: #{fwd.9} parent=87 // pred_fallthru
        _
    $region88: #{fwd.9} parent=5 // pred_fallthru
      _
  $region6: #{fwd.9} parent=0 // loop_footer
    %s27 = sadd.s32 1, %s23
  $region7: #{fwd.9} parent=0 // loop_footer_branch
    %22 = sbr.rel target = $region3
  $region8: #{fwd.9} parent=0 // loop_exit
    _

// kernel: fwd.5
$region0: #{fwd.5}
  #allocation0 [shape = 'u32[]', space=smem, size = 0x4, offset = 0x4, fixed_abs, tag = 'smem constant byte address 0x4 - core index']
  #allocation1 [shape = 'u32[144,128]{1,0:T(1,128)}', space=vmem, size = 0x12000, scoped, tag = 'internal scratch']
  %s0 = inlined_call_operand.vmem [shape: f32[2,8,32], index: 0, kind: input, shape index: {}]
  %s1 = inlined_call_operand.vmem [shape: f32[2,1,8], index: 1, kind: input, shape index: {}]
  %s2 = inlined_call_operand.vmem [shape: bf16[2,32,16], index: 2, kind: input, shape index: {}]
  %s3 = inlined_call_operand.vmem [shape: f32[2,1,16], index: 3, kind: input, shape index: {}]
  %s4 = inlined_call_operand.vmem [shape: bf16[2,32,16], index: 4, kind: input, shape index: {}]
  %s5 = inlined_call_operand.vmem [shape: f32[2,1,16], index: 5, kind: input, shape index: {}]
  %s6 = inlined_call_operand.vmem [shape: bf16[2,32,16], index: 6, kind: input, shape index: {}]
  %s7 = inlined_call_operand.vmem [shape: f32[2,1,16], index: 7, kind: input, shape index: {}]
  %s8 = inlined_call_operand.vmem [shape: bf16[2,16,32], index: 8, kind: input, shape index: {}]
  %s9 = inlined_call_operand.vmem [shape: f32[1,32], index: 9, kind: input, shape index: {}]
  %s10 = inlined_call_operand.vmem [shape: f32[1,32], index: 10, kind: input, shape index: {}]
  %s11 = inlined_call_operand.vmem [shape: f32[1,32], index: 11, kind: input, shape index: {}]
  %s12 = inlined_call_operand.vmem [shape: bf16[32,64], index: 12, kind: input, shape index: {}]
  %s13 = inlined_call_operand.vmem [shape: f32[1,64], index: 13, kind: input, shape index: {}]
  %s14 = inlined_call_operand.vmem [shape: bf16[64,32], index: 14, kind: input, shape index: {}]
  %s15 = inlined_call_operand.vmem [shape: f32[1,32], index: 15, kind: input, shape index: {}]
  %s16 = inlined_call_operand.vmem [shape: f32[1,32], index: 16, kind: input, shape index: {}]
  %s17 = inlined_call_operand.vmem [shape: f32[1,32], index: 17, kind: input, shape index: {}]
  %s18 = inlined_call_operand.vmem [shape: f32[2,8,32], index: 18, kind: output, shape index: {}]
  %s19 = sld [smem:[#allocation0]]
  $region105: #{fwd.5} parent=0
    _
  %s21 = ssub.s32 1, %s19
  %s22 = scalar_select 0, %s21, %s19
  loop: start=0, step=1, limit=4
  $region2: #{fwd.5} parent=0 // loop_pre_header
    _
  $region3: #{fwd.5} parent=0 // loop_header
    %s24 = sphi 0, %s28
    %p25 = scmp.ge.s32.totalorder %s24, 4
    %s34 = sphi 0, %s36
    %s37 = sphi 0, %s34
    %s38 = sphi 0, %s37
    %s54 = sphi 0, %s38
    %s60 = sphi 0, %s62
    %s63 = sphi 0, %s60
    %s64 = sphi 0, %s63
    %s80 = sphi 0, %s64
    %s84 = sphi 0, %s84
    %s86 = sphi 0, %s84
    %s87 = sphi 0, %s86
    %s101 = sphi 0, %s87
    %s105 = sphi 0, %s105
    %s107 = sphi 0, %s105
    %s108 = sphi 0, %s107
    %s122 = sphi 0, %s108
    %s126 = sphi 0, %s126
    %s128 = sphi 0, %s126
    %s129 = sphi 0, %s128
    %s143 = sphi 0, %s129
    %s147 = sphi 0, %s147
    %s149 = sphi 0, %s147
    %s150 = sphi 0, %s149
    %s164 = sphi 0, %s150
    %s168 = sphi 0, %s168
    %s170 = sphi 0, %s168
    %s171 = sphi 0, %s170
    %s185 = sphi 0, %s171
    %s189 = sphi 0, %s189
    %s191 = sphi 0, %s189
    %s192 = sphi 0, %s191
    %s206 = sphi 0, %s192
    %s210 = sphi 0, %s210
    %s212 = sphi 0, %s210
    %s213 = sphi 0, %s212
    %s227 = sphi 0, %s213
    %s231 = sphi 0, %s231
    %s233 = sphi 0, %s231
    %s234 = sphi 0, %s233
    %s248 = sphi 0, %s234
    %s252 = sphi 0, %s252
    %s254 = sphi 0, %s252
    %s255 = sphi 0, %s254
    %s269 = sphi 0, %s255
    %s273 = sphi 0, %s273
    %s275 = sphi 0, %s273
    %s276 = sphi 0, %s275
    %s290 = sphi 0, %s276
    %s294 = sphi 0, %s294
    %s296 = sphi 0, %s294
    %s297 = sphi 0, %s296
    %s311 = sphi 0, %s297
    %s315 = sphi 0, %s315
    %s317 = sphi 0, %s315
    %s318 = sphi 0, %s317
    %s332 = sphi 0, %s318
    %s336 = sphi 0, %s336
    %s338 = sphi 0, %s336
    %s339 = sphi 0, %s338
    %s353 = sphi 0, %s339
    %s357 = sphi 0, %s357
    %s359 = sphi 0, %s357
    %s360 = sphi 0, %s359
    %s374 = sphi 0, %s360
    %s378 = sphi 0, %s378
    %s380 = sphi 0, %s378
    %s381 = sphi 0, %s380
    %s395 = sphi 0, %s381
    %s399 = sphi 0, %s399
    %s401 = sphi 0, %s399
    %s402 = sphi 0, %s401
    %s416 = sphi 0, %s402
    %s422 = sphi 0, %s424
    %s425 = sphi 0, %s422
    %s426 = sphi 0, %s425
    %s442 = sphi 0, %s426
  $region4: #{fwd.5} parent=0 // loop_header_branch
    %27 = sbr.rel (%p25) target = $region8
  $region5: #{fwd.5} parent=0 // loop_body
    %s29 = ssub.s32 %s24, 1
    %s30 = ssub.s32 %s24, 2
    %s31 = sadd.s32 %s24, 1
    %s32 = ssub.s32 %s24, %s31
    %p33 = scmp.eq.s32.totalorder %s32, 0
    %s35 = sadd.s32 %s34, 1
    %s36 = scalar_select %p33, %s34, %s35
    %p39 = pneg %p33
    %p40 = scmp.eq.s32.totalorder %s24, 1
    %p41 = por %p39, %p40
    %p42 = scmp.ne.s32.totalorder %s34, %s37
    %p43 = scmp.eq.s32.totalorder %s24, 0
    %p44 = por %p42, %p43
    %p45 = scmp.ne.s32.totalorder %s34, %s37
    %p46 = scmp.eq.s32.totalorder %s29, 1
    %p47 = por %p45, %p46
    %p48 = scmp.ne.s32.totalorder %s37, %s38
    %p49 = scmp.eq.s32.totalorder %s29, 0
    %p50 = por %p48, %p49
    %p51 = scmp.ne.s32.totalorder %s37, %s38
    %p52 = scmp.eq.s32.totalorder %s30, 1
    %p53 = por %p51, %p52
    %p55 = scmp.ne.s32.totalorder %s38, %s54
    %p56 = scmp.eq.s32.totalorder %s30, 0
    %p57 = por %p55, %p56
    %s58 = ssub.s32 %s24, %s31
    %p59 = scmp.eq.s32.totalorder %s58, 0
    %s61 = sadd.s32 %s60, 1
    %s62 = scalar_select %p59, %s60, %s61
    %p65 = pneg %p59
    %p66 = scmp.eq.s32.totalorder %s24, 1
    %p67 = por %p65, %p66
    %p68 = scmp.ne.s32.totalorder %s60, %s63
    %p69 = scmp.eq.s32.totalorder %s24, 0
    %p70 = por %p68, %p69
    %p71 = scmp.ne.s32.totalorder %s60, %s63
    %p72 = scmp.eq.s32.totalorder %s29, 1
    %p73 = por %p71, %p72
    %p74 = scmp.ne.s32.totalorder %s63, %s64
    %p75 = scmp.eq.s32.totalorder %s29, 0
    %p76 = por %p74, %p75
    %p77 = scmp.ne.s32.totalorder %s63, %s64
    %p78 = scmp.eq.s32.totalorder %s30, 1
    %p79 = por %p77, %p78
    %p81 = scmp.ne.s32.totalorder %s64, %s80
    %p82 = scmp.eq.s32.totalorder %s30, 0
    %p83 = por %p81, %p82
    %s85 = sadd.s32 %s84, 1
    %p88 = scmp.eq.s32.totalorder %s24, 1
    %p89 = scmp.ne.s32.totalorder %s84, %s86
    %p90 = scmp.eq.s32.totalorder %s24, 0
    %p91 = por %p89, %p90
    %p92 = scmp.ne.s32.totalorder %s84, %s86
    %p93 = scmp.eq.s32.totalorder %s29, 1
    %p94 = por %p92, %p93
    %p95 = scmp.ne.s32.totalorder %s86, %s87
    %p96 = scmp.eq.s32.totalorder %s29, 0
    %p97 = por %p95, %p96
    %p98 = scmp.ne.s32.totalorder %s86, %s87
    %p99 = scmp.eq.s32.totalorder %s30, 1
    %p100 = por %p98, %p99
    %p102 = scmp.ne.s32.totalorder %s87, %s101
    %p103 = scmp.eq.s32.totalorder %s30, 0
    %p104 = por %p102, %p103
    %s106 = sadd.s32 %s105, 1
    %p109 = scmp.eq.s32.totalorder %s24, 1
    %p110 = scmp.ne.s32.totalorder %s105, %s107
    %p111 = scmp.eq.s32.totalorder %s24, 0
    %p112 = por %p110, %p111
    %p113 = scmp.ne.s32.totalorder %s105, %s107
    %p114 = scmp.eq.s32.totalorder %s29, 1
    %p115 = por %p113, %p114
    %p116 = scmp.ne.s32.totalorder %s107, %s108
    %p117 = scmp.eq.s32.totalorder %s29, 0
    %p118 = por %p116, %p117
    %p119 = scmp.ne.s32.totalorder %s107, %s108
    %p120 = scmp.eq.s32.totalorder %s30, 1
    %p121 = por %p119, %p120
    %p123 = scmp.ne.s32.totalorder %s108, %s122
    %p124 = scmp.eq.s32.totalorder %s30, 0
    %p125 = por %p123, %p124
    %s127 = sadd.s32 %s126, 1
    %p130 = scmp.eq.s32.totalorder %s24, 1
    %p131 = scmp.ne.s32.totalorder %s126, %s128
    %p132 = scmp.eq.s32.totalorder %s24, 0
    %p133 = por %p131, %p132
    %p134 = scmp.ne.s32.totalorder %s126, %s128
    %p135 = scmp.eq.s32.totalorder %s29, 1
    %p136 = por %p134, %p135
    %p137 = scmp.ne.s32.totalorder %s128, %s129
    %p138 = scmp.eq.s32.totalorder %s29, 0
    %p139 = por %p137, %p138
    %p140 = scmp.ne.s32.totalorder %s128, %s129
    %p141 = scmp.eq.s32.totalorder %s30, 1
    %p142 = por %p140, %p141
    %p144 = scmp.ne.s32.totalorder %s129, %s143
    %p145 = scmp.eq.s32.totalorder %s30, 0
    %p146 = por %p144, %p145
    %s148 = sadd.s32 %s147, 1
    %p151 = scmp.eq.s32.totalorder %s24, 1
    %p152 = scmp.ne.s32.totalorder %s147, %s149
    %p153 = scmp.eq.s32.totalorder %s24, 0
    %p154 = por %p152, %p153
    %p155 = scmp.ne.s32.totalorder %s147, %s149
    %p156 = scmp.eq.s32.totalorder %s29, 1
    %p157 = por %p155, %p156
    %p158 = scmp.ne.s32.totalorder %s149, %s150
    %p159 = scmp.eq.s32.totalorder %s29, 0
    %p160 = por %p158, %p159
    %p161 = scmp.ne.s32.totalorder %s149, %s150
    %p162 = scmp.eq.s32.totalorder %s30, 1
    %p163 = por %p161, %p162
    %p165 = scmp.ne.s32.totalorder %s150, %s164
    %p166 = scmp.eq.s32.totalorder %s30, 0
    %p167 = por %p165, %p166
    %s169 = sadd.s32 %s168, 1
    %p172 = scmp.eq.s32.totalorder %s24, 1
    %p173 = scmp.ne.s32.totalorder %s168, %s170
    %p174 = scmp.eq.s32.totalorder %s24, 0
    %p175 = por %p173, %p174
    %p176 = scmp.ne.s32.totalorder %s168, %s170
    %p177 = scmp.eq.s32.totalorder %s29, 1
    %p178 = por %p176, %p177
    %p179 = scmp.ne.s32.totalorder %s170, %s171
    %p180 = scmp.eq.s32.totalorder %s29, 0
    %p181 = por %p179, %p180
    %p182 = scmp.ne.s32.totalorder %s170, %s171
    %p183 = scmp.eq.s32.totalorder %s30, 1
    %p184 = por %p182, %p183
    %p186 = scmp.ne.s32.totalorder %s171, %s185
    %p187 = scmp.eq.s32.totalorder %s30, 0
    %p188 = por %p186, %p187
    %s190 = sadd.s32 %s189, 1
    %p193 = scmp.eq.s32.totalorder %s24, 1
    %p194 = scmp.ne.s32.totalorder %s189, %s191
    %p195 = scmp.eq.s32.totalorder %s24, 0
    %p196 = por %p194, %p195
    %p197 = scmp.ne.s32.totalorder %s189, %s191
    %p198 = scmp.eq.s32.totalorder %s29, 1
    %p199 = por %p197, %p198
    %p200 = scmp.ne.s32.totalorder %s191, %s192
    %p201 = scmp.eq.s32.totalorder %s29, 0
    %p202 = por %p200, %p201
    %p203 = scmp.ne.s32.totalorder %s191, %s192
    %p204 = scmp.eq.s32.totalorder %s30, 1
    %p205 = por %p203, %p204
    %p207 = scmp.ne.s32.totalorder %s192, %s206
    %p208 = scmp.eq.s32.totalorder %s30, 0
    %p209 = por %p207, %p208
    %s211 = sadd.s32 %s210, 1
    %p214 = scmp.eq.s32.totalorder %s24, 1
    %p215 = scmp.ne.s32.totalorder %s210, %s212
    %p216 = scmp.eq.s32.totalorder %s24, 0
    %p217 = por %p215, %p216
    %p218 = scmp.ne.s32.totalorder %s210, %s212
    %p219 = scmp.eq.s32.totalorder %s29, 1
    %p220 = por %p218, %p219
    %p221 = scmp.ne.s32.totalorder %s212, %s213
    %p222 = scmp.eq.s32.totalorder %s29, 0
    %p223 = por %p221, %p222
    %p224 = scmp.ne.s32.totalorder %s212, %s213
    %p225 = scmp.eq.s32.totalorder %s30, 1
    %p226 = por %p224, %p225
    %p228 = scmp.ne.s32.totalorder %s213, %s227
    %p229 = scmp.eq.s32.totalorder %s30, 0
    %p230 = por %p228, %p229
    %s232 = sadd.s32 %s231, 1
    %p235 = scmp.eq.s32.totalorder %s24, 1
    %p236 = scmp.ne.s32.totalorder %s231, %s233
    %p237 = scmp.eq.s32.totalorder %s24, 0
    %p238 = por %p236, %p237
    %p239 = scmp.ne.s32.totalorder %s231, %s233
    %p240 = scmp.eq.s32.totalorder %s29, 1
    %p241 = por %p239, %p240
    %p242 = scmp.ne.s32.totalorder %s233, %s234
    %p243 = scmp.eq.s32.totalorder %s29, 0
    %p244 = por %p242, %p243
    %p245 = scmp.ne.s32.totalorder %s233, %s234
    %p246 = scmp.eq.s32.totalorder %s30, 1
    %p247 = por %p245, %p246
    %p249 = scmp.ne.s32.totalorder %s234, %s248
    %p250 = scmp.eq.s32.totalorder %s30, 0
    %p251 = por %p249, %p250
    %s253 = sadd.s32 %s252, 1
    %p256 = scmp.eq.s32.totalorder %s24, 1
    %p257 = scmp.ne.s32.totalorder %s252, %s254
    %p258 = scmp.eq.s32.totalorder %s24, 0
    %p259 = por %p257, %p258
    %p260 = scmp.ne.s32.totalorder %s252, %s254
    %p261 = scmp.eq.s32.totalorder %s29, 1
    %p262 = por %p260, %p261
    %p263 = scmp.ne.s32.totalorder %s254, %s255
    %p264 = scmp.eq.s32.totalorder %s29, 0
    %p265 = por %p263, %p264
    %p266 = scmp.ne.s32.totalorder %s254, %s255
    %p267 = scmp.eq.s32.totalorder %s30, 1
    %p268 = por %p266, %p267
    %p270 = scmp.ne.s32.totalorder %s255, %s269
    %p271 = scmp.eq.s32.totalorder %s30, 0
    %p272 = por %p270, %p271
    %s274 = sadd.s32 %s273, 1
    %p277 = scmp.eq.s32.totalorder %s24, 1
    %p278 = scmp.ne.s32.totalorder %s273, %s275
    %p279 = scmp.eq.s32.totalorder %s24, 0
    %p280 = por %p278, %p279
    %p281 = scmp.ne.s32.totalorder %s273, %s275
    %p282 = scmp.eq.s32.totalorder %s29, 1
    %p283 = por %p281, %p282
    %p284 = scmp.ne.s32.totalorder %s275, %s276
    %p285 = scmp.eq.s32.totalorder %s29, 0
    %p286 = por %p284, %p285
    %p287 = scmp.ne.s32.totalorder %s275, %s276
    %p288 = scmp.eq.s32.totalorder %s30, 1
    %p289 = por %p287, %p288
    %p291 = scmp.ne.s32.totalorder %s276, %s290
    %p292 = scmp.eq.s32.totalorder %s30, 0
    %p293 = por %p291, %p292
    %s295 = sadd.s32 %s294, 1
    %p298 = scmp.eq.s32.totalorder %s24, 1
    %p299 = scmp.ne.s32.totalorder %s294, %s296
    %p300 = scmp.eq.s32.totalorder %s24, 0
    %p301 = por %p299, %p300
    %p302 = scmp.ne.s32.totalorder %s294, %s296
    %p303 = scmp.eq.s32.totalorder %s29, 1
    %p304 = por %p302, %p303
    %p305 = scmp.ne.s32.totalorder %s296, %s297
    %p306 = scmp.eq.s32.totalorder %s29, 0
    %p307 = por %p305, %p306
    %p308 = scmp.ne.s32.totalorder %s296, %s297
    %p309 = scmp.eq.s32.totalorder %s30, 1
    %p310 = por %p308, %p309
    %p312 = scmp.ne.s32.totalorder %s297, %s311
    %p313 = scmp.eq.s32.totalorder %s30, 0
    %p314 = por %p312, %p313
    %s316 = sadd.s32 %s315, 1
    %p319 = scmp.eq.s32.totalorder %s24, 1
    %p320 = scmp.ne.s32.totalorder %s315, %s317
    %p321 = scmp.eq.s32.totalorder %s24, 0
    %p322 = por %p320, %p321
    %p323 = scmp.ne.s32.totalorder %s315, %s317
    %p324 = scmp.eq.s32.totalorder %s29, 1
    %p325 = por %p323, %p324
    %p326 = scmp.ne.s32.totalorder %s317, %s318
    %p327 = scmp.eq.s32.totalorder %s29, 0
    %p328 = por %p326, %p327
    %p329 = scmp.ne.s32.totalorder %s317, %s318
    %p330 = scmp.eq.s32.totalorder %s30, 1
    %p331 = por %p329, %p330
    %p333 = scmp.ne.s32.totalorder %s318, %s332
    %p334 = scmp.eq.s32.totalorder %s30, 0
    %p335 = por %p333, %p334
    %s337 = sadd.s32 %s336, 1
    %p340 = scmp.eq.s32.totalorder %s24, 1
    %p341 = scmp.ne.s32.totalorder %s336, %s338
    %p342 = scmp.eq.s32.totalorder %s24, 0
    %p343 = por %p341, %p342
    %p344 = scmp.ne.s32.totalorder %s336, %s338
    %p345 = scmp.eq.s32.totalorder %s29, 1
    %p346 = por %p344, %p345
    %p347 = scmp.ne.s32.totalorder %s338, %s339
    %p348 = scmp.eq.s32.totalorder %s29, 0
    %p349 = por %p347, %p348
    %p350 = scmp.ne.s32.totalorder %s338, %s339
    %p351 = scmp.eq.s32.totalorder %s30, 1
    %p352 = por %p350, %p351
    %p354 = scmp.ne.s32.totalorder %s339, %s353
    %p355 = scmp.eq.s32.totalorder %s30, 0
    %p356 = por %p354, %p355
    %s358 = sadd.s32 %s357, 1
    %p361 = scmp.eq.s32.totalorder %s24, 1
    %p362 = scmp.ne.s32.totalorder %s357, %s359
    %p363 = scmp.eq.s32.totalorder %s24, 0
    %p364 = por %p362, %p363
    %p365 = scmp.ne.s32.totalorder %s357, %s359
    %p366 = scmp.eq.s32.totalorder %s29, 1
    %p367 = por %p365, %p366
    %p368 = scmp.ne.s32.totalorder %s359, %s360
    %p369 = scmp.eq.s32.totalorder %s29, 0
    %p370 = por %p368, %p369
    %p371 = scmp.ne.s32.totalorder %s359, %s360
    %p372 = scmp.eq.s32.totalorder %s30, 1
    %p373 = por %p371, %p372
    %p375 = scmp.ne.s32.totalorder %s360, %s374
    %p376 = scmp.eq.s32.totalorder %s30, 0
    %p377 = por %p375, %p376
    %s379 = sadd.s32 %s378, 1
    %p382 = scmp.eq.s32.totalorder %s24, 1
    %p383 = scmp.ne.s32.totalorder %s378, %s380
    %p384 = scmp.eq.s32.totalorder %s24, 0
    %p385 = por %p383, %p384
    %p386 = scmp.ne.s32.totalorder %s378, %s380
    %p387 = scmp.eq.s32.totalorder %s29, 1
    %p388 = por %p386, %p387
    %p389 = scmp.ne.s32.totalorder %s380, %s381
    %p390 = scmp.eq.s32.totalorder %s29, 0
    %p391 = por %p389, %p390
    %p392 = scmp.ne.s32.totalorder %s380, %s381
    %p393 = scmp.eq.s32.totalorder %s30, 1
    %p394 = por %p392, %p393
    %p396 = scmp.ne.s32.totalorder %s381, %s395
    %p397 = scmp.eq.s32.totalorder %s30, 0
    %p398 = por %p396, %p397
    %s400 = sadd.s32 %s399, 1
    %p403 = scmp.eq.s32.totalorder %s24, 1
    %p404 = scmp.ne.s32.totalorder %s399, %s401
    %p405 = scmp.eq.s32.totalorder %s24, 0
    %p406 = por %p404, %p405
    %p407 = scmp.ne.s32.totalorder %s399, %s401
    %p408 = scmp.eq.s32.totalorder %s29, 1
    %p409 = por %p407, %p408
    %p410 = scmp.ne.s32.totalorder %s401, %s402
    %p411 = scmp.eq.s32.totalorder %s29, 0
    %p412 = por %p410, %p411
    %p413 = scmp.ne.s32.totalorder %s401, %s402
    %p414 = scmp.eq.s32.totalorder %s30, 1
    %p415 = por %p413, %p414
    %p417 = scmp.ne.s32.totalorder %s402, %s416
    %p418 = scmp.eq.s32.totalorder %s30, 0
    %p419 = por %p417, %p418
    %s420 = ssub.s32 %s24, %s31
    %p421 = scmp.eq.s32.totalorder %s420, 0
    %s423 = sadd.s32 %s422, 1
    %s424 = scalar_select %p421, %s422, %s423
    %p427 = pneg %p421
    %p428 = scmp.eq.s32.totalorder %s24, 1
    %p429 = por %p427, %p428
    %p430 = scmp.ne.s32.totalorder %s422, %s425
    %p431 = scmp.eq.s32.totalorder %s24, 0
    %p432 = por %p430, %p431
    %p433 = scmp.ne.s32.totalorder %s422, %s425
    %p434 = scmp.eq.s32.totalorder %s29, 1
    %p435 = por %p433, %p434
    %p436 = scmp.ne.s32.totalorder %s425, %s426
    %p437 = scmp.eq.s32.totalorder %s29, 0
    %p438 = por %p436, %p437
    %p439 = scmp.ne.s32.totalorder %s425, %s426
    %p440 = scmp.eq.s32.totalorder %s30, 1
    %p441 = por %p439, %p440
    %p443 = scmp.ne.s32.totalorder %s426, %s442
    %p444 = scmp.eq.s32.totalorder %s30, 0
    %p445 = por %p443, %p444
    %p446 = scmp.le.s32.totalorder 1, %s24
    %p447 = scmp.lt.s32.totalorder %s24, 3
    %p448 = pnand %p446, %p447
    %p449 = pneg %p448
    // Predicated region
    $region9: #{fwd.5} parent=5 // pred_check
      _
    $region10: #{fwd.5} parent=5 // pred_check_branch
      %451 = sbr.rel (%p448) target = $region12
    $region11: #{fwd.5} parent=5 // pred_region
      %s452 = ssub.s32 %s24, 1
      // Predicated region
      $region13: #{fwd.5} parent=11 // pred_check
        %p453 = pneg %p97
      $region14: #{fwd.5} parent=11 // pred_check_branch
        %455 = sbr.rel (%p453) target = $region16
      $region15: #{fwd.5} parent=11 // pred_region
        _
      $region16: #{fwd.5} parent=11 // pred_fallthru
        _
      // Predicated region
      $region17: #{fwd.5} parent=11 // pred_check
        %p456 = pneg %p118
      $region18: #{fwd.5} parent=11 // pred_check_branch
        %458 = sbr.rel (%p456) target = $region20
      $region19: #{fwd.5} parent=11 // pred_region
        _
      $region20: #{fwd.5} parent=11 // pred_fallthru
        _
      // Predicated region
      $region21: #{fwd.5} parent=11 // pred_check
        %p459 = pneg %p139
      $region22: #{fwd.5} parent=11 // pred_check_branch
        %461 = sbr.rel (%p459) target = $region24
      $region23: #{fwd.5} parent=11 // pred_region
        _
      $region24: #{fwd.5} parent=11 // pred_fallthru
        _
      // Predicated region
      $region25: #{fwd.5} parent=11 // pred_check
        %p462 = pneg %p160
      $region26: #{fwd.5} parent=11 // pred_check_branch
        %464 = sbr.rel (%p462) target = $region28
      $region27: #{fwd.5} parent=11 // pred_region
        _
      $region28: #{fwd.5} parent=11 // pred_fallthru
        _
      // Predicated region
      $region29: #{fwd.5} parent=11 // pred_check
        %p465 = pneg %p181
      $region30: #{fwd.5} parent=11 // pred_check_branch
        %467 = sbr.rel (%p465) target = $region32
      $region31: #{fwd.5} parent=11 // pred_region
        _
      $region32: #{fwd.5} parent=11 // pred_fallthru
        _
      // Predicated region
      $region33: #{fwd.5} parent=11 // pred_check
        %p468 = pneg %p202
      $region34: #{fwd.5} parent=11 // pred_check_branch
        %470 = sbr.rel (%p468) target = $region36
      $region35: #{fwd.5} parent=11 // pred_region
        _
      $region36: #{fwd.5} parent=11 // pred_fallthru
        _
      // Predicated region
      $region37: #{fwd.5} parent=11 // pred_check
        %p471 = pneg %p223
      $region38: #{fwd.5} parent=11 // pred_check_branch
        %473 = sbr.rel (%p471) target = $region40
      $region39: #{fwd.5} parent=11 // pred_region
        _
      $region40: #{fwd.5} parent=11 // pred_fallthru
        _
      // Predicated region
      $region41: #{fwd.5} parent=11 // pred_check
        %p474 = pneg %p244
      $region42: #{fwd.5} parent=11 // pred_check_branch
        %476 = sbr.rel (%p474) target = $region44
      $region43: #{fwd.5} parent=11 // pred_region
        _
      $region44: #{fwd.5} parent=11 // pred_fallthru
        _
      // Predicated region
      $region45: #{fwd.5} parent=11 // pred_check
        %p477 = pneg %p265
      $region46: #{fwd.5} parent=11 // pred_check_branch
        %479 = sbr.rel (%p477) target = $region48
      $region47: #{fwd.5} parent=11 // pred_region
        _
      $region48: #{fwd.5} parent=11 // pred_fallthru
        _
      // Predicated region
      $region49: #{fwd.5} parent=11 // pred_check
        %p480 = pneg %p286
      $region50: #{fwd.5} parent=11 // pred_check_branch
        %482 = sbr.rel (%p480) target = $region52
      $region51: #{fwd.5} parent=11 // pred_region
        _
      $region52: #{fwd.5} parent=11 // pred_fallthru
        _
      // Predicated region
      $region53: #{fwd.5} parent=11 // pred_check
        %p483 = pneg %p307
      $region54: #{fwd.5} parent=11 // pred_check_branch
        %485 = sbr.rel (%p483) target = $region56
      $region55: #{fwd.5} parent=11 // pred_region
        _
      $region56: #{fwd.5} parent=11 // pred_fallthru
        _
      // Predicated region
      $region57: #{fwd.5} parent=11 // pred_check
        %p486 = pneg %p328
      $region58: #{fwd.5} parent=11 // pred_check_branch
        %488 = sbr.rel (%p486) target = $region60
      $region59: #{fwd.5} parent=11 // pred_region
        _
      $region60: #{fwd.5} parent=11 // pred_fallthru
        _
      // Predicated region
      $region61: #{fwd.5} parent=11 // pred_check
        %p489 = pneg %p349
      $region62: #{fwd.5} parent=11 // pred_check_branch
        %491 = sbr.rel (%p489) target = $region64
      $region63: #{fwd.5} parent=11 // pred_region
        _
      $region64: #{fwd.5} parent=11 // pred_fallthru
        _
      // Predicated region
      $region65: #{fwd.5} parent=11 // pred_check
        %p492 = pneg %p370
      $region66: #{fwd.5} parent=11 // pred_check_branch
        %494 = sbr.rel (%p492) target = $region68
      $region67: #{fwd.5} parent=11 // pred_region
        _
      $region68: #{fwd.5} parent=11 // pred_fallthru
        _
      // Predicated region
      $region69: #{fwd.5} parent=11 // pred_check
        %p495 = pneg %p391
      $region70: #{fwd.5} parent=11 // pred_check_branch
        %497 = sbr.rel (%p495) target = $region72
      $region71: #{fwd.5} parent=11 // pred_region
        _
      $region72: #{fwd.5} parent=11 // pred_fallthru
        _
      // Predicated region
      $region73: #{fwd.5} parent=11 // pred_check
        %p498 = pneg %p412
      $region74: #{fwd.5} parent=11 // pred_check_branch
        %500 = sbr.rel (%p498) target = $region76
      $region75: #{fwd.5} parent=11 // pred_region
        _
      $region76: #{fwd.5} parent=11 // pred_fallthru
        _
    $region12: #{fwd.5} parent=5 // pred_fallthru
      _
    %p501 = scmp.lt.s32.totalorder %s24, 2
    // Predicated region
    $region77: #{fwd.5} parent=5 // pred_check
      %p502 = pneg %p501
    $region78: #{fwd.5} parent=5 // pred_check_branch
      %504 = sbr.rel (%p502) target = $region80
    $region79: #{fwd.5} parent=5 // pred_region
      // Predicated region
      $region81: #{fwd.5} parent=79 // pred_check
        %p505 = pneg %p44
      $region82: #{fwd.5} parent=79 // pred_check_branch
        %507 = sbr.rel (%p505) target = $region84
      $region83: #{fwd.5} parent=79 // pred_region
        %p508 = scmp.lt.s32.totalorder %s24, 1
        %s509 = scalar_select %p508, %s24, 1
        %s510 = smul.addr %s509, 8
        %s511 = scalar_lea.vmem %s0, %s510
      $region84: #{fwd.5} parent=79 // pred_fallthru
        _
      // Predicated region
      $region85: #{fwd.5} parent=79 // pred_check
        %p512 = pneg %p70
      $region86: #{fwd.5} parent=79 // pred_check_branch
        %514 = sbr.rel (%p512) target = $region88
      $region87: #{fwd.5} parent=79 // pred_region
        %p515 = scmp.lt.s32.totalorder %s24, 1
        %s516 = scalar_select %p515, %s24, 1
        %s517 = scalar_lea.vmem %s1, %s516
      $region88: #{fwd.5} parent=79 // pred_fallthru
        _
    $region80: #{fwd.5} parent=5 // pred_fallthru
      _
    %p518 = scmp.le.s32.totalorder 1, %s24
    %p519 = scmp.lt.s32.totalorder %s24, 3
    %p520 = pnand %p518, %p519
    %p521 = pneg %p520
    // Predicated region
    $region89: #{fwd.5} parent=5 // pred_check
      _
    $region90: #{fwd.5} parent=5 // pred_check_branch
      %523 = sbr.rel (%p520) target = $region92
    $region91: #{fwd.5} parent=5 // pred_region
      %s524 = ssub.s32 %s24, 1
      %p525 = scmp.lt.s32.totalorder %s29, 1
      %s526 = scalar_select %p525, %s29, 1
      %s527 = smul.addr %s526, 8
      %s528 = scalar_lea.vmem %s0, %s527
      %p529 = pneg %p50
      %p530 = pneg %p47
      %p531 = scmp.lt.s32.totalorder %s29, 1
      %s532 = scalar_select %p531, %s29, 1
      %s533 = scalar_lea.vmem %s1, %s532
      %p534 = pneg %p76
      %p535 = pneg %p73
      %p536 = pneg %p97
      %p537 = pneg %p94
      %p538 = pneg %p118
      %p539 = pneg %p115
      %p540 = pneg %p139
      %p541 = pneg %p136
      %p542 = pneg %p160
      %p543 = pneg %p157
      %p544 = pneg %p181
      %p545 = pneg %p178
      %p546 = pneg %p202
      %p547 = pneg %p199
      %p548 = pneg %p223
      %p549 = pneg %p220
      %p550 = pneg %p244
      %p551 = pneg %p241
      %p552 = pneg %p265
      %p553 = pneg %p262
      %p554 = pneg %p286
      %p555 = pneg %p283
      %p556 = pneg %p307
      %p557 = pneg %p304
      %p558 = pneg %p328
      %p559 = pneg %p325
      %p560 = pneg %p349
      %p561 = pneg %p346
      %p562 = pneg %p370
      %p563 = pneg %p367
      %p564 = pneg %p391
      %p565 = pneg %p388
      %p566 = pneg %p412
      %p567 = pneg %p409
      %p568 = pneg %p438
      %p569 = pneg %p435
      %p570 = scmp.lt.s32.totalorder %s29, 1
      %s571 = scalar_select %p570, %s29, 1
      %s572 = smul.addr %s571, 8
      %s573 = scalar_lea.vmem %s18, %s572
      %p574 = scmp.lt.s32.totalorder %s29, 1
      %s575 = scalar_select %p574, %s29, 1
      %s576 = smul.addr %s575, 8
      %s577 = scalar_lea.vmem %s0, %s576
      %p578 = scmp.lt.s32.totalorder %s29, 1
      %s579 = scalar_select %p578, %s29, 1
      %s580 = scalar_lea.vmem %s1, %s579
      %p581 = scmp.lt.s32.totalorder %s29, 1
      %s582 = scalar_select %p581, %s29, 1
      %s583 = smul.addr %s582, 8
      %s584 = scalar_lea.vmem %s18, %s583
      %v586 = vld [vmem:[%s577] sm:$0xff]
      %v587 = vld [vmem:[%s580] sm:$0x1]
      %v588 = vpack.c.bf16 %v586, %v586
      %v589 = vld [vmem:[%s2] sm:$0xf]
      %v590 = vld [vmem:[%s2 + $0x4] sm:$0xf]
      %v591 = vld [vmem:[%s2 + $0x8] sm:$0xf]
      %v592 = vld [vmem:[%s2 + $0xc] sm:$0xf]
      %v593 = vld [vmem:[%s3] sm:$0x1]
      %v595 = vlaneseq
      %v596 = vshrl.u32 %v595, 7
      %v597 = vsub.s32 0, %v596
      %v598 = vrot.slane %v593, %v597
      %v604 = vunpack.c.l.b16 %v589
      %v605 = vunpack.c.l.b16 %v590
      %v606 = vunpack.c.l.b16 %v591
      %v607 = vunpack.c.l.b16 %v592
      %v608 = vpack.c.b16 %v605, %v604
      %v609 = vpack.c.b16 %v607, %v606
      %vm612 = vcmask 261120
      %v614 = vsel %vm612, %v588, 0
      %616 = vmatprep.subr.bf16.mxu0 0
      %617 = vmatpush1.bf16.msra.mxu0 0
      %618 = vmatprep.subr.bf16.mxu0 0
      %619 = vmatpush1.bf16.msra.mxu0 0
      %620 = vmatprep.subr.bf16.mxu0 0
      %621 = vmatpush1.bf16.msra.mxu0 0
      %622 = vmatprep.subr.bf16.mxu0 0
      %623 = vmatpush1.bf16.msra.mxu0 0
      %624 = vmatprep.subr.bf16.mxu0 0
      %625 = vmatpush1.bf16.msra.mxu0 0
      %626 = vmatprep.subr.bf16.mxu0 0
      %627 = vmatpush1.bf16.msra.mxu0 0
      %628 = vmatprep.subr.bf16.mxu0 0
      %629 = vmatpush1.bf16.msra.mxu0 %v609
      %630 = vmatprep.subr.bf16.mxu0 0
      %631 = vmatpush1.bf16.msra.mxu0 %v608
      %632 = vmatprep.subr.bf16.mxu0 0
      %633 = vmatpush2.bf16.msra.mxu0 0
      %634 = vmatprep.subr.bf16.mxu0 0
      %635 = vmatpush2.bf16.msra.mxu0 0
      %636 = vmatprep.subr.bf16.mxu0 0
      %637 = vmatpush2.bf16.msra.mxu0 0
      %638 = vmatprep.subr.bf16.mxu0 0
      %639 = vmatpush2.bf16.msra.mxu0 0
      %640 = vmatprep.subr.bf16.mxu0 0
      %641 = vmatpush2.bf16.msra.mxu0 0
      %642 = vmatprep.subr.bf16.mxu0 0
      %643 = vmatpush2.bf16.msra.mxu0 0
      %644 = vmatprep.subr.bf16.mxu0 0
      %645 = vmatpush2.bf16.msra.mxu0 0
      %646 = vmatprep.subr.bf16.mxu0 0
      %647 = vmatpush2.bf16.msra.mxu0 0
      %648 = vmatprep.mubr.bf16.mxu0 0
      %649 = vmatmul.mubr.bf16.gmra.mxu0 %v614
      %v650 = vpop.f32.mrf.mxu0
      %v651 = vadd.f32 %v598, %v650
      %v652 = vpop.f32.mrf.mxu0
      %v653 = vpop.f32.mrf.mxu0
      %v654 = vpop.f32.mrf.mxu0
      %655 = vdwg.mxu0
      %v656 = vmul.f32 %v651, 0.25
      %v657 = vld [vmem:[%s4] sm:$0xf]
      %v658 = vld [vmem:[%s4 + $0x4] sm:$0xf]
      %v659 = vld [vmem:[%s4 + $0x8] sm:$0xf]
      %v660 = vld [vmem:[%s4 + $0xc] sm:$0xf]
      %v661 = vld [vmem:[%s5] sm:$0x1]
      %v663 = vlaneseq
      %v664 = vshrl.u32 %v663, 7
      %v665 = vsub.s32 0, %v664
      %v666 = vrot.slane %v661, %v665
      %v672 = vunpack.c.l.b16 %v657
      %v673 = vunpack.c.l.b16 %v658
      %v674 = vunpack.c.l.b16 %v659
      %v675 = vunpack.c.l.b16 %v660
      %v676 = vpack.c.b16 %v673, %v672
      %v677 = vpack.c.b16 %v675, %v674
      %680 = vmatprep.subr.bf16.mxu0 0
      %681 = vmatpush1.bf16.msra.mxu0 0
      %682 = vmatprep.subr.bf16.mxu0 0
      %683 = vmatpush1.bf16.msra.mxu0 0
      %684 = vmatprep.subr.bf16.mxu0 0
      %685 = vmatpush1.bf16.msra.mxu0 0
      %686 = vmatprep.subr.bf16.mxu0 0
      %687 = vmatpush1.bf16.msra.mxu0 0
      %688 = vmatprep.subr.bf16.mxu0 0
      %689 = vmatpush1.bf16.msra.mxu0 0
      %690 = vmatprep.subr.bf16.mxu0 0
      %691 = vmatpush1.bf16.msra.mxu0 0
      %692 = vmatprep.subr.bf16.mxu0 0
      %693 = vmatpush1.bf16.msra.mxu0 %v677
      %694 = vmatprep.subr.bf16.mxu0 0
      %695 = vmatpush1.bf16.msra.mxu0 %v676
      %696 = vmatprep.subr.bf16.mxu0 0
      %697 = vmatpush2.bf16.msra.mxu0 0
      %698 = vmatprep.subr.bf16.mxu0 0
      %699 = vmatpush2.bf16.msra.mxu0 0
      %700 = vmatprep.subr.bf16.mxu0 0
      %701 = vmatpush2.bf16.msra.mxu0 0
      %702 = vmatprep.subr.bf16.mxu0 0
      %703 = vmatpush2.bf16.msra.mxu0 0
      %704 = vmatprep.subr.bf16.mxu0 0
      %705 = vmatpush2.bf16.msra.mxu0 0
      %706 = vmatprep.subr.bf16.mxu0 0
      %707 = vmatpush2.bf16.msra.mxu0 0
      %708 = vmatprep.subr.bf16.mxu0 0
      %709 = vmatpush2.bf16.msra.mxu0 0
      %710 = vmatprep.subr.bf16.mxu0 0
      %711 = vmatpush2.bf16.msra.mxu0 0
      %712 = vmatprep.mubr.bf16.mxu0 0
      %713 = vmatmul.mubr.bf16.gmra.mxu0 %v614
      %v714 = vpop.f32.mrf.mxu0
      %v715 = vadd.f32 %v666, %v714
      %v716 = vpop.f32.mrf.mxu0
      %v717 = vpop.f32.mrf.mxu0
      %v718 = vpop.f32.mrf.mxu0
      %719 = vdwg.mxu0
      %v720 = vld [vmem:[%s6] sm:$0xf]
      %v721 = vld [vmem:[%s6 + $0x4] sm:$0xf]
      %v722 = vld [vmem:[%s6 + $0x8] sm:$0xf]
      %v723 = vld [vmem:[%s6 + $0xc] sm:$0xf]
      %v724 = vld [vmem:[%s7] sm:$0x1]
      %v726 = vlaneseq
      %v727 = vshrl.u32 %v726, 7
      %v728 = vsub.s32 0, %v727
      %v729 = vrot.slane %v724, %v728
      %v735 = vunpack.c.l.b16 %v720
      %v736 = vunpack.c.l.b16 %v721
      %v737 = vunpack.c.l.b16 %v722
      %v738 = vunpack.c.l.b16 %v723
      %v739 = vpack.c.b16 %v736, %v735
      %v740 = vpack.c.b16 %v738, %v737
      %743 = vmatprep.subr.bf16.mxu0 0
      %744 = vmatpush1.bf16.msra.mxu0 0
      %745 = vmatprep.subr.bf16.mxu0 0
      %746 = vmatpush1.bf16.msra.mxu0 0
      %747 = vmatprep.subr.bf16.mxu0 0
      %748 = vmatpush1.bf16.msra.mxu0 0
      %749 = vmatprep.subr.bf16.mxu0 0
      %750 = vmatpush1.bf16.msra.mxu0 0
      %751 = vmatprep.subr.bf16.mxu0 0
      %752 = vmatpush1.bf16.msra.mxu0 0
      %753 = vmatprep.subr.bf16.mxu0 0
      %754 = vmatpush1.bf16.msra.mxu0 0
      %755 = vmatprep.subr.bf16.mxu0 0
      %756 = vmatpush1.bf16.msra.mxu0 %v740
      %757 = vmatprep.subr.bf16.mxu0 0
      %758 = vmatpush1.bf16.msra.mxu0 %v739
      %759 = vmatprep.subr.bf16.mxu0 0
      %760 = vmatpush2.bf16.msra.mxu0 0
      %761 = vmatprep.subr.bf16.mxu0 0
      %762 = vmatpush2.bf16.msra.mxu0 0
      %763 = vmatprep.subr.bf16.mxu0 0
      %764 = vmatpush2.bf16.msra.mxu0 0
      %765 = vmatprep.subr.bf16.mxu0 0
      %766 = vmatpush2.bf16.msra.mxu0 0
      %767 = vmatprep.subr.bf16.mxu0 0
      %768 = vmatpush2.bf16.msra.mxu0 0
      %769 = vmatprep.subr.bf16.mxu0 0
      %770 = vmatpush2.bf16.msra.mxu0 0
      %771 = vmatprep.subr.bf16.mxu0 0
      %772 = vmatpush2.bf16.msra.mxu0 0
      %773 = vmatprep.subr.bf16.mxu0 0
      %774 = vmatpush2.bf16.msra.mxu0 0
      %775 = vmatprep.mubr.bf16.mxu0 0
      %776 = vmatmul.mubr.bf16.gmra.mxu0 %v614
      %v777 = vpop.f32.mrf.mxu0
      %v778 = vadd.f32 %v729, %v777
      %v779 = vpop.f32.mrf.mxu0
      %v780 = vpop.f32.mrf.mxu0
      %v781 = vpop.f32.mrf.mxu0
      %782 = vdwg.mxu0
      %v784 = vlaneseq
      %v785 = vshrl.u32 %v784, 7
      %v786 = vsub.s32 0, %v785
      %v787 = vrot.slane %v587, %v786
      %vm789 = vcmask 130048
      %v791 = vsel %vm789, %v656, 0
      %v794 = vsel %vm789, %v715, 0
      %796 = vmatprep.subr.mxu0 0.0
      %797 = vmatpush1.xpose.msra.mxu0 0.0
      %798 = vmatprep.subr.mxu0 0.0
      %799 = vmatpush1.xpose.msra.mxu0 0.0
      %800 = vmatprep.subr.mxu0 0.0
      %801 = vmatpush1.xpose.msra.mxu0 0.0
      %802 = vmatprep.subr.mxu0 0.0
      %803 = vmatpush1.xpose.msra.mxu0 0.0
      %804 = vmatprep.subr.mxu0 0.0
      %805 = vmatpush1.xpose.msra.mxu0 0.0
      %806 = vmatprep.subr.mxu0 0.0
      %807 = vmatpush1.xpose.msra.mxu0 0.0
      %808 = vmatprep.subr.mxu0 0.0
      %809 = vmatpush1.xpose.msra.mxu0 0.0
      %810 = vmatprep.subr.mxu0 0.0
      %811 = vmatpush1.xpose.msra.mxu0 0.0
      %812 = vmatprep.subr.mxu0 0.0
      %813 = vmatpush1.xpose.msra.mxu0 0.0
      %814 = vmatprep.subr.mxu0 0.0
      %815 = vmatpush1.xpose.msra.mxu0 0.0
      %816 = vmatprep.subr.mxu0 0.0
      %817 = vmatpush1.xpose.msra.mxu0 0.0
      %818 = vmatprep.subr.mxu0 0.0
      %819 = vmatpush1.xpose.msra.mxu0 0.0
      %820 = vmatprep.subr.mxu0 0.0
      %821 = vmatpush1.xpose.msra.mxu0 0.0
      %822 = vmatprep.subr.mxu0 0.0
      %823 = vmatpush1.xpose.msra.mxu0 0.0
      %824 = vmatprep.subr.mxu0 0.0
      %825 = vmatpush1.xpose.msra.mxu0 0.0
      %826 = vmatprep.subr.mxu0 0.0
      %827 = vmatpush1.xpose.msra.mxu0 %v794
      %828 = vmatprep.subr.mxu0 0.0
      %829 = vmatpush2.xpose.msra.mxu0 0.0
      %830 = vmatprep.subr.mxu0 0.0
      %831 = vmatpush2.xpose.msra.mxu0 0.0
      %832 = vmatprep.subr.mxu0 0.0
      %833 = vmatpush2.xpose.msra.mxu0 0.0
      %834 = vmatprep.subr.mxu0 0.0
      %835 = vmatpush2.xpose.msra.mxu0 0.0
      %836 = vmatprep.subr.mxu0 0.0
      %837 = vmatpush2.xpose.msra.mxu0 0.0
      %838 = vmatprep.subr.mxu0 0.0
      %839 = vmatpush2.xpose.msra.mxu0 0.0
      %840 = vmatprep.subr.mxu0 0.0
      %841 = vmatpush2.xpose.msra.mxu0 0.0
      %842 = vmatprep.subr.mxu0 0.0
      %843 = vmatpush2.xpose.msra.mxu0 0.0
      %844 = vmatprep.subr.mxu0 0.0
      %845 = vmatpush2.xpose.msra.mxu0 0.0
      %846 = vmatprep.subr.mxu0 0.0
      %847 = vmatpush2.xpose.msra.mxu0 0.0
      %848 = vmatprep.subr.mxu0 0.0
      %849 = vmatpush2.xpose.msra.mxu0 0.0
      %850 = vmatprep.subr.mxu0 0.0
      %851 = vmatpush2.xpose.msra.mxu0 0.0
      %852 = vmatprep.subr.mxu0 0.0
      %853 = vmatpush2.xpose.msra.mxu0 0.0
      %854 = vmatprep.subr.mxu0 0.0
      %855 = vmatpush2.xpose.msra.mxu0 0.0
      %856 = vmatprep.subr.mxu0 0.0
      %857 = vmatpush2.xpose.msra.mxu0 0.0
      %858 = vmatprep.subr.mxu0 0.0
      %859 = vmatpush2.xpose.msra.mxu0 0.0
      %860 = vmatprep.mubr.f32.mxu0 0.0
      %861 = vmatmul.mubr.f32.gmra.mxu0 %v791
      %v862 = vpop.f32.mrf.mxu0
      %v863 = vadd.f32 %v787, %v862
      %v864 = vpop.f32.mrf.mxu0
      %865 = vdwg.mxu0
      %vm866 = vcmask 64512
      %v867 = vsel %vm866, %v863, -inf
      %868 = vmax.xlane.f32.xlu0 %v867
      %v869 = vpop.xlane.xlu0 %868
      %v870 = vsub.f32 %v863, %v869
      %v871 = vmul.f32 %v870, 1.442695
      %v872 = vpow.pop %v871
      %v873 = vsel %vm866, %v872, 0.0
      %874 = vadd.xlane.f32.xlu0 %v873
      %v875 = vpop.xlane.xlu0 %874
      %v876 = vrcp.pop %v875
      %v877 = vmul.f32 %v872, %v876
      %v878 = vpack.c.bf16 %v877, %v877
      %v879 = vpack.c.bf16 %v778, %v778
      %v881 = vsel %vm866, %v878, 0
      %vm883 = vcmask 1043456
      %v885 = vsel %vm883, %v879, 0
      %887 = vmatprep.subr.bf16.mxu0 0
      %888 = vmatpush1.bf16.msra.mxu0 0
      %889 = vmatprep.subr.bf16.mxu0 0
      %890 = vmatpush1.bf16.msra.mxu0 0
      %891 = vmatprep.subr.bf16.mxu0 0
      %892 = vmatpush1.bf16.msra.mxu0 0
      %893 = vmatprep.subr.bf16.mxu0 0
      %894 = vmatpush1.bf16.msra.mxu0 0
      %895 = vmatprep.subr.bf16.mxu0 0
      %896 = vmatpush1.bf16.msra.mxu0 0
      %897 = vmatprep.subr.bf16.mxu0 0
      %898 = vmatpush1.bf16.msra.mxu0 0
      %899 = vmatprep.subr.bf16.mxu0 0
      %900 = vmatpush1.bf16.msra.mxu0 0
      %901 = vmatprep.subr.bf16.mxu0 0
      %902 = vmatpush1.bf16.msra.mxu0 %v885
      %903 = vmatprep.subr.bf16.mxu0 0
      %904 = vmatpush2.bf16.msra.mxu0 0
      %905 = vmatprep.subr.bf16.mxu0 0
      %906 = vmatpush2.bf16.msra.mxu0 0
      %907 = vmatprep.subr.bf16.mxu0 0
      %908 = vmatpush2.bf16.msra.mxu0 0
      %909 = vmatprep.subr.bf16.mxu0 0
      %910 = vmatpush2.bf16.msra.mxu0 0
      %911 = vmatprep.subr.bf16.mxu0 0
      %912 = vmatpush2.bf16.msra.mxu0 0
      %913 = vmatprep.subr.bf16.mxu0 0
      %914 = vmatpush2.bf16.msra.mxu0 0
      %915 = vmatprep.subr.bf16.mxu0 0
      %916 = vmatpush2.bf16.msra.mxu0 0
      %917 = vmatprep.subr.bf16.mxu0 0
      %918 = vmatpush2.bf16.msra.mxu0 0
      %919 = vmatprep.mubr.bf16.mxu0 0
      %920 = vmatmul.mubr.bf16.gmra.mxu0 %v881
      %v921 = vpop.f32.mrf.mxu0
      %v922 = vadd.f32 0.0, %v921
      %v923 = vpop.f32.mrf.mxu0
      %v924 = vpop.f32.mrf.mxu0
      %v925 = vpop.f32.mrf.mxu0
      %926 = vdwg.mxu0
      %v927 = vpack.c.bf16 %v922, %v922
      %v928 = vld [vmem:[%s8] sm:$0xf]
      %v929 = vld [vmem:[%s8 + $0x4] sm:$0xf]
      %s930 = scalar_lea.vmem %s2, 16
      %v931 = vld [vmem:[%s930] sm:$0xf]
      %v932 = vld [vmem:[%s930 + $0x4] sm:$0xf]
      %v933 = vld [vmem:[%s930 + $0x8] sm:$0xf]
      %v934 = vld [vmem:[%s930 + $0xc] sm:$0xf]
      %s935 = scalar_lea.vmem %s3, 1
      %v936 = vld [vmem:[%s935] sm:$0x1]
      %v938 = vlaneseq
      %v939 = vshrl.u32 %v938, 7
      %v940 = vsub.s32 0, %v939
      %v941 = vrot.slane %v936, %v940
      %v947 = vunpack.c.l.b16 %v931
      %v948 = vunpack.c.l.b16 %v932
      %v949 = vunpack.c.l.b16 %v933
      %v950 = vunpack.c.l.b16 %v934
      %v951 = vpack.c.b16 %v948, %v947
      %v952 = vpack.c.b16 %v950, %v949
      %955 = vmatprep.subr.bf16.mxu0 0
      %956 = vmatpush1.bf16.msra.mxu0 0
      %957 = vmatprep.subr.bf16.mxu0 0
      %958 = vmatpush1.bf16.msra.mxu0 0
      %959 = vmatprep.subr.bf16.mxu0 0
      %960 = vmatpush1.bf16.msra.mxu0 0
      %961 = vmatprep.subr.bf16.mxu0 0
      %962 = vmatpush1.bf16.msra.mxu0 0
      %963 = vmatprep.subr.bf16.mxu0 0
      %964 = vmatpush1.bf16.msra.mxu0 0
      %965 = vmatprep.subr.bf16.mxu0 0
      %966 = vmatpush1.bf16.msra.mxu0 0
      %967 = vmatprep.subr.bf16.mxu0 0
      %968 = vmatpush1.bf16.msra.mxu0 %v952
      %969 = vmatprep.subr.bf16.mxu0 0
      %970 = vmatpush1.bf16.msra.mxu0 %v951
      %971 = vmatprep.subr.bf16.mxu0 0
      %972 = vmatpush2.bf16.msra.mxu0 0
      %973 = vmatprep.subr.bf16.mxu0 0
      %974 = vmatpush2.bf16.msra.mxu0 0
      %975 = vmatprep.subr.bf16.mxu0 0
      %976 = vmatpush2.bf16.msra.mxu0 0
      %977 = vmatprep.subr.bf16.mxu0 0
      %978 = vmatpush2.bf16.msra.mxu0 0
      %979 = vmatprep.subr.bf16.mxu0 0
      %980 = vmatpush2.bf16.msra.mxu0 0
      %981 = vmatprep.subr.bf16.mxu0 0
      %982 = vmatpush2.bf16.msra.mxu0 0
      %983 = vmatprep.subr.bf16.mxu0 0
      %984 = vmatpush2.bf16.msra.mxu0 0
      %985 = vmatprep.subr.bf16.mxu0 0
      %986 = vmatpush2.bf16.msra.mxu0 0
      %987 = vmatprep.mubr.bf16.mxu0 0
      %988 = vmatmul.mubr.bf16.gmra.mxu0 %v614
      %v989 = vpop.f32.mrf.mxu0
      %v990 = vadd.f32 %v941, %v989
      %v991 = vpop.f32.mrf.mxu0
      %v992 = vpop.f32.mrf.mxu0
      %v993 = vpop.f32.mrf.mxu0
      %994 = vdwg.mxu0
      %v995 = vmul.f32 %v990, 0.25
      %s996 = scalar_lea.vmem %s4, 16
      %v997 = vld [vmem:[%s996] sm:$0xf]
      %v998 = vld [vmem:[%s996 + $0x4] sm:$0xf]
      %v999 = vld [vmem:[%s996 + $0x8] sm:$0xf]
      %v1000 = vld [vmem:[%s996 + $0xc] sm:$0xf]
      %s1001 = scalar_lea.vmem %s5, 1
      %v1002 = vld [vmem:[%s1001] sm:$0x1]
      %v1004 = vlaneseq
      %v1005 = vshrl.u32 %v1004, 7
      %v1006 = vsub.s32 0, %v1005
      %v1007 = vrot.slane %v1002, %v1006
      %v1013 = vunpack.c.l.b16 %v997
      %v1014 = vunpack.c.l.b16 %v998
      %v1015 = vunpack.c.l.b16 %v999
      %v1016 = vunpack.c.l.b16 %v1000
      %v1017 = vpack.c.b16 %v1014, %v1013
      %v1018 = vpack.c.b16 %v1016, %v1015
      %1021 = vmatprep.subr.bf16.mxu0 0
      %1022 = vmatpush1.bf16.msra.mxu0 0
      %1023 = vmatprep.subr.bf16.mxu0 0
      %1024 = vmatpush1.bf16.msra.mxu0 0
      %1025 = vmatprep.subr.bf16.mxu0 0
      %1026 = vmatpush1.bf16.msra.mxu0 0
      %1027 = vmatprep.subr.bf16.mxu0 0
      %1028 = vmatpush1.bf16.msra.mxu0 0
      %1029 = vmatprep.subr.bf16.mxu0 0
      %1030 = vmatpush1.bf16.msra.mxu0 0
      %1031 = vmatprep.subr.bf16.mxu0 0
      %1032 = vmatpush1.bf16.msra.mxu0 0
      %1033 = vmatprep.subr.bf16.mxu0 0
      %1034 = vmatpush1.bf16.msra.mxu0 %v1018
      %1035 = vmatprep.subr.bf16.mxu0 0
      %1036 = vmatpush1.bf16.msra.mxu0 %v1017
      %1037 = vmatprep.subr.bf16.mxu0 0
      %1038 = vmatpush2.bf16.msra.mxu0 0
      %1039 = vmatprep.subr.bf16.mxu0 0
      %1040 = vmatpush2.bf16.msra.mxu0 0
      %1041 = vmatprep.subr.bf16.mxu0 0
      %1042 = vmatpush2.bf16.msra.mxu0 0
      %1043 = vmatprep.subr.bf16.mxu0 0
      %1044 = vmatpush2.bf16.msra.mxu0 0
      %1045 = vmatprep.subr.bf16.mxu0 0
      %1046 = vmatpush2.bf16.msra.mxu0 0
      %1047 = vmatprep.subr.bf16.mxu0 0
      %1048 = vmatpush2.bf16.msra.mxu0 0
      %1049 = vmatprep.subr.bf16.mxu0 0
      %1050 = vmatpush2.bf16.msra.mxu0 0
      %1051 = vmatprep.subr.bf16.mxu0 0
      %1052 = vmatpush2.bf16.msra.mxu0 0
      %1053 = vmatprep.mubr.bf16.mxu0 0
      %1054 = vmatmul.mubr.bf16.gmra.mxu0 %v614
      %v1055 = vpop.f32.mrf.mxu0
      %v1056 = vadd.f32 %v1007, %v1055
      %v1057 = vpop.f32.mrf.mxu0
      %v1058 = vpop.f32.mrf.mxu0
      %v1059 = vpop.f32.mrf.mxu0
      %1060 = vdwg.mxu0
      %s1061 = scalar_lea.vmem %s6, 16
      %v1062 = vld [vmem:[%s1061] sm:$0xf]
      %v1063 = vld [vmem:[%s1061 + $0x4] sm:$0xf]
      %v1064 = vld [vmem:[%s1061 + $0x8] sm:$0xf]
      %v1065 = vld [vmem:[%s1061 + $0xc] sm:$0xf]
      %s1066 = scalar_lea.vmem %s7, 1
      %v1067 = vld [vmem:[%s1066] sm:$0x1]
      %v1069 = vlaneseq
      %v1070 = vshrl.u32 %v1069, 7
      %v1071 = vsub.s32 0, %v1070
      %v1072 = vrot.slane %v1067, %v1071
      %v1078 = vunpack.c.l.b16 %v1062
      %v1079 = vunpack.c.l.b16 %v1063
      %v1080 = vunpack.c.l.b16 %v1064
      %v1081 = vunpack.c.l.b16 %v1065
      %v1082 = vpack.c.b16 %v1079, %v1078
      %v1083 = vpack.c.b16 %v1081, %v1080
      %1086 = vmatprep.subr.bf16.mxu0 0
      %1087 = vmatpush1.bf16.msra.mxu0 0
      %1088 = vmatprep.subr.bf16.mxu0 0
      %1089 = vmatpush1.bf16.msra.mxu0 0
      %1090 = vmatprep.subr.bf16.mxu0 0
      %1091 = vmatpush1.bf16.msra.mxu0 0
      %1092 = vmatprep.subr.bf16.mxu0 0
      %1093 = vmatpush1.bf16.msra.mxu0 0
      %1094 = vmatprep.subr.bf16.mxu0 0
      %1095 = vmatpush1.bf16.msra.mxu0 0
      %1096 = vmatprep.subr.bf16.mxu0 0
      %1097 = vmatpush1.bf16.msra.mxu0 0
      %1098 = vmatprep.subr.bf16.mxu0 0
      %1099 = vmatpush1.bf16.msra.mxu0 %v1083
      %1100 = vmatprep.subr.bf16.mxu0 0
      %1101 = vmatpush1.bf16.msra.mxu0 %v1082
      %1102 = vmatprep.subr.bf16.mxu0 0
      %1103 = vmatpush2.bf16.msra.mxu0 0
      %1104 = vmatprep.subr.bf16.mxu0 0
      %1105 = vmatpush2.bf16.msra.mxu0 0
      %1106 = vmatprep.subr.bf16.mxu0 0
      %1107 = vmatpush2.bf16.msra.mxu0 0
      %1108 = vmatprep.subr.bf16.mxu0 0
      %1109 = vmatpush2.bf16.msra.mxu0 0
      %1110 = vmatprep.subr.bf16.mxu0 0
      %1111 = vmatpush2.bf16.msra.mxu0 0
      %1112 = vmatprep.subr.bf16.mxu0 0
      %1113 = vmatpush2.bf16.msra.mxu0 0
      %1114 = vmatprep.subr.bf16.mxu0 0
      %1115 = vmatpush2.bf16.msra.mxu0 0
      %1116 = vmatprep.subr.bf16.mxu0 0
      %1117 = vmatpush2.bf16.msra.mxu0 0
      %1118 = vmatprep.mubr.bf16.mxu0 0
      %1119 = vmatmul.mubr.bf16.gmra.mxu0 %v614
      %v1120 = vpop.f32.mrf.mxu0
      %v1121 = vadd.f32 %v1072, %v1120
      %v1122 = vpop.f32.mrf.mxu0
      %v1123 = vpop.f32.mrf.mxu0
      %v1124 = vpop.f32.mrf.mxu0
      %1125 = vdwg.mxu0
      %v1127 = vsel %vm789, %v995, 0
      %v1130 = vsel %vm789, %v1056, 0
      %1132 = vmatprep.subr.mxu0 0.0
      %1133 = vmatpush1.xpose.msra.mxu0 0.0
      %1134 = vmatprep.subr.mxu0 0.0
      %1135 = vmatpush1.xpose.msra.mxu0 0.0
      %1136 = vmatprep.subr.mxu0 0.0
      %1137 = vmatpush1.xpose.msra.mxu0 0.0
      %1138 = vmatprep.subr.mxu0 0.0
      %1139 = vmatpush1.xpose.msra.mxu0 0.0
      %1140 = vmatprep.subr.mxu0 0.0
      %1141 = vmatpush1.xpose.msra.mxu0 0.0
      %1142 = vmatprep.subr.mxu0 0.0
      %1143 = vmatpush1.xpose.msra.mxu0 0.0
      %1144 = vmatprep.subr.mxu0 0.0
      %1145 = vmatpush1.xpose.msra.mxu0 0.0
      %1146 = vmatprep.subr.mxu0 0.0
      %1147 = vmatpush1.xpose.msra.mxu0 0.0
      %1148 = vmatprep.subr.mxu0 0.0
      %1149 = vmatpush1.xpose.msra.mxu0 0.0
      %1150 = vmatprep.subr.mxu0 0.0
      %1151 = vmatpush1.xpose.msra.mxu0 0.0
      %1152 = vmatprep.subr.mxu0 0.0
      %1153 = vmatpush1.xpose.msra.mxu0 0.0
      %1154 = vmatprep.subr.mxu0 0.0
      %1155 = vmatpush1.xpose.msra.mxu0 0.0
      %1156 = vmatprep.subr.mxu0 0.0
      %1157 = vmatpush1.xpose.msra.mxu0 0.0
      %1158 = vmatprep.subr.mxu0 0.0
      %1159 = vmatpush1.xpose.msra.mxu0 0.0
      %1160 = vmatprep.subr.mxu0 0.0
      %1161 = vmatpush1.xpose.msra.mxu0 0.0
      %1162 = vmatprep.subr.mxu0 0.0
      %1163 = vmatpush1.xpose.msra.mxu0 %v1130
      %1164 = vmatprep.subr.mxu0 0.0
      %1165 = vmatpush2.xpose.msra.mxu0 0.0
      %1166 = vmatprep.subr.mxu0 0.0
      %1167 = vmatpush2.xpose.msra.mxu0 0.0
      %1168 = vmatprep.subr.mxu0 0.0
      %1169 = vmatpush2.xpose.msra.mxu0 0.0
      %1170 = vmatprep.subr.mxu0 0.0
      %1171 = vmatpush2.xpose.msra.mxu0 0.0
      %1172 = vmatprep.subr.mxu0 0.0
      %1173 = vmatpush2.xpose.msra.mxu0 0.0
      %1174 = vmatprep.subr.mxu0 0.0
      %1175 = vmatpush2.xpose.msra.mxu0 0.0
      %1176 = vmatprep.subr.mxu0 0.0
      %1177 = vmatpush2.xpose.msra.mxu0 0.0
      %1178 = vmatprep.subr.mxu0 0.0
      %1179 = vmatpush2.xpose.msra.mxu0 0.0
      %1180 = vmatprep.subr.mxu0 0.0
      %1181 = vmatpush2.xpose.msra.mxu0 0.0
      %1182 = vmatprep.subr.mxu0 0.0
      %1183 = vmatpush2.xpose.msra.mxu0 0.0
      %1184 = vmatprep.subr.mxu0 0.0
      %1185 = vmatpush2.xpose.msra.mxu0 0.0
      %1186 = vmatprep.subr.mxu0 0.0
      %1187 = vmatpush2.xpose.msra.mxu0 0.0
      %1188 = vmatprep.subr.mxu0 0.0
      %1189 = vmatpush2.xpose.msra.mxu0 0.0
      %1190 = vmatprep.subr.mxu0 0.0
      %1191 = vmatpush2.xpose.msra.mxu0 0.0
      %1192 = vmatprep.subr.mxu0 0.0
      %1193 = vmatpush2.xpose.msra.mxu0 0.0
      %1194 = vmatprep.subr.mxu0 0.0
      %1195 = vmatpush2.xpose.msra.mxu0 0.0
      %1196 = vmatprep.mubr.f32.mxu0 0.0
      %1197 = vmatmul.mubr.f32.gmra.mxu0 %v1127
      %v1198 = vpop.f32.mrf.mxu0
      %v1199 = vadd.f32 %v787, %v1198
      %v1200 = vpop.f32.mrf.mxu0
      %1201 = vdwg.mxu0
      %v1202 = vsel %vm866, %v1199, -inf
      %1203 = vmax.xlane.f32.xlu0 %v1202
      %v1204 = vpop.xlane.xlu0 %1203
      %v1205 = vsub.f32 %v1199, %v1204
      %v1206 = vmul.f32 %v1205, 1.442695
      %v1207 = vpow.pop %v1206
      %v1208 = vsel %vm866, %v1207, 0.0
      %1209 = vadd.xlane.f32.xlu0 %v1208
      %v1210 = vpop.xlane.xlu0 %1209
      %v1211 = vrcp.pop %v1210
      %v1212 = vmul.f32 %v1207, %v1211
      %v1213 = vpack.c.bf16 %v1212, %v1212
      %v1214 = vpack.c.bf16 %v1121, %v1121
      %v1216 = vsel %vm866, %v1213, 0
      %v1219 = vsel %vm883, %v1214, 0
      %1221 = vmatprep.subr.bf16.mxu0 0
      %1222 = vmatpush1.bf16.msra.mxu0 0
      %1223 = vmatprep.subr.bf16.mxu0 0
      %1224 = vmatpush1.bf16.msra.mxu0 0
      %1225 = vmatprep.subr.bf16.mxu0 0
      %1226 = vmatpush1.bf16.msra.mxu0 0
      %1227 = vmatprep.subr.bf16.mxu0 0
      %1228 = vmatpush1.bf16.msra.mxu0 0
      %1229 = vmatprep.subr.bf16.mxu0 0
      %1230 = vmatpush1.bf16.msra.mxu0 0
      %1231 = vmatprep.subr.bf16.mxu0 0
      %1232 = vmatpush1.bf16.msra.mxu0 0
      %1233 = vmatprep.subr.bf16.mxu0 0
      %1234 = vmatpush1.bf16.msra.mxu0 0
      %1235 = vmatprep.subr.bf16.mxu0 0
      %1236 = vmatpush1.bf16.msra.mxu0 %v1219
      %1237 = vmatprep.subr.bf16.mxu0 0
      %1238 = vmatpush2.bf16.msra.mxu0 0
      %1239 = vmatprep.subr.bf16.mxu0 0
      %1240 = vmatpush2.bf16.msra.mxu0 0
      %1241 = vmatprep.subr.bf16.mxu0 0
      %1242 = vmatpush2.bf16.msra.mxu0 0
      %1243 = vmatprep.subr.bf16.mxu0 0
      %1244 = vmatpush2.bf16.msra.mxu0 0
      %1245 = vmatprep.subr.bf16.mxu0 0
      %1246 = vmatpush2.bf16.msra.mxu0 0
      %1247 = vmatprep.subr.bf16.mxu0 0
      %1248 = vmatpush2.bf16.msra.mxu0 0
      %1249 = vmatprep.subr.bf16.mxu0 0
      %1250 = vmatpush2.bf16.msra.mxu0 0
      %1251 = vmatprep.subr.bf16.mxu0 0
      %1252 = vmatpush2.bf16.msra.mxu0 0
      %1253 = vmatprep.mubr.bf16.mxu0 0
      %1254 = vmatmul.mubr.bf16.gmra.mxu0 %v1216
      %v1255 = vpop.f32.mrf.mxu0
      %v1256 = vadd.f32 0.0, %v1255
      %v1257 = vpop.f32.mrf.mxu0
      %v1258 = vpop.f32.mrf.mxu0
      %v1259 = vpop.f32.mrf.mxu0
      %1260 = vdwg.mxu0
      %v1261 = vpack.c.bf16 %v1256, %v1256
      %s1262 = scalar_lea.vmem %s8, 8
      %v1263 = vld [vmem:[%s1262] sm:$0xf]
      %v1264 = vld [vmem:[%s1262 + $0x4] sm:$0xf]
      %v1267 = vunpack.c.l.b16 %v1263
      %v1268 = vunpack.c.l.b16 %v1264
      %v1269 = vpack.c.b16 %v1268, %v1267
      %v1272 = vsel %vm789, %v1261, 0
      %1274 = vmatprep.subr.bf16.mxu0 0
      %1275 = vmatpush1.bf16.msra.mxu0 0
      %1276 = vmatprep.subr.bf16.mxu0 0
      %1277 = vmatpush1.bf16.msra.mxu0 0
      %1278 = vmatprep.subr.bf16.mxu0 0
      %1279 = vmatpush1.bf16.msra.mxu0 0
      %1280 = vmatprep.subr.bf16.mxu0 0
      %1281 = vmatpush1.bf16.msra.mxu0 0
      %1282 = vmatprep.subr.bf16.mxu0 0
      %1283 = vmatpush1.bf16.msra.mxu0 0
      %1284 = vmatprep.subr.bf16.mxu0 0
      %1285 = vmatpush1.bf16.msra.mxu0 0
      %1286 = vmatprep.subr.bf16.mxu0 0
      %1287 = vmatpush1.bf16.msra.mxu0 0
      %1288 = vmatprep.subr.bf16.mxu0 0
      %1289 = vmatpush1.bf16.msra.mxu0 %v1269
      %1290 = vmatprep.subr.bf16.mxu0 0
      %1291 = vmatpush2.bf16.msra.mxu0 0
      %1292 = vmatprep.subr.bf16.mxu0 0
      %1293 = vmatpush2.bf16.msra.mxu0 0
      %1294 = vmatprep.subr.bf16.mxu0 0
      %1295 = vmatpush2.bf16.msra.mxu0 0
      %1296 = vmatprep.subr.bf16.mxu0 0
      %1297 = vmatpush2.bf16.msra.mxu0 0
      %1298 = vmatprep.subr.bf16.mxu0 0
      %1299 = vmatpush2.bf16.msra.mxu0 0
      %1300 = vmatprep.subr.bf16.mxu0 0
      %1301 = vmatpush2.bf16.msra.mxu0 0
      %1302 = vmatprep.subr.bf16.mxu0 0
      %1303 = vmatpush2.bf16.msra.mxu0 0
      %1304 = vmatprep.subr.bf16.mxu0 0
      %1305 = vmatpush2.bf16.msra.mxu0 0
      %1306 = vmatprep.mubr.bf16.mxu0 0
      %1307 = vmatmul.mubr.bf16.gmra.mxu0 %v1272
      %v1308 = vpop.f32.mrf.mxu0
      %v1309 = vadd.f32 0.0, %v1308
      %v1310 = vpop.f32.mrf.mxu0
      %v1311 = vpop.f32.mrf.mxu0
      %v1312 = vpop.f32.mrf.mxu0
      %1313 = vdwg.mxu0
      %v1316 = vunpack.c.l.b16 %v928
      %v1317 = vunpack.c.l.b16 %v929
      %v1318 = vpack.c.b16 %v1317, %v1316
      %v1321 = vsel %vm789, %v927, 0
      %1323 = vmatprep.subr.bf16.mxu0 0
      %1324 = vmatpush1.bf16.msra.mxu0 0
      %1325 = vmatprep.subr.bf16.mxu0 0
      %1326 = vmatpush1.bf16.msra.mxu0 0
      %1327 = vmatprep.subr.bf16.mxu0 0
      %1328 = vmatpush1.bf16.msra.mxu0 0
      %1329 = vmatprep.subr.bf16.mxu0 0
      %1330 = vmatpush1.bf16.msra.mxu0 0
      %1331 = vmatprep.subr.bf16.mxu0 0
      %1332 = vmatpush1.bf16.msra.mxu0 0
      %1333 = vmatprep.subr.bf16.mxu0 0
      %1334 = vmatpush1.bf16.msra.mxu0 0
      %1335 = vmatprep.subr.bf16.mxu0 0
      %1336 = vmatpush1.bf16.msra.mxu0 0
      %1337 = vmatprep.subr.bf16.mxu0 0
      %1338 = vmatpush1.bf16.msra.mxu0 %v1318
      %1339 = vmatprep.subr.bf16.mxu0 0
      %1340 = vmatpush2.bf16.msra.mxu0 0
      %1341 = vmatprep.subr.bf16.mxu0 0
      %1342 = vmatpush2.bf16.msra.mxu0 0
      %1343 = vmatprep.subr.bf16.mxu0 0
      %1344 = vmatpush2.bf16.msra.mxu0 0
      %1345 = vmatprep.subr.bf16.mxu0 0
      %1346 = vmatpush2.bf16.msra.mxu0 0
      %1347 = vmatprep.subr.bf16.mxu0 0
      %1348 = vmatpush2.bf16.msra.mxu0 0
      %1349 = vmatprep.subr.bf16.mxu0 0
      %1350 = vmatpush2.bf16.msra.mxu0 0
      %1351 = vmatprep.subr.bf16.mxu0 0
      %1352 = vmatpush2.bf16.msra.mxu0 0
      %1353 = vmatprep.subr.bf16.mxu0 0
      %1354 = vmatpush2.bf16.msra.mxu0 0
      %1355 = vmatprep.mubr.bf16.mxu0 0
      %1356 = vmatmul.mubr.bf16.gmra.mxu0 %v1321
      %v1357 = vpop.f32.mrf.mxu0
      %v1358 = vadd.f32 %v1309, %v1357
      %v1359 = vpop.f32.mrf.mxu0
      %v1360 = vpop.f32.mrf.mxu0
      %v1361 = vpop.f32.mrf.mxu0
      %1362 = vdwg.mxu0
      %v1363 = vld [vmem:[%s9] sm:$0x1]
      %v1365 = vlaneseq
      %v1366 = vshrl.u32 %v1365, 7
      %v1367 = vsub.s32 0, %v1366
      %v1368 = vrot.slane %v1363, %v1367
      %v1370 = vadd.f32 %v1358, %v1368
      %v1371 = vadd.f32 %v586, %v1370
      %v1372 = vld [vmem:[%s10] sm:$0x1]
      %v1373 = vld [vmem:[%s11] sm:$0x1]
      %v1374 = vsel %vm612, %v1371, 0.0
      %1375 = vadd.xlane.f32.xlu0 %v1374
      %v1376 = vpop.xlane.xlu0 %1375
      %v1377 = vrcp.pop 32.0
      %v1378 = vmul.f32 %v1376, %v1377
      %v1379 = vsub.f32 %v1371, %v1378
      %v1380 = vmul.f32 %v1379, %v1379
      %v1381 = vsel %vm612, %v1380, 0.0
      %1382 = vadd.xlane.f32.xlu0 %v1381
      %v1383 = vpop.xlane.xlu0 %1382
      %v1384 = vmul.f32 %v1383, %v1377
      %v1385 = vadd.f32 %v1384, 1e-05
      %v1386 = vrsqrt.pop %v1385
      %v1387 = vmul.f32 %v1379, %v1386
      %v1389 = vlaneseq
      %v1390 = vshrl.u32 %v1389, 7
      %v1391 = vsub.s32 0, %v1390
      %v1392 = vrot.slane %v1372, %v1391
      %v1394 = vmul.f32 %v1387, %v1392
      %v1396 = vlaneseq
      %v1397 = vshrl.u32 %v1396, 7
      %v1398 = vsub.s32 0, %v1397
      %v1399 = vrot.slane %v1373, %v1398
      %v1401 = vadd.f32 %v1394, %v1399
      %v1402 = vpack.c.bf16 %v1401, %v1401
      %v1403 = vld [vmem:[%s12] sm:$0xf]
      %v1404 = vld [vmem:[%s12 + $0x4] sm:$0xf]
      %v1405 = vld [vmem:[%s12 + $0x8] sm:$0xf]
      %v1406 = vld [vmem:[%s12 + $0xc] sm:$0xf]
      %v1407 = vld [vmem:[%s13] sm:$0x1]
      %v1409 = vlaneseq
      %v1410 = vshrl.u32 %v1409, 7
      %v1411 = vsub.s32 0, %v1410
      %v1412 = vrot.slane %v1407, %v1411
      %v1418 = vunpack.c.l.b16 %v1403
      %v1419 = vunpack.c.l.b16 %v1404
      %v1420 = vunpack.c.l.b16 %v1405
      %v1421 = vunpack.c.l.b16 %v1406
      %v1422 = vpack.c.b16 %v1419, %v1418
      %v1423 = vpack.c.b16 %v1421, %v1420
      %v1427 = vsel %vm612, %v1402, 0
      %1429 = vmatprep.subr.bf16.mxu0 0
      %1430 = vmatpush1.bf16.msra.mxu0 0
      %1431 = vmatprep.subr.bf16.mxu0 0
      %1432 = vmatpush1.bf16.msra.mxu0 0
      %1433 = vmatprep.subr.bf16.mxu0 0
      %1434 = vmatpush1.bf16.msra.mxu0 0
      %1435 = vmatprep.subr.bf16.mxu0 0
      %1436 = vmatpush1.bf16.msra.mxu0 0
      %1437 = vmatprep.subr.bf16.mxu0 0
      %1438 = vmatpush1.bf16.msra.mxu0 0
      %1439 = vmatprep.subr.bf16.mxu0 0
      %1440 = vmatpush1.bf16.msra.mxu0 0
      %1441 = vmatprep.subr.bf16.mxu0 0
      %1442 = vmatpush1.bf16.msra.mxu0 %v1423
      %1443 = vmatprep.subr.bf16.mxu0 0
      %1444 = vmatpush1.bf16.msra.mxu0 %v1422
      %1445 = vmatprep.subr.bf16.mxu0 0
      %1446 = vmatpush2.bf16.msra.mxu0 0
      %1447 = vmatprep.subr.bf16.mxu0 0
      %1448 = vmatpush2.bf16.msra.mxu0 0
      %1449 = vmatprep.subr.bf16.mxu0 0
      %1450 = vmatpush2.bf16.msra.mxu0 0
      %1451 = vmatprep.subr.bf16.mxu0 0
      %1452 = vmatpush2.bf16.msra.mxu0 0
      %1453 = vmatprep.subr.bf16.mxu0 0
      %1454 = vmatpush2.bf16.msra.mxu0 0
      %1455 = vmatprep.subr.bf16.mxu0 0
      %1456 = vmatpush2.bf16.msra.mxu0 0
      %1457 = vmatprep.subr.bf16.mxu0 0
      %1458 = vmatpush2.bf16.msra.mxu0 0
      %1459 = vmatprep.subr.bf16.mxu0 0
      %1460 = vmatpush2.bf16.msra.mxu0 0
      %1461 = vmatprep.mubr.bf16.mxu0 0
      %1462 = vmatmul.mubr.bf16.gmra.mxu0 %v1427
      %v1463 = vpop.f32.mrf.mxu0
      %v1464 = vadd.f32 %v1412, %v1463
      %v1465 = vpop.f32.mrf.mxu0
      %v1466 = vpop.f32.mrf.mxu0
      %v1467 = vpop.f32.mrf.mxu0
      %1468 = vdwg.mxu0
      %v1469 = vmax.f32 %v1464, 0.0
      %v1470 = vpack.c.bf16 %v1469, %v1469
      %v1471 = vld [vmem:[%s14] sm:$0xf]
      %v1472 = vld [vmem:[%s14 + $0x4] sm:$0xf]
      %v1473 = vld [vmem:[%s14 + $0x8] sm:$0xf]
      %v1474 = vld [vmem:[%s14 + $0xc] sm:$0xf]
      %v1475 = vld [vmem:[%s14 + $0x10] sm:$0xf]
      %v1476 = vld [vmem:[%s14 + $0x14] sm:$0xf]
      %v1477 = vld [vmem:[%s14 + $0x18] sm:$0xf]
      %v1478 = vld [vmem:[%s14 + $0x1c] sm:$0xf]
      %v1479 = vld [vmem:[%s15] sm:$0x1]
      %v1481 = vlaneseq
      %v1482 = vshrl.u32 %v1481, 7
      %v1483 = vsub.s32 0, %v1482
      %v1484 = vrot.slane %v1479, %v1483
      %v1494 = vunpack.c.l.b16 %v1471
      %v1495 = vunpack.c.l.b16 %v1472
      %v1496 = vunpack.c.l.b16 %v1473
      %v1497 = vunpack.c.l.b16 %v1474
      %v1498 = vunpack.c.l.b16 %v1475
      %v1499 = vunpack.c.l.b16 %v1476
      %v1500 = vunpack.c.l.b16 %v1477
      %v1501 = vunpack.c.l.b16 %v1478
      %v1502 = vpack.c.b16 %v1495, %v1494
      %v1503 = vpack.c.b16 %v1497, %v1496
      %v1504 = vpack.c.b16 %v1499, %v1498
      %v1505 = vpack.c.b16 %v1501, %v1500
      %vm1510 = vcmask 523264
      %v1512 = vsel %vm1510, %v1470, 0
      %1514 = vmatprep.subr.bf16.mxu0 0
      %1515 = vmatpush1.bf16.msra.mxu0 0
      %1516 = vmatprep.subr.bf16.mxu0 0
      %1517 = vmatpush1.bf16.msra.mxu0 0
      %1518 = vmatprep.subr.bf16.mxu0 0
      %1519 = vmatpush1.bf16.msra.mxu0 0
      %1520 = vmatprep.subr.bf16.mxu0 0
      %1521 = vmatpush1.bf16.msra.mxu0 0
      %1522 = vmatprep.subr.bf16.mxu0 0
      %1523 = vmatpush1.bf16.msra.mxu0 %v1505
      %1524 = vmatprep.subr.bf16.mxu0 0
      %1525 = vmatpush1.bf16.msra.mxu0 %v1504
      %1526 = vmatprep.subr.bf16.mxu0 0
      %1527 = vmatpush1.bf16.msra.mxu0 %v1503
      %1528 = vmatprep.subr.bf16.mxu0 0
      %1529 = vmatpush1.bf16.msra.mxu0 %v1502
      %1530 = vmatprep.subr.bf16.mxu0 0
      %1531 = vmatpush2.bf16.msra.mxu0 0
      %1532 = vmatprep.subr.bf16.mxu0 0
      %1533 = vmatpush2.bf16.msra.mxu0 0
      %1534 = vmatprep.subr.bf16.mxu0 0
      %1535 = vmatpush2.bf16.msra.mxu0 0
      %1536 = vmatprep.subr.bf16.mxu0 0
      %1537 = vmatpush2.bf16.msra.mxu0 0
      %1538 = vmatprep.subr.bf16.mxu0 0
      %1539 = vmatpush2.bf16.msra.mxu0 0
      %1540 = vmatprep.subr.bf16.mxu0 0
      %1541 = vmatpush2.bf16.msra.mxu0 0
      %1542 = vmatprep.subr.bf16.mxu0 0
      %1543 = vmatpush2.bf16.msra.mxu0 0
      %1544 = vmatprep.subr.bf16.mxu0 0
      %1545 = vmatpush2.bf16.msra.mxu0 0
      %1546 = vmatprep.mubr.bf16.mxu0 0
      %1547 = vmatmul.mubr.bf16.gmra.mxu0 %v1512
      %v1548 = vpop.f32.mrf.mxu0
      %v1549 = vadd.f32 %v1484, %v1548
      %v1550 = vpop.f32.mrf.mxu0
      %v1551 = vpop.f32.mrf.mxu0
      %v1552 = vpop.f32.mrf.mxu0
      %1553 = vdwg.mxu0
      %v1554 = vadd.f32 %v1401, %v1549
      %v1555 = vld [vmem:[%s16] sm:$0x1]
      %v1556 = vld [vmem:[%s17] sm:$0x1]
      %v1557 = vsel %vm612, %v1554, 0.0
      %1558 = vadd.xlane.f32.xlu0 %v1557
      %v1559 = vpop.xlane.xlu0 %1558
      %v1560 = vmul.f32 %v1559, %v1377
      %v1561 = vsub.f32 %v1554, %v1560
      %v1562 = vmul.f32 %v1561, %v1561
      %v1563 = vsel %vm612, %v1562, 0.0
      %1564 = vadd.xlane.f32.xlu0 %v1563
      %v1565 = vpop.xlane.xlu0 %1564
      %v1566 = vmul.f32 %v1565, %v1377
      %v1567 = vadd.f32 %v1566, 1e-05
      %v1568 = vrsqrt.pop %v1567
      %v1569 = vmul.f32 %v1561, %v1568
      %v1571 = vlaneseq
      %v1572 = vshrl.u32 %v1571, 7
      %v1573 = vsub.s32 0, %v1572
      %v1574 = vrot.slane %v1555, %v1573
      %v1576 = vmul.f32 %v1569, %v1574
      %v1578 = vlaneseq
      %v1579 = vshrl.u32 %v1578, 7
      %v1580 = vsub.s32 0, %v1579
      %v1581 = vrot.slane %v1556, %v1580
      %v1583 = vadd.f32 %v1576, %v1581
      %1584 = vst.msk [vmem:[%s584] sm:$0xff] %vm612, %v1583
      %p1585 = scmp.lt.s32.totalorder %s29, 1
      %s1586 = scalar_select %p1585, %s29, 1
      %s1587 = smul.addr %s1586, 8
      %s1588 = scalar_lea.vmem %s18, %s1587
      // Predicated region
      $region93: #{fwd.5} parent=91 // pred_check
        %p1589 = pneg %p435
      $region94: #{fwd.5} parent=91 // pred_check_branch
        %1591 = sbr.rel (%p1589) target = $region96
      $region95: #{fwd.5} parent=91 // pred_region
        _
      $region96: #{fwd.5} parent=91 // pred_fallthru
        _
    $region92: #{fwd.5} parent=5 // pred_fallthru
      _
    %p1592 = scmp.le.s32.totalorder 2, %s24
    // Predicated region
    $region97: #{fwd.5} parent=5 // pred_check
      %p1593 = pneg %p1592
    $region98: #{fwd.5} parent=5 // pred_check_branch
      %1595 = sbr.rel (%p1593) target = $region100
    $region99: #{fwd.5} parent=5 // pred_region
      %s1596 = ssub.s32 %s24, 2
      // Predicated region
      $region101: #{fwd.5} parent=99 // pred_check
        %p1597 = pneg %p441
      $region102: #{fwd.5} parent=99 // pred_check_branch
        %1599 = sbr.rel (%p1597) target = $region104
      $region103: #{fwd.5} parent=99 // pred_region
        %p1600 = scmp.lt.s32.totalorder %s30, 1
        %s1601 = scalar_select %p1600, %s30, 1
        %s1602 = smul.addr %s1601, 8
        %s1603 = scalar_lea.vmem %s18, %s1602
      $region104: #{fwd.5} parent=99 // pred_fallthru
        _
    $region100: #{fwd.5} parent=5 // pred_fallthru
      _
  $region6: #{fwd.5} parent=0 // loop_footer
    %s28 = sadd.s32 1, %s24
  $region7: #{fwd.5} parent=0 // loop_footer_branch
    %23 = sbr.rel target = $region3
  $region8: #{fwd.5} parent=0 // loop_exit
    _

// kernel: fwd.7
$region0: #{fwd.7}
  #allocation0 [shape = 'u32[]', space=smem, size = 0x4, offset = 0x4, fixed_abs, tag = 'smem constant byte address 0x4 - core index']
  #allocation1 [shape = 'u32[144,128]{1,0:T(1,128)}', space=vmem, size = 0x12000, scoped, tag = 'internal scratch']
  %s0 = inlined_call_operand.vmem [shape: f32[2,16,32], index: 0, kind: input, shape index: {}]
  %s1 = inlined_call_operand.vmem [shape: f32[2,1,16], index: 1, kind: input, shape index: {}]
  %s2 = inlined_call_operand.vmem [shape: bf16[2,32,16], index: 2, kind: input, shape index: {}]
  %s3 = inlined_call_operand.vmem [shape: f32[2,1,16], index: 3, kind: input, shape index: {}]
  %s4 = inlined_call_operand.vmem [shape: bf16[2,32,16], index: 4, kind: input, shape index: {}]
  %s5 = inlined_call_operand.vmem [shape: f32[2,1,16], index: 5, kind: input, shape index: {}]
  %s6 = inlined_call_operand.vmem [shape: bf16[2,32,16], index: 6, kind: input, shape index: {}]
  %s7 = inlined_call_operand.vmem [shape: f32[2,1,16], index: 7, kind: input, shape index: {}]
  %s8 = inlined_call_operand.vmem [shape: bf16[2,16,32], index: 8, kind: input, shape index: {}]
  %s9 = inlined_call_operand.vmem [shape: f32[1,32], index: 9, kind: input, shape index: {}]
  %s10 = inlined_call_operand.vmem [shape: f32[1,32], index: 10, kind: input, shape index: {}]
  %s11 = inlined_call_operand.vmem [shape: f32[1,32], index: 11, kind: input, shape index: {}]
  %s12 = inlined_call_operand.vmem [shape: bf16[32,64], index: 12, kind: input, shape index: {}]
  %s13 = inlined_call_operand.vmem [shape: f32[1,64], index: 13, kind: input, shape index: {}]
  %s14 = inlined_call_operand.vmem [shape: bf16[64,32], index: 14, kind: input, shape index: {}]
  %s15 = inlined_call_operand.vmem [shape: f32[1,32], index: 15, kind: input, shape index: {}]
  %s16 = inlined_call_operand.vmem [shape: f32[1,32], index: 16, kind: input, shape index: {}]
  %s17 = inlined_call_operand.vmem [shape: f32[1,32], index: 17, kind: input, shape index: {}]
  %s18 = inlined_call_operand.vmem [shape: f32[2,16,32], index: 18, kind: output, shape index: {}]
  %s19 = sld [smem:[#allocation0]]
  $region105: #{fwd.7} parent=0
    _
  %s21 = ssub.s32 1, %s19
  %s22 = scalar_select 0, %s21, %s19
  loop: start=0, step=1, limit=4
  $region2: #{fwd.7} parent=0 // loop_pre_header
    _
  $region3: #{fwd.7} parent=0 // loop_header
    %s24 = sphi 0, %s28
    %p25 = scmp.ge.s32.totalorder %s24, 4
    %s34 = sphi 0, %s36
    %s37 = sphi 0, %s34
    %s38 = sphi 0, %s37
    %s54 = sphi 0, %s38
    %s60 = sphi 0, %s62
    %s63 = sphi 0, %s60
    %s64 = sphi 0, %s63
    %s80 = sphi 0, %s64
    %s84 = sphi 0, %s84
    %s86 = sphi 0, %s84
    %s87 = sphi 0, %s86
    %s101 = sphi 0, %s87
    %s105 = sphi 0, %s105
    %s107 = sphi 0, %s105
    %s108 = sphi 0, %s107
    %s122 = sphi 0, %s108
    %s126 = sphi 0, %s126
    %s128 = sphi 0, %s126
    %s129 = sphi 0, %s128
    %s143 = sphi 0, %s129
    %s147 = sphi 0, %s147
    %s149 = sphi 0, %s147
    %s150 = sphi 0, %s149
    %s164 = sphi 0, %s150
    %s168 = sphi 0, %s168
    %s170 = sphi 0, %s168
    %s171 = sphi 0, %s170
    %s185 = sphi 0, %s171
    %s189 = sphi 0, %s189
    %s191 = sphi 0, %s189
    %s192 = sphi 0, %s191
    %s206 = sphi 0, %s192
    %s210 = sphi 0, %s210
    %s212 = sphi 0, %s210
    %s213 = sphi 0, %s212
    %s227 = sphi 0, %s213
    %s231 = sphi 0, %s231
    %s233 = sphi 0, %s231
    %s234 = sphi 0, %s233
    %s248 = sphi 0, %s234
    %s252 = sphi 0, %s252
    %s254 = sphi 0, %s252
    %s255 = sphi 0, %s254
    %s269 = sphi 0, %s255
    %s273 = sphi 0, %s273
    %s275 = sphi 0, %s273
    %s276 = sphi 0, %s275
    %s290 = sphi 0, %s276
    %s294 = sphi 0, %s294
    %s296 = sphi 0, %s294
    %s297 = sphi 0, %s296
    %s311 = sphi 0, %s297
    %s315 = sphi 0, %s315
    %s317 = sphi 0, %s315
    %s318 = sphi 0, %s317
    %s332 = sphi 0, %s318
    %s336 = sphi 0, %s336
    %s338 = sphi 0, %s336
    %s339 = sphi 0, %s338
    %s353 = sphi 0, %s339
    %s357 = sphi 0, %s357
    %s359 = sphi 0, %s357
    %s360 = sphi 0, %s359
    %s374 = sphi 0, %s360
    %s378 = sphi 0, %s378
    %s380 = sphi 0, %s378
    %s381 = sphi 0, %s380
    %s395 = sphi 0, %s381
    %s399 = sphi 0, %s399
    %s401 = sphi 0, %s399
    %s402 = sphi 0, %s401
    %s416 = sphi 0, %s402
    %s422 = sphi 0, %s424
    %s425 = sphi 0, %s422
    %s426 = sphi 0, %s425
    %s442 = sphi 0, %s426
  $region4: #{fwd.7} parent=0 // loop_header_branch
    %27 = sbr.rel (%p25) target = $region8
  $region5: #{fwd.7} parent=0 // loop_body
    %s29 = ssub.s32 %s24, 1
    %s30 = ssub.s32 %s24, 2
    %s31 = sadd.s32 %s24, 1
    %s32 = ssub.s32 %s24, %s31
    %p33 = scmp.eq.s32.totalorder %s32, 0
    %s35 = sadd.s32 %s34, 1
    %s36 = scalar_select %p33, %s34, %s35
    %p39 = pneg %p33
    %p40 = scmp.eq.s32.totalorder %s24, 1
    %p41 = por %p39, %p40
    %p42 = scmp.ne.s32.totalorder %s34, %s37
    %p43 = scmp.eq.s32.totalorder %s24, 0
    %p44 = por %p42, %p43
    %p45 = scmp.ne.s32.totalorder %s34, %s37
    %p46 = scmp.eq.s32.totalorder %s29, 1
    %p47 = por %p45, %p46
    %p48 = scmp.ne.s32.totalorder %s37, %s38
    %p49 = scmp.eq.s32.totalorder %s29, 0
    %p50 = por %p48, %p49
    %p51 = scmp.ne.s32.totalorder %s37, %s38
    %p52 = scmp.eq.s32.totalorder %s30, 1
    %p53 = por %p51, %p52
    %p55 = scmp.ne.s32.totalorder %s38, %s54
    %p56 = scmp.eq.s32.totalorder %s30, 0
    %p57 = por %p55, %p56
    %s58 = ssub.s32 %s24, %s31
    %p59 = scmp.eq.s32.totalorder %s58, 0
    %s61 = sadd.s32 %s60, 1
    %s62 = scalar_select %p59, %s60, %s61
    %p65 = pneg %p59
    %p66 = scmp.eq.s32.totalorder %s24, 1
    %p67 = por %p65, %p66
    %p68 = scmp.ne.s32.totalorder %s60, %s63
    %p69 = scmp.eq.s32.totalorder %s24, 0
    %p70 = por %p68, %p69
    %p71 = scmp.ne.s32.totalorder %s60, %s63
    %p72 = scmp.eq.s32.totalorder %s29, 1
    %p73 = por %p71, %p72
    %p74 = scmp.ne.s32.totalorder %s63, %s64
    %p75 = scmp.eq.s32.totalorder %s29, 0
    %p76 = por %p74, %p75
    %p77 = scmp.ne.s32.totalorder %s63, %s64
    %p78 = scmp.eq.s32.totalorder %s30, 1
    %p79 = por %p77, %p78
    %p81 = scmp.ne.s32.totalorder %s64, %s80
    %p82 = scmp.eq.s32.totalorder %s30, 0
    %p83 = por %p81, %p82
    %s85 = sadd.s32 %s84, 1
    %p88 = scmp.eq.s32.totalorder %s24, 1
    %p89 = scmp.ne.s32.totalorder %s84, %s86
    %p90 = scmp.eq.s32.totalorder %s24, 0
    %p91 = por %p89, %p90
    %p92 = scmp.ne.s32.totalorder %s84, %s86
    %p93 = scmp.eq.s32.totalorder %s29, 1
    %p94 = por %p92, %p93
    %p95 = scmp.ne.s32.totalorder %s86, %s87
    %p96 = scmp.eq.s32.totalorder %s29, 0
    %p97 = por %p95, %p96
    %p98 = scmp.ne.s32.totalorder %s86, %s87
    %p99 = scmp.eq.s32.totalorder %s30, 1
    %p100 = por %p98, %p99
    %p102 = scmp.ne.s32.totalorder %s87, %s101
    %p103 = scmp.eq.s32.totalorder %s30, 0
    %p104 = por %p102, %p103
    %s106 = sadd.s32 %s105, 1
    %p109 = scmp.eq.s32.totalorder %s24, 1
    %p110 = scmp.ne.s32.totalorder %s105, %s107
    %p111 = scmp.eq.s32.totalorder %s24, 0
    %p112 = por %p110, %p111
    %p113 = scmp.ne.s32.totalorder %s105, %s107
    %p114 = scmp.eq.s32.totalorder %s29, 1
    %p115 = por %p113, %p114
    %p116 = scmp.ne.s32.totalorder %s107, %s108
    %p117 = scmp.eq.s32.totalorder %s29, 0
    %p118 = por %p116, %p117
    %p119 = scmp.ne.s32.totalorder %s107, %s108
    %p120 = scmp.eq.s32.totalorder %s30, 1
    %p121 = por %p119, %p120
    %p123 = scmp.ne.s32.totalorder %s108, %s122
    %p124 = scmp.eq.s32.totalorder %s30, 0
    %p125 = por %p123, %p124
    %s127 = sadd.s32 %s126, 1
    %p130 = scmp.eq.s32.totalorder %s24, 1
    %p131 = scmp.ne.s32.totalorder %s126, %s128
    %p132 = scmp.eq.s32.totalorder %s24, 0
    %p133 = por %p131, %p132
    %p134 = scmp.ne.s32.totalorder %s126, %s128
    %p135 = scmp.eq.s32.totalorder %s29, 1
    %p136 = por %p134, %p135
    %p137 = scmp.ne.s32.totalorder %s128, %s129
    %p138 = scmp.eq.s32.totalorder %s29, 0
    %p139 = por %p137, %p138
    %p140 = scmp.ne.s32.totalorder %s128, %s129
    %p141 = scmp.eq.s32.totalorder %s30, 1
    %p142 = por %p140, %p141
    %p144 = scmp.ne.s32.totalorder %s129, %s143
    %p145 = scmp.eq.s32.totalorder %s30, 0
    %p146 = por %p144, %p145
    %s148 = sadd.s32 %s147, 1
    %p151 = scmp.eq.s32.totalorder %s24, 1
    %p152 = scmp.ne.s32.totalorder %s147, %s149
    %p153 = scmp.eq.s32.totalorder %s24, 0
    %p154 = por %p152, %p153
    %p155 = scmp.ne.s32.totalorder %s147, %s149
    %p156 = scmp.eq.s32.totalorder %s29, 1
    %p157 = por %p155, %p156
    %p158 = scmp.ne.s32.totalorder %s149, %s150
    %p159 = scmp.eq.s32.totalorder %s29, 0
    %p160 = por %p158, %p159
    %p161 = scmp.ne.s32.totalorder %s149, %s150
    %p162 = scmp.eq.s32.totalorder %s30, 1
    %p163 = por %p161, %p162
    %p165 = scmp.ne.s32.totalorder %s150, %s164
    %p166 = scmp.eq.s32.totalorder %s30, 0
    %p167 = por %p165, %p166
    %s169 = sadd.s32 %s168, 1
    %p172 = scmp.eq.s32.totalorder %s24, 1
    %p173 = scmp.ne.s32.totalorder %s168, %s170
    %p174 = scmp.eq.s32.totalorder %s24, 0
    %p175 = por %p173, %p174
    %p176 = scmp.ne.s32.totalorder %s168, %s170
    %p177 = scmp.eq.s32.totalorder %s29, 1
    %p178 = por %p176, %p177
    %p179 = scmp.ne.s32.totalorder %s170, %s171
    %p180 = scmp.eq.s32.totalorder %s29, 0
    %p181 = por %p179, %p180
    %p182 = scmp.ne.s32.totalorder %s170, %s171
    %p183 = scmp.eq.s32.totalorder %s30, 1
    %p184 = por %p182, %p183
    %p186 = scmp.ne.s32.totalorder %s171, %s185
    %p187 = scmp.eq.s32.totalorder %s30, 0
    %p188 = por %p186, %p187
    %s190 = sadd.s32 %s189, 1
    %p193 = scmp.eq.s32.totalorder %s24, 1
    %p194 = scmp.ne.s32.totalorder %s189, %s191
    %p195 = scmp.eq.s32.totalorder %s24, 0
    %p196 = por %p194, %p195
    %p197 = scmp.ne.s32.totalorder %s189, %s191
    %p198 = scmp.eq.s32.totalorder %s29, 1
    %p199 = por %p197, %p198
    %p200 = scmp.ne.s32.totalorder %s191, %s192
    %p201 = scmp.eq.s32.totalorder %s29, 0
    %p202 = por %p200, %p201
    %p203 = scmp.ne.s32.totalorder %s191, %s192
    %p204 = scmp.eq.s32.totalorder %s30, 1
    %p205 = por %p203, %p204
    %p207 = scmp.ne.s32.totalorder %s192, %s206
    %p208 = scmp.eq.s32.totalorder %s30, 0
    %p209 = por %p207, %p208
    %s211 = sadd.s32 %s210, 1
    %p214 = scmp.eq.s32.totalorder %s24, 1
    %p215 = scmp.ne.s32.totalorder %s210, %s212
    %p216 = scmp.eq.s32.totalorder %s24, 0
    %p217 = por %p215, %p216
    %p218 = scmp.ne.s32.totalorder %s210, %s212
    %p219 = scmp.eq.s32.totalorder %s29, 1
    %p220 = por %p218, %p219
    %p221 = scmp.ne.s32.totalorder %s212, %s213
    %p222 = scmp.eq.s32.totalorder %s29, 0
    %p223 = por %p221, %p222
    %p224 = scmp.ne.s32.totalorder %s212, %s213
    %p225 = scmp.eq.s32.totalorder %s30, 1
    %p226 = por %p224, %p225
    %p228 = scmp.ne.s32.totalorder %s213, %s227
    %p229 = scmp.eq.s32.totalorder %s30, 0
    %p230 = por %p228, %p229
    %s232 = sadd.s32 %s231, 1
    %p235 = scmp.eq.s32.totalorder %s24, 1
    %p236 = scmp.ne.s32.totalorder %s231, %s233
    %p237 = scmp.eq.s32.totalorder %s24, 0
    %p238 = por %p236, %p237
    %p239 = scmp.ne.s32.totalorder %s231, %s233
    %p240 = scmp.eq.s32.totalorder %s29, 1
    %p241 = por %p239, %p240
    %p242 = scmp.ne.s32.totalorder %s233, %s234
    %p243 = scmp.eq.s32.totalorder %s29, 0
    %p244 = por %p242, %p243
    %p245 = scmp.ne.s32.totalorder %s233, %s234
    %p246 = scmp.eq.s32.totalorder %s30, 1
    %p247 = por %p245, %p246
    %p249 = scmp.ne.s32.totalorder %s234, %s248
    %p250 = scmp.eq.s32.totalorder %s30, 0
    %p251 = por %p249, %p250
    %s253 = sadd.s32 %s252, 1
    %p256 = scmp.eq.s32.totalorder %s24, 1
    %p257 = scmp.ne.s32.totalorder %s252, %s254
    %p258 = scmp.eq.s32.totalorder %s24, 0
    %p259 = por %p257, %p258
    %p260 = scmp.ne.s32.totalorder %s252, %s254
    %p261 = scmp.eq.s32.totalorder %s29, 1
    %p262 = por %p260, %p261
    %p263 = scmp.ne.s32.totalorder %s254, %s255
    %p264 = scmp.eq.s32.totalorder %s29, 0
    %p265 = por %p263, %p264
    %p266 = scmp.ne.s32.totalorder %s254, %s255
    %p267 = scmp.eq.s32.totalorder %s30, 1
    %p268 = por %p266, %p267
    %p270 = scmp.ne.s32.totalorder %s255, %s269
    %p271 = scmp.eq.s32.totalorder %s30, 0
    %p272 = por %p270, %p271
    %s274 = sadd.s32 %s273, 1
    %p277 = scmp.eq.s32.totalorder %s24, 1
    %p278 = scmp.ne.s32.totalorder %s273, %s275
    %p279 = scmp.eq.s32.totalorder %s24, 0
    %p280 = por %p278, %p279
    %p281 = scmp.ne.s32.totalorder %s273, %s275
    %p282 = scmp.eq.s32.totalorder %s29, 1
    %p283 = por %p281, %p282
    %p284 = scmp.ne.s32.totalorder %s275, %s276
    %p285 = scmp.eq.s32.totalorder %s29, 0
    %p286 = por %p284, %p285
    %p287 = scmp.ne.s32.totalorder %s275, %s276
    %p288 = scmp.eq.s32.totalorder %s30, 1
    %p289 = por %p287, %p288
    %p291 = scmp.ne.s32.totalorder %s276, %s290
    %p292 = scmp.eq.s32.totalorder %s30, 0
    %p293 = por %p291, %p292
    %s295 = sadd.s32 %s294, 1
    %p298 = scmp.eq.s32.totalorder %s24, 1
    %p299 = scmp.ne.s32.totalorder %s294, %s296
    %p300 = scmp.eq.s32.totalorder %s24, 0
    %p301 = por %p299, %p300
    %p302 = scmp.ne.s32.totalorder %s294, %s296
    %p303 = scmp.eq.s32.totalorder %s29, 1
    %p304 = por %p302, %p303
    %p305 = scmp.ne.s32.totalorder %s296, %s297
    %p306 = scmp.eq.s32.totalorder %s29, 0
    %p307 = por %p305, %p306
    %p308 = scmp.ne.s32.totalorder %s296, %s297
    %p309 = scmp.eq.s32.totalorder %s30, 1
    %p310 = por %p308, %p309
    %p312 = scmp.ne.s32.totalorder %s297, %s311
    %p313 = scmp.eq.s32.totalorder %s30, 0
    %p314 = por %p312, %p313
    %s316 = sadd.s32 %s315, 1
    %p319 = scmp.eq.s32.totalorder %s24, 1
    %p320 = scmp.ne.s32.totalorder %s315, %s317
    %p321 = scmp.eq.s32.totalorder %s24, 0
    %p322 = por %p320, %p321
    %p323 = scmp.ne.s32.totalorder %s315, %s317
    %p324 = scmp.eq.s32.totalorder %s29, 1
    %p325 = por %p323, %p324
    %p326 = scmp.ne.s32.totalorder %s317, %s318
    %p327 = scmp.eq.s32.totalorder %s29, 0
    %p328 = por %p326, %p327
    %p329 = scmp.ne.s32.totalorder %s317, %s318
    %p330 = scmp.eq.s32.totalorder %s30, 1
    %p331 = por %p329, %p330
    %p333 = scmp.ne.s32.totalorder %s318, %s332
    %p334 = scmp.eq.s32.totalorder %s30, 0
    %p335 = por %p333, %p334
    %s337 = sadd.s32 %s336, 1
    %p340 = scmp.eq.s32.totalorder %s24, 1
    %p341 = scmp.ne.s32.totalorder %s336, %s338
    %p342 = scmp.eq.s32.totalorder %s24, 0
    %p343 = por %p341, %p342
    %p344 = scmp.ne.s32.totalorder %s336, %s338
    %p345 = scmp.eq.s32.totalorder %s29, 1
    %p346 = por %p344, %p345
    %p347 = scmp.ne.s32.totalorder %s338, %s339
    %p348 = scmp.eq.s32.totalorder %s29, 0
    %p349 = por %p347, %p348
    %p350 = scmp.ne.s32.totalorder %s338, %s339
    %p351 = scmp.eq.s32.totalorder %s30, 1
    %p352 = por %p350, %p351
    %p354 = scmp.ne.s32.totalorder %s339, %s353
    %p355 = scmp.eq.s32.totalorder %s30, 0
    %p356 = por %p354, %p355
    %s358 = sadd.s32 %s357, 1
    %p361 = scmp.eq.s32.totalorder %s24, 1
    %p362 = scmp.ne.s32.totalorder %s357, %s359
    %p363 = scmp.eq.s32.totalorder %s24, 0
    %p364 = por %p362, %p363
    %p365 = scmp.ne.s32.totalorder %s357, %s359
    %p366 = scmp.eq.s32.totalorder %s29, 1
    %p367 = por %p365, %p366
    %p368 = scmp.ne.s32.totalorder %s359, %s360
    %p369 = scmp.eq.s32.totalorder %s29, 0
    %p370 = por %p368, %p369
    %p371 = scmp.ne.s32.totalorder %s359, %s360
    %p372 = scmp.eq.s32.totalorder %s30, 1
    %p373 = por %p371, %p372
    %p375 = scmp.ne.s32.totalorder %s360, %s374
    %p376 = scmp.eq.s32.totalorder %s30, 0
    %p377 = por %p375, %p376
    %s379 = sadd.s32 %s378, 1
    %p382 = scmp.eq.s32.totalorder %s24, 1
    %p383 = scmp.ne.s32.totalorder %s378, %s380
    %p384 = scmp.eq.s32.totalorder %s24, 0
    %p385 = por %p383, %p384
    %p386 = scmp.ne.s32.totalorder %s378, %s380
    %p387 = scmp.eq.s32.totalorder %s29, 1
    %p388 = por %p386, %p387
    %p389 = scmp.ne.s32.totalorder %s380, %s381
    %p390 = scmp.eq.s32.totalorder %s29, 0
    %p391 = por %p389, %p390
    %p392 = scmp.ne.s32.totalorder %s380, %s381
    %p393 = scmp.eq.s32.totalorder %s30, 1
    %p394 = por %p392, %p393
    %p396 = scmp.ne.s32.totalorder %s381, %s395
    %p397 = scmp.eq.s32.totalorder %s30, 0
    %p398 = por %p396, %p397
    %s400 = sadd.s32 %s399, 1
    %p403 = scmp.eq.s32.totalorder %s24, 1
    %p404 = scmp.ne.s32.totalorder %s399, %s401
    %p405 = scmp.eq.s32.totalorder %s24, 0
    %p406 = por %p404, %p405
    %p407 = scmp.ne.s32.totalorder %s399, %s401
    %p408 = scmp.eq.s32.totalorder %s29, 1
    %p409 = por %p407, %p408
    %p410 = scmp.ne.s32.totalorder %s401, %s402
    %p411 = scmp.eq.s32.totalorder %s29, 0
    %p412 = por %p410, %p411
    %p413 = scmp.ne.s32.totalorder %s401, %s402
    %p414 = scmp.eq.s32.totalorder %s30, 1
    %p415 = por %p413, %p414
    %p417 = scmp.ne.s32.totalorder %s402, %s416
    %p418 = scmp.eq.s32.totalorder %s30, 0
    %p419 = por %p417, %p418
    %s420 = ssub.s32 %s24, %s31
    %p421 = scmp.eq.s32.totalorder %s420, 0
    %s423 = sadd.s32 %s422, 1
    %s424 = scalar_select %p421, %s422, %s423
    %p427 = pneg %p421
    %p428 = scmp.eq.s32.totalorder %s24, 1
    %p429 = por %p427, %p428
    %p430 = scmp.ne.s32.totalorder %s422, %s425
    %p431 = scmp.eq.s32.totalorder %s24, 0
    %p432 = por %p430, %p431
    %p433 = scmp.ne.s32.totalorder %s422, %s425
    %p434 = scmp.eq.s32.totalorder %s29, 1
    %p435 = por %p433, %p434
    %p436 = scmp.ne.s32.totalorder %s425, %s426
    %p437 = scmp.eq.s32.totalorder %s29, 0
    %p438 = por %p436, %p437
    %p439 = scmp.ne.s32.totalorder %s425, %s426
    %p440 = scmp.eq.s32.totalorder %s30, 1
    %p441 = por %p439, %p440
    %p443 = scmp.ne.s32.totalorder %s426, %s442
    %p444 = scmp.eq.s32.totalorder %s30, 0
    %p445 = por %p443, %p444
    %p446 = scmp.le.s32.totalorder 1, %s24
    %p447 = scmp.lt.s32.totalorder %s24, 3
    %p448 = pnand %p446, %p447
    %p449 = pneg %p448
    // Predicated region
    $region9: #{fwd.7} parent=5 // pred_check
      _
    $region10: #{fwd.7} parent=5 // pred_check_branch
      %451 = sbr.rel (%p448) target = $region12
    $region11: #{fwd.7} parent=5 // pred_region
      %s452 = ssub.s32 %s24, 1
      // Predicated region
      $region13: #{fwd.7} parent=11 // pred_check
        %p453 = pneg %p97
      $region14: #{fwd.7} parent=11 // pred_check_branch
        %455 = sbr.rel (%p453) target = $region16
      $region15: #{fwd.7} parent=11 // pred_region
        _
      $region16: #{fwd.7} parent=11 // pred_fallthru
        _
      // Predicated region
      $region17: #{fwd.7} parent=11 // pred_check
        %p456 = pneg %p118
      $region18: #{fwd.7} parent=11 // pred_check_branch
        %458 = sbr.rel (%p456) target = $region20
      $region19: #{fwd.7} parent=11 // pred_region
        _
      $region20: #{fwd.7} parent=11 // pred_fallthru
        _
      // Predicated region
      $region21: #{fwd.7} parent=11 // pred_check
        %p459 = pneg %p139
      $region22: #{fwd.7} parent=11 // pred_check_branch
        %461 = sbr.rel (%p459) target = $region24
      $region23: #{fwd.7} parent=11 // pred_region
        _
      $region24: #{fwd.7} parent=11 // pred_fallthru
        _
      // Predicated region
      $region25: #{fwd.7} parent=11 // pred_check
        %p462 = pneg %p160
      $region26: #{fwd.7} parent=11 // pred_check_branch
        %464 = sbr.rel (%p462) target = $region28
      $region27: #{fwd.7} parent=11 // pred_region
        _
      $region28: #{fwd.7} parent=11 // pred_fallthru
        _
      // Predicated region
      $region29: #{fwd.7} parent=11 // pred_check
        %p465 = pneg %p181
      $region30: #{fwd.7} parent=11 // pred_check_branch
        %467 = sbr.rel (%p465) target = $region32
      $region31: #{fwd.7} parent=11 // pred_region
        _
      $region32: #{fwd.7} parent=11 // pred_fallthru
        _
      // Predicated region
      $region33: #{fwd.7} parent=11 // pred_check
        %p468 = pneg %p202
      $region34: #{fwd.7} parent=11 // pred_check_branch
        %470 = sbr.rel (%p468) target = $region36
      $region35: #{fwd.7} parent=11 // pred_region
        _
      $region36: #{fwd.7} parent=11 // pred_fallthru
        _
      // Predicated region
      $region37: #{fwd.7} parent=11 // pred_check
        %p471 = pneg %p223
      $region38: #{fwd.7} parent=11 // pred_check_branch
        %473 = sbr.rel (%p471) target = $region40
      $region39: #{fwd.7} parent=11 // pred_region
        _
      $region40: #{fwd.7} parent=11 // pred_fallthru
        _
      // Predicated region
      $region41: #{fwd.7} parent=11 // pred_check
        %p474 = pneg %p244
      $region42: #{fwd.7} parent=11 // pred_check_branch
        %476 = sbr.rel (%p474) target = $region44
      $region43: #{fwd.7} parent=11 // pred_region
        _
      $region44: #{fwd.7} parent=11 // pred_fallthru
        _
      // Predicated region
      $region45: #{fwd.7} parent=11 // pred_check
        %p477 = pneg %p265
      $region46: #{fwd.7} parent=11 // pred_check_branch
        %479 = sbr.rel (%p477) target = $region48
      $region47: #{fwd.7} parent=11 // pred_region
        _
      $region48: #{fwd.7} parent=11 // pred_fallthru
        _
      // Predicated region
      $region49: #{fwd.7} parent=11 // pred_check
        %p480 = pneg %p286
      $region50: #{fwd.7} parent=11 // pred_check_branch
        %482 = sbr.rel (%p480) target = $region52
      $region51: #{fwd.7} parent=11 // pred_region
        _
      $region52: #{fwd.7} parent=11 // pred_fallthru
        _
      // Predicated region
      $region53: #{fwd.7} parent=11 // pred_check
        %p483 = pneg %p307
      $region54: #{fwd.7} parent=11 // pred_check_branch
        %485 = sbr.rel (%p483) target = $region56
      $region55: #{fwd.7} parent=11 // pred_region
        _
      $region56: #{fwd.7} parent=11 // pred_fallthru
        _
      // Predicated region
      $region57: #{fwd.7} parent=11 // pred_check
        %p486 = pneg %p328
      $region58: #{fwd.7} parent=11 // pred_check_branch
        %488 = sbr.rel (%p486) target = $region60
      $region59: #{fwd.7} parent=11 // pred_region
        _
      $region60: #{fwd.7} parent=11 // pred_fallthru
        _
      // Predicated region
      $region61: #{fwd.7} parent=11 // pred_check
        %p489 = pneg %p349
      $region62: #{fwd.7} parent=11 // pred_check_branch
        %491 = sbr.rel (%p489) target = $region64
      $region63: #{fwd.7} parent=11 // pred_region
        _
      $region64: #{fwd.7} parent=11 // pred_fallthru
        _
      // Predicated region
      $region65: #{fwd.7} parent=11 // pred_check
        %p492 = pneg %p370
      $region66: #{fwd.7} parent=11 // pred_check_branch
        %494 = sbr.rel (%p492) target = $region68
      $region67: #{fwd.7} parent=11 // pred_region
        _
      $region68: #{fwd.7} parent=11 // pred_fallthru
        _
      // Predicated region
      $region69: #{fwd.7} parent=11 // pred_check
        %p495 = pneg %p391
      $region70: #{fwd.7} parent=11 // pred_check_branch
        %497 = sbr.rel (%p495) target = $region72
      $region71: #{fwd.7} parent=11 // pred_region
        _
      $region72: #{fwd.7} parent=11 // pred_fallthru
        _
      // Predicated region
      $region73: #{fwd.7} parent=11 // pred_check
        %p498 = pneg %p412
      $region74: #{fwd.7} parent=11 // pred_check_branch
        %500 = sbr.rel (%p498) target = $region76
      $region75: #{fwd.7} parent=11 // pred_region
        _
      $region76: #{fwd.7} parent=11 // pred_fallthru
        _
    $region12: #{fwd.7} parent=5 // pred_fallthru
      _
    %p501 = scmp.lt.s32.totalorder %s24, 2
    // Predicated region
    $region77: #{fwd.7} parent=5 // pred_check
      %p502 = pneg %p501
    $region78: #{fwd.7} parent=5 // pred_check_branch
      %504 = sbr.rel (%p502) target = $region80
    $region79: #{fwd.7} parent=5 // pred_region
      // Predicated region
      $region81: #{fwd.7} parent=79 // pred_check
        %p505 = pneg %p44
      $region82: #{fwd.7} parent=79 // pred_check_branch
        %507 = sbr.rel (%p505) target = $region84
      $region83: #{fwd.7} parent=79 // pred_region
        %p508 = scmp.lt.s32.totalorder %s24, 1
        %s509 = scalar_select %p508, %s24, 1
        %s510 = smul.addr %s509, 2
        %s511 = smul.addr %s510, 8
        %s512 = scalar_lea.vmem %s0, %s511
      $region84: #{fwd.7} parent=79 // pred_fallthru
        _
      // Predicated region
      $region85: #{fwd.7} parent=79 // pred_check
        %p513 = pneg %p70
      $region86: #{fwd.7} parent=79 // pred_check_branch
        %515 = sbr.rel (%p513) target = $region88
      $region87: #{fwd.7} parent=79 // pred_region
        %p516 = scmp.lt.s32.totalorder %s24, 1
        %s517 = scalar_select %p516, %s24, 1
        %s518 = scalar_lea.vmem %s1, %s517
      $region88: #{fwd.7} parent=79 // pred_fallthru
        _
    $region80: #{fwd.7} parent=5 // pred_fallthru
      _
    %p519 = scmp.le.s32.totalorder 1, %s24
    %p520 = scmp.lt.s32.totalorder %s24, 3
    %p521 = pnand %p519, %p520
    %p522 = pneg %p521
    // Predicated region
    $region89: #{fwd.7} parent=5 // pred_check
      _
    $region90: #{fwd.7} parent=5 // pred_check_branch
      %524 = sbr.rel (%p521) target = $region92
    $region91: #{fwd.7} parent=5 // pred_region
      %s525 = ssub.s32 %s24, 1
      %p526 = scmp.lt.s32.totalorder %s29, 1
      %s527 = scalar_select %p526, %s29, 1
      %s528 = smul.addr %s527, 2
      %s529 = smul.addr %s528, 8
      %s530 = scalar_lea.vmem %s0, %s529
      %p531 = pneg %p50
      %p532 = pneg %p47
      %p533 = scmp.lt.s32.totalorder %s29, 1
      %s534 = scalar_select %p533, %s29, 1
      %s535 = scalar_lea.vmem %s1, %s534
      %p536 = pneg %p76
      %p537 = pneg %p73
      %p538 = pneg %p97
      %p539 = pneg %p94
      %p540 = pneg %p118
      %p541 = pneg %p115
      %p542 = pneg %p139
      %p543 = pneg %p136
      %p544 = pneg %p160
      %p545 = pneg %p157
      %p546 = pneg %p181
      %p547 = pneg %p178
      %p548 = pneg %p202
      %p549 = pneg %p199
      %p550 = pneg %p223
      %p551 = pneg %p220
      %p552 = pneg %p244
      %p553 = pneg %p241
      %p554 = pneg %p265
      %p555 = pneg %p262
      %p556 = pneg %p286
      %p557 = pneg %p283
      %p558 = pneg %p307
      %p559 = pneg %p304
      %p560 = pneg %p328
      %p561 = pneg %p325
      %p562 = pneg %p349
      %p563 = pneg %p346
      %p564 = pneg %p370
      %p565 = pneg %p367
      %p566 = pneg %p391
      %p567 = pneg %p388
      %p568 = pneg %p412
      %p569 = pneg %p409
      %p570 = pneg %p438
      %p571 = pneg %p435
      %p572 = scmp.lt.s32.totalorder %s29, 1
      %s573 = scalar_select %p572, %s29, 1
      %s574 = smul.addr %s573, 2
      %s575 = smul.addr %s574, 8
      %s576 = scalar_lea.vmem %s18, %s575
      %p577 = scmp.lt.s32.totalorder %s29, 1
      %s578 = scalar_select %p577, %s29, 1
      %s579 = smul.addr %s578, 2
      %s580 = smul.addr %s579, 8
      %s581 = scalar_lea.vmem %s0, %s580
      %p582 = scmp.lt.s32.totalorder %s29, 1
      %s583 = scalar_select %p582, %s29, 1
      %s584 = scalar_lea.vmem %s1, %s583
      %p585 = scmp.lt.s32.totalorder %s29, 1
      %s586 = scalar_select %p585, %s29, 1
      %s587 = smul.addr %s586, 2
      %s588 = smul.addr %s587, 8
      %s589 = scalar_lea.vmem %s18, %s588
      %v591 = vld [vmem:[%s581] sm:$0xff]
      %v592 = vld [vmem:[%s581 + $0x8] sm:$0xff]
      %v593 = vld [vmem:[%s584] sm:$0x1]
      %v594 = vpack.c.bf16 %v592, %v591
      %v595 = vld [vmem:[%s2] sm:$0xf]
      %v596 = vld [vmem:[%s2 + $0x4] sm:$0xf]
      %v597 = vld [vmem:[%s2 + $0x8] sm:$0xf]
      %v598 = vld [vmem:[%s2 + $0xc] sm:$0xf]
      %v599 = vld [vmem:[%s3] sm:$0x1]
      %v601 = vlaneseq
      %v602 = vshrl.u32 %v601, 7
      %v603 = vsub.s32 0, %v602
      %v604 = vrot.slane %v599, %v603
      %v610 = vunpack.c.l.b16 %v595
      %v611 = vunpack.c.l.b16 %v596
      %v612 = vunpack.c.l.b16 %v597
      %v613 = vunpack.c.l.b16 %v598
      %v614 = vpack.c.b16 %v611, %v610
      %v615 = vpack.c.b16 %v613, %v612
      %vm618 = vcmask 261120
      %v620 = vsel %vm618, %v594, 0
      %622 = vmatprep.subr.bf16.mxu0 0
      %623 = vmatpush1.bf16.msra.mxu0 0
      %624 = vmatprep.subr.bf16.mxu0 0
      %625 = vmatpush1.bf16.msra.mxu0 0
      %626 = vmatprep.subr.bf16.mxu0 0
      %627 = vmatpush1.bf16.msra.mxu0 0
      %628 = vmatprep.subr.bf16.mxu0 0
      %629 = vmatpush1.bf16.msra.mxu0 0
      %630 = vmatprep.subr.bf16.mxu0 0
      %631 = vmatpush1.bf16.msra.mxu0 0
      %632 = vmatprep.subr.bf16.mxu0 0
      %633 = vmatpush1.bf16.msra.mxu0 0
      %634 = vmatprep.subr.bf16.mxu0 0
      %635 = vmatpush1.bf16.msra.mxu0 %v615
      %636 = vmatprep.subr.bf16.mxu0 0
      %637 = vmatpush1.bf16.msra.mxu0 %v614
      %638 = vmatprep.subr.bf16.mxu0 0
      %639 = vmatpush2.bf16.msra.mxu0 0
      %640 = vmatprep.subr.bf16.mxu0 0
      %641 = vmatpush2.bf16.msra.mxu0 0
      %642 = vmatprep.subr.bf16.mxu0 0
      %643 = vmatpush2.bf16.msra.mxu0 0
      %644 = vmatprep.subr.bf16.mxu0 0
      %645 = vmatpush2.bf16.msra.mxu0 0
      %646 = vmatprep.subr.bf16.mxu0 0
      %647 = vmatpush2.bf16.msra.mxu0 0
      %648 = vmatprep.subr.bf16.mxu0 0
      %649 = vmatpush2.bf16.msra.mxu0 0
      %650 = vmatprep.subr.bf16.mxu0 0
      %651 = vmatpush2.bf16.msra.mxu0 0
      %652 = vmatprep.subr.bf16.mxu0 0
      %653 = vmatpush2.bf16.msra.mxu0 0
      %654 = vmatprep.mubr.bf16.mxu0 0
      %655 = vmatmul.mubr.bf16.gmra.mxu0 %v620
      %v656 = vpop.f32.mrf.mxu0
      %v657 = vadd.f32 %v604, %v656
      %v658 = vpop.f32.mrf.mxu0
      %v659 = vpop.f32.mrf.mxu0
      %v660 = vadd.f32 %v604, %v659
      %v661 = vpop.f32.mrf.mxu0
      %662 = vdwg.mxu0
      %v663 = vmul.f32 %v657, 0.25
      %v664 = vmul.f32 %v660, 0.25
      %v665 = vld [vmem:[%s4] sm:$0xf]
      %v666 = vld [vmem:[%s4 + $0x4] sm:$0xf]
      %v667 = vld [vmem:[%s4 + $0x8] sm:$0xf]
      %v668 = vld [vmem:[%s4 + $0xc] sm:$0xf]
      %v669 = vld [vmem:[%s5] sm:$0x1]
      %v671 = vlaneseq
      %v672 = vshrl.u32 %v671, 7
      %v673 = vsub.s32 0, %v672
      %v674 = vrot.slane %v669, %v673
      %v680 = vunpack.c.l.b16 %v665
      %v681 = vunpack.c.l.b16 %v666
      %v682 = vunpack.c.l.b16 %v667
      %v683 = vunpack.c.l.b16 %v668
      %v684 = vpack.c.b16 %v681, %v680
      %v685 = vpack.c.b16 %v683, %v682
      %688 = vmatprep.subr.bf16.mxu0 0
      %689 = vmatpush1.bf16.msra.mxu0 0
      %690 = vmatprep.subr.bf16.mxu0 0
      %691 = vmatpush1.bf16.msra.mxu0 0
      %692 = vmatprep.subr.bf16.mxu0 0
      %693 = vmatpush1.bf16.msra.mxu0 0
      %694 = vmatprep.subr.bf16.mxu0 0
      %695 = vmatpush1.bf16.msra.mxu0 0
      %696 = vmatprep.subr.bf16.mxu0 0
      %697 = vmatpush1.bf16.msra.mxu0 0
      %698 = vmatprep.subr.bf16.mxu0 0
      %699 = vmatpush1.bf16.msra.mxu0 0
      %700 = vmatprep.subr.bf16.mxu0 0
      %701 = vmatpush1.bf16.msra.mxu0 %v685
      %702 = vmatprep.subr.bf16.mxu0 0
      %703 = vmatpush1.bf16.msra.mxu0 %v684
      %704 = vmatprep.subr.bf16.mxu0 0
      %705 = vmatpush2.bf16.msra.mxu0 0
      %706 = vmatprep.subr.bf16.mxu0 0
      %707 = vmatpush2.bf16.msra.mxu0 0
      %708 = vmatprep.subr.bf16.mxu0 0
      %709 = vmatpush2.bf16.msra.mxu0 0
      %710 = vmatprep.subr.bf16.mxu0 0
      %711 = vmatpush2.bf16.msra.mxu0 0
      %712 = vmatprep.subr.bf16.mxu0 0
      %713 = vmatpush2.bf16.msra.mxu0 0
      %714 = vmatprep.subr.bf16.mxu0 0
      %715 = vmatpush2.bf16.msra.mxu0 0
      %716 = vmatprep.subr.bf16.mxu0 0
      %717 = vmatpush2.bf16.msra.mxu0 0
      %718 = vmatprep.subr.bf16.mxu0 0
      %719 = vmatpush2.bf16.msra.mxu0 0
      %720 = vmatprep.mubr.bf16.mxu0 0
      %721 = vmatmul.mubr.bf16.gmra.mxu0 %v620
      %v722 = vpop.f32.mrf.mxu0
      %v723 = vadd.f32 %v674, %v722
      %v724 = vpop.f32.mrf.mxu0
      %v725 = vpop.f32.mrf.mxu0
      %v726 = vadd.f32 %v674, %v725
      %v727 = vpop.f32.mrf.mxu0
      %728 = vdwg.mxu0
      %v729 = vld [vmem:[%s6] sm:$0xf]
      %v730 = vld [vmem:[%s6 + $0x4] sm:$0xf]
      %v731 = vld [vmem:[%s6 + $0x8] sm:$0xf]
      %v732 = vld [vmem:[%s6 + $0xc] sm:$0xf]
      %v733 = vld [vmem:[%s7] sm:$0x1]
      %v735 = vlaneseq
      %v736 = vshrl.u32 %v735, 7
      %v737 = vsub.s32 0, %v736
      %v738 = vrot.slane %v733, %v737
      %v744 = vunpack.c.l.b16 %v729
      %v745 = vunpack.c.l.b16 %v730
      %v746 = vunpack.c.l.b16 %v731
      %v747 = vunpack.c.l.b16 %v732
      %v748 = vpack.c.b16 %v745, %v744
      %v749 = vpack.c.b16 %v747, %v746
      %752 = vmatprep.subr.bf16.mxu0 0
      %753 = vmatpush1.bf16.msra.mxu0 0
      %754 = vmatprep.subr.bf16.mxu0 0
      %755 = vmatpush1.bf16.msra.mxu0 0
      %756 = vmatprep.subr.bf16.mxu0 0
      %757 = vmatpush1.bf16.msra.mxu0 0
      %758 = vmatprep.subr.bf16.mxu0 0
      %759 = vmatpush1.bf16.msra.mxu0 0
      %760 = vmatprep.subr.bf16.mxu0 0
      %761 = vmatpush1.bf16.msra.mxu0 0
      %762 = vmatprep.subr.bf16.mxu0 0
      %763 = vmatpush1.bf16.msra.mxu0 0
      %764 = vmatprep.subr.bf16.mxu0 0
      %765 = vmatpush1.bf16.msra.mxu0 %v749
      %766 = vmatprep.subr.bf16.mxu0 0
      %767 = vmatpush1.bf16.msra.mxu0 %v748
      %768 = vmatprep.subr.bf16.mxu0 0
      %769 = vmatpush2.bf16.msra.mxu0 0
      %770 = vmatprep.subr.bf16.mxu0 0
      %771 = vmatpush2.bf16.msra.mxu0 0
      %772 = vmatprep.subr.bf16.mxu0 0
      %773 = vmatpush2.bf16.msra.mxu0 0
      %774 = vmatprep.subr.bf16.mxu0 0
      %775 = vmatpush2.bf16.msra.mxu0 0
      %776 = vmatprep.subr.bf16.mxu0 0
      %777 = vmatpush2.bf16.msra.mxu0 0
      %778 = vmatprep.subr.bf16.mxu0 0
      %779 = vmatpush2.bf16.msra.mxu0 0
      %780 = vmatprep.subr.bf16.mxu0 0
      %781 = vmatpush2.bf16.msra.mxu0 0
      %782 = vmatprep.subr.bf16.mxu0 0
      %783 = vmatpush2.bf16.msra.mxu0 0
      %784 = vmatprep.mubr.bf16.mxu0 0
      %785 = vmatmul.mubr.bf16.gmra.mxu0 %v620
      %v786 = vpop.f32.mrf.mxu0
      %v787 = vadd.f32 %v738, %v786
      %v788 = vpop.f32.mrf.mxu0
      %v789 = vpop.f32.mrf.mxu0
      %v790 = vadd.f32 %v738, %v789
      %v791 = vpop.f32.mrf.mxu0
      %792 = vdwg.mxu0
      %v794 = vlaneseq
      %v795 = vshrl.u32 %v794, 7
      %v796 = vsub.s32 0, %v795
      %v797 = vrot.slane %v593, %v796
      %vm799 = vcmask 130048
      %v801 = vsel %vm799, %v663, 0
      %v804 = vsel %vm799, %v664, 0
      %v807 = vsel %vm799, %v723, 0
      %v810 = vsel %vm799, %v726, 0
      %812 = vmatprep.subr.mxu0 0.0
      %813 = vmatpush1.xpose.msra.mxu0 0.0
      %814 = vmatprep.subr.mxu0 0.0
      %815 = vmatpush1.xpose.msra.mxu0 0.0
      %816 = vmatprep.subr.mxu0 0.0
      %817 = vmatpush1.xpose.msra.mxu0 0.0
      %818 = vmatprep.subr.mxu0 0.0
      %819 = vmatpush1.xpose.msra.mxu0 0.0
      %820 = vmatprep.subr.mxu0 0.0
      %821 = vmatpush1.xpose.msra.mxu0 0.0
      %822 = vmatprep.subr.mxu0 0.0
      %823 = vmatpush1.xpose.msra.mxu0 0.0
      %824 = vmatprep.subr.mxu0 0.0
      %825 = vmatpush1.xpose.msra.mxu0 0.0
      %826 = vmatprep.subr.mxu0 0.0
      %827 = vmatpush1.xpose.msra.mxu0 0.0
      %828 = vmatprep.subr.mxu0 0.0
      %829 = vmatpush1.xpose.msra.mxu0 0.0
      %830 = vmatprep.subr.mxu0 0.0
      %831 = vmatpush1.xpose.msra.mxu0 0.0
      %832 = vmatprep.subr.mxu0 0.0
      %833 = vmatpush1.xpose.msra.mxu0 0.0
      %834 = vmatprep.subr.mxu0 0.0
      %835 = vmatpush1.xpose.msra.mxu0 0.0
      %836 = vmatprep.subr.mxu0 0.0
      %837 = vmatpush1.xpose.msra.mxu0 0.0
      %838 = vmatprep.subr.mxu0 0.0
      %839 = vmatpush1.xpose.msra.mxu0 0.0
      %840 = vmatprep.subr.mxu0 0.0
      %841 = vmatpush1.xpose.msra.mxu0 %v810
      %842 = vmatprep.subr.mxu0 0.0
      %843 = vmatpush1.xpose.msra.mxu0 %v807
      %844 = vmatprep.subr.mxu0 0.0
      %845 = vmatpush2.xpose.msra.mxu0 0.0
      %846 = vmatprep.subr.mxu0 0.0
      %847 = vmatpush2.xpose.msra.mxu0 0.0
      %848 = vmatprep.subr.mxu0 0.0
      %849 = vmatpush2.xpose.msra.mxu0 0.0
      %850 = vmatprep.subr.mxu0 0.0
      %851 = vmatpush2.xpose.msra.mxu0 0.0
      %852 = vmatprep.subr.mxu0 0.0
      %853 = vmatpush2.xpose.msra.mxu0 0.0
      %854 = vmatprep.subr.mxu0 0.0
      %855 = vmatpush2.xpose.msra.mxu0 0.0
      %856 = vmatprep.subr.mxu0 0.0
      %857 = vmatpush2.xpose.msra.mxu0 0.0
      %858 = vmatprep.subr.mxu0 0.0
      %859 = vmatpush2.xpose.msra.mxu0 0.0
      %860 = vmatprep.subr.mxu0 0.0
      %861 = vmatpush2.xpose.msra.mxu0 0.0
      %862 = vmatprep.subr.mxu0 0.0
      %863 = vmatpush2.xpose.msra.mxu0 0.0
      %864 = vmatprep.subr.mxu0 0.0
      %865 = vmatpush2.xpose.msra.mxu0 0.0
      %866 = vmatprep.subr.mxu0 0.0
      %867 = vmatpush2.xpose.msra.mxu0 0.0
      %868 = vmatprep.subr.mxu0 0.0
      %869 = vmatpush2.xpose.msra.mxu0 0.0
      %870 = vmatprep.subr.mxu0 0.0
      %871 = vmatpush2.xpose.msra.mxu0 0.0
      %872 = vmatprep.subr.mxu0 0.0
      %873 = vmatpush2.xpose.msra.mxu0 0.0
      %874 = vmatprep.subr.mxu0 0.0
      %875 = vmatpush2.xpose.msra.mxu0 0.0
      %876 = vmatprep.mubr.f32.mxu0 0.0
      %877 = vmatmul.mubr.f32.gmra.mxu0 %v801
      %v878 = vpop.f32.mrf.mxu0
      %v879 = vadd.f32 %v797, %v878
      %v880 = vpop.f32.mrf.mxu0
      %881 = vmatprep.mubr.f32.mxu0 0.0
      %882 = vmatmul.mubr.f32.gmra.mxu0 %v804
      %v883 = vpop.f32.mrf.mxu0
      %v884 = vadd.f32 %v797, %v883
      %v885 = vpop.f32.mrf.mxu0
      %886 = vdwg.mxu0
      %v887 = vsel %vm799, %v879, -inf
      %888 = vmax.xlane.f32.xlu0 %v887
      %v889 = vpop.xlane.xlu0 %888
      %v890 = vsel %vm799, %v884, -inf
      %891 = vmax.xlane.f32.xlu0 %v890
      %v892 = vpop.xlane.xlu0 %891
      %v893 = vsub.f32 %v879, %v889
      %v894 = vsub.f32 %v884, %v892
      %v895 = vmul.f32 %v893, 1.442695
      %v896 = vpow.pop %v895
      %v897 = vmul.f32 %v894, 1.442695
      %v898 = vpow.pop %v897
      %v899 = vsel %vm799, %v896, 0.0
      %900 = vadd.xlane.f32.xlu0 %v899
      %v901 = vpop.xlane.xlu0 %900
      %v902 = vsel %vm799, %v898, 0.0
      %903 = vadd.xlane.f32.xlu0 %v902
      %v904 = vpop.xlane.xlu0 %903
      %v905 = vrcp.pop %v901
      %v906 = vrcp.pop %v904
      %v907 = vmul.f32 %v896, %v905
      %v908 = vmul.f32 %v898, %v906
      %v909 = vpack.c.bf16 %v908, %v907
      %v910 = vpack.c.bf16 %v790, %v787
      %v912 = vsel %vm799, %v909, 0
      %914 = vmatprep.subr.bf16.mxu0 0
      %915 = vmatpush1.bf16.msra.mxu0 0
      %916 = vmatprep.subr.bf16.mxu0 0
      %917 = vmatpush1.bf16.msra.mxu0 0
      %918 = vmatprep.subr.bf16.mxu0 0
      %919 = vmatpush1.bf16.msra.mxu0 0
      %920 = vmatprep.subr.bf16.mxu0 0
      %921 = vmatpush1.bf16.msra.mxu0 0
      %922 = vmatprep.subr.bf16.mxu0 0
      %923 = vmatpush1.bf16.msra.mxu0 0
      %924 = vmatprep.subr.bf16.mxu0 0
      %925 = vmatpush1.bf16.msra.mxu0 0
      %926 = vmatprep.subr.bf16.mxu0 0
      %927 = vmatpush1.bf16.msra.mxu0 0
      %928 = vmatprep.subr.bf16.mxu0 0
      %929 = vmatpush1.bf16.msra.mxu0 %v910
      %930 = vmatprep.subr.bf16.mxu0 0
      %931 = vmatpush2.bf16.msra.mxu0 0
      %932 = vmatprep.subr.bf16.mxu0 0
      %933 = vmatpush2.bf16.msra.mxu0 0
      %934 = vmatprep.subr.bf16.mxu0 0
      %935 = vmatpush2.bf16.msra.mxu0 0
      %936 = vmatprep.subr.bf16.mxu0 0
      %937 = vmatpush2.bf16.msra.mxu0 0
      %938 = vmatprep.subr.bf16.mxu0 0
      %939 = vmatpush2.bf16.msra.mxu0 0
      %940 = vmatprep.subr.bf16.mxu0 0
      %941 = vmatpush2.bf16.msra.mxu0 0
      %942 = vmatprep.subr.bf16.mxu0 0
      %943 = vmatpush2.bf16.msra.mxu0 0
      %944 = vmatprep.subr.bf16.mxu0 0
      %945 = vmatpush2.bf16.msra.mxu0 0
      %946 = vmatprep.mubr.bf16.mxu0 0
      %947 = vmatmul.mubr.bf16.gmra.mxu0 %v912
      %v948 = vpop.f32.mrf.mxu0
      %v949 = vadd.f32 0.0, %v948
      %v950 = vpop.f32.mrf.mxu0
      %v951 = vpop.f32.mrf.mxu0
      %v952 = vadd.f32 0.0, %v951
      %v953 = vpop.f32.mrf.mxu0
      %954 = vdwg.mxu0
      %v955 = vpack.c.bf16 %v952, %v949
      %v956 = vld [vmem:[%s8] sm:$0xf]
      %v957 = vld [vmem:[%s8 + $0x4] sm:$0xf]
      %s958 = scalar_lea.vmem %s2, 16
      %v959 = vld [vmem:[%s958] sm:$0xf]
      %v960 = vld [vmem:[%s958 + $0x4] sm:$0xf]
      %v961 = vld [vmem:[%s958 + $0x8] sm:$0xf]
      %v962 = vld [vmem:[%s958 + $0xc] sm:$0xf]
      %s963 = scalar_lea.vmem %s3, 1
      %v964 = vld [vmem:[%s963] sm:$0x1]
      %v966 = vlaneseq
      %v967 = vshrl.u32 %v966, 7
      %v968 = vsub.s32 0, %v967
      %v969 = vrot.slane %v964, %v968
      %v975 = vunpack.c.l.b16 %v959
      %v976 = vunpack.c.l.b16 %v960
      %v977 = vunpack.c.l.b16 %v961
      %v978 = vunpack.c.l.b16 %v962
      %v979 = vpack.c.b16 %v976, %v975
      %v980 = vpack.c.b16 %v978, %v977
      %983 = vmatprep.subr.bf16.mxu0 0
      %984 = vmatpush1.bf16.msra.mxu0 0
      %985 = vmatprep.subr.bf16.mxu0 0
      %986 = vmatpush1.bf16.msra.mxu0 0
      %987 = vmatprep.subr.bf16.mxu0 0
      %988 = vmatpush1.bf16.msra.mxu0 0
      %989 = vmatprep.subr.bf16.mxu0 0
      %990 = vmatpush1.bf16.msra.mxu0 0
      %991 = vmatprep.subr.bf16.mxu0 0
      %992 = vmatpush1.bf16.msra.mxu0 0
      %993 = vmatprep.subr.bf16.mxu0 0
      %994 = vmatpush1.bf16.msra.mxu0 0
      %995 = vmatprep.subr.bf16.mxu0 0
      %996 = vmatpush1.bf16.msra.mxu0 %v980
      %997 = vmatprep.subr.bf16.mxu0 0
      %998 = vmatpush1.bf16.msra.mxu0 %v979
      %999 = vmatprep.subr.bf16.mxu0 0
      %1000 = vmatpush2.bf16.msra.mxu0 0
      %1001 = vmatprep.subr.bf16.mxu0 0
      %1002 = vmatpush2.bf16.msra.mxu0 0
      %1003 = vmatprep.subr.bf16.mxu0 0
      %1004 = vmatpush2.bf16.msra.mxu0 0
      %1005 = vmatprep.subr.bf16.mxu0 0
      %1006 = vmatpush2.bf16.msra.mxu0 0
      %1007 = vmatprep.subr.bf16.mxu0 0
      %1008 = vmatpush2.bf16.msra.mxu0 0
      %1009 = vmatprep.subr.bf16.mxu0 0
      %1010 = vmatpush2.bf16.msra.mxu0 0
      %1011 = vmatprep.subr.bf16.mxu0 0
      %1012 = vmatpush2.bf16.msra.mxu0 0
      %1013 = vmatprep.subr.bf16.mxu0 0
      %1014 = vmatpush2.bf16.msra.mxu0 0
      %1015 = vmatprep.mubr.bf16.mxu0 0
      %1016 = vmatmul.mubr.bf16.gmra.mxu0 %v620
      %v1017 = vpop.f32.mrf.mxu0
      %v1018 = vadd.f32 %v969, %v1017
      %v1019 = vpop.f32.mrf.mxu0
      %v1020 = vpop.f32.mrf.mxu0
      %v1021 = vadd.f32 %v969, %v1020
      %v1022 = vpop.f32.mrf.mxu0
      %1023 = vdwg.mxu0
      %v1024 = vmul.f32 %v1018, 0.25
      %v1025 = vmul.f32 %v1021, 0.25
      %s1026 = scalar_lea.vmem %s4, 16
      %v1027 = vld [vmem:[%s1026] sm:$0xf]
      %v1028 = vld [vmem:[%s1026 + $0x4] sm:$0xf]
      %v1029 = vld [vmem:[%s1026 + $0x8] sm:$0xf]
      %v1030 = vld [vmem:[%s1026 + $0xc] sm:$0xf]
      %s1031 = scalar_lea.vmem %s5, 1
      %v1032 = vld [vmem:[%s1031] sm:$0x1]
      %v1034 = vlaneseq
      %v1035 = vshrl.u32 %v1034, 7
      %v1036 = vsub.s32 0, %v1035
      %v1037 = vrot.slane %v1032, %v1036
      %v1043 = vunpack.c.l.b16 %v1027
      %v1044 = vunpack.c.l.b16 %v1028
      %v1045 = vunpack.c.l.b16 %v1029
      %v1046 = vunpack.c.l.b16 %v1030
      %v1047 = vpack.c.b16 %v1044, %v1043
      %v1048 = vpack.c.b16 %v1046, %v1045
      %1051 = vmatprep.subr.bf16.mxu0 0
      %1052 = vmatpush1.bf16.msra.mxu0 0
      %1053 = vmatprep.subr.bf16.mxu0 0
      %1054 = vmatpush1.bf16.msra.mxu0 0
      %1055 = vmatprep.subr.bf16.mxu0 0
      %1056 = vmatpush1.bf16.msra.mxu0 0
      %1057 = vmatprep.subr.bf16.mxu0 0
      %1058 = vmatpush1.bf16.msra.mxu0 0
      %1059 = vmatprep.subr.bf16.mxu0 0
      %1060 = vmatpush1.bf16.msra.mxu0 0
      %1061 = vmatprep.subr.bf16.mxu0 0
      %1062 = vmatpush1.bf16.msra.mxu0 0
      %1063 = vmatprep.subr.bf16.mxu0 0
      %1064 = vmatpush1.bf16.msra.mxu0 %v1048
      %1065 = vmatprep.subr.bf16.mxu0 0
      %1066 = vmatpush1.bf16.msra.mxu0 %v1047
      %1067 = vmatprep.subr.bf16.mxu0 0
      %1068 = vmatpush2.bf16.msra.mxu0 0
      %1069 = vmatprep.subr.bf16.mxu0 0
      %1070 = vmatpush2.bf16.msra.mxu0 0
      %1071 = vmatprep.subr.bf16.mxu0 0
      %1072 = vmatpush2.bf16.msra.mxu0 0
      %1073 = vmatprep.subr.bf16.mxu0 0
      %1074 = vmatpush2.bf16.msra.mxu0 0
      %1075 = vmatprep.subr.bf16.mxu0 0
      %1076 = vmatpush2.bf16.msra.mxu0 0
      %1077 = vmatprep.subr.bf16.mxu0 0
      %1078 = vmatpush2.bf16.msra.mxu0 0
      %1079 = vmatprep.subr.bf16.mxu0 0
      %1080 = vmatpush2.bf16.msra.mxu0 0
      %1081 = vmatprep.subr.bf16.mxu0 0
      %1082 = vmatpush2.bf16.msra.mxu0 0
      %1083 = vmatprep.mubr.bf16.mxu0 0
      %1084 = vmatmul.mubr.bf16.gmra.mxu0 %v620
      %v1085 = vpop.f32.mrf.mxu0
      %v1086 = vadd.f32 %v1037, %v1085
      %v1087 = vpop.f32.mrf.mxu0
      %v1088 = vpop.f32.mrf.mxu0
      %v1089 = vadd.f32 %v1037, %v1088
      %v1090 = vpop.f32.mrf.mxu0
      %1091 = vdwg.mxu0
      %s1092 = scalar_lea.vmem %s6, 16
      %v1093 = vld [vmem:[%s1092] sm:$0xf]
      %v1094 = vld [vmem:[%s1092 + $0x4] sm:$0xf]
      %v1095 = vld [vmem:[%s1092 + $0x8] sm:$0xf]
      %v1096 = vld [vmem:[%s1092 + $0xc] sm:$0xf]
      %s1097 = scalar_lea.vmem %s7, 1
      %v1098 = vld [vmem:[%s1097] sm:$0x1]
      %v1100 = vlaneseq
      %v1101 = vshrl.u32 %v1100, 7
      %v1102 = vsub.s32 0, %v1101
      %v1103 = vrot.slane %v1098, %v1102
      %v1109 = vunpack.c.l.b16 %v1093
      %v1110 = vunpack.c.l.b16 %v1094
      %v1111 = vunpack.c.l.b16 %v1095
      %v1112 = vunpack.c.l.b16 %v1096
      %v1113 = vpack.c.b16 %v1110, %v1109
      %v1114 = vpack.c.b16 %v1112, %v1111
      %1117 = vmatprep.subr.bf16.mxu0 0
      %1118 = vmatpush1.bf16.msra.mxu0 0
      %1119 = vmatprep.subr.bf16.mxu0 0
      %1120 = vmatpush1.bf16.msra.mxu0 0
      %1121 = vmatprep.subr.bf16.mxu0 0
      %1122 = vmatpush1.bf16.msra.mxu0 0
      %1123 = vmatprep.subr.bf16.mxu0 0
      %1124 = vmatpush1.bf16.msra.mxu0 0
      %1125 = vmatprep.subr.bf16.mxu0 0
      %1126 = vmatpush1.bf16.msra.mxu0 0
      %1127 = vmatprep.subr.bf16.mxu0 0
      %1128 = vmatpush1.bf16.msra.mxu0 0
      %1129 = vmatprep.subr.bf16.mxu0 0
      %1130 = vmatpush1.bf16.msra.mxu0 %v1114
      %1131 = vmatprep.subr.bf16.mxu0 0
      %1132 = vmatpush1.bf16.msra.mxu0 %v1113
      %1133 = vmatprep.subr.bf16.mxu0 0
      %1134 = vmatpush2.bf16.msra.mxu0 0
      %1135 = vmatprep.subr.bf16.mxu0 0
      %1136 = vmatpush2.bf16.msra.mxu0 0
      %1137 = vmatprep.subr.bf16.mxu0 0
      %1138 = vmatpush2.bf16.msra.mxu0 0
      %1139 = vmatprep.subr.bf16.mxu0 0
      %1140 = vmatpush2.bf16.msra.mxu0 0
      %1141 = vmatprep.subr.bf16.mxu0 0
      %1142 = vmatpush2.bf16.msra.mxu0 0
      %1143 = vmatprep.subr.bf16.mxu0 0
      %1144 = vmatpush2.bf16.msra.mxu0 0
      %1145 = vmatprep.subr.bf16.mxu0 0
      %1146 = vmatpush2.bf16.msra.mxu0 0
      %1147 = vmatprep.subr.bf16.mxu0 0
      %1148 = vmatpush2.bf16.msra.mxu0 0
      %1149 = vmatprep.mubr.bf16.mxu0 0
      %1150 = vmatmul.mubr.bf16.gmra.mxu0 %v620
      %v1151 = vpop.f32.mrf.mxu0
      %v1152 = vadd.f32 %v1103, %v1151
      %v1153 = vpop.f32.mrf.mxu0
      %v1154 = vpop.f32.mrf.mxu0
      %v1155 = vadd.f32 %v1103, %v1154
      %v1156 = vpop.f32.mrf.mxu0
      %1157 = vdwg.mxu0
      %v1159 = vsel %vm799, %v1024, 0
      %v1162 = vsel %vm799, %v1025, 0
      %v1165 = vsel %vm799, %v1086, 0
      %v1168 = vsel %vm799, %v1089, 0
      %1170 = vmatprep.subr.mxu0 0.0
      %1171 = vmatpush1.xpose.msra.mxu0 0.0
      %1172 = vmatprep.subr.mxu0 0.0
      %1173 = vmatpush1.xpose.msra.mxu0 0.0
      %1174 = vmatprep.subr.mxu0 0.0
      %1175 = vmatpush1.xpose.msra.mxu0 0.0
      %1176 = vmatprep.subr.mxu0 0.0
      %1177 = vmatpush1.xpose.msra.mxu0 0.0
      %1178 = vmatprep.subr.mxu0 0.0
      %1179 = vmatpush1.xpose.msra.mxu0 0.0
      %1180 = vmatprep.subr.mxu0 0.0
      %1181 = vmatpush1.xpose.msra.mxu0 0.0
      %1182 = vmatprep.subr.mxu0 0.0
      %1183 = vmatpush1.xpose.msra.mxu0 0.0
      %1184 = vmatprep.subr.mxu0 0.0
      %1185 = vmatpush1.xpose.msra.mxu0 0.0
      %1186 = vmatprep.subr.mxu0 0.0
      %1187 = vmatpush1.xpose.msra.mxu0 0.0
      %1188 = vmatprep.subr.mxu0 0.0
      %1189 = vmatpush1.xpose.msra.mxu0 0.0
      %1190 = vmatprep.subr.mxu0 0.0
      %1191 = vmatpush1.xpose.msra.mxu0 0.0
      %1192 = vmatprep.subr.mxu0 0.0
      %1193 = vmatpush1.xpose.msra.mxu0 0.0
      %1194 = vmatprep.subr.mxu0 0.0
      %1195 = vmatpush1.xpose.msra.mxu0 0.0
      %1196 = vmatprep.subr.mxu0 0.0
      %1197 = vmatpush1.xpose.msra.mxu0 0.0
      %1198 = vmatprep.subr.mxu0 0.0
      %1199 = vmatpush1.xpose.msra.mxu0 %v1168
      %1200 = vmatprep.subr.mxu0 0.0
      %1201 = vmatpush1.xpose.msra.mxu0 %v1165
      %1202 = vmatprep.subr.mxu0 0.0
      %1203 = vmatpush2.xpose.msra.mxu0 0.0
      %1204 = vmatprep.subr.mxu0 0.0
      %1205 = vmatpush2.xpose.msra.mxu0 0.0
      %1206 = vmatprep.subr.mxu0 0.0
      %1207 = vmatpush2.xpose.msra.mxu0 0.0
      %1208 = vmatprep.subr.mxu0 0.0
      %1209 = vmatpush2.xpose.msra.mxu0 0.0
      %1210 = vmatprep.subr.mxu0 0.0
      %1211 = vmatpush2.xpose.msra.mxu0 0.0
      %1212 = vmatprep.subr.mxu0 0.0
      %1213 = vmatpush2.xpose.msra.mxu0 0.0
      %1214 = vmatprep.subr.mxu0 0.0
      %1215 = vmatpush2.xpose.msra.mxu0 0.0
      %1216 = vmatprep.subr.mxu0 0.0
      %1217 = vmatpush2.xpose.msra.mxu0 0.0
      %1218 = vmatprep.subr.mxu0 0.0
      %1219 = vmatpush2.xpose.msra.mxu0 0.0
      %1220 = vmatprep.subr.mxu0 0.0
      %1221 = vmatpush2.xpose.msra.mxu0 0.0
      %1222 = vmatprep.subr.mxu0 0.0
      %1223 = vmatpush2.xpose.msra.mxu0 0.0
      %1224 = vmatprep.subr.mxu0 0.0
      %1225 = vmatpush2.xpose.msra.mxu0 0.0
      %1226 = vmatprep.subr.mxu0 0.0
      %1227 = vmatpush2.xpose.msra.mxu0 0.0
      %1228 = vmatprep.subr.mxu0 0.0
      %1229 = vmatpush2.xpose.msra.mxu0 0.0
      %1230 = vmatprep.subr.mxu0 0.0
      %1231 = vmatpush2.xpose.msra.mxu0 0.0
      %1232 = vmatprep.subr.mxu0 0.0
      %1233 = vmatpush2.xpose.msra.mxu0 0.0
      %1234 = vmatprep.mubr.f32.mxu0 0.0
      %1235 = vmatmul.mubr.f32.gmra.mxu0 %v1159
      %v1236 = vpop.f32.mrf.mxu0
      %v1237 = vadd.f32 %v797, %v1236
      %v1238 = vpop.f32.mrf.mxu0
      %1239 = vmatprep.mubr.f32.mxu0 0.0
      %1240 = vmatmul.mubr.f32.gmra.mxu0 %v1162
      %v1241 = vpop.f32.mrf.mxu0
      %v1242 = vadd.f32 %v797, %v1241
      %v1243 = vpop.f32.mrf.mxu0
      %1244 = vdwg.mxu0
      %v1245 = vsel %vm799, %v1237, -inf
      %1246 = vmax.xlane.f32.xlu0 %v1245
      %v1247 = vpop.xlane.xlu0 %1246
      %v1248 = vsel %vm799, %v1242, -inf
      %1249 = vmax.xlane.f32.xlu0 %v1248
      %v1250 = vpop.xlane.xlu0 %1249
      %v1251 = vsub.f32 %v1237, %v1247
      %v1252 = vsub.f32 %v1242, %v1250
      %v1253 = vmul.f32 %v1251, 1.442695
      %v1254 = vpow.pop %v1253
      %v1255 = vmul.f32 %v1252, 1.442695
      %v1256 = vpow.pop %v1255
      %v1257 = vsel %vm799, %v1254, 0.0
      %1258 = vadd.xlane.f32.xlu0 %v1257
      %v1259 = vpop.xlane.xlu0 %1258
      %v1260 = vsel %vm799, %v1256, 0.0
      %1261 = vadd.xlane.f32.xlu0 %v1260
      %v1262 = vpop.xlane.xlu0 %1261
      %v1263 = vrcp.pop %v1259
      %v1264 = vrcp.pop %v1262
      %v1265 = vmul.f32 %v1254, %v1263
      %v1266 = vmul.f32 %v1256, %v1264
      %v1267 = vpack.c.bf16 %v1266, %v1265
      %v1268 = vpack.c.bf16 %v1155, %v1152
      %v1270 = vsel %vm799, %v1267, 0
      %1272 = vmatprep.subr.bf16.mxu0 0
      %1273 = vmatpush1.bf16.msra.mxu0 0
      %1274 = vmatprep.subr.bf16.mxu0 0
      %1275 = vmatpush1.bf16.msra.mxu0 0
      %1276 = vmatprep.subr.bf16.mxu0 0
      %1277 = vmatpush1.bf16.msra.mxu0 0
      %1278 = vmatprep.subr.bf16.mxu0 0
      %1279 = vmatpush1.bf16.msra.mxu0 0
      %1280 = vmatprep.subr.bf16.mxu0 0
      %1281 = vmatpush1.bf16.msra.mxu0 0
      %1282 = vmatprep.subr.bf16.mxu0 0
      %1283 = vmatpush1.bf16.msra.mxu0 0
      %1284 = vmatprep.subr.bf16.mxu0 0
      %1285 = vmatpush1.bf16.msra.mxu0 0
      %1286 = vmatprep.subr.bf16.mxu0 0
      %1287 = vmatpush1.bf16.msra.mxu0 %v1268
      %1288 = vmatprep.subr.bf16.mxu0 0
      %1289 = vmatpush2.bf16.msra.mxu0 0
      %1290 = vmatprep.subr.bf16.mxu0 0
      %1291 = vmatpush2.bf16.msra.mxu0 0
      %1292 = vmatprep.subr.bf16.mxu0 0
      %1293 = vmatpush2.bf16.msra.mxu0 0
      %1294 = vmatprep.subr.bf16.mxu0 0
      %1295 = vmatpush2.bf16.msra.mxu0 0
      %1296 = vmatprep.subr.bf16.mxu0 0
      %1297 = vmatpush2.bf16.msra.mxu0 0
      %1298 = vmatprep.subr.bf16.mxu0 0
      %1299 = vmatpush2.bf16.msra.mxu0 0
      %1300 = vmatprep.subr.bf16.mxu0 0
      %1301 = vmatpush2.bf16.msra.mxu0 0
      %1302 = vmatprep.subr.bf16.mxu0 0
      %1303 = vmatpush2.bf16.msra.mxu0 0
      %1304 = vmatprep.mubr.bf16.mxu0 0
      %1305 = vmatmul.mubr.bf16.gmra.mxu0 %v1270
      %v1306 = vpop.f32.mrf.mxu0
      %v1307 = vadd.f32 0.0, %v1306
      %v1308 = vpop.f32.mrf.mxu0
      %v1309 = vpop.f32.mrf.mxu0
      %v1310 = vadd.f32 0.0, %v1309
      %v1311 = vpop.f32.mrf.mxu0
      %1312 = vdwg.mxu0
      %v1313 = vpack.c.bf16 %v1310, %v1307
      %s1314 = scalar_lea.vmem %s8, 8
      %v1315 = vld [vmem:[%s1314] sm:$0xf]
      %v1316 = vld [vmem:[%s1314 + $0x4] sm:$0xf]
      %v1319 = vunpack.c.l.b16 %v1315
      %v1320 = vunpack.c.l.b16 %v1316
      %v1321 = vpack.c.b16 %v1320, %v1319
      %v1324 = vsel %vm799, %v1313, 0
      %1326 = vmatprep.subr.bf16.mxu0 0
      %1327 = vmatpush1.bf16.msra.mxu0 0
      %1328 = vmatprep.subr.bf16.mxu0 0
      %1329 = vmatpush1.bf16.msra.mxu0 0
      %1330 = vmatprep.subr.bf16.mxu0 0
      %1331 = vmatpush1.bf16.msra.mxu0 0
      %1332 = vmatprep.subr.bf16.mxu0 0
      %1333 = vmatpush1.bf16.msra.mxu0 0
      %1334 = vmatprep.subr.bf16.mxu0 0
      %1335 = vmatpush1.bf16.msra.mxu0 0
      %1336 = vmatprep.subr.bf16.mxu0 0
      %1337 = vmatpush1.bf16.msra.mxu0 0
      %1338 = vmatprep.subr.bf16.mxu0 0
      %1339 = vmatpush1.bf16.msra.mxu0 0
      %1340 = vmatprep.subr.bf16.mxu0 0
      %1341 = vmatpush1.bf16.msra.mxu0 %v1321
      %1342 = vmatprep.subr.bf16.mxu0 0
      %1343 = vmatpush2.bf16.msra.mxu0 0
      %1344 = vmatprep.subr.bf16.mxu0 0
      %1345 = vmatpush2.bf16.msra.mxu0 0
      %1346 = vmatprep.subr.bf16.mxu0 0
      %1347 = vmatpush2.bf16.msra.mxu0 0
      %1348 = vmatprep.subr.bf16.mxu0 0
      %1349 = vmatpush2.bf16.msra.mxu0 0
      %1350 = vmatprep.subr.bf16.mxu0 0
      %1351 = vmatpush2.bf16.msra.mxu0 0
      %1352 = vmatprep.subr.bf16.mxu0 0
      %1353 = vmatpush2.bf16.msra.mxu0 0
      %1354 = vmatprep.subr.bf16.mxu0 0
      %1355 = vmatpush2.bf16.msra.mxu0 0
      %1356 = vmatprep.subr.bf16.mxu0 0
      %1357 = vmatpush2.bf16.msra.mxu0 0
      %1358 = vmatprep.mubr.bf16.mxu0 0
      %1359 = vmatmul.mubr.bf16.gmra.mxu0 %v1324
      %v1360 = vpop.f32.mrf.mxu0
      %v1361 = vadd.f32 0.0, %v1360
      %v1362 = vpop.f32.mrf.mxu0
      %v1363 = vpop.f32.mrf.mxu0
      %v1364 = vadd.f32 0.0, %v1363
      %v1365 = vpop.f32.mrf.mxu0
      %1366 = vdwg.mxu0
      %v1369 = vunpack.c.l.b16 %v956
      %v1370 = vunpack.c.l.b16 %v957
      %v1371 = vpack.c.b16 %v1370, %v1369
      %v1374 = vsel %vm799, %v955, 0
      %1376 = vmatprep.subr.bf16.mxu0 0
      %1377 = vmatpush1.bf16.msra.mxu0 0
      %1378 = vmatprep.subr.bf16.mxu0 0
      %1379 = vmatpush1.bf16.msra.mxu0 0
      %1380 = vmatprep.subr.bf16.mxu0 0
      %1381 = vmatpush1.bf16.msra.mxu0 0
      %1382 = vmatprep.subr.bf16.mxu0 0
      %1383 = vmatpush1.bf16.msra.mxu0 0
      %1384 = vmatprep.subr.bf16.mxu0 0
      %1385 = vmatpush1.bf16.msra.mxu0 0
      %1386 = vmatprep.subr.bf16.mxu0 0
      %1387 = vmatpush1.bf16.msra.mxu0 0
      %1388 = vmatprep.subr.bf16.mxu0 0
      %1389 = vmatpush1.bf16.msra.mxu0 0
      %1390 = vmatprep.subr.bf16.mxu0 0
      %1391 = vmatpush1.bf16.msra.mxu0 %v1371
      %1392 = vmatprep.subr.bf16.mxu0 0
      %1393 = vmatpush2.bf16.msra.mxu0 0
      %1394 = vmatprep.subr.bf16.mxu0 0
      %1395 = vmatpush2.bf16.msra.mxu0 0
      %1396 = vmatprep.subr.bf16.mxu0 0
      %1397 = vmatpush2.bf16.msra.mxu0 0
      %1398 = vmatprep.subr.bf16.mxu0 0
      %1399 = vmatpush2.bf16.msra.mxu0 0
      %1400 = vmatprep.subr.bf16.mxu0 0
      %1401 = vmatpush2.bf16.msra.mxu0 0
      %1402 = vmatprep.subr.bf16.mxu0 0
      %1403 = vmatpush2.bf16.msra.mxu0 0
      %1404 = vmatprep.subr.bf16.mxu0 0
      %1405 = vmatpush2.bf16.msra.mxu0 0
      %1406 = vmatprep.subr.bf16.mxu0 0
      %1407 = vmatpush2.bf16.msra.mxu0 0
      %1408 = vmatprep.mubr.bf16.mxu0 0
      %1409 = vmatmul.mubr.bf16.gmra.mxu0 %v1374
      %v1410 = vpop.f32.mrf.mxu0
      %v1411 = vadd.f32 %v1361, %v1410
      %v1412 = vpop.f32.mrf.mxu0
      %v1413 = vpop.f32.mrf.mxu0
      %v1414 = vadd.f32 %v1364, %v1413
      %v1415 = vpop.f32.mrf.mxu0
      %1416 = vdwg.mxu0
      %v1417 = vld [vmem:[%s9] sm:$0x1]
      %v1419 = vlaneseq
      %v1420 = vshrl.u32 %v1419, 7
      %v1421 = vsub.s32 0, %v1420
      %v1422 = vrot.slane %v1417, %v1421
      %v1424 = vadd.f32 %v1411, %v1422
      %v1425 = vadd.f32 %v1414, %v1422
      %v1426 = vadd.f32 %v591, %v1424
      %v1427 = vadd.f32 %v592, %v1425
      %v1428 = vld [vmem:[%s10] sm:$0x1]
      %v1429 = vld [vmem:[%s11] sm:$0x1]
      %v1430 = vsel %vm618, %v1426, 0.0
      %1431 = vadd.xlane.f32.xlu0 %v1430
      %v1432 = vpop.xlane.xlu0 %1431
      %v1433 = vsel %vm618, %v1427, 0.0
      %1434 = vadd.xlane.f32.xlu0 %v1433
      %v1435 = vpop.xlane.xlu0 %1434
      %v1436 = vrcp.pop 32.0
      %v1437 = vmul.f32 %v1432, %v1436
      %v1438 = vmul.f32 %v1435, %v1436
      %v1439 = vsub.f32 %v1426, %v1437
      %v1440 = vsub.f32 %v1427, %v1438
      %v1441 = vmul.f32 %v1439, %v1439
      %v1442 = vmul.f32 %v1440, %v1440
      %v1443 = vsel %vm618, %v1441, 0.0
      %1444 = vadd.xlane.f32.xlu0 %v1443
      %v1445 = vpop.xlane.xlu0 %1444
      %v1446 = vsel %vm618, %v1442, 0.0
      %1447 = vadd.xlane.f32.xlu0 %v1446
      %v1448 = vpop.xlane.xlu0 %1447
      %v1449 = vmul.f32 %v1445, %v1436
      %v1450 = vmul.f32 %v1448, %v1436
      %v1451 = vadd.f32 %v1449, 1e-05
      %v1452 = vadd.f32 %v1450, 1e-05
      %v1453 = vrsqrt.pop %v1451
      %v1454 = vrsqrt.pop %v1452
      %v1455 = vmul.f32 %v1439, %v1453
      %v1456 = vmul.f32 %v1440, %v1454
      %v1458 = vlaneseq
      %v1459 = vshrl.u32 %v1458, 7
      %v1460 = vsub.s32 0, %v1459
      %v1461 = vrot.slane %v1428, %v1460
      %v1463 = vmul.f32 %v1455, %v1461
      %v1464 = vmul.f32 %v1456, %v1461
      %v1466 = vlaneseq
      %v1467 = vshrl.u32 %v1466, 7
      %v1468 = vsub.s32 0, %v1467
      %v1469 = vrot.slane %v1429, %v1468
      %v1471 = vadd.f32 %v1463, %v1469
      %v1472 = vadd.f32 %v1464, %v1469
      %v1473 = vpack.c.bf16 %v1472, %v1471
      %v1474 = vld [vmem:[%s12] sm:$0xf]
      %v1475 = vld [vmem:[%s12 + $0x4] sm:$0xf]
      %v1476 = vld [vmem:[%s12 + $0x8] sm:$0xf]
      %v1477 = vld [vmem:[%s12 + $0xc] sm:$0xf]
      %v1478 = vld [vmem:[%s13] sm:$0x1]
      %v1480 = vlaneseq
      %v1481 = vshrl.u32 %v1480, 7
      %v1482 = vsub.s32 0, %v1481
      %v1483 = vrot.slane %v1478, %v1482
      %v1489 = vunpack.c.l.b16 %v1474
      %v1490 = vunpack.c.l.b16 %v1475
      %v1491 = vunpack.c.l.b16 %v1476
      %v1492 = vunpack.c.l.b16 %v1477
      %v1493 = vpack.c.b16 %v1490, %v1489
      %v1494 = vpack.c.b16 %v1492, %v1491
      %v1498 = vsel %vm618, %v1473, 0
      %1500 = vmatprep.subr.bf16.mxu0 0
      %1501 = vmatpush1.bf16.msra.mxu0 0
      %1502 = vmatprep.subr.bf16.mxu0 0
      %1503 = vmatpush1.bf16.msra.mxu0 0
      %1504 = vmatprep.subr.bf16.mxu0 0
      %1505 = vmatpush1.bf16.msra.mxu0 0
      %1506 = vmatprep.subr.bf16.mxu0 0
      %1507 = vmatpush1.bf16.msra.mxu0 0
      %1508 = vmatprep.subr.bf16.mxu0 0
      %1509 = vmatpush1.bf16.msra.mxu0 0
      %1510 = vmatprep.subr.bf16.mxu0 0
      %1511 = vmatpush1.bf16.msra.mxu0 0
      %1512 = vmatprep.subr.bf16.mxu0 0
      %1513 = vmatpush1.bf16.msra.mxu0 %v1494
      %1514 = vmatprep.subr.bf16.mxu0 0
      %1515 = vmatpush1.bf16.msra.mxu0 %v1493
      %1516 = vmatprep.subr.bf16.mxu0 0
      %1517 = vmatpush2.bf16.msra.mxu0 0
      %1518 = vmatprep.subr.bf16.mxu0 0
      %1519 = vmatpush2.bf16.msra.mxu0 0
      %1520 = vmatprep.subr.bf16.mxu0 0
      %1521 = vmatpush2.bf16.msra.mxu0 0
      %1522 = vmatprep.subr.bf16.mxu0 0
      %1523 = vmatpush2.bf16.msra.mxu0 0
      %1524 = vmatprep.subr.bf16.mxu0 0
      %1525 = vmatpush2.bf16.msra.mxu0 0
      %1526 = vmatprep.subr.bf16.mxu0 0
      %1527 = vmatpush2.bf16.msra.mxu0 0
      %1528 = vmatprep.subr.bf16.mxu0 0
      %1529 = vmatpush2.bf16.msra.mxu0 0
      %1530 = vmatprep.subr.bf16.mxu0 0
      %1531 = vmatpush2.bf16.msra.mxu0 0
      %1532 = vmatprep.mubr.bf16.mxu0 0
      %1533 = vmatmul.mubr.bf16.gmra.mxu0 %v1498
      %v1534 = vpop.f32.mrf.mxu0
      %v1535 = vadd.f32 %v1483, %v1534
      %v1536 = vpop.f32.mrf.mxu0
      %v1537 = vpop.f32.mrf.mxu0
      %v1538 = vadd.f32 %v1483, %v1537
      %v1539 = vpop.f32.mrf.mxu0
      %1540 = vdwg.mxu0
      %v1541 = vmax.f32 %v1535, 0.0
      %v1542 = vmax.f32 %v1538, 0.0
      %v1543 = vpack.c.bf16 %v1542, %v1541
      %v1544 = vld [vmem:[%s14] sm:$0xf]
      %v1545 = vld [vmem:[%s14 + $0x4] sm:$0xf]
      %v1546 = vld [vmem:[%s14 + $0x8] sm:$0xf]
      %v1547 = vld [vmem:[%s14 + $0xc] sm:$0xf]
      %v1548 = vld [vmem:[%s14 + $0x10] sm:$0xf]
      %v1549 = vld [vmem:[%s14 + $0x14] sm:$0xf]
      %v1550 = vld [vmem:[%s14 + $0x18] sm:$0xf]
      %v1551 = vld [vmem:[%s14 + $0x1c] sm:$0xf]
      %v1552 = vld [vmem:[%s15] sm:$0x1]
      %v1554 = vlaneseq
      %v1555 = vshrl.u32 %v1554, 7
      %v1556 = vsub.s32 0, %v1555
      %v1557 = vrot.slane %v1552, %v1556
      %v1567 = vunpack.c.l.b16 %v1544
      %v1568 = vunpack.c.l.b16 %v1545
      %v1569 = vunpack.c.l.b16 %v1546
      %v1570 = vunpack.c.l.b16 %v1547
      %v1571 = vunpack.c.l.b16 %v1548
      %v1572 = vunpack.c.l.b16 %v1549
      %v1573 = vunpack.c.l.b16 %v1550
      %v1574 = vunpack.c.l.b16 %v1551
      %v1575 = vpack.c.b16 %v1568, %v1567
      %v1576 = vpack.c.b16 %v1570, %v1569
      %v1577 = vpack.c.b16 %v1572, %v1571
      %v1578 = vpack.c.b16 %v1574, %v1573
      %vm1583 = vcmask 523264
      %v1585 = vsel %vm1583, %v1543, 0
      %1587 = vmatprep.subr.bf16.mxu0 0
      %1588 = vmatpush1.bf16.msra.mxu0 0
      %1589 = vmatprep.subr.bf16.mxu0 0
      %1590 = vmatpush1.bf16.msra.mxu0 0
      %1591 = vmatprep.subr.bf16.mxu0 0
      %1592 = vmatpush1.bf16.msra.mxu0 0
      %1593 = vmatprep.subr.bf16.mxu0 0
      %1594 = vmatpush1.bf16.msra.mxu0 0
      %1595 = vmatprep.subr.bf16.mxu0 0
      %1596 = vmatpush1.bf16.msra.mxu0 %v1578
      %1597 = vmatprep.subr.bf16.mxu0 0
      %1598 = vmatpush1.bf16.msra.mxu0 %v1577
      %1599 = vmatprep.subr.bf16.mxu0 0
      %1600 = vmatpush1.bf16.msra.mxu0 %v1576
      %1601 = vmatprep.subr.bf16.mxu0 0
      %1602 = vmatpush1.bf16.msra.mxu0 %v1575
      %1603 = vmatprep.subr.bf16.mxu0 0
      %1604 = vmatpush2.bf16.msra.mxu0 0
      %1605 = vmatprep.subr.bf16.mxu0 0
      %1606 = vmatpush2.bf16.msra.mxu0 0
      %1607 = vmatprep.subr.bf16.mxu0 0
      %1608 = vmatpush2.bf16.msra.mxu0 0
      %1609 = vmatprep.subr.bf16.mxu0 0
      %1610 = vmatpush2.bf16.msra.mxu0 0
      %1611 = vmatprep.subr.bf16.mxu0 0
      %1612 = vmatpush2.bf16.msra.mxu0 0
      %1613 = vmatprep.subr.bf16.mxu0 0
      %1614 = vmatpush2.bf16.msra.mxu0 0
      %1615 = vmatprep.subr.bf16.mxu0 0
      %1616 = vmatpush2.bf16.msra.mxu0 0
      %1617 = vmatprep.subr.bf16.mxu0 0
      %1618 = vmatpush2.bf16.msra.mxu0 0
      %1619 = vmatprep.mubr.bf16.mxu0 0
      %1620 = vmatmul.mubr.bf16.gmra.mxu0 %v1585
      %v1621 = vpop.f32.mrf.mxu0
      %v1622 = vadd.f32 %v1557, %v1621
      %v1623 = vpop.f32.mrf.mxu0
      %v1624 = vpop.f32.mrf.mxu0
      %v1625 = vadd.f32 %v1557, %v1624
      %v1626 = vpop.f32.mrf.mxu0
      %1627 = vdwg.mxu0
      %v1628 = vadd.f32 %v1471, %v1622
      %v1629 = vadd.f32 %v1472, %v1625
      %v1630 = vld [vmem:[%s16] sm:$0x1]
      %v1631 = vld [vmem:[%s17] sm:$0x1]
      %v1632 = vsel %vm618, %v1628, 0.0
      %1633 = vadd.xlane.f32.xlu0 %v1632
      %v1634 = vpop.xlane.xlu0 %1633
      %v1635 = vsel %vm618, %v1629, 0.0
      %1636 = vadd.xlane.f32.xlu0 %v1635
      %v1637 = vpop.xlane.xlu0 %1636
      %v1638 = vmul.f32 %v1634, %v1436
      %v1639 = vmul.f32 %v1637, %v1436
      %v1640 = vsub.f32 %v1628, %v1638
      %v1641 = vsub.f32 %v1629, %v1639
      %v1642 = vmul.f32 %v1640, %v1640
      %v1643 = vmul.f32 %v1641, %v1641
      %v1644 = vsel %vm618, %v1642, 0.0
      %1645 = vadd.xlane.f32.xlu0 %v1644
      %v1646 = vpop.xlane.xlu0 %1645
      %v1647 = vsel %vm618, %v1643, 0.0
      %1648 = vadd.xlane.f32.xlu0 %v1647
      %v1649 = vpop.xlane.xlu0 %1648
      %v1650 = vmul.f32 %v1646, %v1436
      %v1651 = vmul.f32 %v1649, %v1436
      %v1652 = vadd.f32 %v1650, 1e-05
      %v1653 = vadd.f32 %v1651, 1e-05
      %v1654 = vrsqrt.pop %v1652
      %v1655 = vrsqrt.pop %v1653
      %v1656 = vmul.f32 %v1640, %v1654
      %v1657 = vmul.f32 %v1641, %v1655
      %v1659 = vlaneseq
      %v1660 = vshrl.u32 %v1659, 7
      %v1661 = vsub.s32 0, %v1660
      %v1662 = vrot.slane %v1630, %v1661
      %v1664 = vmul.f32 %v1656, %v1662
      %v1665 = vmul.f32 %v1657, %v1662
      %v1667 = vlaneseq
      %v1668 = vshrl.u32 %v1667, 7
      %v1669 = vsub.s32 0, %v1668
      %v1670 = vrot.slane %v1631, %v1669
      %v1672 = vadd.f32 %v1664, %v1670
      %v1673 = vadd.f32 %v1665, %v1670
      %1674 = vst.msk [vmem:[%s589] sm:$0xff] %vm618, %v1672
      %1675 = vst.msk [vmem:[%s589 + $0x8] sm:$0xff] %vm618, %v1673
      %p1676 = scmp.lt.s32.totalorder %s29, 1
      %s1677 = scalar_select %p1676, %s29, 1
      %s1678 = smul.addr %s1677, 2
      %s1679 = smul.addr %s1678, 8
      %s1680 = scalar_lea.vmem %s18, %s1679
      // Predicated region
      $region93: #{fwd.7} parent=91 // pred_check
        %p1681 = pneg %p435
      $region94: #{fwd.7} parent=91 // pred_check_branch
        %1683 = sbr.rel (%p1681) target = $region96
      $region95: #{fwd.7} parent=91 // pred_region
        _
      $region96: #{fwd.7} parent=91 // pred_fallthru
        _
    $region92: #{fwd.7} parent=5 // pred_fallthru
      _
    %p1684 = scmp.le.s32.totalorder 2, %s24
    // Predicated region
    $region97: #{fwd.7} parent=5 // pred_check
      %p1685 = pneg %p1684
    $region98: #{fwd.7} parent=5 // pred_check_branch
      %1687 = sbr.rel (%p1685) target = $region100
    $region99: #{fwd.7} parent=5 // pred_region
      %s1688 = ssub.s32 %s24, 2
      // Predicated region
      $region101: #{fwd.7} parent=99 // pred_check
        %p1689 = pneg %p441
      $region102: #{fwd.7} parent=99 // pred_check_branch
        %1691 = sbr.rel (%p1689) target = $region104
      $region103: #{fwd.7} parent=99 // pred_region
        %p1692 = scmp.lt.s32.totalorder %s30, 1
        %s1693 = scalar_select %p1692, %s30, 1
        %s1694 = smul.addr %s1693, 2
        %s1695 = smul.addr %s1694, 8
        %s1696 = scalar_lea.vmem %s18, %s1695
      $region104: #{fwd.7} parent=99 // pred_fallthru
        _
    $region100: #{fwd.7} parent=5 // pred_fallthru
      _
  $region6: #{fwd.7} parent=0 // loop_footer
    %s28 = sadd.s32 1, %s24
  $region7: #{fwd.7} parent=0 // loop_footer_branch
    %23 = sbr.rel target = $region3
  $region8: #{fwd.7} parent=0 // loop_exit
    _

// kernel: fwd.8
$region0: #{fwd.8}
  #allocation0 [shape = 'u32[]', space=smem, size = 0x4, offset = 0x4, fixed_abs, tag = 'smem constant byte address 0x4 - core index']
  #allocation1 [shape = 'u32[144,128]{1,0:T(1,128)}', space=vmem, size = 0x12000, scoped, tag = 'internal scratch']
  %s0 = inlined_call_operand.vmem [shape: f32[2,16,32], index: 0, kind: input, shape index: {}]
  %s1 = inlined_call_operand.vmem [shape: f32[2,1,16], index: 1, kind: input, shape index: {}]
  %s2 = inlined_call_operand.vmem [shape: bf16[2,32,16], index: 2, kind: input, shape index: {}]
  %s3 = inlined_call_operand.vmem [shape: f32[2,1,16], index: 3, kind: input, shape index: {}]
  %s4 = inlined_call_operand.vmem [shape: bf16[2,32,16], index: 4, kind: input, shape index: {}]
  %s5 = inlined_call_operand.vmem [shape: f32[2,1,16], index: 5, kind: input, shape index: {}]
  %s6 = inlined_call_operand.vmem [shape: bf16[2,32,16], index: 6, kind: input, shape index: {}]
  %s7 = inlined_call_operand.vmem [shape: f32[2,1,16], index: 7, kind: input, shape index: {}]
  %s8 = inlined_call_operand.vmem [shape: bf16[2,16,32], index: 8, kind: input, shape index: {}]
  %s9 = inlined_call_operand.vmem [shape: f32[1,32], index: 9, kind: input, shape index: {}]
  %s10 = inlined_call_operand.vmem [shape: f32[1,32], index: 10, kind: input, shape index: {}]
  %s11 = inlined_call_operand.vmem [shape: f32[1,32], index: 11, kind: input, shape index: {}]
  %s12 = inlined_call_operand.vmem [shape: bf16[32,64], index: 12, kind: input, shape index: {}]
  %s13 = inlined_call_operand.vmem [shape: f32[1,64], index: 13, kind: input, shape index: {}]
  %s14 = inlined_call_operand.vmem [shape: bf16[64,32], index: 14, kind: input, shape index: {}]
  %s15 = inlined_call_operand.vmem [shape: f32[1,32], index: 15, kind: input, shape index: {}]
  %s16 = inlined_call_operand.vmem [shape: f32[1,32], index: 16, kind: input, shape index: {}]
  %s17 = inlined_call_operand.vmem [shape: f32[1,32], index: 17, kind: input, shape index: {}]
  %s18 = inlined_call_operand.vmem [shape: bf16[32,20], index: 18, kind: input, shape index: {}]
  %s19 = inlined_call_operand.vmem [shape: f32[1,20], index: 19, kind: input, shape index: {}]
  %s20 = inlined_call_operand.vmem [shape: f32[2,16,20], index: 20, kind: output, shape index: {}]
  %s21 = sld [smem:[#allocation0]]
  $region113: #{fwd.8} parent=0
    _
  %s23 = ssub.s32 1, %s21
  %s24 = scalar_select 0, %s23, %s21
  loop: start=0, step=1, limit=4
  $region2: #{fwd.8} parent=0 // loop_pre_header
    _
  $region3: #{fwd.8} parent=0 // loop_header
    %s26 = sphi 0, %s30
    %p27 = scmp.ge.s32.totalorder %s26, 4
    %s36 = sphi 0, %s38
    %s39 = sphi 0, %s36
    %s40 = sphi 0, %s39
    %s56 = sphi 0, %s40
    %s62 = sphi 0, %s64
    %s65 = sphi 0, %s62
    %s66 = sphi 0, %s65
    %s82 = sphi 0, %s66
    %s86 = sphi 0, %s86
    %s88 = sphi 0, %s86
    %s89 = sphi 0, %s88
    %s103 = sphi 0, %s89
    %s107 = sphi 0, %s107
    %s109 = sphi 0, %s107
    %s110 = sphi 0, %s109
    %s124 = sphi 0, %s110
    %s128 = sphi 0, %s128
    %s130 = sphi 0, %s128
    %s131 = sphi 0, %s130
    %s145 = sphi 0, %s131
    %s149 = sphi 0, %s149
    %s151 = sphi 0, %s149
    %s152 = sphi 0, %s151
    %s166 = sphi 0, %s152
    %s170 = sphi 0, %s170
    %s172 = sphi 0, %s170
    %s173 = sphi 0, %s172
    %s187 = sphi 0, %s173
    %s191 = sphi 0, %s191
    %s193 = sphi 0, %s191
    %s194 = sphi 0, %s193
    %s208 = sphi 0, %s194
    %s212 = sphi 0, %s212
    %s214 = sphi 0, %s212
    %s215 = sphi 0, %s214
    %s229 = sphi 0, %s215
    %s233 = sphi 0, %s233
    %s235 = sphi 0, %s233
    %s236 = sphi 0, %s235
    %s250 = sphi 0, %s236
    %s254 = sphi 0, %s254
    %s256 = sphi 0, %s254
    %s257 = sphi 0, %s256
    %s271 = sphi 0, %s257
    %s275 = sphi 0, %s275
    %s277 = sphi 0, %s275
    %s278 = sphi 0, %s277
    %s292 = sphi 0, %s278
    %s296 = sphi 0, %s296
    %s298 = sphi 0, %s296
    %s299 = sphi 0, %s298
    %s313 = sphi 0, %s299
    %s317 = sphi 0, %s317
    %s319 = sphi 0, %s317
    %s320 = sphi 0, %s319
    %s334 = sphi 0, %s320
    %s338 = sphi 0, %s338
    %s340 = sphi 0, %s338
    %s341 = sphi 0, %s340
    %s355 = sphi 0, %s341
    %s359 = sphi 0, %s359
    %s361 = sphi 0, %s359
    %s362 = sphi 0, %s361
    %s376 = sphi 0, %s362
    %s380 = sphi 0, %s380
    %s382 = sphi 0, %s380
    %s383 = sphi 0, %s382
    %s397 = sphi 0, %s383
    %s401 = sphi 0, %s401
    %s403 = sphi 0, %s401
    %s404 = sphi 0, %s403
    %s418 = sphi 0, %s404
    %s422 = sphi 0, %s422
    %s424 = sphi 0, %s422
    %s425 = sphi 0, %s424
    %s439 = sphi 0, %s425
    %s443 = sphi 0, %s443
    %s445 = sphi 0, %s443
    %s446 = sphi 0, %s445
    %s460 = sphi 0, %s446
    %s466 = sphi 0, %s468
    %s469 = sphi 0, %s466
    %s470 = sphi 0, %s469
    %s486 = sphi 0, %s470
  $region4: #{fwd.8} parent=0 // loop_header_branch
    %29 = sbr.rel (%p27) target = $region8
  $region5: #{fwd.8} parent=0 // loop_body
    %s31 = ssub.s32 %s26, 1
    %s32 = ssub.s32 %s26, 2
    %s33 = sadd.s32 %s26, 1
    %s34 = ssub.s32 %s26, %s33
    %p35 = scmp.eq.s32.totalorder %s34, 0
    %s37 = sadd.s32 %s36, 1
    %s38 = scalar_select %p35, %s36, %s37
    %p41 = pneg %p35
    %p42 = scmp.eq.s32.totalorder %s26, 1
    %p43 = por %p41, %p42
    %p44 = scmp.ne.s32.totalorder %s36, %s39
    %p45 = scmp.eq.s32.totalorder %s26, 0
    %p46 = por %p44, %p45
    %p47 = scmp.ne.s32.totalorder %s36, %s39
    %p48 = scmp.eq.s32.totalorder %s31, 1
    %p49 = por %p47, %p48
    %p50 = scmp.ne.s32.totalorder %s39, %s40
    %p51 = scmp.eq.s32.totalorder %s31, 0
    %p52 = por %p50, %p51
    %p53 = scmp.ne.s32.totalorder %s39, %s40
    %p54 = scmp.eq.s32.totalorder %s32, 1
    %p55 = por %p53, %p54
    %p57 = scmp.ne.s32.totalorder %s40, %s56
    %p58 = scmp.eq.s32.totalorder %s32, 0
    %p59 = por %p57, %p58
    %s60 = ssub.s32 %s26, %s33
    %p61 = scmp.eq.s32.totalorder %s60, 0
    %s63 = sadd.s32 %s62, 1
    %s64 = scalar_select %p61, %s62, %s63
    %p67 = pneg %p61
    %p68 = scmp.eq.s32.totalorder %s26, 1
    %p69 = por %p67, %p68
    %p70 = scmp.ne.s32.totalorder %s62, %s65
    %p71 = scmp.eq.s32.totalorder %s26, 0
    %p72 = por %p70, %p71
    %p73 = scmp.ne.s32.totalorder %s62, %s65
    %p74 = scmp.eq.s32.totalorder %s31, 1
    %p75 = por %p73, %p74
    %p76 = scmp.ne.s32.totalorder %s65, %s66
    %p77 = scmp.eq.s32.totalorder %s31, 0
    %p78 = por %p76, %p77
    %p79 = scmp.ne.s32.totalorder %s65, %s66
    %p80 = scmp.eq.s32.totalorder %s32, 1
    %p81 = por %p79, %p80
    %p83 = scmp.ne.s32.totalorder %s66, %s82
    %p84 = scmp.eq.s32.totalorder %s32, 0
    %p85 = por %p83, %p84
    %s87 = sadd.s32 %s86, 1
    %p90 = scmp.eq.s32.totalorder %s26, 1
    %p91 = scmp.ne.s32.totalorder %s86, %s88
    %p92 = scmp.eq.s32.totalorder %s26, 0
    %p93 = por %p91, %p92
    %p94 = scmp.ne.s32.totalorder %s86, %s88
    %p95 = scmp.eq.s32.totalorder %s31, 1
    %p96 = por %p94, %p95
    %p97 = scmp.ne.s32.totalorder %s88, %s89
    %p98 = scmp.eq.s32.totalorder %s31, 0
    %p99 = por %p97, %p98
    %p100 = scmp.ne.s32.totalorder %s88, %s89
    %p101 = scmp.eq.s32.totalorder %s32, 1
    %p102 = por %p100, %p101
    %p104 = scmp.ne.s32.totalorder %s89, %s103
    %p105 = scmp.eq.s32.totalorder %s32, 0
    %p106 = por %p104, %p105
    %s108 = sadd.s32 %s107, 1
    %p111 = scmp.eq.s32.totalorder %s26, 1
    %p112 = scmp.ne.s32.totalorder %s107, %s109
    %p113 = scmp.eq.s32.totalorder %s26, 0
    %p114 = por %p112, %p113
    %p115 = scmp.ne.s32.totalorder %s107, %s109
    %p116 = scmp.eq.s32.totalorder %s31, 1
    %p117 = por %p115, %p116
    %p118 = scmp.ne.s32.totalorder %s109, %s110
    %p119 = scmp.eq.s32.totalorder %s31, 0
    %p120 = por %p118, %p119
    %p121 = scmp.ne.s32.totalorder %s109, %s110
    %p122 = scmp.eq.s32.totalorder %s32, 1
    %p123 = por %p121, %p122
    %p125 = scmp.ne.s32.totalorder %s110, %s124
    %p126 = scmp.eq.s32.totalorder %s32, 0
    %p127 = por %p125, %p126
    %s129 = sadd.s32 %s128, 1
    %p132 = scmp.eq.s32.totalorder %s26, 1
    %p133 = scmp.ne.s32.totalorder %s128, %s130
    %p134 = scmp.eq.s32.totalorder %s26, 0
    %p135 = por %p133, %p134
    %p136 = scmp.ne.s32.totalorder %s128, %s130
    %p137 = scmp.eq.s32.totalorder %s31, 1
    %p138 = por %p136, %p137
    %p139 = scmp.ne.s32.totalorder %s130, %s131
    %p140 = scmp.eq.s32.totalorder %s31, 0
    %p141 = por %p139, %p140
    %p142 = scmp.ne.s32.totalorder %s130, %s131
    %p143 = scmp.eq.s32.totalorder %s32, 1
    %p144 = por %p142, %p143
    %p146 = scmp.ne.s32.totalorder %s131, %s145
    %p147 = scmp.eq.s32.totalorder %s32, 0
    %p148 = por %p146, %p147
    %s150 = sadd.s32 %s149, 1
    %p153 = scmp.eq.s32.totalorder %s26, 1
    %p154 = scmp.ne.s32.totalorder %s149, %s151
    %p155 = scmp.eq.s32.totalorder %s26, 0
    %p156 = por %p154, %p155
    %p157 = scmp.ne.s32.totalorder %s149, %s151
    %p158 = scmp.eq.s32.totalorder %s31, 1
    %p159 = por %p157, %p158
    %p160 = scmp.ne.s32.totalorder %s151, %s152
    %p161 = scmp.eq.s32.totalorder %s31, 0
    %p162 = por %p160, %p161
    %p163 = scmp.ne.s32.totalorder %s151, %s152
    %p164 = scmp.eq.s32.totalorder %s32, 1
    %p165 = por %p163, %p164
    %p167 = scmp.ne.s32.totalorder %s152, %s166
    %p168 = scmp.eq.s32.totalorder %s32, 0
    %p169 = por %p167, %p168
    %s171 = sadd.s32 %s170, 1
    %p174 = scmp.eq.s32.totalorder %s26, 1
    %p175 = scmp.ne.s32.totalorder %s170, %s172
    %p176 = scmp.eq.s32.totalorder %s26, 0
    %p177 = por %p175, %p176
    %p178 = scmp.ne.s32.totalorder %s170, %s172
    %p179 = scmp.eq.s32.totalorder %s31, 1
    %p180 = por %p178, %p179
    %p181 = scmp.ne.s32.totalorder %s172, %s173
    %p182 = scmp.eq.s32.totalorder %s31, 0
    %p183 = por %p181, %p182
    %p184 = scmp.ne.s32.totalorder %s172, %s173
    %p185 = scmp.eq.s32.totalorder %s32, 1
    %p186 = por %p184, %p185
    %p188 = scmp.ne.s32.totalorder %s173, %s187
    %p189 = scmp.eq.s32.totalorder %s32, 0
    %p190 = por %p188, %p189
    %s192 = sadd.s32 %s191, 1
    %p195 = scmp.eq.s32.totalorder %s26, 1
    %p196 = scmp.ne.s32.totalorder %s191, %s193
    %p197 = scmp.eq.s32.totalorder %s26, 0
    %p198 = por %p196, %p197
    %p199 = scmp.ne.s32.totalorder %s191, %s193
    %p200 = scmp.eq.s32.totalorder %s31, 1
    %p201 = por %p199, %p200
    %p202 = scmp.ne.s32.totalorder %s193, %s194
    %p203 = scmp.eq.s32.totalorder %s31, 0
    %p204 = por %p202, %p203
    %p205 = scmp.ne.s32.totalorder %s193, %s194
    %p206 = scmp.eq.s32.totalorder %s32, 1
    %p207 = por %p205, %p206
    %p209 = scmp.ne.s32.totalorder %s194, %s208
    %p210 = scmp.eq.s32.totalorder %s32, 0
    %p211 = por %p209, %p210
    %s213 = sadd.s32 %s212, 1
    %p216 = scmp.eq.s32.totalorder %s26, 1
    %p217 = scmp.ne.s32.totalorder %s212, %s214
    %p218 = scmp.eq.s32.totalorder %s26, 0
    %p219 = por %p217, %p218
    %p220 = scmp.ne.s32.totalorder %s212, %s214
    %p221 = scmp.eq.s32.totalorder %s31, 1
    %p222 = por %p220, %p221
    %p223 = scmp.ne.s32.totalorder %s214, %s215
    %p224 = scmp.eq.s32.totalorder %s31, 0
    %p225 = por %p223, %p224
    %p226 = scmp.ne.s32.totalorder %s214, %s215
    %p227 = scmp.eq.s32.totalorder %s32, 1
    %p228 = por %p226, %p227
    %p230 = scmp.ne.s32.totalorder %s215, %s229
    %p231 = scmp.eq.s32.totalorder %s32, 0
    %p232 = por %p230, %p231
    %s234 = sadd.s32 %s233, 1
    %p237 = scmp.eq.s32.totalorder %s26, 1
    %p238 = scmp.ne.s32.totalorder %s233, %s235
    %p239 = scmp.eq.s32.totalorder %s26, 0
    %p240 = por %p238, %p239
    %p241 = scmp.ne.s32.totalorder %s233, %s235
    %p242 = scmp.eq.s32.totalorder %s31, 1
    %p243 = por %p241, %p242
    %p244 = scmp.ne.s32.totalorder %s235, %s236
    %p245 = scmp.eq.s32.totalorder %s31, 0
    %p246 = por %p244, %p245
    %p247 = scmp.ne.s32.totalorder %s235, %s236
    %p248 = scmp.eq.s32.totalorder %s32, 1
    %p249 = por %p247, %p248
    %p251 = scmp.ne.s32.totalorder %s236, %s250
    %p252 = scmp.eq.s32.totalorder %s32, 0
    %p253 = por %p251, %p252
    %s255 = sadd.s32 %s254, 1
    %p258 = scmp.eq.s32.totalorder %s26, 1
    %p259 = scmp.ne.s32.totalorder %s254, %s256
    %p260 = scmp.eq.s32.totalorder %s26, 0
    %p261 = por %p259, %p260
    %p262 = scmp.ne.s32.totalorder %s254, %s256
    %p263 = scmp.eq.s32.totalorder %s31, 1
    %p264 = por %p262, %p263
    %p265 = scmp.ne.s32.totalorder %s256, %s257
    %p266 = scmp.eq.s32.totalorder %s31, 0
    %p267 = por %p265, %p266
    %p268 = scmp.ne.s32.totalorder %s256, %s257
    %p269 = scmp.eq.s32.totalorder %s32, 1
    %p270 = por %p268, %p269
    %p272 = scmp.ne.s32.totalorder %s257, %s271
    %p273 = scmp.eq.s32.totalorder %s32, 0
    %p274 = por %p272, %p273
    %s276 = sadd.s32 %s275, 1
    %p279 = scmp.eq.s32.totalorder %s26, 1
    %p280 = scmp.ne.s32.totalorder %s275, %s277
    %p281 = scmp.eq.s32.totalorder %s26, 0
    %p282 = por %p280, %p281
    %p283 = scmp.ne.s32.totalorder %s275, %s277
    %p284 = scmp.eq.s32.totalorder %s31, 1
    %p285 = por %p283, %p284
    %p286 = scmp.ne.s32.totalorder %s277, %s278
    %p287 = scmp.eq.s32.totalorder %s31, 0
    %p288 = por %p286, %p287
    %p289 = scmp.ne.s32.totalorder %s277, %s278
    %p290 = scmp.eq.s32.totalorder %s32, 1
    %p291 = por %p289, %p290
    %p293 = scmp.ne.s32.totalorder %s278, %s292
    %p294 = scmp.eq.s32.totalorder %s32, 0
    %p295 = por %p293, %p294
    %s297 = sadd.s32 %s296, 1
    %p300 = scmp.eq.s32.totalorder %s26, 1
    %p301 = scmp.ne.s32.totalorder %s296, %s298
    %p302 = scmp.eq.s32.totalorder %s26, 0
    %p303 = por %p301, %p302
    %p304 = scmp.ne.s32.totalorder %s296, %s298
    %p305 = scmp.eq.s32.totalorder %s31, 1
    %p306 = por %p304, %p305
    %p307 = scmp.ne.s32.totalorder %s298, %s299
    %p308 = scmp.eq.s32.totalorder %s31, 0
    %p309 = por %p307, %p308
    %p310 = scmp.ne.s32.totalorder %s298, %s299
    %p311 = scmp.eq.s32.totalorder %s32, 1
    %p312 = por %p310, %p311
    %p314 = scmp.ne.s32.totalorder %s299, %s313
    %p315 = scmp.eq.s32.totalorder %s32, 0
    %p316 = por %p314, %p315
    %s318 = sadd.s32 %s317, 1
    %p321 = scmp.eq.s32.totalorder %s26, 1
    %p322 = scmp.ne.s32.totalorder %s317, %s319
    %p323 = scmp.eq.s32.totalorder %s26, 0
    %p324 = por %p322, %p323
    %p325 = scmp.ne.s32.totalorder %s317, %s319
    %p326 = scmp.eq.s32.totalorder %s31, 1
    %p327 = por %p325, %p326
    %p328 = scmp.ne.s32.totalorder %s319, %s320
    %p329 = scmp.eq.s32.totalorder %s31, 0
    %p330 = por %p328, %p329
    %p331 = scmp.ne.s32.totalorder %s319, %s320
    %p332 = scmp.eq.s32.totalorder %s32, 1
    %p333 = por %p331, %p332
    %p335 = scmp.ne.s32.totalorder %s320, %s334
    %p336 = scmp.eq.s32.totalorder %s32, 0
    %p337 = por %p335, %p336
    %s339 = sadd.s32 %s338, 1
    %p342 = scmp.eq.s32.totalorder %s26, 1
    %p343 = scmp.ne.s32.totalorder %s338, %s340
    %p344 = scmp.eq.s32.totalorder %s26, 0
    %p345 = por %p343, %p344
    %p346 = scmp.ne.s32.totalorder %s338, %s340
    %p347 = scmp.eq.s32.totalorder %s31, 1
    %p348 = por %p346, %p347
    %p349 = scmp.ne.s32.totalorder %s340, %s341
    %p350 = scmp.eq.s32.totalorder %s31, 0
    %p351 = por %p349, %p350
    %p352 = scmp.ne.s32.totalorder %s340, %s341
    %p353 = scmp.eq.s32.totalorder %s32, 1
    %p354 = por %p352, %p353
    %p356 = scmp.ne.s32.totalorder %s341, %s355
    %p357 = scmp.eq.s32.totalorder %s32, 0
    %p358 = por %p356, %p357
    %s360 = sadd.s32 %s359, 1
    %p363 = scmp.eq.s32.totalorder %s26, 1
    %p364 = scmp.ne.s32.totalorder %s359, %s361
    %p365 = scmp.eq.s32.totalorder %s26, 0
    %p366 = por %p364, %p365
    %p367 = scmp.ne.s32.totalorder %s359, %s361
    %p368 = scmp.eq.s32.totalorder %s31, 1
    %p369 = por %p367, %p368
    %p370 = scmp.ne.s32.totalorder %s361, %s362
    %p371 = scmp.eq.s32.totalorder %s31, 0
    %p372 = por %p370, %p371
    %p373 = scmp.ne.s32.totalorder %s361, %s362
    %p374 = scmp.eq.s32.totalorder %s32, 1
    %p375 = por %p373, %p374
    %p377 = scmp.ne.s32.totalorder %s362, %s376
    %p378 = scmp.eq.s32.totalorder %s32, 0
    %p379 = por %p377, %p378
    %s381 = sadd.s32 %s380, 1
    %p384 = scmp.eq.s32.totalorder %s26, 1
    %p385 = scmp.ne.s32.totalorder %s380, %s382
    %p386 = scmp.eq.s32.totalorder %s26, 0
    %p387 = por %p385, %p386
    %p388 = scmp.ne.s32.totalorder %s380, %s382
    %p389 = scmp.eq.s32.totalorder %s31, 1
    %p390 = por %p388, %p389
    %p391 = scmp.ne.s32.totalorder %s382, %s383
    %p392 = scmp.eq.s32.totalorder %s31, 0
    %p393 = por %p391, %p392
    %p394 = scmp.ne.s32.totalorder %s382, %s383
    %p395 = scmp.eq.s32.totalorder %s32, 1
    %p396 = por %p394, %p395
    %p398 = scmp.ne.s32.totalorder %s383, %s397
    %p399 = scmp.eq.s32.totalorder %s32, 0
    %p400 = por %p398, %p399
    %s402 = sadd.s32 %s401, 1
    %p405 = scmp.eq.s32.totalorder %s26, 1
    %p406 = scmp.ne.s32.totalorder %s401, %s403
    %p407 = scmp.eq.s32.totalorder %s26, 0
    %p408 = por %p406, %p407
    %p409 = scmp.ne.s32.totalorder %s401, %s403
    %p410 = scmp.eq.s32.totalorder %s31, 1
    %p411 = por %p409, %p410
    %p412 = scmp.ne.s32.totalorder %s403, %s404
    %p413 = scmp.eq.s32.totalorder %s31, 0
    %p414 = por %p412, %p413
    %p415 = scmp.ne.s32.totalorder %s403, %s404
    %p416 = scmp.eq.s32.totalorder %s32, 1
    %p417 = por %p415, %p416
    %p419 = scmp.ne.s32.totalorder %s404, %s418
    %p420 = scmp.eq.s32.totalorder %s32, 0
    %p421 = por %p419, %p420
    %s423 = sadd.s32 %s422, 1
    %p426 = scmp.eq.s32.totalorder %s26, 1
    %p427 = scmp.ne.s32.totalorder %s422, %s424
    %p428 = scmp.eq.s32.totalorder %s26, 0
    %p429 = por %p427, %p428
    %p430 = scmp.ne.s32.totalorder %s422, %s424
    %p431 = scmp.eq.s32.totalorder %s31, 1
    %p432 = por %p430, %p431
    %p433 = scmp.ne.s32.totalorder %s424, %s425
    %p434 = scmp.eq.s32.totalorder %s31, 0
    %p435 = por %p433, %p434
    %p436 = scmp.ne.s32.totalorder %s424, %s425
    %p437 = scmp.eq.s32.totalorder %s32, 1
    %p438 = por %p436, %p437
    %p440 = scmp.ne.s32.totalorder %s425, %s439
    %p441 = scmp.eq.s32.totalorder %s32, 0
    %p442 = por %p440, %p441
    %s444 = sadd.s32 %s443, 1
    %p447 = scmp.eq.s32.totalorder %s26, 1
    %p448 = scmp.ne.s32.totalorder %s443, %s445
    %p449 = scmp.eq.s32.totalorder %s26, 0
    %p450 = por %p448, %p449
    %p451 = scmp.ne.s32.totalorder %s443, %s445
    %p452 = scmp.eq.s32.totalorder %s31, 1
    %p453 = por %p451, %p452
    %p454 = scmp.ne.s32.totalorder %s445, %s446
    %p455 = scmp.eq.s32.totalorder %s31, 0
    %p456 = por %p454, %p455
    %p457 = scmp.ne.s32.totalorder %s445, %s446
    %p458 = scmp.eq.s32.totalorder %s32, 1
    %p459 = por %p457, %p458
    %p461 = scmp.ne.s32.totalorder %s446, %s460
    %p462 = scmp.eq.s32.totalorder %s32, 0
    %p463 = por %p461, %p462
    %s464 = ssub.s32 %s26, %s33
    %p465 = scmp.eq.s32.totalorder %s464, 0
    %s467 = sadd.s32 %s466, 1
    %s468 = scalar_select %p465, %s466, %s467
    %p471 = pneg %p465
    %p472 = scmp.eq.s32.totalorder %s26, 1
    %p473 = por %p471, %p472
    %p474 = scmp.ne.s32.totalorder %s466, %s469
    %p475 = scmp.eq.s32.totalorder %s26, 0
    %p476 = por %p474, %p475
    %p477 = scmp.ne.s32.totalorder %s466, %s469
    %p478 = scmp.eq.s32.totalorder %s31, 1
    %p479 = por %p477, %p478
    %p480 = scmp.ne.s32.totalorder %s469, %s470
    %p481 = scmp.eq.s32.totalorder %s31, 0
    %p482 = por %p480, %p481
    %p483 = scmp.ne.s32.totalorder %s469, %s470
    %p484 = scmp.eq.s32.totalorder %s32, 1
    %p485 = por %p483, %p484
    %p487 = scmp.ne.s32.totalorder %s470, %s486
    %p488 = scmp.eq.s32.totalorder %s32, 0
    %p489 = por %p487, %p488
    %p490 = scmp.le.s32.totalorder 1, %s26
    %p491 = scmp.lt.s32.totalorder %s26, 3
    %p492 = pnand %p490, %p491
    %p493 = pneg %p492
    // Predicated region
    $region9: #{fwd.8} parent=5 // pred_check
      _
    $region10: #{fwd.8} parent=5 // pred_check_branch
      %495 = sbr.rel (%p492) target = $region12
    $region11: #{fwd.8} parent=5 // pred_region
      %s496 = ssub.s32 %s26, 1
      // Predicated region
      $region13: #{fwd.8} parent=11 // pred_check
        %p497 = pneg %p99
      $region14: #{fwd.8} parent=11 // pred_check_branch
        %499 = sbr.rel (%p497) target = $region16
      $region15: #{fwd.8} parent=11 // pred_region
        _
      $region16: #{fwd.8} parent=11 // pred_fallthru
        _
      // Predicated region
      $region17: #{fwd.8} parent=11 // pred_check
        %p500 = pneg %p120
      $region18: #{fwd.8} parent=11 // pred_check_branch
        %502 = sbr.rel (%p500) target = $region20
      $region19: #{fwd.8} parent=11 // pred_region
        _
      $region20: #{fwd.8} parent=11 // pred_fallthru
        _
      // Predicated region
      $region21: #{fwd.8} parent=11 // pred_check
        %p503 = pneg %p141
      $region22: #{fwd.8} parent=11 // pred_check_branch
        %505 = sbr.rel (%p503) target = $region24
      $region23: #{fwd.8} parent=11 // pred_region
        _
      $region24: #{fwd.8} parent=11 // pred_fallthru
        _
      // Predicated region
      $region25: #{fwd.8} parent=11 // pred_check
        %p506 = pneg %p162
      $region26: #{fwd.8} parent=11 // pred_check_branch
        %508 = sbr.rel (%p506) target = $region28
      $region27: #{fwd.8} parent=11 // pred_region
        _
      $region28: #{fwd.8} parent=11 // pred_fallthru
        _
      // Predicated region
      $region29: #{fwd.8} parent=11 // pred_check
        %p509 = pneg %p183
      $region30: #{fwd.8} parent=11 // pred_check_branch
        %511 = sbr.rel (%p509) target = $region32
      $region31: #{fwd.8} parent=11 // pred_region
        _
      $region32: #{fwd.8} parent=11 // pred_fallthru
        _
      // Predicated region
      $region33: #{fwd.8} parent=11 // pred_check
        %p512 = pneg %p204
      $region34: #{fwd.8} parent=11 // pred_check_branch
        %514 = sbr.rel (%p512) target = $region36
      $region35: #{fwd.8} parent=11 // pred_region
        _
      $region36: #{fwd.8} parent=11 // pred_fallthru
        _
      // Predicated region
      $region37: #{fwd.8} parent=11 // pred_check
        %p515 = pneg %p225
      $region38: #{fwd.8} parent=11 // pred_check_branch
        %517 = sbr.rel (%p515) target = $region40
      $region39: #{fwd.8} parent=11 // pred_region
        _
      $region40: #{fwd.8} parent=11 // pred_fallthru
        _
      // Predicated region
      $region41: #{fwd.8} parent=11 // pred_check
        %p518 = pneg %p246
      $region42: #{fwd.8} parent=11 // pred_check_branch
        %520 = sbr.rel (%p518) target = $region44
      $region43: #{fwd.8} parent=11 // pred_region
        _
      $region44: #{fwd.8} parent=11 // pred_fallthru
        _
      // Predicated region
      $region45: #{fwd.8} parent=11 // pred_check
        %p521 = pneg %p267
      $region46: #{fwd.8} parent=11 // pred_check_branch
        %523 = sbr.rel (%p521) target = $region48
      $region47: #{fwd.8} parent=11 // pred_region
        _
      $region48: #{fwd.8} parent=11 // pred_fallthru
        _
      // Predicated region
      $region49: #{fwd.8} parent=11 // pred_check
        %p524 = pneg %p288
      $region50: #{fwd.8} parent=11 // pred_check_branch
        %526 = sbr.rel (%p524) target = $region52
      $region51: #{fwd.8} parent=11 // pred_region
        _
      $region52: #{fwd.8} parent=11 // pred_fallthru
        _
      // Predicated region
      $region53: #{fwd.8} parent=11 // pred_check
        %p527 = pneg %p309
      $region54: #{fwd.8} parent=11 // pred_check_branch
        %529 = sbr.rel (%p527) target = $region56
      $region55: #{fwd.8} parent=11 // pred_region
        _
      $region56: #{fwd.8} parent=11 // pred_fallthru
        _
      // Predicated region
      $region57: #{fwd.8} parent=11 // pred_check
        %p530 = pneg %p330
      $region58: #{fwd.8} parent=11 // pred_check_branch
        %532 = sbr.rel (%p530) target = $region60
      $region59: #{fwd.8} parent=11 // pred_region
        _
      $region60: #{fwd.8} parent=11 // pred_fallthru
        _
      // Predicated region
      $region61: #{fwd.8} parent=11 // pred_check
        %p533 = pneg %p351
      $region62: #{fwd.8} parent=11 // pred_check_branch
        %535 = sbr.rel (%p533) target = $region64
      $region63: #{fwd.8} parent=11 // pred_region
        _
      $region64: #{fwd.8} parent=11 // pred_fallthru
        _
      // Predicated region
      $region65: #{fwd.8} parent=11 // pred_check
        %p536 = pneg %p372
      $region66: #{fwd.8} parent=11 // pred_check_branch
        %538 = sbr.rel (%p536) target = $region68
      $region67: #{fwd.8} parent=11 // pred_region
        _
      $region68: #{fwd.8} parent=11 // pred_fallthru
        _
      // Predicated region
      $region69: #{fwd.8} parent=11 // pred_check
        %p539 = pneg %p393
      $region70: #{fwd.8} parent=11 // pred_check_branch
        %541 = sbr.rel (%p539) target = $region72
      $region71: #{fwd.8} parent=11 // pred_region
        _
      $region72: #{fwd.8} parent=11 // pred_fallthru
        _
      // Predicated region
      $region73: #{fwd.8} parent=11 // pred_check
        %p542 = pneg %p414
      $region74: #{fwd.8} parent=11 // pred_check_branch
        %544 = sbr.rel (%p542) target = $region76
      $region75: #{fwd.8} parent=11 // pred_region
        _
      $region76: #{fwd.8} parent=11 // pred_fallthru
        _
      // Predicated region
      $region77: #{fwd.8} parent=11 // pred_check
        %p545 = pneg %p435
      $region78: #{fwd.8} parent=11 // pred_check_branch
        %547 = sbr.rel (%p545) target = $region80
      $region79: #{fwd.8} parent=11 // pred_region
        _
      $region80: #{fwd.8} parent=11 // pred_fallthru
        _
      // Predicated region
      $region81: #{fwd.8} parent=11 // pred_check
        %p548 = pneg %p456
      $region82: #{fwd.8} parent=11 // pred_check_branch
        %550 = sbr.rel (%p548) target = $region84
      $region83: #{fwd.8} parent=11 // pred_region
        _
      $region84: #{fwd.8} parent=11 // pred_fallthru
        _
    $region12: #{fwd.8} parent=5 // pred_fallthru
      _
    %p551 = scmp.lt.s32.totalorder %s26, 2
    // Predicated region
    $region85: #{fwd.8} parent=5 // pred_check
      %p552 = pneg %p551
    $region86: #{fwd.8} parent=5 // pred_check_branch
      %554 = sbr.rel (%p552) target = $region88
    $region87: #{fwd.8} parent=5 // pred_region
      // Predicated region
      $region89: #{fwd.8} parent=87 // pred_check
        %p555 = pneg %p46
      $region90: #{fwd.8} parent=87 // pred_check_branch
        %557 = sbr.rel (%p555) target = $region92
      $region91: #{fwd.8} parent=87 // pred_region
        %p558 = scmp.lt.s32.totalorder %s26, 1
        %s559 = scalar_select %p558, %s26, 1
        %s560 = smul.addr %s559, 2
        %s561 = smul.addr %s560, 8
        %s562 = scalar_lea.vmem %s0, %s561
      $region92: #{fwd.8} parent=87 // pred_fallthru
        _
      // Predicated region
      $region93: #{fwd.8} parent=87 // pred_check
        %p563 = pneg %p72
      $region94: #{fwd.8} parent=87 // pred_check_branch
        %565 = sbr.rel (%p563) target = $region96
      $region95: #{fwd.8} parent=87 // pred_region
        %p566 = scmp.lt.s32.totalorder %s26, 1
        %s567 = scalar_select %p566, %s26, 1
        %s568 = scalar_lea.vmem %s1, %s567
      $region96: #{fwd.8} parent=87 // pred_fallthru
        _
    $region88: #{fwd.8} parent=5 // pred_fallthru
      _
    %p569 = scmp.le.s32.totalorder 1, %s26
    %p570 = scmp.lt.s32.totalorder %s26, 3
    %p571 = pnand %p569, %p570
    %p572 = pneg %p571
    // Predicated region
    $region97: #{fwd.8} parent=5 // pred_check
      _
    $region98: #{fwd.8} parent=5 // pred_check_branch
      %574 = sbr.rel (%p571) target = $region100
    $region99: #{fwd.8} parent=5 // pred_region
      %s575 = ssub.s32 %s26, 1
      %p576 = scmp.lt.s32.totalorder %s31, 1
      %s577 = scalar_select %p576, %s31, 1
      %s578 = smul.addr %s577, 2
      %s579 = smul.addr %s578, 8
      %s580 = scalar_lea.vmem %s0, %s579
      %p581 = pneg %p52
      %p582 = pneg %p49
      %p583 = scmp.lt.s32.totalorder %s31, 1
      %s584 = scalar_select %p583, %s31, 1
      %s585 = scalar_lea.vmem %s1, %s584
      %p586 = pneg %p78
      %p587 = pneg %p75
      %p588 = pneg %p99
      %p589 = pneg %p96
      %p590 = pneg %p120
      %p591 = pneg %p117
      %p592 = pneg %p141
      %p593 = pneg %p138
      %p594 = pneg %p162
      %p595 = pneg %p159
      %p596 = pneg %p183
      %p597 = pneg %p180
      %p598 = pneg %p204
      %p599 = pneg %p201
      %p600 = pneg %p225
      %p601 = pneg %p222
      %p602 = pneg %p246
      %p603 = pneg %p243
      %p604 = pneg %p267
      %p605 = pneg %p264
      %p606 = pneg %p288
      %p607 = pneg %p285
      %p608 = pneg %p309
      %p609 = pneg %p306
      %p610 = pneg %p330
      %p611 = pneg %p327
      %p612 = pneg %p351
      %p613 = pneg %p348
      %p614 = pneg %p372
      %p615 = pneg %p369
      %p616 = pneg %p393
      %p617 = pneg %p390
      %p618 = pneg %p414
      %p619 = pneg %p411
      %p620 = pneg %p435
      %p621 = pneg %p432
      %p622 = pneg %p456
      %p623 = pneg %p453
      %p624 = pneg %p482
      %p625 = pneg %p479
      %p626 = scmp.lt.s32.totalorder %s31, 1
      %s627 = scalar_select %p626, %s31, 1
      %s628 = smul.addr %s627, 2
      %s629 = smul.addr %s628, 8
      %s630 = scalar_lea.vmem %s20, %s629
      %p631 = scmp.lt.s32.totalorder %s31, 1
      %s632 = scalar_select %p631, %s31, 1
      %s633 = smul.addr %s632, 2
      %s634 = smul.addr %s633, 8
      %s635 = scalar_lea.vmem %s0, %s634
      %p636 = scmp.lt.s32.totalorder %s31, 1
      %s637 = scalar_select %p636, %s31, 1
      %s638 = scalar_lea.vmem %s1, %s637
      %p639 = scmp.lt.s32.totalorder %s31, 1
      %s640 = scalar_select %p639, %s31, 1
      %s641 = smul.addr %s640, 2
      %s642 = smul.addr %s641, 8
      %s643 = scalar_lea.vmem %s20, %s642
      %v645 = vld [vmem:[%s635] sm:$0xff]
      %v646 = vld [vmem:[%s635 + $0x8] sm:$0xff]
      %v647 = vld [vmem:[%s638] sm:$0x1]
      %v648 = vpack.c.bf16 %v646, %v645
      %v649 = vld [vmem:[%s2] sm:$0xf]
      %v650 = vld [vmem:[%s2 + $0x4] sm:$0xf]
      %v651 = vld [vmem:[%s2 + $0x8] sm:$0xf]
      %v652 = vld [vmem:[%s2 + $0xc] sm:$0xf]
      %v653 = vld [vmem:[%s3] sm:$0x1]
      %v655 = vlaneseq
      %v656 = vshrl.u32 %v655, 7
      %v657 = vsub.s32 0, %v656
      %v658 = vrot.slane %v653, %v657
      %v664 = vunpack.c.l.b16 %v649
      %v665 = vunpack.c.l.b16 %v650
      %v666 = vunpack.c.l.b16 %v651
      %v667 = vunpack.c.l.b16 %v652
      %v668 = vpack.c.b16 %v665, %v664
      %v669 = vpack.c.b16 %v667, %v666
      %vm672 = vcmask 261120
      %v674 = vsel %vm672, %v648, 0
      %676 = vmatprep.subr.bf16.mxu0 0
      %677 = vmatpush1.bf16.msra.mxu0 0
      %678 = vmatprep.subr.bf16.mxu0 0
      %679 = vmatpush1.bf16.msra.mxu0 0
      %680 = vmatprep.subr.bf16.mxu0 0
      %681 = vmatpush1.bf16.msra.mxu0 0
      %682 = vmatprep.subr.bf16.mxu0 0
      %683 = vmatpush1.bf16.msra.mxu0 0
      %684 = vmatprep.subr.bf16.mxu0 0
      %685 = vmatpush1.bf16.msra.mxu0 0
      %686 = vmatprep.subr.bf16.mxu0 0
      %687 = vmatpush1.bf16.msra.mxu0 0
      %688 = vmatprep.subr.bf16.mxu0 0
      %689 = vmatpush1.bf16.msra.mxu0 %v669
      %690 = vmatprep.subr.bf16.mxu0 0
      %691 = vmatpush1.bf16.msra.mxu0 %v668
      %692 = vmatprep.subr.bf16.mxu0 0
      %693 = vmatpush2.bf16.msra.mxu0 0
      %694 = vmatprep.subr.bf16.mxu0 0
      %695 = vmatpush2.bf16.msra.mxu0 0
      %696 = vmatprep.subr.bf16.mxu0 0
      %697 = vmatpush2.bf16.msra.mxu0 0
      %698 = vmatprep.subr.bf16.mxu0 0
      %699 = vmatpush2.bf16.msra.mxu0 0
      %700 = vmatprep.subr.bf16.mxu0 0
      %701 = vmatpush2.bf16.msra.mxu0 0
      %702 = vmatprep.subr.bf16.mxu0 0
      %703 = vmatpush2.bf16.msra.mxu0 0
      %704 = vmatprep.subr.bf16.mxu0 0
      %705 = vmatpush2.bf16.msra.mxu0 0
      %706 = vmatprep.subr.bf16.mxu0 0
      %707 = vmatpush2.bf16.msra.mxu0 0
      %708 = vmatprep.mubr.bf16.mxu0 0
      %709 = vmatmul.mubr.bf16.gmra.mxu0 %v674
      %v710 = vpop.f32.mrf.mxu0
      %v711 = vadd.f32 %v658, %v710
      %v712 = vpop.f32.mrf.mxu0
      %v713 = vpop.f32.mrf.mxu0
      %v714 = vadd.f32 %v658, %v713
      %v715 = vpop.f32.mrf.mxu0
      %716 = vdwg.mxu0
      %v717 = vmul.f32 %v711, 0.25
      %v718 = vmul.f32 %v714, 0.25
      %v719 = vld [vmem:[%s4] sm:$0xf]
      %v720 = vld [vmem:[%s4 + $0x4] sm:$0xf]
      %v721 = vld [vmem:[%s4 + $0x8] sm:$0xf]
      %v722 = vld [vmem:[%s4 + $0xc] sm:$0xf]
      %v723 = vld [vmem:[%s5] sm:$0x1]
      %v725 = vlaneseq
      %v726 = vshrl.u32 %v725, 7
      %v727 = vsub.s32 0, %v726
      %v728 = vrot.slane %v723, %v727
      %v734 = vunpack.c.l.b16 %v719
      %v735 = vunpack.c.l.b16 %v720
      %v736 = vunpack.c.l.b16 %v721
      %v737 = vunpack.c.l.b16 %v722
      %v738 = vpack.c.b16 %v735, %v734
      %v739 = vpack.c.b16 %v737, %v736
      %742 = vmatprep.subr.bf16.mxu0 0
      %743 = vmatpush1.bf16.msra.mxu0 0
      %744 = vmatprep.subr.bf16.mxu0 0
      %745 = vmatpush1.bf16.msra.mxu0 0
      %746 = vmatprep.subr.bf16.mxu0 0
      %747 = vmatpush1.bf16.msra.mxu0 0
      %748 = vmatprep.subr.bf16.mxu0 0
      %749 = vmatpush1.bf16.msra.mxu0 0
      %750 = vmatprep.subr.bf16.mxu0 0
      %751 = vmatpush1.bf16.msra.mxu0 0
      %752 = vmatprep.subr.bf16.mxu0 0
      %753 = vmatpush1.bf16.msra.mxu0 0
      %754 = vmatprep.subr.bf16.mxu0 0
      %755 = vmatpush1.bf16.msra.mxu0 %v739
      %756 = vmatprep.subr.bf16.mxu0 0
      %757 = vmatpush1.bf16.msra.mxu0 %v738
      %758 = vmatprep.subr.bf16.mxu0 0
      %759 = vmatpush2.bf16.msra.mxu0 0
      %760 = vmatprep.subr.bf16.mxu0 0
      %761 = vmatpush2.bf16.msra.mxu0 0
      %762 = vmatprep.subr.bf16.mxu0 0
      %763 = vmatpush2.bf16.msra.mxu0 0
      %764 = vmatprep.subr.bf16.mxu0 0
      %765 = vmatpush2.bf16.msra.mxu0 0
      %766 = vmatprep.subr.bf16.mxu0 0
      %767 = vmatpush2.bf16.msra.mxu0 0
      %768 = vmatprep.subr.bf16.mxu0 0
      %769 = vmatpush2.bf16.msra.mxu0 0
      %770 = vmatprep.subr.bf16.mxu0 0
      %771 = vmatpush2.bf16.msra.mxu0 0
      %772 = vmatprep.subr.bf16.mxu0 0
      %773 = vmatpush2.bf16.msra.mxu0 0
      %774 = vmatprep.mubr.bf16.mxu0 0
      %775 = vmatmul.mubr.bf16.gmra.mxu0 %v674
      %v776 = vpop.f32.mrf.mxu0
      %v777 = vadd.f32 %v728, %v776
      %v778 = vpop.f32.mrf.mxu0
      %v779 = vpop.f32.mrf.mxu0
      %v780 = vadd.f32 %v728, %v779
      %v781 = vpop.f32.mrf.mxu0
      %782 = vdwg.mxu0
      %v783 = vld [vmem:[%s6] sm:$0xf]
      %v784 = vld [vmem:[%s6 + $0x4] sm:$0xf]
      %v785 = vld [vmem:[%s6 + $0x8] sm:$0xf]
      %v786 = vld [vmem:[%s6 + $0xc] sm:$0xf]
      %v787 = vld [vmem:[%s7] sm:$0x1]
      %v789 = vlaneseq
      %v790 = vshrl.u32 %v789, 7
      %v791 = vsub.s32 0, %v790
      %v792 = vrot.slane %v787, %v791
      %v798 = vunpack.c.l.b16 %v783
      %v799 = vunpack.c.l.b16 %v784
      %v800 = vunpack.c.l.b16 %v785
      %v801 = vunpack.c.l.b16 %v786
      %v802 = vpack.c.b16 %v799, %v798
      %v803 = vpack.c.b16 %v801, %v800
      %806 = vmatprep.subr.bf16.mxu0 0
      %807 = vmatpush1.bf16.msra.mxu0 0
      %808 = vmatprep.subr.bf16.mxu0 0
      %809 = vmatpush1.bf16.msra.mxu0 0
      %810 = vmatprep.subr.bf16.mxu0 0
      %811 = vmatpush1.bf16.msra.mxu0 0
      %812 = vmatprep.subr.bf16.mxu0 0
      %813 = vmatpush1.bf16.msra.mxu0 0
      %814 = vmatprep.subr.bf16.mxu0 0
      %815 = vmatpush1.bf16.msra.mxu0 0
      %816 = vmatprep.subr.bf16.mxu0 0
      %817 = vmatpush1.bf16.msra.mxu0 0
      %818 = vmatprep.subr.bf16.mxu0 0
      %819 = vmatpush1.bf16.msra.mxu0 %v803
      %820 = vmatprep.subr.bf16.mxu0 0
      %821 = vmatpush1.bf16.msra.mxu0 %v802
      %822 = vmatprep.subr.bf16.mxu0 0
      %823 = vmatpush2.bf16.msra.mxu0 0
      %824 = vmatprep.subr.bf16.mxu0 0
      %825 = vmatpush2.bf16.msra.mxu0 0
      %826 = vmatprep.subr.bf16.mxu0 0
      %827 = vmatpush2.bf16.msra.mxu0 0
      %828 = vmatprep.subr.bf16.mxu0 0
      %829 = vmatpush2.bf16.msra.mxu0 0
      %830 = vmatprep.subr.bf16.mxu0 0
      %831 = vmatpush2.bf16.msra.mxu0 0
      %832 = vmatprep.subr.bf16.mxu0 0
      %833 = vmatpush2.bf16.msra.mxu0 0
      %834 = vmatprep.subr.bf16.mxu0 0
      %835 = vmatpush2.bf16.msra.mxu0 0
      %836 = vmatprep.subr.bf16.mxu0 0
      %837 = vmatpush2.bf16.msra.mxu0 0
      %838 = vmatprep.mubr.bf16.mxu0 0
      %839 = vmatmul.mubr.bf16.gmra.mxu0 %v674
      %v840 = vpop.f32.mrf.mxu0
      %v841 = vadd.f32 %v792, %v840
      %v842 = vpop.f32.mrf.mxu0
      %v843 = vpop.f32.mrf.mxu0
      %v844 = vadd.f32 %v792, %v843
      %v845 = vpop.f32.mrf.mxu0
      %846 = vdwg.mxu0
      %v848 = vlaneseq
      %v849 = vshrl.u32 %v848, 7
      %v850 = vsub.s32 0, %v849
      %v851 = vrot.slane %v647, %v850
      %vm853 = vcmask 130048
      %v855 = vsel %vm853, %v717, 0
      %v858 = vsel %vm853, %v718, 0
      %v861 = vsel %vm853, %v777, 0
      %v864 = vsel %vm853, %v780, 0
      %866 = vmatprep.subr.mxu0 0.0
      %867 = vmatpush1.xpose.msra.mxu0 0.0
      %868 = vmatprep.subr.mxu0 0.0
      %869 = vmatpush1.xpose.msra.mxu0 0.0
      %870 = vmatprep.subr.mxu0 0.0
      %871 = vmatpush1.xpose.msra.mxu0 0.0
      %872 = vmatprep.subr.mxu0 0.0
      %873 = vmatpush1.xpose.msra.mxu0 0.0
      %874 = vmatprep.subr.mxu0 0.0
      %875 = vmatpush1.xpose.msra.mxu0 0.0
      %876 = vmatprep.subr.mxu0 0.0
      %877 = vmatpush1.xpose.msra.mxu0 0.0
      %878 = vmatprep.subr.mxu0 0.0
      %879 = vmatpush1.xpose.msra.mxu0 0.0
      %880 = vmatprep.subr.mxu0 0.0
      %881 = vmatpush1.xpose.msra.mxu0 0.0
      %882 = vmatprep.subr.mxu0 0.0
      %883 = vmatpush1.xpose.msra.mxu0 0.0
      %884 = vmatprep.subr.mxu0 0.0
      %885 = vmatpush1.xpose.msra.mxu0 0.0
      %886 = vmatprep.subr.mxu0 0.0
      %887 = vmatpush1.xpose.msra.mxu0 0.0
      %888 = vmatprep.subr.mxu0 0.0
      %889 = vmatpush1.xpose.msra.mxu0 0.0
      %890 = vmatprep.subr.mxu0 0.0
      %891 = vmatpush1.xpose.msra.mxu0 0.0
      %892 = vmatprep.subr.mxu0 0.0
      %893 = vmatpush1.xpose.msra.mxu0 0.0
      %894 = vmatprep.subr.mxu0 0.0
      %895 = vmatpush1.xpose.msra.mxu0 %v864
      %896 = vmatprep.subr.mxu0 0.0
      %897 = vmatpush1.xpose.msra.mxu0 %v861
      %898 = vmatprep.subr.mxu0 0.0
      %899 = vmatpush2.xpose.msra.mxu0 0.0
      %900 = vmatprep.subr.mxu0 0.0
      %901 = vmatpush2.xpose.msra.mxu0 0.0
      %902 = vmatprep.subr.mxu0 0.0
      %903 = vmatpush2.xpose.msra.mxu0 0.0
      %904 = vmatprep.subr.mxu0 0.0
      %905 = vmatpush2.xpose.msra.mxu0 0.0
      %906 = vmatprep.subr.mxu0 0.0
      %907 = vmatpush2.xpose.msra.mxu0 0.0
      %908 = vmatprep.subr.mxu0 0.0
      %909 = vmatpush2.xpose.msra.mxu0 0.0
      %910 = vmatprep.subr.mxu0 0.0
      %911 = vmatpush2.xpose.msra.mxu0 0.0
      %912 = vmatprep.subr.mxu0 0.0
      %913 = vmatpush2.xpose.msra.mxu0 0.0
      %914 = vmatprep.subr.mxu0 0.0
      %915 = vmatpush2.xpose.msra.mxu0 0.0
      %916 = vmatprep.subr.mxu0 0.0
      %917 = vmatpush2.xpose.msra.mxu0 0.0
      %918 = vmatprep.subr.mxu0 0.0
      %919 = vmatpush2.xpose.msra.mxu0 0.0
      %920 = vmatprep.subr.mxu0 0.0
      %921 = vmatpush2.xpose.msra.mxu0 0.0
      %922 = vmatprep.subr.mxu0 0.0
      %923 = vmatpush2.xpose.msra.mxu0 0.0
      %924 = vmatprep.subr.mxu0 0.0
      %925 = vmatpush2.xpose.msra.mxu0 0.0
      %926 = vmatprep.subr.mxu0 0.0
      %927 = vmatpush2.xpose.msra.mxu0 0.0
      %928 = vmatprep.subr.mxu0 0.0
      %929 = vmatpush2.xpose.msra.mxu0 0.0
      %930 = vmatprep.mubr.f32.mxu0 0.0
      %931 = vmatmul.mubr.f32.gmra.mxu0 %v855
      %v932 = vpop.f32.mrf.mxu0
      %v933 = vadd.f32 %v851, %v932
      %v934 = vpop.f32.mrf.mxu0
      %935 = vmatprep.mubr.f32.mxu0 0.0
      %936 = vmatmul.mubr.f32.gmra.mxu0 %v858
      %v937 = vpop.f32.mrf.mxu0
      %v938 = vadd.f32 %v851, %v937
      %v939 = vpop.f32.mrf.mxu0
      %940 = vdwg.mxu0
      %v941 = vsel %vm853, %v933, -inf
      %942 = vmax.xlane.f32.xlu0 %v941
      %v943 = vpop.xlane.xlu0 %942
      %v944 = vsel %vm853, %v938, -inf
      %945 = vmax.xlane.f32.xlu0 %v944
      %v946 = vpop.xlane.xlu0 %945
      %v947 = vsub.f32 %v933, %v943
      %v948 = vsub.f32 %v938, %v946
      %v949 = vmul.f32 %v947, 1.442695
      %v950 = vpow.pop %v949
      %v951 = vmul.f32 %v948, 1.442695
      %v952 = vpow.pop %v951
      %v953 = vsel %vm853, %v950, 0.0
      %954 = vadd.xlane.f32.xlu0 %v953
      %v955 = vpop.xlane.xlu0 %954
      %v956 = vsel %vm853, %v952, 0.0
      %957 = vadd.xlane.f32.xlu0 %v956
      %v958 = vpop.xlane.xlu0 %957
      %v959 = vrcp.pop %v955
      %v960 = vrcp.pop %v958
      %v961 = vmul.f32 %v950, %v959
      %v962 = vmul.f32 %v952, %v960
      %v963 = vpack.c.bf16 %v962, %v961
      %v964 = vpack.c.bf16 %v844, %v841
      %v966 = vsel %vm853, %v963, 0
      %968 = vmatprep.subr.bf16.mxu0 0
      %969 = vmatpush1.bf16.msra.mxu0 0
      %970 = vmatprep.subr.bf16.mxu0 0
      %971 = vmatpush1.bf16.msra.mxu0 0
      %972 = vmatprep.subr.bf16.mxu0 0
      %973 = vmatpush1.bf16.msra.mxu0 0
      %974 = vmatprep.subr.bf16.mxu0 0
      %975 = vmatpush1.bf16.msra.mxu0 0
      %976 = vmatprep.subr.bf16.mxu0 0
      %977 = vmatpush1.bf16.msra.mxu0 0
      %978 = vmatprep.subr.bf16.mxu0 0
      %979 = vmatpush1.bf16.msra.mxu0 0
      %980 = vmatprep.subr.bf16.mxu0 0
      %981 = vmatpush1.bf16.msra.mxu0 0
      %982 = vmatprep.subr.bf16.mxu0 0
      %983 = vmatpush1.bf16.msra.mxu0 %v964
      %984 = vmatprep.subr.bf16.mxu0 0
      %985 = vmatpush2.bf16.msra.mxu0 0
      %986 = vmatprep.subr.bf16.mxu0 0
      %987 = vmatpush2.bf16.msra.mxu0 0
      %988 = vmatprep.subr.bf16.mxu0 0
      %989 = vmatpush2.bf16.msra.mxu0 0
      %990 = vmatprep.subr.bf16.mxu0 0
      %991 = vmatpush2.bf16.msra.mxu0 0
      %992 = vmatprep.subr.bf16.mxu0 0
      %993 = vmatpush2.bf16.msra.mxu0 0
      %994 = vmatprep.subr.bf16.mxu0 0
      %995 = vmatpush2.bf16.msra.mxu0 0
      %996 = vmatprep.subr.bf16.mxu0 0
      %997 = vmatpush2.bf16.msra.mxu0 0
      %998 = vmatprep.subr.bf16.mxu0 0
      %999 = vmatpush2.bf16.msra.mxu0 0
      %1000 = vmatprep.mubr.bf16.mxu0 0
      %1001 = vmatmul.mubr.bf16.gmra.mxu0 %v966
      %v1002 = vpop.f32.mrf.mxu0
      %v1003 = vadd.f32 0.0, %v1002
      %v1004 = vpop.f32.mrf.mxu0
      %v1005 = vpop.f32.mrf.mxu0
      %v1006 = vadd.f32 0.0, %v1005
      %v1007 = vpop.f32.mrf.mxu0
      %1008 = vdwg.mxu0
      %v1009 = vpack.c.bf16 %v1006, %v1003
      %v1010 = vld [vmem:[%s8] sm:$0xf]
      %v1011 = vld [vmem:[%s8 + $0x4] sm:$0xf]
      %s1012 = scalar_lea.vmem %s2, 16
      %v1013 = vld [vmem:[%s1012] sm:$0xf]
      %v1014 = vld [vmem:[%s1012 + $0x4] sm:$0xf]
      %v1015 = vld [vmem:[%s1012 + $0x8] sm:$0xf]
      %v1016 = vld [vmem:[%s1012 + $0xc] sm:$0xf]
      %s1017 = scalar_lea.vmem %s3, 1
      %v1018 = vld [vmem:[%s1017] sm:$0x1]
      %v1020 = vlaneseq
      %v1021 = vshrl.u32 %v1020, 7
      %v1022 = vsub.s32 0, %v1021
      %v1023 = vrot.slane %v1018, %v1022
      %v1029 = vunpack.c.l.b16 %v1013
      %v1030 = vunpack.c.l.b16 %v1014
      %v1031 = vunpack.c.l.b16 %v1015
      %v1032 = vunpack.c.l.b16 %v1016
      %v1033 = vpack.c.b16 %v1030, %v1029
      %v1034 = vpack.c.b16 %v1032, %v1031
      %1037 = vmatprep.subr.bf16.mxu0 0
      %1038 = vmatpush1.bf16.msra.mxu0 0
      %1039 = vmatprep.subr.bf16.mxu0 0
      %1040 = vmatpush1.bf16.msra.mxu0 0
      %1041 = vmatprep.subr.bf16.mxu0 0
      %1042 = vmatpush1.bf16.msra.mxu0 0
      %1043 = vmatprep.subr.bf16.mxu0 0
      %1044 = vmatpush1.bf16.msra.mxu0 0
      %1045 = vmatprep.subr.bf16.mxu0 0
      %1046 = vmatpush1.bf16.msra.mxu0 0
      %1047 = vmatprep.subr.bf16.mxu0 0
      %1048 = vmatpush1.bf16.msra.mxu0 0
      %1049 = vmatprep.subr.bf16.mxu0 0
      %1050 = vmatpush1.bf16.msra.mxu0 %v1034
      %1051 = vmatprep.subr.bf16.mxu0 0
      %1052 = vmatpush1.bf16.msra.mxu0 %v1033
      %1053 = vmatprep.subr.bf16.mxu0 0
      %1054 = vmatpush2.bf16.msra.mxu0 0
      %1055 = vmatprep.subr.bf16.mxu0 0
      %1056 = vmatpush2.bf16.msra.mxu0 0
      %1057 = vmatprep.subr.bf16.mxu0 0
      %1058 = vmatpush2.bf16.msra.mxu0 0
      %1059 = vmatprep.subr.bf16.mxu0 0
      %1060 = vmatpush2.bf16.msra.mxu0 0
      %1061 = vmatprep.subr.bf16.mxu0 0
      %1062 = vmatpush2.bf16.msra.mxu0 0
      %1063 = vmatprep.subr.bf16.mxu0 0
      %1064 = vmatpush2.bf16.msra.mxu0 0
      %1065 = vmatprep.subr.bf16.mxu0 0
      %1066 = vmatpush2.bf16.msra.mxu0 0
      %1067 = vmatprep.subr.bf16.mxu0 0
      %1068 = vmatpush2.bf16.msra.mxu0 0
      %1069 = vmatprep.mubr.bf16.mxu0 0
      %1070 = vmatmul.mubr.bf16.gmra.mxu0 %v674
      %v1071 = vpop.f32.mrf.mxu0
      %v1072 = vadd.f32 %v1023, %v1071
      %v1073 = vpop.f32.mrf.mxu0
      %v1074 = vpop.f32.mrf.mxu0
      %v1075 = vadd.f32 %v1023, %v1074
      %v1076 = vpop.f32.mrf.mxu0
      %1077 = vdwg.mxu0
      %v1078 = vmul.f32 %v1072, 0.25
      %v1079 = vmul.f32 %v1075, 0.25
      %s1080 = scalar_lea.vmem %s4, 16
      %v1081 = vld [vmem:[%s1080] sm:$0xf]
      %v1082 = vld [vmem:[%s1080 + $0x4] sm:$0xf]
      %v1083 = vld [vmem:[%s1080 + $0x8] sm:$0xf]
      %v1084 = vld [vmem:[%s1080 + $0xc] sm:$0xf]
      %s1085 = scalar_lea.vmem %s5, 1
      %v1086 = vld [vmem:[%s1085] sm:$0x1]
      %v1088 = vlaneseq
      %v1089 = vshrl.u32 %v1088, 7
      %v1090 = vsub.s32 0, %v1089
      %v1091 = vrot.slane %v1086, %v1090
      %v1097 = vunpack.c.l.b16 %v1081
      %v1098 = vunpack.c.l.b16 %v1082
      %v1099 = vunpack.c.l.b16 %v1083
      %v1100 = vunpack.c.l.b16 %v1084
      %v1101 = vpack.c.b16 %v1098, %v1097
      %v1102 = vpack.c.b16 %v1100, %v1099
      %1105 = vmatprep.subr.bf16.mxu0 0
      %1106 = vmatpush1.bf16.msra.mxu0 0
      %1107 = vmatprep.subr.bf16.mxu0 0
      %1108 = vmatpush1.bf16.msra.mxu0 0
      %1109 = vmatprep.subr.bf16.mxu0 0
      %1110 = vmatpush1.bf16.msra.mxu0 0
      %1111 = vmatprep.subr.bf16.mxu0 0
      %1112 = vmatpush1.bf16.msra.mxu0 0
      %1113 = vmatprep.subr.bf16.mxu0 0
      %1114 = vmatpush1.bf16.msra.mxu0 0
      %1115 = vmatprep.subr.bf16.mxu0 0
      %1116 = vmatpush1.bf16.msra.mxu0 0
      %1117 = vmatprep.subr.bf16.mxu0 0
      %1118 = vmatpush1.bf16.msra.mxu0 %v1102
      %1119 = vmatprep.subr.bf16.mxu0 0
      %1120 = vmatpush1.bf16.msra.mxu0 %v1101
      %1121 = vmatprep.subr.bf16.mxu0 0
      %1122 = vmatpush2.bf16.msra.mxu0 0
      %1123 = vmatprep.subr.bf16.mxu0 0
      %1124 = vmatpush2.bf16.msra.mxu0 0
      %1125 = vmatprep.subr.bf16.mxu0 0
      %1126 = vmatpush2.bf16.msra.mxu0 0
      %1127 = vmatprep.subr.bf16.mxu0 0
      %1128 = vmatpush2.bf16.msra.mxu0 0
      %1129 = vmatprep.subr.bf16.mxu0 0
      %1130 = vmatpush2.bf16.msra.mxu0 0
      %1131 = vmatprep.subr.bf16.mxu0 0
      %1132 = vmatpush2.bf16.msra.mxu0 0
      %1133 = vmatprep.subr.bf16.mxu0 0
      %1134 = vmatpush2.bf16.msra.mxu0 0
      %1135 = vmatprep.subr.bf16.mxu0 0
      %1136 = vmatpush2.bf16.msra.mxu0 0
      %1137 = vmatprep.mubr.bf16.mxu0 0
      %1138 = vmatmul.mubr.bf16.gmra.mxu0 %v674
      %v1139 = vpop.f32.mrf.mxu0
      %v1140 = vadd.f32 %v1091, %v1139
      %v1141 = vpop.f32.mrf.mxu0
      %v1142 = vpop.f32.mrf.mxu0
      %v1143 = vadd.f32 %v1091, %v1142
      %v1144 = vpop.f32.mrf.mxu0
      %1145 = vdwg.mxu0
      %s1146 = scalar_lea.vmem %s6, 16
      %v1147 = vld [vmem:[%s1146] sm:$0xf]
      %v1148 = vld [vmem:[%s1146 + $0x4] sm:$0xf]
      %v1149 = vld [vmem:[%s1146 + $0x8] sm:$0xf]
      %v1150 = vld [vmem:[%s1146 + $0xc] sm:$0xf]
      %s1151 = scalar_lea.vmem %s7, 1
      %v1152 = vld [vmem:[%s1151] sm:$0x1]
      %v1154 = vlaneseq
      %v1155 = vshrl.u32 %v1154, 7
      %v1156 = vsub.s32 0, %v1155
      %v1157 = vrot.slane %v1152, %v1156
      %v1163 = vunpack.c.l.b16 %v1147
      %v1164 = vunpack.c.l.b16 %v1148
      %v1165 = vunpack.c.l.b16 %v1149
      %v1166 = vunpack.c.l.b16 %v1150
      %v1167 = vpack.c.b16 %v1164, %v1163
      %v1168 = vpack.c.b16 %v1166, %v1165
      %1171 = vmatprep.subr.bf16.mxu0 0
      %1172 = vmatpush1.bf16.msra.mxu0 0
      %1173 = vmatprep.subr.bf16.mxu0 0
      %1174 = vmatpush1.bf16.msra.mxu0 0
      %1175 = vmatprep.subr.bf16.mxu0 0
      %1176 = vmatpush1.bf16.msra.mxu0 0
      %1177 = vmatprep.subr.bf16.mxu0 0
      %1178 = vmatpush1.bf16.msra.mxu0 0
      %1179 = vmatprep.subr.bf16.mxu0 0
      %1180 = vmatpush1.bf16.msra.mxu0 0
      %1181 = vmatprep.subr.bf16.mxu0 0
      %1182 = vmatpush1.bf16.msra.mxu0 0
      %1183 = vmatprep.subr.bf16.mxu0 0
      %1184 = vmatpush1.bf16.msra.mxu0 %v1168
      %1185 = vmatprep.subr.bf16.mxu0 0
      %1186 = vmatpush1.bf16.msra.mxu0 %v1167
      %1187 = vmatprep.subr.bf16.mxu0 0
      %1188 = vmatpush2.bf16.msra.mxu0 0
      %1189 = vmatprep.subr.bf16.mxu0 0
      %1190 = vmatpush2.bf16.msra.mxu0 0
      %1191 = vmatprep.subr.bf16.mxu0 0
      %1192 = vmatpush2.bf16.msra.mxu0 0
      %1193 = vmatprep.subr.bf16.mxu0 0
      %1194 = vmatpush2.bf16.msra.mxu0 0
      %1195 = vmatprep.subr.bf16.mxu0 0
      %1196 = vmatpush2.bf16.msra.mxu0 0
      %1197 = vmatprep.subr.bf16.mxu0 0
      %1198 = vmatpush2.bf16.msra.mxu0 0
      %1199 = vmatprep.subr.bf16.mxu0 0
      %1200 = vmatpush2.bf16.msra.mxu0 0
      %1201 = vmatprep.subr.bf16.mxu0 0
      %1202 = vmatpush2.bf16.msra.mxu0 0
      %1203 = vmatprep.mubr.bf16.mxu0 0
      %1204 = vmatmul.mubr.bf16.gmra.mxu0 %v674
      %v1205 = vpop.f32.mrf.mxu0
      %v1206 = vadd.f32 %v1157, %v1205
      %v1207 = vpop.f32.mrf.mxu0
      %v1208 = vpop.f32.mrf.mxu0
      %v1209 = vadd.f32 %v1157, %v1208
      %v1210 = vpop.f32.mrf.mxu0
      %1211 = vdwg.mxu0
      %v1213 = vsel %vm853, %v1078, 0
      %v1216 = vsel %vm853, %v1079, 0
      %v1219 = vsel %vm853, %v1140, 0
      %v1222 = vsel %vm853, %v1143, 0
      %1224 = vmatprep.subr.mxu0 0.0
      %1225 = vmatpush1.xpose.msra.mxu0 0.0
      %1226 = vmatprep.subr.mxu0 0.0
      %1227 = vmatpush1.xpose.msra.mxu0 0.0
      %1228 = vmatprep.subr.mxu0 0.0
      %1229 = vmatpush1.xpose.msra.mxu0 0.0
      %1230 = vmatprep.subr.mxu0 0.0
      %1231 = vmatpush1.xpose.msra.mxu0 0.0
      %1232 = vmatprep.subr.mxu0 0.0
      %1233 = vmatpush1.xpose.msra.mxu0 0.0
      %1234 = vmatprep.subr.mxu0 0.0
      %1235 = vmatpush1.xpose.msra.mxu0 0.0
      %1236 = vmatprep.subr.mxu0 0.0
      %1237 = vmatpush1.xpose.msra.mxu0 0.0
      %1238 = vmatprep.subr.mxu0 0.0
      %1239 = vmatpush1.xpose.msra.mxu0 0.0
      %1240 = vmatprep.subr.mxu0 0.0
      %1241 = vmatpush1.xpose.msra.mxu0 0.0
      %1242 = vmatprep.subr.mxu0 0.0
      %1243 = vmatpush1.xpose.msra.mxu0 0.0
      %1244 = vmatprep.subr.mxu0 0.0
      %1245 = vmatpush1.xpose.msra.mxu0 0.0
      %1246 = vmatprep.subr.mxu0 0.0
      %1247 = vmatpush1.xpose.msra.mxu0 0.0
      %1248 = vmatprep.subr.mxu0 0.0
      %1249 = vmatpush1.xpose.msra.mxu0 0.0
      %1250 = vmatprep.subr.mxu0 0.0
      %1251 = vmatpush1.xpose.msra.mxu0 0.0
      %1252 = vmatprep.subr.mxu0 0.0
      %1253 = vmatpush1.xpose.msra.mxu0 %v1222
      %1254 = vmatprep.subr.mxu0 0.0
      %1255 = vmatpush1.xpose.msra.mxu0 %v1219
      %1256 = vmatprep.subr.mxu0 0.0
      %1257 = vmatpush2.xpose.msra.mxu0 0.0
      %1258 = vmatprep.subr.mxu0 0.0
      %1259 = vmatpush2.xpose.msra.mxu0 0.0
      %1260 = vmatprep.subr.mxu0 0.0
      %1261 = vmatpush2.xpose.msra.mxu0 0.0
      %1262 = vmatprep.subr.mxu0 0.0
      %1263 = vmatpush2.xpose.msra.mxu0 0.0
      %1264 = vmatprep.subr.mxu0 0.0
      %1265 = vmatpush2.xpose.msra.mxu0 0.0
      %1266 = vmatprep.subr.mxu0 0.0
      %1267 = vmatpush2.xpose.msra.mxu0 0.0
      %1268 = vmatprep.subr.mxu0 0.0
      %1269 = vmatpush2.xpose.msra.mxu0 0.0
      %1270 = vmatprep.subr.mxu0 0.0
      %1271 = vmatpush2.xpose.msra.mxu0 0.0
      %1272 = vmatprep.subr.mxu0 0.0
      %1273 = vmatpush2.xpose.msra.mxu0 0.0
      %1274 = vmatprep.subr.mxu0 0.0
      %1275 = vmatpush2.xpose.msra.mxu0 0.0
      %1276 = vmatprep.subr.mxu0 0.0
      %1277 = vmatpush2.xpose.msra.mxu0 0.0
      %1278 = vmatprep.subr.mxu0 0.0
      %1279 = vmatpush2.xpose.msra.mxu0 0.0
      %1280 = vmatprep.subr.mxu0 0.0
      %1281 = vmatpush2.xpose.msra.mxu0 0.0
      %1282 = vmatprep.subr.mxu0 0.0
      %1283 = vmatpush2.xpose.msra.mxu0 0.0
      %1284 = vmatprep.subr.mxu0 0.0
      %1285 = vmatpush2.xpose.msra.mxu0 0.0
      %1286 = vmatprep.subr.mxu0 0.0
      %1287 = vmatpush2.xpose.msra.mxu0 0.0
      %1288 = vmatprep.mubr.f32.mxu0 0.0
      %1289 = vmatmul.mubr.f32.gmra.mxu0 %v1213
      %v1290 = vpop.f32.mrf.mxu0
      %v1291 = vadd.f32 %v851, %v1290
      %v1292 = vpop.f32.mrf.mxu0
      %1293 = vmatprep.mubr.f32.mxu0 0.0
      %1294 = vmatmul.mubr.f32.gmra.mxu0 %v1216
      %v1295 = vpop.f32.mrf.mxu0
      %v1296 = vadd.f32 %v851, %v1295
      %v1297 = vpop.f32.mrf.mxu0
      %1298 = vdwg.mxu0
      %v1299 = vsel %vm853, %v1291, -inf
      %1300 = vmax.xlane.f32.xlu0 %v1299
      %v1301 = vpop.xlane.xlu0 %1300
      %v1302 = vsel %vm853, %v1296, -inf
      %1303 = vmax.xlane.f32.xlu0 %v1302
      %v1304 = vpop.xlane.xlu0 %1303
      %v1305 = vsub.f32 %v1291, %v1301
      %v1306 = vsub.f32 %v1296, %v1304
      %v1307 = vmul.f32 %v1305, 1.442695
      %v1308 = vpow.pop %v1307
      %v1309 = vmul.f32 %v1306, 1.442695
      %v1310 = vpow.pop %v1309
      %v1311 = vsel %vm853, %v1308, 0.0
      %1312 = vadd.xlane.f32.xlu0 %v1311
      %v1313 = vpop.xlane.xlu0 %1312
      %v1314 = vsel %vm853, %v1310, 0.0
      %1315 = vadd.xlane.f32.xlu0 %v1314
      %v1316 = vpop.xlane.xlu0 %1315
      %v1317 = vrcp.pop %v1313
      %v1318 = vrcp.pop %v1316
      %v1319 = vmul.f32 %v1308, %v1317
      %v1320 = vmul.f32 %v1310, %v1318
      %v1321 = vpack.c.bf16 %v1320, %v1319
      %v1322 = vpack.c.bf16 %v1209, %v1206
      %v1324 = vsel %vm853, %v1321, 0
      %1326 = vmatprep.subr.bf16.mxu0 0
      %1327 = vmatpush1.bf16.msra.mxu0 0
      %1328 = vmatprep.subr.bf16.mxu0 0
      %1329 = vmatpush1.bf16.msra.mxu0 0
      %1330 = vmatprep.subr.bf16.mxu0 0
      %1331 = vmatpush1.bf16.msra.mxu0 0
      %1332 = vmatprep.subr.bf16.mxu0 0
      %1333 = vmatpush1.bf16.msra.mxu0 0
      %1334 = vmatprep.subr.bf16.mxu0 0
      %1335 = vmatpush1.bf16.msra.mxu0 0
      %1336 = vmatprep.subr.bf16.mxu0 0
      %1337 = vmatpush1.bf16.msra.mxu0 0
      %1338 = vmatprep.subr.bf16.mxu0 0
      %1339 = vmatpush1.bf16.msra.mxu0 0
      %1340 = vmatprep.subr.bf16.mxu0 0
      %1341 = vmatpush1.bf16.msra.mxu0 %v1322
      %1342 = vmatprep.subr.bf16.mxu0 0
      %1343 = vmatpush2.bf16.msra.mxu0 0
      %1344 = vmatprep.subr.bf16.mxu0 0
      %1345 = vmatpush2.bf16.msra.mxu0 0
      %1346 = vmatprep.subr.bf16.mxu0 0
      %1347 = vmatpush2.bf16.msra.mxu0 0
      %1348 = vmatprep.subr.bf16.mxu0 0
      %1349 = vmatpush2.bf16.msra.mxu0 0
      %1350 = vmatprep.subr.bf16.mxu0 0
      %1351 = vmatpush2.bf16.msra.mxu0 0
      %1352 = vmatprep.subr.bf16.mxu0 0
      %1353 = vmatpush2.bf16.msra.mxu0 0
      %1354 = vmatprep.subr.bf16.mxu0 0
      %1355 = vmatpush2.bf16.msra.mxu0 0
      %1356 = vmatprep.subr.bf16.mxu0 0
      %1357 = vmatpush2.bf16.msra.mxu0 0
      %1358 = vmatprep.mubr.bf16.mxu0 0
      %1359 = vmatmul.mubr.bf16.gmra.mxu0 %v1324
      %v1360 = vpop.f32.mrf.mxu0
      %v1361 = vadd.f32 0.0, %v1360
      %v1362 = vpop.f32.mrf.mxu0
      %v1363 = vpop.f32.mrf.mxu0
      %v1364 = vadd.f32 0.0, %v1363
      %v1365 = vpop.f32.mrf.mxu0
      %1366 = vdwg.mxu0
      %v1367 = vpack.c.bf16 %v1364, %v1361
      %s1368 = scalar_lea.vmem %s8, 8
      %v1369 = vld [vmem:[%s1368] sm:$0xf]
      %v1370 = vld [vmem:[%s1368 + $0x4] sm:$0xf]
      %v1373 = vunpack.c.l.b16 %v1369
      %v1374 = vunpack.c.l.b16 %v1370
      %v1375 = vpack.c.b16 %v1374, %v1373
      %v1378 = vsel %vm853, %v1367, 0
      %1380 = vmatprep.subr.bf16.mxu0 0
      %1381 = vmatpush1.bf16.msra.mxu0 0
      %1382 = vmatprep.subr.bf16.mxu0 0
      %1383 = vmatpush1.bf16.msra.mxu0 0
      %1384 = vmatprep.subr.bf16.mxu0 0
      %1385 = vmatpush1.bf16.msra.mxu0 0
      %1386 = vmatprep.subr.bf16.mxu0 0
      %1387 = vmatpush1.bf16.msra.mxu0 0
      %1388 = vmatprep.subr.bf16.mxu0 0
      %1389 = vmatpush1.bf16.msra.mxu0 0
      %1390 = vmatprep.subr.bf16.mxu0 0
      %1391 = vmatpush1.bf16.msra.mxu0 0
      %1392 = vmatprep.subr.bf16.mxu0 0
      %1393 = vmatpush1.bf16.msra.mxu0 0
      %1394 = vmatprep.subr.bf16.mxu0 0
      %1395 = vmatpush1.bf16.msra.mxu0 %v1375
      %1396 = vmatprep.subr.bf16.mxu0 0
      %1397 = vmatpush2.bf16.msra.mxu0 0
      %1398 = vmatprep.subr.bf16.mxu0 0
      %1399 = vmatpush2.bf16.msra.mxu0 0
      %1400 = vmatprep.subr.bf16.mxu0 0
      %1401 = vmatpush2.bf16.msra.mxu0 0
      %1402 = vmatprep.subr.bf16.mxu0 0
      %1403 = vmatpush2.bf16.msra.mxu0 0
      %1404 = vmatprep.subr.bf16.mxu0 0
      %1405 = vmatpush2.bf16.msra.mxu0 0
      %1406 = vmatprep.subr.bf16.mxu0 0
      %1407 = vmatpush2.bf16.msra.mxu0 0
      %1408 = vmatprep.subr.bf16.mxu0 0
      %1409 = vmatpush2.bf16.msra.mxu0 0
      %1410 = vmatprep.subr.bf16.mxu0 0
      %1411 = vmatpush2.bf16.msra.mxu0 0
      %1412 = vmatprep.mubr.bf16.mxu0 0
      %1413 = vmatmul.mubr.bf16.gmra.mxu0 %v1378
      %v1414 = vpop.f32.mrf.mxu0
      %v1415 = vadd.f32 0.0, %v1414
      %v1416 = vpop.f32.mrf.mxu0
      %v1417 = vpop.f32.mrf.mxu0
      %v1418 = vadd.f32 0.0, %v1417
      %v1419 = vpop.f32.mrf.mxu0
      %1420 = vdwg.mxu0
      %v1423 = vunpack.c.l.b16 %v1010
      %v1424 = vunpack.c.l.b16 %v1011
      %v1425 = vpack.c.b16 %v1424, %v1423
      %v1428 = vsel %vm853, %v1009, 0
      %1430 = vmatprep.subr.bf16.mxu0 0
      %1431 = vmatpush1.bf16.msra.mxu0 0
      %1432 = vmatprep.subr.bf16.mxu0 0
      %1433 = vmatpush1.bf16.msra.mxu0 0
      %1434 = vmatprep.subr.bf16.mxu0 0
      %1435 = vmatpush1.bf16.msra.mxu0 0
      %1436 = vmatprep.subr.bf16.mxu0 0
      %1437 = vmatpush1.bf16.msra.mxu0 0
      %1438 = vmatprep.subr.bf16.mxu0 0
      %1439 = vmatpush1.bf16.msra.mxu0 0
      %1440 = vmatprep.subr.bf16.mxu0 0
      %1441 = vmatpush1.bf16.msra.mxu0 0
      %1442 = vmatprep.subr.bf16.mxu0 0
      %1443 = vmatpush1.bf16.msra.mxu0 0
      %1444 = vmatprep.subr.bf16.mxu0 0
      %1445 = vmatpush1.bf16.msra.mxu0 %v1425
      %1446 = vmatprep.subr.bf16.mxu0 0
      %1447 = vmatpush2.bf16.msra.mxu0 0
      %1448 = vmatprep.subr.bf16.mxu0 0
      %1449 = vmatpush2.bf16.msra.mxu0 0
      %1450 = vmatprep.subr.bf16.mxu0 0
      %1451 = vmatpush2.bf16.msra.mxu0 0
      %1452 = vmatprep.subr.bf16.mxu0 0
      %1453 = vmatpush2.bf16.msra.mxu0 0
      %1454 = vmatprep.subr.bf16.mxu0 0
      %1455 = vmatpush2.bf16.msra.mxu0 0
      %1456 = vmatprep.subr.bf16.mxu0 0
      %1457 = vmatpush2.bf16.msra.mxu0 0
      %1458 = vmatprep.subr.bf16.mxu0 0
      %1459 = vmatpush2.bf16.msra.mxu0 0
      %1460 = vmatprep.subr.bf16.mxu0 0
      %1461 = vmatpush2.bf16.msra.mxu0 0
      %1462 = vmatprep.mubr.bf16.mxu0 0
      %1463 = vmatmul.mubr.bf16.gmra.mxu0 %v1428
      %v1464 = vpop.f32.mrf.mxu0
      %v1465 = vadd.f32 %v1415, %v1464
      %v1466 = vpop.f32.mrf.mxu0
      %v1467 = vpop.f32.mrf.mxu0
      %v1468 = vadd.f32 %v1418, %v1467
      %v1469 = vpop.f32.mrf.mxu0
      %1470 = vdwg.mxu0
      %v1471 = vld [vmem:[%s9] sm:$0x1]
      %v1473 = vlaneseq
      %v1474 = vshrl.u32 %v1473, 7
      %v1475 = vsub.s32 0, %v1474
      %v1476 = vrot.slane %v1471, %v1475
      %v1478 = vadd.f32 %v1465, %v1476
      %v1479 = vadd.f32 %v1468, %v1476
      %v1480 = vadd.f32 %v645, %v1478
      %v1481 = vadd.f32 %v646, %v1479
      %v1482 = vld [vmem:[%s10] sm:$0x1]
      %v1483 = vld [vmem:[%s11] sm:$0x1]
      %v1484 = vsel %vm672, %v1480, 0.0
      %1485 = vadd.xlane.f32.xlu0 %v1484
      %v1486 = vpop.xlane.xlu0 %1485
      %v1487 = vsel %vm672, %v1481, 0.0
      %1488 = vadd.xlane.f32.xlu0 %v1487
      %v1489 = vpop.xlane.xlu0 %1488
      %v1490 = vrcp.pop 32.0
      %v1491 = vmul.f32 %v1486, %v1490
      %v1492 = vmul.f32 %v1489, %v1490
      %v1493 = vsub.f32 %v1480, %v1491
      %v1494 = vsub.f32 %v1481, %v1492
      %v1495 = vmul.f32 %v1493, %v1493
      %v1496 = vmul.f32 %v1494, %v1494
      %v1497 = vsel %vm672, %v1495, 0.0
      %1498 = vadd.xlane.f32.xlu0 %v1497
      %v1499 = vpop.xlane.xlu0 %1498
      %v1500 = vsel %vm672, %v1496, 0.0
      %1501 = vadd.xlane.f32.xlu0 %v1500
      %v1502 = vpop.xlane.xlu0 %1501
      %v1503 = vmul.f32 %v1499, %v1490
      %v1504 = vmul.f32 %v1502, %v1490
      %v1505 = vadd.f32 %v1503, 1e-05
      %v1506 = vadd.f32 %v1504, 1e-05
      %v1507 = vrsqrt.pop %v1505
      %v1508 = vrsqrt.pop %v1506
      %v1509 = vmul.f32 %v1493, %v1507
      %v1510 = vmul.f32 %v1494, %v1508
      %v1512 = vlaneseq
      %v1513 = vshrl.u32 %v1512, 7
      %v1514 = vsub.s32 0, %v1513
      %v1515 = vrot.slane %v1482, %v1514
      %v1517 = vmul.f32 %v1509, %v1515
      %v1518 = vmul.f32 %v1510, %v1515
      %v1520 = vlaneseq
      %v1521 = vshrl.u32 %v1520, 7
      %v1522 = vsub.s32 0, %v1521
      %v1523 = vrot.slane %v1483, %v1522
      %v1525 = vadd.f32 %v1517, %v1523
      %v1526 = vadd.f32 %v1518, %v1523
      %v1527 = vpack.c.bf16 %v1526, %v1525
      %v1528 = vld [vmem:[%s12] sm:$0xf]
      %v1529 = vld [vmem:[%s12 + $0x4] sm:$0xf]
      %v1530 = vld [vmem:[%s12 + $0x8] sm:$0xf]
      %v1531 = vld [vmem:[%s12 + $0xc] sm:$0xf]
      %v1532 = vld [vmem:[%s13] sm:$0x1]
      %v1534 = vlaneseq
      %v1535 = vshrl.u32 %v1534, 7
      %v1536 = vsub.s32 0, %v1535
      %v1537 = vrot.slane %v1532, %v1536
      %v1543 = vunpack.c.l.b16 %v1528
      %v1544 = vunpack.c.l.b16 %v1529
      %v1545 = vunpack.c.l.b16 %v1530
      %v1546 = vunpack.c.l.b16 %v1531
      %v1547 = vpack.c.b16 %v1544, %v1543
      %v1548 = vpack.c.b16 %v1546, %v1545
      %v1552 = vsel %vm672, %v1527, 0
      %1554 = vmatprep.subr.bf16.mxu0 0
      %1555 = vmatpush1.bf16.msra.mxu0 0
      %1556 = vmatprep.subr.bf16.mxu0 0
      %1557 = vmatpush1.bf16.msra.mxu0 0
      %1558 = vmatprep.subr.bf16.mxu0 0
      %1559 = vmatpush1.bf16.msra.mxu0 0
      %1560 = vmatprep.subr.bf16.mxu0 0
      %1561 = vmatpush1.bf16.msra.mxu0 0
      %1562 = vmatprep.subr.bf16.mxu0 0
      %1563 = vmatpush1.bf16.msra.mxu0 0
      %1564 = vmatprep.subr.bf16.mxu0 0
      %1565 = vmatpush1.bf16.msra.mxu0 0
      %1566 = vmatprep.subr.bf16.mxu0 0
      %1567 = vmatpush1.bf16.msra.mxu0 %v1548
      %1568 = vmatprep.subr.bf16.mxu0 0
      %1569 = vmatpush1.bf16.msra.mxu0 %v1547
      %1570 = vmatprep.subr.bf16.mxu0 0
      %1571 = vmatpush2.bf16.msra.mxu0 0
      %1572 = vmatprep.subr.bf16.mxu0 0
      %1573 = vmatpush2.bf16.msra.mxu0 0
      %1574 = vmatprep.subr.bf16.mxu0 0
      %1575 = vmatpush2.bf16.msra.mxu0 0
      %1576 = vmatprep.subr.bf16.mxu0 0
      %1577 = vmatpush2.bf16.msra.mxu0 0
      %1578 = vmatprep.subr.bf16.mxu0 0
      %1579 = vmatpush2.bf16.msra.mxu0 0
      %1580 = vmatprep.subr.bf16.mxu0 0
      %1581 = vmatpush2.bf16.msra.mxu0 0
      %1582 = vmatprep.subr.bf16.mxu0 0
      %1583 = vmatpush2.bf16.msra.mxu0 0
      %1584 = vmatprep.subr.bf16.mxu0 0
      %1585 = vmatpush2.bf16.msra.mxu0 0
      %1586 = vmatprep.mubr.bf16.mxu0 0
      %1587 = vmatmul.mubr.bf16.gmra.mxu0 %v1552
      %v1588 = vpop.f32.mrf.mxu0
      %v1589 = vadd.f32 %v1537, %v1588
      %v1590 = vpop.f32.mrf.mxu0
      %v1591 = vpop.f32.mrf.mxu0
      %v1592 = vadd.f32 %v1537, %v1591
      %v1593 = vpop.f32.mrf.mxu0
      %1594 = vdwg.mxu0
      %v1595 = vmax.f32 %v1589, 0.0
      %v1596 = vmax.f32 %v1592, 0.0
      %v1597 = vpack.c.bf16 %v1596, %v1595
      %v1598 = vld [vmem:[%s14] sm:$0xf]
      %v1599 = vld [vmem:[%s14 + $0x4] sm:$0xf]
      %v1600 = vld [vmem:[%s14 + $0x8] sm:$0xf]
      %v1601 = vld [vmem:[%s14 + $0xc] sm:$0xf]
      %v1602 = vld [vmem:[%s14 + $0x10] sm:$0xf]
      %v1603 = vld [vmem:[%s14 + $0x14] sm:$0xf]
      %v1604 = vld [vmem:[%s14 + $0x18] sm:$0xf]
      %v1605 = vld [vmem:[%s14 + $0x1c] sm:$0xf]
      %v1606 = vld [vmem:[%s15] sm:$0x1]
      %v1608 = vlaneseq
      %v1609 = vshrl.u32 %v1608, 7
      %v1610 = vsub.s32 0, %v1609
      %v1611 = vrot.slane %v1606, %v1610
      %v1621 = vunpack.c.l.b16 %v1598
      %v1622 = vunpack.c.l.b16 %v1599
      %v1623 = vunpack.c.l.b16 %v1600
      %v1624 = vunpack.c.l.b16 %v1601
      %v1625 = vunpack.c.l.b16 %v1602
      %v1626 = vunpack.c.l.b16 %v1603
      %v1627 = vunpack.c.l.b16 %v1604
      %v1628 = vunpack.c.l.b16 %v1605
      %v1629 = vpack.c.b16 %v1622, %v1621
      %v1630 = vpack.c.b16 %v1624, %v1623
      %v1631 = vpack.c.b16 %v1626, %v1625
      %v1632 = vpack.c.b16 %v1628, %v1627
      %vm1637 = vcmask 523264
      %v1639 = vsel %vm1637, %v1597, 0
      %1641 = vmatprep.subr.bf16.mxu0 0
      %1642 = vmatpush1.bf16.msra.mxu0 0
      %1643 = vmatprep.subr.bf16.mxu0 0
      %1644 = vmatpush1.bf16.msra.mxu0 0
      %1645 = vmatprep.subr.bf16.mxu0 0
      %1646 = vmatpush1.bf16.msra.mxu0 0
      %1647 = vmatprep.subr.bf16.mxu0 0
      %1648 = vmatpush1.bf16.msra.mxu0 0
      %1649 = vmatprep.subr.bf16.mxu0 0
      %1650 = vmatpush1.bf16.msra.mxu0 %v1632
      %1651 = vmatprep.subr.bf16.mxu0 0
      %1652 = vmatpush1.bf16.msra.mxu0 %v1631
      %1653 = vmatprep.subr.bf16.mxu0 0
      %1654 = vmatpush1.bf16.msra.mxu0 %v1630
      %1655 = vmatprep.subr.bf16.mxu0 0
      %1656 = vmatpush1.bf16.msra.mxu0 %v1629
      %1657 = vmatprep.subr.bf16.mxu0 0
      %1658 = vmatpush2.bf16.msra.mxu0 0
      %1659 = vmatprep.subr.bf16.mxu0 0
      %1660 = vmatpush2.bf16.msra.mxu0 0
      %1661 = vmatprep.subr.bf16.mxu0 0
      %1662 = vmatpush2.bf16.msra.mxu0 0
      %1663 = vmatprep.subr.bf16.mxu0 0
      %1664 = vmatpush2.bf16.msra.mxu0 0
      %1665 = vmatprep.subr.bf16.mxu0 0
      %1666 = vmatpush2.bf16.msra.mxu0 0
      %1667 = vmatprep.subr.bf16.mxu0 0
      %1668 = vmatpush2.bf16.msra.mxu0 0
      %1669 = vmatprep.subr.bf16.mxu0 0
      %1670 = vmatpush2.bf16.msra.mxu0 0
      %1671 = vmatprep.subr.bf16.mxu0 0
      %1672 = vmatpush2.bf16.msra.mxu0 0
      %1673 = vmatprep.mubr.bf16.mxu0 0
      %1674 = vmatmul.mubr.bf16.gmra.mxu0 %v1639
      %v1675 = vpop.f32.mrf.mxu0
      %v1676 = vadd.f32 %v1611, %v1675
      %v1677 = vpop.f32.mrf.mxu0
      %v1678 = vpop.f32.mrf.mxu0
      %v1679 = vadd.f32 %v1611, %v1678
      %v1680 = vpop.f32.mrf.mxu0
      %1681 = vdwg.mxu0
      %v1682 = vadd.f32 %v1525, %v1676
      %v1683 = vadd.f32 %v1526, %v1679
      %v1684 = vld [vmem:[%s16] sm:$0x1]
      %v1685 = vld [vmem:[%s17] sm:$0x1]
      %v1686 = vsel %vm672, %v1682, 0.0
      %1687 = vadd.xlane.f32.xlu0 %v1686
      %v1688 = vpop.xlane.xlu0 %1687
      %v1689 = vsel %vm672, %v1683, 0.0
      %1690 = vadd.xlane.f32.xlu0 %v1689
      %v1691 = vpop.xlane.xlu0 %1690
      %v1692 = vmul.f32 %v1688, %v1490
      %v1693 = vmul.f32 %v1691, %v1490
      %v1694 = vsub.f32 %v1682, %v1692
      %v1695 = vsub.f32 %v1683, %v1693
      %v1696 = vmul.f32 %v1694, %v1694
      %v1697 = vmul.f32 %v1695, %v1695
      %v1698 = vsel %vm672, %v1696, 0.0
      %1699 = vadd.xlane.f32.xlu0 %v1698
      %v1700 = vpop.xlane.xlu0 %1699
      %v1701 = vsel %vm672, %v1697, 0.0
      %1702 = vadd.xlane.f32.xlu0 %v1701
      %v1703 = vpop.xlane.xlu0 %1702
      %v1704 = vmul.f32 %v1700, %v1490
      %v1705 = vmul.f32 %v1703, %v1490
      %v1706 = vadd.f32 %v1704, 1e-05
      %v1707 = vadd.f32 %v1705, 1e-05
      %v1708 = vrsqrt.pop %v1706
      %v1709 = vrsqrt.pop %v1707
      %v1710 = vmul.f32 %v1694, %v1708
      %v1711 = vmul.f32 %v1695, %v1709
      %v1713 = vlaneseq
      %v1714 = vshrl.u32 %v1713, 7
      %v1715 = vsub.s32 0, %v1714
      %v1716 = vrot.slane %v1684, %v1715
      %v1718 = vmul.f32 %v1710, %v1716
      %v1719 = vmul.f32 %v1711, %v1716
      %v1721 = vlaneseq
      %v1722 = vshrl.u32 %v1721, 7
      %v1723 = vsub.s32 0, %v1722
      %v1724 = vrot.slane %v1685, %v1723
      %v1726 = vadd.f32 %v1718, %v1724
      %v1727 = vadd.f32 %v1719, %v1724
      %v1728 = vpack.c.bf16 %v1727, %v1726
      %v1729 = vld [vmem:[%s18] sm:$0xf]
      %v1730 = vld [vmem:[%s18 + $0x4] sm:$0xf]
      %v1731 = vld [vmem:[%s18 + $0x8] sm:$0xf]
      %v1732 = vld [vmem:[%s18 + $0xc] sm:$0xf]
      %v1733 = vld [vmem:[%s19] sm:$0x1]
      %v1735 = vlaneseq
      %v1736 = vshrl.u32 %v1735, 7
      %v1737 = vsub.s32 0, %v1736
      %v1738 = vrot.slane %v1733, %v1737
      %v1744 = vunpack.c.l.b16 %v1729
      %v1745 = vunpack.c.l.b16 %v1730
      %v1746 = vunpack.c.l.b16 %v1731
      %v1747 = vunpack.c.l.b16 %v1732
      %v1748 = vpack.c.b16 %v1745, %v1744
      %v1749 = vpack.c.b16 %v1747, %v1746
      %v1753 = vsel %vm672, %v1728, 0
      %1755 = vmatprep.subr.bf16.mxu0 0
      %1756 = vmatpush1.bf16.msra.mxu0 0
      %1757 = vmatprep.subr.bf16.mxu0 0
      %1758 = vmatpush1.bf16.msra.mxu0 0
      %1759 = vmatprep.subr.bf16.mxu0 0
      %1760 = vmatpush1.bf16.msra.mxu0 0
      %1761 = vmatprep.subr.bf16.mxu0 0
      %1762 = vmatpush1.bf16.msra.mxu0 0
      %1763 = vmatprep.subr.bf16.mxu0 0
      %1764 = vmatpush1.bf16.msra.mxu0 0
      %1765 = vmatprep.subr.bf16.mxu0 0
      %1766 = vmatpush1.bf16.msra.mxu0 0
      %1767 = vmatprep.subr.bf16.mxu0 0
      %1768 = vmatpush1.bf16.msra.mxu0 %v1749
      %1769 = vmatprep.subr.bf16.mxu0 0
      %1770 = vmatpush1.bf16.msra.mxu0 %v1748
      %1771 = vmatprep.subr.bf16.mxu0 0
      %1772 = vmatpush2.bf16.msra.mxu0 0
      %1773 = vmatprep.subr.bf16.mxu0 0
      %1774 = vmatpush2.bf16.msra.mxu0 0
      %1775 = vmatprep.subr.bf16.mxu0 0
      %1776 = vmatpush2.bf16.msra.mxu0 0
      %1777 = vmatprep.subr.bf16.mxu0 0
      %1778 = vmatpush2.bf16.msra.mxu0 0
      %1779 = vmatprep.subr.bf16.mxu0 0
      %1780 = vmatpush2.bf16.msra.mxu0 0
      %1781 = vmatprep.subr.bf16.mxu0 0
      %1782 = vmatpush2.bf16.msra.mxu0 0
      %1783 = vmatprep.subr.bf16.mxu0 0
      %1784 = vmatpush2.bf16.msra.mxu0 0
      %1785 = vmatprep.subr.bf16.mxu0 0
      %1786 = vmatpush2.bf16.msra.mxu0 0
      %1787 = vmatprep.mubr.bf16.mxu0 0
      %1788 = vmatmul.mubr.bf16.gmra.mxu0 %v1753
      %v1789 = vpop.f32.mrf.mxu0
      %v1790 = vadd.f32 %v1738, %v1789
      %v1791 = vpop.f32.mrf.mxu0
      %v1792 = vpop.f32.mrf.mxu0
      %v1793 = vadd.f32 %v1738, %v1792
      %v1794 = vpop.f32.mrf.mxu0
      %1795 = vdwg.mxu0
      %vm1796 = vcmask 162816
      %1797 = vst.msk [vmem:[%s643] sm:$0xff] %vm1796, %v1790
      %1798 = vst.msk [vmem:[%s643 + $0x8] sm:$0xff] %vm1796, %v1793
      %p1799 = scmp.lt.s32.totalorder %s31, 1
      %s1800 = scalar_select %p1799, %s31, 1
      %s1801 = smul.addr %s1800, 2
      %s1802 = smul.addr %s1801, 8
      %s1803 = scalar_lea.vmem %s20, %s1802
      // Predicated region
      $region101: #{fwd.8} parent=99 // pred_check
        %p1804 = pneg %p479
      $region102: #{fwd.8} parent=99 // pred_check_branch
        %1806 = sbr.rel (%p1804) target = $region104
      $region103: #{fwd.8} parent=99 // pred_region
        _
      $region104: #{fwd.8} parent=99 // pred_fallthru
        _
    $region100: #{fwd.8} parent=5 // pred_fallthru
      _
    %p1807 = scmp.le.s32.totalorder 2, %s26
    // Predicated region
    $region105: #{fwd.8} parent=5 // pred_check
      %p1808 = pneg %p1807
    $region106: #{fwd.8} parent=5 // pred_check_branch
      %1810 = sbr.rel (%p1808) target = $region108
    $region107: #{fwd.8} parent=5 // pred_region
      %s1811 = ssub.s32 %s26, 2
      // Predicated region
      $region109: #{fwd.8} parent=107 // pred_check
        %p1812 = pneg %p485
      $region110: #{fwd.8} parent=107 // pred_check_branch
        %1814 = sbr.rel (%p1812) target = $region112
      $region111: #{fwd.8} parent=107 // pred_region
        %p1815 = scmp.lt.s32.totalorder %s32, 1
        %s1816 = scalar_select %p1815, %s32, 1
        %s1817 = smul.addr %s1816, 2
        %s1818 = smul.addr %s1817, 8
        %s1819 = scalar_lea.vmem %s20, %s1818
      $region112: #{fwd.8} parent=107 // pred_fallthru
        _
    $region108: #{fwd.8} parent=5 // pred_fallthru
      _
  $region6: #{fwd.8} parent=0 // loop_footer
    %s30 = sadd.s32 1, %s26
  $region7: #{fwd.8} parent=0 // loop_footer_branch
    %25 = sbr.rel target = $region3
  $region8: #{fwd.8} parent=0 // loop_exit
    _

</llo_original>
